<compile_context>
chip_gen: v7x
topology: tpu7x:2x2x1
jax: 0.10.0
libtpu: 0.0.40
codegen_flags: <defaults>
</compile_context>

<pallas_src>
import functools

import jax
import jax.numpy as jnp
from jax.experimental import pallas as pl
from jax.experimental.pallas import tpu as pltpu


def _round_up(x, m):
    return (x + m - 1) // m * m


def _vmem_capacity():
    try:
        return int(pltpu.get_tpu_info().vmem_capacity_bytes)
    except Exception:
        return 64 * 1024 * 1024          # conservative (v7x per-TC VMEM)


def _vmem_estimate(th, size, w, cin_p, cp, cout, in_bytes, out_bytes):
    """Rough per-step VMEM footprint for band height `th`."""
    r = th + 2 * size
    h0 = r - 2 if size > 1 else th
    xb_blk = 2 * r * (w + 2) * cin_p * in_bytes        # double-buffered input block
    w0 = 2 * 9 * cin_p * cp * in_bytes                 # weights (double-buffered)
    wr = 2 * (size - 1) * 9 * cp * cp * in_bytes
    bias = 2 * size * cp * 4
    out_blk = 2 * th * w * cout * out_bytes            # double-buffered output block
    buf = (h0 * (w + 16) * cp * in_bytes) if size >= 2 else 0
    tmp = h0 * w * (3 * cp * 4 + max(cin_p, cp) * in_bytes)  # acc + dot temporaries
    return xb_blk + w0 + wr + bias + out_blk + buf + tmp


def _pick_band(h, size, est_fn, budget, cap):
    """Largest band height fitting the VMEM budget; prefer divisors of h."""
    cap = max(1, min(h, cap))
    lo = max(1, min(h, size))
    best_any = None
    for th in range(cap, lo - 1, -1):
        if est_fn(th) <= budget:
            best_any = th
            break
    if best_any is None:
        best_any = lo
    best_div = None
    for th in range(best_any, lo - 1, -1):
        if h % th == 0 and est_fn(th) <= budget:
            best_div = th
            break
    if best_div is not None and (best_div * 2 >= best_any or best_div == h):
        return best_div
    return best_any                                   # ragged (ceil-div) bands


def _conv_block_kernel(*refs, size, TH, W, H, Cp, Cout, num_bands, ragged):
    # refs (size >= 2): x_ref, w0_ref, wr_ref, b_ref, o_ref, buf
    # refs (size == 1): x_ref, w0_ref, b_ref, o_ref
    # x_ref : (R, W+2, Cin_p)  pipelined input band (row halo + W zero columns)
    # w0_ref: (9, Cin_p, Cp)   layer-0 tap weights (K = Cin_p only)
    # wr_ref: ((size-1)*9, Cp, Cp) remaining layers' tap weights
    # b_ref : (size, Cp)       per-layer bias (f32)
    # o_ref : (TH, W, Cout)    output band (only Cout channels hit HBM)
    # buf   : (TH+2*(size-1), W+16, Cp) activation pyramid (VMEM scratch)
    if size >= 2:
        x_ref, w0_ref, wr_ref, b_ref, o_ref, buf = refs
    else:
        x_ref, w0_ref, b_ref, o_ref = refs
        wr_ref, buf = None, None

    band = pl.program_id(1)
    LP = 8                                   # sublane-aligned left halo in buf
    h0 = TH + 2 * (size - 1)                 # layer-0 output rows

    if size >= 2:
        # (Re)zero the W-halo column stripes of the activation pyramid; the
        # image region [LP, LP+W) never touches them.
        zs = jnp.zeros((h0, LP, Cp), dtype=buf.dtype)
        buf[:, 0:LP, :] = zs
        buf[:, LP + W:LP + W + LP, :] = zs

    def conv_layer(l, h, read_window, w_tap, k_dim):
        """One 3x3 conv: 9 per-tap MXU matmuls accumulated in f32 (no slab)."""
        acc = None
        for ky in range(3):
            for kx in range(3):
                win = read_window(ky, kx, h).reshape(h * W, k_dim)
                d = jnp.dot(win, w_tap(ky * 3 + kx),
                            preferred_element_type=jnp.float32)
                acc = d if acc is None else acc + d
        return jnp.maximum(acc + b_ref[l:l + 1, :], 0.0)     # bias + ReLU (f32)

    def store_intermediate(l, h, acc):
        """Write layer-l activations into the pyramid; zero out-of-image rows."""
        pad = size - 1 - l                   # overhang rows per side
        act = acc.reshape(h, W, Cp)
        if ragged:
            # Ceil-div bands: rows past the real image bottom must be zero
            # before serving as the next layer's zero padding.
            j = jax.lax.broadcasted_iota(jnp.int32, (h, 1, 1), 0)
            act = jnp.where(j < H + pad - band * TH, act, 0.0)
        buf[l:l + h, LP:LP + W, :] = act.astype(buf.dtype)
        if pad > 0:
            zr = jnp.zeros((pad, W, Cp), dtype=buf.dtype)

            @pl.when(band == 0)
            def _():                         # rows above the image top
                buf[l:l + pad, LP:LP + W, :] = zr

            if not ragged:
                @pl.when(band == num_bands - 1)
                def _():                     # rows below the image bottom
                    buf[l + h - pad:l + h, LP:LP + W, :] = zr

    # ---- layer 0: windows read directly from the pipelined input block ----
    Cin_p = w0_ref.shape[1]
    acc = conv_layer(
        0, h0,
        lambda ky, kx, h: x_ref[ky:ky + h, kx:kx + W, :],
        lambda t: w0_ref[t], Cin_p)

    if size == 1:
        out = acc if Cout == Cp else acc[:, :Cout]
        o_ref[...] = out.reshape(TH, W, Cout).astype(o_ref.dtype)
        return
    store_intermediate(0, h0, acc)

    # ---- layers 1..size-1: VMEM pyramid, valid rows shrink by 1/side ----
    for l in range(1, size):
        h = TH + 2 * (size - 1 - l)
        acc = conv_layer(
            l, h,
            lambda ky, kx, hh, _l=l: buf[_l - 1 + ky:_l - 1 + ky + hh,
                                         LP - 1 + kx:LP - 1 + kx + W, :],
            lambda t, _l=l: wr_ref[(_l - 1) * 9 + t], Cp)
        if l == size - 1:
            out = acc if Cout == Cp else acc[:, :Cout]
            o_ref[...] = out.reshape(TH, W, Cout).astype(o_ref.dtype)
        else:
            store_intermediate(l, h, acc)


def conv_block_forward_nhwc(x, params, *, compute_dtype=jnp.float32,
                            band_target=64, vmem_budget=None):
    """Fused ConvBlock forward in NHWC. params: list of (w_hwio, b)."""
    size = len(params)
    assert size >= 1
    N, H, W, Cin = x.shape
    for (w, _) in params:
        assert w.shape[:2] == (3, 3)
    Cout = params[-1][0].shape[-1]
    Cp = _round_up(max(p[0].shape[-1] for p in params), 128)   # lane-dense
    Cin_p = _round_up(Cin, 8)                                  # sublane multiple

    in_bytes = jnp.dtype(compute_dtype).itemsize
    out_bytes = jnp.dtype(x.dtype).itemsize
    vmem_cap = _vmem_capacity()
    if vmem_budget is None:
        vmem_budget = int(vmem_cap * 0.5)

    def est(th):
        return _vmem_estimate(th, size, W, Cin_p, Cp, Cout, in_bytes, out_bytes)

    TH = _pick_band(H, size, est, vmem_budget, band_target)
    num_bands = -(-H // TH)
    if num_bands > 1 and TH < size:      # stripe bookkeeping needs TH >= size
        TH, num_bands = H, 1
    H_pad = num_bands * TH
    ragged = (H_pad != H)
    R = TH + 2 * size

    cdt = compute_dtype
    # Banded input: row halo of `size` zero rows + 1-column W zero pad +
    # channels padded only to a sublane multiple of 8 (not 128).
    xp = jnp.pad(x.astype(cdt),
                 ((0, 0), (size, size + H_pad - H), (1, 1), (0, Cin_p - Cin)))
    xb = jnp.stack([xp[:, bd * TH: bd * TH + R] for bd in range(num_bands)],
                   axis=1).reshape(N * num_bands, R, W + 2, Cin_p)

    # Tap-major weights. Layer 0 keeps K = Cin_p; later layers are (Cp, Cp).
    w0, b0 = params[0]
    co0 = w0.shape[-1]
    w0p = jnp.zeros((3, 3, Cin_p, Cp), jnp.float32)
    w0p = w0p.at[:, :, :Cin, :co0].set(w0.astype(jnp.float32))
    w0p = w0p.reshape(9, Cin_p, Cp).astype(cdt)

    b_all = jnp.zeros((size, Cp), jnp.float32)
    b_all = b_all.at[0, :co0].set(b0.reshape(-1).astype(jnp.float32))

    w_rest = None
    if size >= 2:
        ws = []
        for l, (w, b) in enumerate(params[1:], start=1):
            ci, co = w.shape[2], w.shape[3]
            wp = jnp.zeros((3, 3, Cp, Cp), jnp.float32)
            wp = wp.at[:, :, :ci, :co].set(w.astype(jnp.float32))
            ws.append(wp.reshape(9, Cp, Cp))
            b_all = b_all.at[l, :co].set(b.reshape(-1).astype(jnp.float32))
        w_rest = jnp.concatenate(ws, axis=0).astype(cdt)   # ((size-1)*9, Cp, Cp)

    kernel = functools.partial(_conv_block_kernel, size=size, TH=TH, W=W, H=H,
                               Cp=Cp, Cout=Cout, num_bands=num_bands,
                               ragged=ragged)

    in_specs = [
        pl.BlockSpec((None, R, W + 2, Cin_p),
                     lambda n, bd: (n * num_bands + bd, 0, 0, 0)),
        pl.BlockSpec((9, Cin_p, Cp), lambda n, bd: (0, 0, 0)),      # resident
    ]
    args = [xb, w0p]
    if size >= 2:
        in_specs.append(pl.BlockSpec(((size - 1) * 9, Cp, Cp),
                                     lambda n, bd: (0, 0, 0)))      # resident
        args.append(w_rest)
    in_specs.append(pl.BlockSpec((size, Cp), lambda n, bd: (0, 0)))  # resident
    args.append(b_all)

    scratch = []
    if size >= 2:
        scratch.append(pltpu.VMEM((TH + 2 * (size - 1), W + 16, Cp), cdt))

    vlim = int(min(vmem_cap, max(32 * 1024 * 1024, est(TH) * 2 + (8 << 20))))

    out = pl.pallas_call(
        kernel,
        out_shape=jax.ShapeDtypeStruct((N, H_pad, W, Cout), x.dtype),
        grid=(N, num_bands),
        in_specs=in_specs,
        out_specs=pl.BlockSpec((None, TH, W, Cout), lambda n, bd: (n, bd, 0, 0)),
        scratch_shapes=scratch,
        compiler_params=pltpu.CompilerParams(
            dimension_semantics=("parallel", "parallel"),
            vmem_limit_bytes=vlim),
    )(*args)

    if ragged:
        out = out[:, :H]
    return out


def conv_block_forward(x_nchw, params, **kwargs):
    """ConvBlock.forward: NCHW in, NCHW out (PyTorch semantics)."""
    x = jnp.transpose(x_nchw, (0, 2, 3, 1))            # NCHW -> NHWC
    y = conv_block_forward_nhwc(x, params, **kwargs)
    return jnp.transpose(y, (0, 3, 1, 2))              # NHWC -> NCHW


def init_conv_block_params(key, size, in_features, out_features):
    """Deterministic init matching PyTorch Conv2d default bounds."""
    params = []
    cin = in_features
    for _ in range(size):
        key, kw, kb = jax.random.split(key, 3)
        fan_in = cin * 9
        bound = 1.0 / (fan_in ** 0.5)
        w = jax.random.uniform(kw, (3, 3, cin, out_features), jnp.float32,
                               minval=-bound, maxval=bound)
        b = jax.random.uniform(kb, (out_features,), jnp.float32,
                               minval=-bound, maxval=bound)
        params.append((w, b))
        cin = out_features
    return params


def _reference_forward(x_nchw, params):
    """Pure-JAX reference (lax conv) for correctness checking."""
    x = x_nchw
    for w, b in params:
        y = jax.lax.conv_general_dilated(
            x, w, window_strides=(1, 1), padding=((1, 1), (1, 1)),
            dimension_numbers=("NCHW", "HWIO", "NCHW"))
        x = jnp.maximum(y + b[None, :, None, None], 0.0)
    return x


if __name__ == "__main__":
    key = jax.random.PRNGKey(0)

    # --- Main check: ConvBlock(size=2, 4 -> 8) on (2, 4, 16, 16), f32. ---
    size, in_features, out_features = 2, 4, 8
    key, kx, kp = jax.random.split(key, 3)
    x = jax.random.normal(kx, (2, in_features, 16, 16), jnp.float32)
    params = init_conv_block_params(kp, size, in_features, out_features)

    out = jax.block_until_ready(conv_block_forward(x, params))
    ref = _reference_forward(x, params)
    assert out.shape == (2, out_features, 16, 16)
    err = float(jnp.max(jnp.abs(out - ref)))
    assert jnp.allclose(out, ref, atol=1e-3, rtol=1e-3), err

    # --- Multi-band (divisible H) path: size=3, several H-bands. ---
    key, kx2, kp2 = jax.random.split(key, 3)
    x2 = jax.random.normal(kx2, (1, 4, 20, 20), jnp.float32)
    p2 = init_conv_block_params(kp2, 3, 4, 8)
    out2 = jax.block_until_ready(conv_block_forward(x2, p2, band_target=8))
    ref2 = _reference_forward(x2, p2)
    err2 = float(jnp.max(jnp.abs(out2 - ref2)))
    assert jnp.allclose(out2, ref2, atol=1e-3, rtol=1e-3), err2

    # --- Ragged H (no divisor <= band target): masked-tail path. ---
    key, kx3, kp3 = jax.random.split(key, 3)
    x3 = jax.random.normal(kx3, (1, 3, 19, 16), jnp.float32)
    p3 = init_conv_block_params(kp3, 2, 3, 8)
    out3 = jax.block_until_ready(conv_block_forward(x3, p3, band_target=8))
    ref3 = _reference_forward(x3, p3)
    err3 = float(jnp.max(jnp.abs(out3 - ref3)))
    assert jnp.allclose(out3, ref3, atol=1e-3, rtol=1e-3), err3

    # --- bf16 operand/activation storage (v6e/v7x fast path), f32 accumulate. ---
    out_bf = jax.block_until_ready(
        conv_block_forward(x, params, compute_dtype=jnp.bfloat16))
    err_bf = float(jnp.max(jnp.abs(out_bf - ref)))
    assert jnp.allclose(out_bf, ref, atol=5e-2, rtol=5e-2), err_bf

    print("KERNEL_OK")
</pallas_src>

<mosaic_0001>
module attributes {stable_mosaic.version = 11 : i64} {
  func.func @_conv_block_kernel(%arg0: i32, %arg1: i32, %arg2: memref<1x20x18x8xf32, #tpu.memory_space<vmem>>, %arg3: memref<9x8x128xf32, #tpu.memory_space<vmem>>, %arg4: memref<9x128x128xf32, #tpu.memory_space<vmem>>, %arg5: memref<2x128xf32, #tpu.memory_space<vmem>>, %arg6: memref<1x16x16x8xf32, #tpu.memory_space<vmem>>, %arg7: memref<18x32x128xf32, #tpu.memory_space<vmem>>) attributes {dimension_semantics = [#tpu.dimension_semantics<parallel>, #tpu.dimension_semantics<parallel>], iteration_bounds = array<i64: 2, 1>, scalar_prefetch = 0 : i64, scratch_operands = 1 : i64, tpu.core_type = #tpu.core_type<tc>, window_params = [{transform_indices = @transform_0, window_bounds = array<i64: 1, 20, 18, 8>}, {pipeline_mode = #tpu.pipeline_mode<synchronous>, transform_indices = @transform_1, window_bounds = array<i64: 9, 8, 128>}, {pipeline_mode = #tpu.pipeline_mode<synchronous>, transform_indices = @transform_2, window_bounds = array<i64: 9, 128, 128>}, {pipeline_mode = #tpu.pipeline_mode<synchronous>, transform_indices = @transform_3, window_bounds = array<i64: 2, 128>}, {transform_indices = @transform_4, window_bounds = array<i64: 1, 16, 16, 8>}]} {
    %cst = arith.constant 0.000000e+00 : f32
    %0 = vector.broadcast %cst : f32 to vector<18x8x128xf32>
    %c0 = arith.constant 0 : index
    %c0_0 = arith.constant 0 : index
    %c0_1 = arith.constant 0 : index
    %1 = vector.load %arg7[%c0, %c0_0, %c0_1] : memref<18x32x128xf32, #tpu.memory_space<vmem>>, vector<18x8x128xf32>
    tpu.vector_store %arg7[%c0, %c0_0, %c0_1], %0 {strides = array<i32>} : memref<18x32x128xf32, #tpu.memory_space<vmem>>, vector<18x8x128xf32>,
    %c0_2 = arith.constant 0 : index
    %c24 = arith.constant 24 : index
    %c0_3 = arith.constant 0 : index
    %2 = vector.load %arg7[%c0_2, %c24, %c0_3] : memref<18x32x128xf32, #tpu.memory_space<vmem>>, vector<18x8x128xf32>
    tpu.vector_store %arg7[%c0_2, %c24, %c0_3], %0 {strides = array<i32>} : memref<18x32x128xf32, #tpu.memory_space<vmem>>, vector<18x8x128xf32>,
    %c0_4 = arith.constant 0 : index
    %c0_5 = arith.constant 0 : index
    %c0_6 = arith.constant 0 : index
    %c0_7 = arith.constant 0 : index
    %3 = vector.load %arg2[%c0_4, %c0_5, %c0_6, %c0_7] : memref<1x20x18x8xf32, #tpu.memory_space<vmem>>, vector<1x18x16x8xf32>
    %4 = vector.shape_cast %3 : vector<1x18x16x8xf32> to vector<18x16x8xf32>
    %5 = vector.shape_cast %4 : vector<18x16x8xf32> to vector<288x8xf32>
    %c0_8 = arith.constant 0 : index
    %c0_9 = arith.constant 0 : index
    %c0_10 = arith.constant 0 : index
    %6 = vector.load %arg3[%c0_8, %c0_9, %c0_10] : memref<9x8x128xf32, #tpu.memory_space<vmem>>, vector<1x8x128xf32>
    %7 = vector.shape_cast %6 : vector<1x8x128xf32> to vector<8x128xf32>
    %cst_11 = arith.constant dense<0.000000e+00> : vector<288x128xf32>
    %8 = tpu.matmul %5, %7, %cst_11 {dimension_numbers = #tpu.dot_dimension_numbers<[1], [0], [0], [1], [0, 0, 1, 1], [], []>} : vector<288x8xf32>, vector<8x128xf32>, vector<288x128xf32> -> vector<288x128xf32>
    %c0_12 = arith.constant 0 : index
    %c0_13 = arith.constant 0 : index
    %c1 = arith.constant 1 : index
    %c0_14 = arith.constant 0 : index
    %9 = vector.load %arg2[%c0_12, %c0_13, %c1, %c0_14] : memref<1x20x18x8xf32, #tpu.memory_space<vmem>>, vector<1x18x16x8xf32>
    %10 = vector.shape_cast %9 : vector<1x18x16x8xf32> to vector<18x16x8xf32>
    %11 = vector.shape_cast %10 : vector<18x16x8xf32> to vector<288x8xf32>
    %c1_15 = arith.constant 1 : index
    %c0_16 = arith.constant 0 : index
    %c0_17 = arith.constant 0 : index
    %12 = vector.load %arg3[%c1_15, %c0_16, %c0_17] : memref<9x8x128xf32, #tpu.memory_space<vmem>>, vector<1x8x128xf32>
    %13 = vector.shape_cast %12 : vector<1x8x128xf32> to vector<8x128xf32>
    %cst_18 = arith.constant dense<0.000000e+00> : vector<288x128xf32>
    %14 = tpu.matmul %11, %13, %cst_18 {dimension_numbers = #tpu.dot_dimension_numbers<[1], [0], [0], [1], [0, 0, 1, 1], [], []>} : vector<288x8xf32>, vector<8x128xf32>, vector<288x128xf32> -> vector<288x128xf32>
    %15 = arith.addf %8, %14 : vector<288x128xf32>
    %c0_19 = arith.constant 0 : index
    %c0_20 = arith.constant 0 : index
    %c2 = arith.constant 2 : index
    %c0_21 = arith.constant 0 : index
    %16 = vector.load %arg2[%c0_19, %c0_20, %c2, %c0_21] : memref<1x20x18x8xf32, #tpu.memory_space<vmem>>, vector<1x18x16x8xf32>
    %17 = vector.shape_cast %16 : vector<1x18x16x8xf32> to vector<18x16x8xf32>
    %18 = vector.shape_cast %17 : vector<18x16x8xf32> to vector<288x8xf32>
    %c2_22 = arith.constant 2 : index
    %c0_23 = arith.constant 0 : index
    %c0_24 = arith.constant 0 : index
    %19 = vector.load %arg3[%c2_22, %c0_23, %c0_24] : memref<9x8x128xf32, #tpu.memory_space<vmem>>, vector<1x8x128xf32>
    %20 = vector.shape_cast %19 : vector<1x8x128xf32> to vector<8x128xf32>
    %cst_25 = arith.constant dense<0.000000e+00> : vector<288x128xf32>
    %21 = tpu.matmul %18, %20, %cst_25 {dimension_numbers = #tpu.dot_dimension_numbers<[1], [0], [0], [1], [0, 0, 1, 1], [], []>} : vector<288x8xf32>, vector<8x128xf32>, vector<288x128xf32> -> vector<288x128xf32>
    %22 = arith.addf %15, %21 : vector<288x128xf32>
    %c0_26 = arith.constant 0 : index
    %c1_27 = arith.constant 1 : index
    %c0_28 = arith.constant 0 : index
    %c0_29 = arith.constant 0 : index
    %23 = vector.load %arg2[%c0_26, %c1_27, %c0_28, %c0_29] : memref<1x20x18x8xf32, #tpu.memory_space<vmem>>, vector<1x18x16x8xf32>
    %24 = vector.shape_cast %23 : vector<1x18x16x8xf32> to vector<18x16x8xf32>
    %25 = vector.shape_cast %24 : vector<18x16x8xf32> to vector<288x8xf32>
    %c3 = arith.constant 3 : index
    %c0_30 = arith.constant 0 : index
    %c0_31 = arith.constant 0 : index
    %26 = vector.load %arg3[%c3, %c0_30, %c0_31] : memref<9x8x128xf32, #tpu.memory_space<vmem>>, vector<1x8x128xf32>
    %27 = vector.shape_cast %26 : vector<1x8x128xf32> to vector<8x128xf32>
    %cst_32 = arith.constant dense<0.000000e+00> : vector<288x128xf32>
    %28 = tpu.matmul %25, %27, %cst_32 {dimension_numbers = #tpu.dot_dimension_numbers<[1], [0], [0], [1], [0, 0, 1, 1], [], []>} : vector<288x8xf32>, vector<8x128xf32>, vector<288x128xf32> -> vector<288x128xf32>
    %29 = arith.addf %22, %28 : vector<288x128xf32>
    %c0_33 = arith.constant 0 : index
    %c1_34 = arith.constant 1 : index
    %c1_35 = arith.constant 1 : index
    %c0_36 = arith.constant 0 : index
    %30 = vector.load %arg2[%c0_33, %c1_34, %c1_35, %c0_36] : memref<1x20x18x8xf32, #tpu.memory_space<vmem>>, vector<1x18x16x8xf32>
    %31 = vector.shape_cast %30 : vector<1x18x16x8xf32> to vector<18x16x8xf32>
    %32 = vector.shape_cast %31 : vector<18x16x8xf32> to vector<288x8xf32>
    %c4 = arith.constant 4 : index
    %c0_37 = arith.constant 0 : index
    %c0_38 = arith.constant 0 : index
    %33 = vector.load %arg3[%c4, %c0_37, %c0_38] : memref<9x8x128xf32, #tpu.memory_space<vmem>>, vector<1x8x128xf32>
    %34 = vector.shape_cast %33 : vector<1x8x128xf32> to vector<8x128xf32>
    %cst_39 = arith.constant dense<0.000000e+00> : vector<288x128xf32>
    %35 = tpu.matmul %32, %34, %cst_39 {dimension_numbers = #tpu.dot_dimension_numbers<[1], [0], [0], [1], [0, 0, 1, 1], [], []>} : vector<288x8xf32>, vector<8x128xf32>, vector<288x128xf32> -> vector<288x128xf32>
    %36 = arith.addf %29, %35 : vector<288x128xf32>
    %c0_40 = arith.constant 0 : index
    %c1_41 = arith.constant 1 : index
    %c2_42 = arith.constant 2 : index
    %c0_43 = arith.constant 0 : index
    %37 = vector.load %arg2[%c0_40, %c1_41, %c2_42, %c0_43] : memref<1x20x18x8xf32, #tpu.memory_space<vmem>>, vector<1x18x16x8xf32>
    %38 = vector.shape_cast %37 : vector<1x18x16x8xf32> to vector<18x16x8xf32>
    %39 = vector.shape_cast %38 : vector<18x16x8xf32> to vector<288x8xf32>
    %c5 = arith.constant 5 : index
    %c0_44 = arith.constant 0 : index
    %c0_45 = arith.constant 0 : index
    %40 = vector.load %arg3[%c5, %c0_44, %c0_45] : memref<9x8x128xf32, #tpu.memory_space<vmem>>, vector<1x8x128xf32>
    %41 = vector.shape_cast %40 : vector<1x8x128xf32> to vector<8x128xf32>
    %cst_46 = arith.constant dense<0.000000e+00> : vector<288x128xf32>
    %42 = tpu.matmul %39, %41, %cst_46 {dimension_numbers = #tpu.dot_dimension_numbers<[1], [0], [0], [1], [0, 0, 1, 1], [], []>} : vector<288x8xf32>, vector<8x128xf32>, vector<288x128xf32> -> vector<288x128xf32>
    %43 = arith.addf %36, %42 : vector<288x128xf32>
    %c0_47 = arith.constant 0 : index
    %c2_48 = arith.constant 2 : index
    %c0_49 = arith.constant 0 : index
    %c0_50 = arith.constant 0 : index
    %44 = vector.load %arg2[%c0_47, %c2_48, %c0_49, %c0_50] : memref<1x20x18x8xf32, #tpu.memory_space<vmem>>, vector<1x18x16x8xf32>
    %45 = vector.shape_cast %44 : vector<1x18x16x8xf32> to vector<18x16x8xf32>
    %46 = vector.shape_cast %45 : vector<18x16x8xf32> to vector<288x8xf32>
    %c6 = arith.constant 6 : index
    %c0_51 = arith.constant 0 : index
    %c0_52 = arith.constant 0 : index
    %47 = vector.load %arg3[%c6, %c0_51, %c0_52] : memref<9x8x128xf32, #tpu.memory_space<vmem>>, vector<1x8x128xf32>
    %48 = vector.shape_cast %47 : vector<1x8x128xf32> to vector<8x128xf32>
    %cst_53 = arith.constant dense<0.000000e+00> : vector<288x128xf32>
    %49 = tpu.matmul %46, %48, %cst_53 {dimension_numbers = #tpu.dot_dimension_numbers<[1], [0], [0], [1], [0, 0, 1, 1], [], []>} : vector<288x8xf32>, vector<8x128xf32>, vector<288x128xf32> -> vector<288x128xf32>
    %50 = arith.addf %43, %49 : vector<288x128xf32>
    %c0_54 = arith.constant 0 : index
    %c2_55 = arith.constant 2 : index
    %c1_56 = arith.constant 1 : index
    %c0_57 = arith.constant 0 : index
    %51 = vector.load %arg2[%c0_54, %c2_55, %c1_56, %c0_57] : memref<1x20x18x8xf32, #tpu.memory_space<vmem>>, vector<1x18x16x8xf32>
    %52 = vector.shape_cast %51 : vector<1x18x16x8xf32> to vector<18x16x8xf32>
    %53 = vector.shape_cast %52 : vector<18x16x8xf32> to vector<288x8xf32>
    %c7 = arith.constant 7 : index
    %c0_58 = arith.constant 0 : index
    %c0_59 = arith.constant 0 : index
    %54 = vector.load %arg3[%c7, %c0_58, %c0_59] : memref<9x8x128xf32, #tpu.memory_space<vmem>>, vector<1x8x128xf32>
    %55 = vector.shape_cast %54 : vector<1x8x128xf32> to vector<8x128xf32>
    %cst_60 = arith.constant dense<0.000000e+00> : vector<288x128xf32>
    %56 = tpu.matmul %53, %55, %cst_60 {dimension_numbers = #tpu.dot_dimension_numbers<[1], [0], [0], [1], [0, 0, 1, 1], [], []>} : vector<288x8xf32>, vector<8x128xf32>, vector<288x128xf32> -> vector<288x128xf32>
    %57 = arith.addf %50, %56 : vector<288x128xf32>
    %c0_61 = arith.constant 0 : index
    %c2_62 = arith.constant 2 : index
    %c2_63 = arith.constant 2 : index
    %c0_64 = arith.constant 0 : index
    %58 = vector.load %arg2[%c0_61, %c2_62, %c2_63, %c0_64] : memref<1x20x18x8xf32, #tpu.memory_space<vmem>>, vector<1x18x16x8xf32>
    %59 = vector.shape_cast %58 : vector<1x18x16x8xf32> to vector<18x16x8xf32>
    %60 = vector.shape_cast %59 : vector<18x16x8xf32> to vector<288x8xf32>
    %c8 = arith.constant 8 : index
    %c0_65 = arith.constant 0 : index
    %c0_66 = arith.constant 0 : index
    %61 = vector.load %arg3[%c8, %c0_65, %c0_66] : memref<9x8x128xf32, #tpu.memory_space<vmem>>, vector<1x8x128xf32>
    %62 = vector.shape_cast %61 : vector<1x8x128xf32> to vector<8x128xf32>
    %cst_67 = arith.constant dense<0.000000e+00> : vector<288x128xf32>
    %63 = tpu.matmul %60, %62, %cst_67 {dimension_numbers = #tpu.dot_dimension_numbers<[1], [0], [0], [1], [0, 0, 1, 1], [], []>} : vector<288x8xf32>, vector<8x128xf32>, vector<288x128xf32> -> vector<288x128xf32>
    %64 = arith.addf %57, %63 : vector<288x128xf32>
    %c0_68 = arith.constant 0 : index
    %c0_69 = arith.constant 0 : index
    %65 = vector.load %arg5[%c0_68, %c0_69] : memref<2x128xf32, #tpu.memory_space<vmem>>, vector<1x128xf32>
    %66 = vector.broadcast %65 : vector<1x128xf32> to vector<288x128xf32>
    %67 = arith.addf %64, %66 : vector<288x128xf32>
    %cst_70 = arith.constant 0.000000e+00 : f32
    %68 = vector.broadcast %cst_70 : f32 to vector<288x128xf32>
    %69 = arith.maximumf %67, %68 : vector<288x128xf32>
    %70 = vector.shape_cast %69 : vector<288x128xf32> to vector<18x16x128xf32>
    %c0_71 = arith.constant 0 : index
    %c8_72 = arith.constant 8 : index
    %c0_73 = arith.constant 0 : index
    %71 = vector.load %arg7[%c0_71, %c8_72, %c0_73] : memref<18x32x128xf32, #tpu.memory_space<vmem>>, vector<18x16x128xf32>
    tpu.vector_store %arg7[%c0_71, %c8_72, %c0_73], %70 {strides = array<i32>} : memref<18x32x128xf32, #tpu.memory_space<vmem>>, vector<18x16x128xf32>,
    %cst_74 = arith.constant 0.000000e+00 : f32
    %72 = vector.broadcast %cst_74 : f32 to vector<1x16x128xf32>
    %c0_i32 = arith.constant 0 : i32
    %73 = arith.cmpi eq, %arg1, %c0_i32 : i32
    %74 = arith.extui %73 : i1 to i32
    %c0_i32_75 = arith.constant 0 : i32
    %75 = arith.cmpi ne, %74, %c0_i32_75 : i32
    scf.if %75 {
      %c0_147 = arith.constant 0 : index
      %c8_148 = arith.constant 8 : index
      %c0_149 = arith.constant 0 : index
      %142 = vector.load %arg7[%c0_147, %c8_148, %c0_149] : memref<18x32x128xf32, #tpu.memory_space<vmem>>, vector<1x16x128xf32>
      tpu.vector_store %arg7[%c0_147, %c8_148, %c0_149], %72 {strides = array<i32>} : memref<18x32x128xf32, #tpu.memory_space<vmem>>, vector<1x16x128xf32>,
    } else {
    }
    %c0_i32_76 = arith.constant 0 : i32
    %76 = arith.cmpi eq, %arg1, %c0_i32_76 : i32
    %77 = arith.extui %76 : i1 to i32
    %c0_i32_77 = arith.constant 0 : i32
    %78 = arith.cmpi ne, %77, %c0_i32_77 : i32
    scf.if %78 {
      %c17 = arith.constant 17 : index
      %c8_147 = arith.constant 8 : index
      %c0_148 = arith.constant 0 : index
      %142 = vector.load %arg7[%c17, %c8_147, %c0_148] : memref<18x32x128xf32, #tpu.memory_space<vmem>>, vector<1x16x128xf32>
      tpu.vector_store %arg7[%c17, %c8_147, %c0_148], %72 {strides = array<i32>} : memref<18x32x128xf32, #tpu.memory_space<vmem>>, vector<1x16x128xf32>,
    } else {
    }
    %c0_78 = arith.constant 0 : index
    %c7_79 = arith.constant 7 : index
    %c0_80 = arith.constant 0 : index
    %79 = vector.load %arg7[%c0_78, %c7_79, %c0_80] : memref<18x32x128xf32, #tpu.memory_space<vmem>>, vector<16x16x128xf32>
    %80 = vector.shape_cast %79 : vector<16x16x128xf32> to vector<256x128xf32>
    %c0_81 = arith.constant 0 : index
    %c0_82 = arith.constant 0 : index
    %c0_83 = arith.constant 0 : index
    %81 = vector.load %arg4[%c0_81, %c0_82, %c0_83] : memref<9x128x128xf32, #tpu.memory_space<vmem>>, vector<1x128x128xf32>
    %82 = vector.shape_cast %81 : vector<1x128x128xf32> to vector<128x128xf32>
    %cst_84 = arith.constant dense<0.000000e+00> : vector<256x128xf32>
    %83 = tpu.matmul %80, %82, %cst_84 {dimension_numbers = #tpu.dot_dimension_numbers<[1], [0], [0], [1], [0, 0, 1, 1], [], []>} : vector<256x128xf32>, vector<128x128xf32>, vector<256x128xf32> -> vector<256x128xf32>
    %c0_85 = arith.constant 0 : index
    %c8_86 = arith.constant 8 : index
    %c0_87 = arith.constant 0 : index
    %84 = vector.load %arg7[%c0_85, %c8_86, %c0_87] : memref<18x32x128xf32, #tpu.memory_space<vmem>>, vector<16x16x128xf32>
    %85 = vector.shape_cast %84 : vector<16x16x128xf32> to vector<256x128xf32>
    %c1_88 = arith.constant 1 : index
    %c0_89 = arith.constant 0 : index
    %c0_90 = arith.constant 0 : index
    %86 = vector.load %arg4[%c1_88, %c0_89, %c0_90] : memref<9x128x128xf32, #tpu.memory_space<vmem>>, vector<1x128x128xf32>
    %87 = vector.shape_cast %86 : vector<1x128x128xf32> to vector<128x128xf32>
    %cst_91 = arith.constant dense<0.000000e+00> : vector<256x128xf32>
    %88 = tpu.matmul %85, %87, %cst_91 {dimension_numbers = #tpu.dot_dimension_numbers<[1], [0], [0], [1], [0, 0, 1, 1], [], []>} : vector<256x128xf32>, vector<128x128xf32>, vector<256x128xf32> -> vector<256x128xf32>
    %89 = arith.addf %83, %88 : vector<256x128xf32>
    %c0_92 = arith.constant 0 : index
    %c9 = arith.constant 9 : index
    %c0_93 = arith.constant 0 : index
    %90 = vector.load %arg7[%c0_92, %c9, %c0_93] : memref<18x32x128xf32, #tpu.memory_space<vmem>>, vector<16x16x128xf32>
    %91 = vector.shape_cast %90 : vector<16x16x128xf32> to vector<256x128xf32>
    %c2_94 = arith.constant 2 : index
    %c0_95 = arith.constant 0 : index
    %c0_96 = arith.constant 0 : index
    %92 = vector.load %arg4[%c2_94, %c0_95, %c0_96] : memref<9x128x128xf32, #tpu.memory_space<vmem>>, vector<1x128x128xf32>
    %93 = vector.shape_cast %92 : vector<1x128x128xf32> to vector<128x128xf32>
    %cst_97 = arith.constant dense<0.000000e+00> : vector<256x128xf32>
    %94 = tpu.matmul %91, %93, %cst_97 {dimension_numbers = #tpu.dot_dimension_numbers<[1], [0], [0], [1], [0, 0, 1, 1], [], []>} : vector<256x128xf32>, vector<128x128xf32>, vector<256x128xf32> -> vector<256x128xf32>
    %95 = arith.addf %89, %94 : vector<256x128xf32>
    %c1_98 = arith.constant 1 : index
    %c7_99 = arith.constant 7 : index
    %c0_100 = arith.constant 0 : index
    %96 = vector.load %arg7[%c1_98, %c7_99, %c0_100] : memref<18x32x128xf32, #tpu.memory_space<vmem>>, vector<16x16x128xf32>
    %97 = vector.shape_cast %96 : vector<16x16x128xf32> to vector<256x128xf32>
    %c3_101 = arith.constant 3 : index
    %c0_102 = arith.constant 0 : index
    %c0_103 = arith.constant 0 : index
    %98 = vector.load %arg4[%c3_101, %c0_102, %c0_103] : memref<9x128x128xf32, #tpu.memory_space<vmem>>, vector<1x128x128xf32>
    %99 = vector.shape_cast %98 : vector<1x128x128xf32> to vector<128x128xf32>
    %cst_104 = arith.constant dense<0.000000e+00> : vector<256x128xf32>
    %100 = tpu.matmul %97, %99, %cst_104 {dimension_numbers = #tpu.dot_dimension_numbers<[1], [0], [0], [1], [0, 0, 1, 1], [], []>} : vector<256x128xf32>, vector<128x128xf32>, vector<256x128xf32> -> vector<256x128xf32>
    %101 = arith.addf %95, %100 : vector<256x128xf32>
    %c1_105 = arith.constant 1 : index
    %c8_106 = arith.constant 8 : index
    %c0_107 = arith.constant 0 : index
    %102 = vector.load %arg7[%c1_105, %c8_106, %c0_107] : memref<18x32x128xf32, #tpu.memory_space<vmem>>, vector<16x16x128xf32>
    %103 = vector.shape_cast %102 : vector<16x16x128xf32> to vector<256x128xf32>
    %c4_108 = arith.constant 4 : index
    %c0_109 = arith.constant 0 : index
    %c0_110 = arith.constant 0 : index
    %104 = vector.load %arg4[%c4_108, %c0_109, %c0_110] : memref<9x128x128xf32, #tpu.memory_space<vmem>>, vector<1x128x128xf32>
    %105 = vector.shape_cast %104 : vector<1x128x128xf32> to vector<128x128xf32>
    %cst_111 = arith.constant dense<0.000000e+00> : vector<256x128xf32>
    %106 = tpu.matmul %103, %105, %cst_111 {dimension_numbers = #tpu.dot_dimension_numbers<[1], [0], [0], [1], [0, 0, 1, 1], [], []>} : vector<256x128xf32>, vector<128x128xf32>, vector<256x128xf32> -> vector<256x128xf32>
    %107 = arith.addf %101, %106 : vector<256x128xf32>
    %c1_112 = arith.constant 1 : index
    %c9_113 = arith.constant 9 : index
    %c0_114 = arith.constant 0 : index
    %108 = vector.load %arg7[%c1_112, %c9_113, %c0_114] : memref<18x32x128xf32, #tpu.memory_space<vmem>>, vector<16x16x128xf32>
    %109 = vector.shape_cast %108 : vector<16x16x128xf32> to vector<256x128xf32>
    %c5_115 = arith.constant 5 : index
    %c0_116 = arith.constant 0 : index
    %c0_117 = arith.constant 0 : index
    %110 = vector.load %arg4[%c5_115, %c0_116, %c0_117] : memref<9x128x128xf32, #tpu.memory_space<vmem>>, vector<1x128x128xf32>
    %111 = vector.shape_cast %110 : vector<1x128x128xf32> to vector<128x128xf32>
    %cst_118 = arith.constant dense<0.000000e+00> : vector<256x128xf32>
    %112 = tpu.matmul %109, %111, %cst_118 {dimension_numbers = #tpu.dot_dimension_numbers<[1], [0], [0], [1], [0, 0, 1, 1], [], []>} : vector<256x128xf32>, vector<128x128xf32>, vector<256x128xf32> -> vector<256x128xf32>
    %113 = arith.addf %107, %112 : vector<256x128xf32>
    %c2_119 = arith.constant 2 : index
    %c7_120 = arith.constant 7 : index
    %c0_121 = arith.constant 0 : index
    %114 = vector.load %arg7[%c2_119, %c7_120, %c0_121] : memref<18x32x128xf32, #tpu.memory_space<vmem>>, vector<16x16x128xf32>
    %115 = vector.shape_cast %114 : vector<16x16x128xf32> to vector<256x128xf32>
    %c6_122 = arith.constant 6 : index
    %c0_123 = arith.constant 0 : index
    %c0_124 = arith.constant 0 : index
    %116 = vector.load %arg4[%c6_122, %c0_123, %c0_124] : memref<9x128x128xf32, #tpu.memory_space<vmem>>, vector<1x128x128xf32>
    %117 = vector.shape_cast %116 : vector<1x128x128xf32> to vector<128x128xf32>
    %cst_125 = arith.constant dense<0.000000e+00> : vector<256x128xf32>
    %118 = tpu.matmul %115, %117, %cst_125 {dimension_numbers = #tpu.dot_dimension_numbers<[1], [0], [0], [1], [0, 0, 1, 1], [], []>} : vector<256x128xf32>, vector<128x128xf32>, vector<256x128xf32> -> vector<256x128xf32>
    %119 = arith.addf %113, %118 : vector<256x128xf32>
    %c2_126 = arith.constant 2 : index
    %c8_127 = arith.constant 8 : index
    %c0_128 = arith.constant 0 : index
    %120 = vector.load %arg7[%c2_126, %c8_127, %c0_128] : memref<18x32x128xf32, #tpu.memory_space<vmem>>, vector<16x16x128xf32>
    %121 = vector.shape_cast %120 : vector<16x16x128xf32> to vector<256x128xf32>
    %c7_129 = arith.constant 7 : index
    %c0_130 = arith.constant 0 : index
    %c0_131 = arith.constant 0 : index
    %122 = vector.load %arg4[%c7_129, %c0_130, %c0_131] : memref<9x128x128xf32, #tpu.memory_space<vmem>>, vector<1x128x128xf32>
    %123 = vector.shape_cast %122 : vector<1x128x128xf32> to vector<128x128xf32>
    %cst_132 = arith.constant dense<0.000000e+00> : vector<256x128xf32>
    %124 = tpu.matmul %121, %123, %cst_132 {dimension_numbers = #tpu.dot_dimension_numbers<[1], [0], [0], [1], [0, 0, 1, 1], [], []>} : vector<256x128xf32>, vector<128x128xf32>, vector<256x128xf32> -> vector<256x128xf32>
    %125 = arith.addf %119, %124 : vector<256x128xf32>
    %c2_133 = arith.constant 2 : index
    %c9_134 = arith.constant 9 : index
    %c0_135 = arith.constant 0 : index
    %126 = vector.load %arg7[%c2_133, %c9_134, %c0_135] : memref<18x32x128xf32, #tpu.memory_space<vmem>>, vector<16x16x128xf32>
    %127 = vector.shape_cast %126 : vector<16x16x128xf32> to vector<256x128xf32>
    %c8_136 = arith.constant 8 : index
    %c0_137 = arith.constant 0 : index
    %c0_138 = arith.constant 0 : index
    %128 = vector.load %arg4[%c8_136, %c0_137, %c0_138] : memref<9x128x128xf32, #tpu.memory_space<vmem>>, vector<1x128x128xf32>
    %129 = vector.shape_cast %128 : vector<1x128x128xf32> to vector<128x128xf32>
    %cst_139 = arith.constant dense<0.000000e+00> : vector<256x128xf32>
    %130 = tpu.matmul %127, %129, %cst_139 {dimension_numbers = #tpu.dot_dimension_numbers<[1], [0], [0], [1], [0, 0, 1, 1], [], []>} : vector<256x128xf32>, vector<128x128xf32>, vector<256x128xf32> -> vector<256x128xf32>
    %131 = arith.addf %125, %130 : vector<256x128xf32>
    %c1_140 = arith.constant 1 : index
    %c0_141 = arith.constant 0 : index
    %132 = vector.load %arg5[%c1_140, %c0_141] : memref<2x128xf32, #tpu.memory_space<vmem>>, vector<1x128xf32>
    %133 = vector.broadcast %132 : vector<1x128xf32> to vector<256x128xf32>
    %134 = arith.addf %131, %133 : vector<256x128xf32>
    %cst_142 = arith.constant 0.000000e+00 : f32
    %135 = vector.broadcast %cst_142 : f32 to vector<256x128xf32>
    %136 = arith.maximumf %134, %135 : vector<256x128xf32>
    %137 = vector.extract_strided_slice %136 {offsets = [0, 0], sizes = [256, 8], strides = [1, 1]} : vector<256x128xf32> to vector<256x8xf32>
    %138 = vector.shape_cast %137 : vector<256x8xf32> to vector<16x16x8xf32>
    %c0_143 = arith.constant 0 : index
    %c0_144 = arith.constant 0 : index
    %c0_145 = arith.constant 0 : index
    %c0_146 = arith.constant 0 : index
    %139 = vector.load %arg6[%c0_143, %c0_144, %c0_145, %c0_146] : memref<1x16x16x8xf32, #tpu.memory_space<vmem>>, vector<1x16x16x8xf32>
    %140 = vector.shape_cast %139 : vector<1x16x16x8xf32> to vector<16x16x8xf32>
    %141 = vector.shape_cast %138 : vector<16x16x8xf32> to vector<1x16x16x8xf32>
    tpu.vector_store %arg6[%c0_143, %c0_144, %c0_145, %c0_146], %141 {strides = array<i32>} : memref<1x16x16x8xf32, #tpu.memory_space<vmem>>, vector<1x16x16x8xf32>,
    return
  }
  func.func @transform_0(%arg0: i32, %arg1: i32) -> (i32, i32, i32, i32) {
    %c1_i32 = arith.constant 1 : i32
    %0 = arith.muli %arg0, %c1_i32 : i32
    %1 = arith.addi %0, %arg1 : i32
    %c0_i32 = arith.constant 0 : i32
    %c0_i32_0 = arith.constant 0 : i32
    %c0_i32_1 = arith.constant 0 : i32
    %c0_i32_2 = arith.constant 0 : i32
    return %1, %c0_i32, %c0_i32_0, %c0_i32_1 : i32, i32, i32, i32
  }
  func.func @transform_1(%arg0: i32, %arg1: i32) -> (i32, i32, i32) {
    %c0_i32 = arith.constant 0 : i32
    %c0_i32_0 = arith.constant 0 : i32
    %c0_i32_1 = arith.constant 0 : i32
    %c0_i32_2 = arith.constant 0 : i32
    return %c0_i32, %c0_i32_0, %c0_i32_1 : i32, i32, i32
  }
  func.func @transform_2(%arg0: i32, %arg1: i32) -> (i32, i32, i32) {
    %c0_i32 = arith.constant 0 : i32
    %c0_i32_0 = arith.constant 0 : i32
    %c0_i32_1 = arith.constant 0 : i32
    %c0_i32_2 = arith.constant 0 : i32
    return %c0_i32, %c0_i32_0, %c0_i32_1 : i32, i32, i32
  }
  func.func @transform_3(%arg0: i32, %arg1: i32) -> (i32, i32) {
    %c0_i32 = arith.constant 0 : i32
    %c0_i32_0 = arith.constant 0 : i32
    %c0_i32_1 = arith.constant 0 : i32
    return %c0_i32, %c0_i32_0 : i32, i32
  }
  func.func @transform_4(%arg0: i32, %arg1: i32) -> (i32, i32, i32, i32) {
    %c0_i32 = arith.constant 0 : i32
    %c0_i32_0 = arith.constant 0 : i32
    %c0_i32_1 = arith.constant 0 : i32
    return %arg0, %arg1, %c0_i32, %c0_i32_0 : i32, i32, i32, i32
  }
}

</mosaic_0001>

<llo_original>
// kernel: tpu_custom_call.1
$region0: #{tpu_custom_call.1}
  #allocation0 [shape = 'u32[]', space=smem, size = 0x4, offset = 0x4, fixed_abs, tag = 'smem constant byte address 0x4 - core index']
  #allocation1 [shape = 'u32[144,128]{1,0:T(1,128)}', space=vmem, size = 0x12000, scoped, tag = 'internal scratch']
  #allocation2 [shape = 'f32[18,32,128]{2,1,0:T(8,128)}', space=vmem, size = 0x48000, scoped, tag = 'scratch operand']
  %s0 = inlined_call_operand.vmem [shape: f32[2,20,18,8], index: 0, kind: input, shape index: {}]
  %s1 = inlined_call_operand.vmem [shape: f32[9,8,128], index: 1, kind: input, shape index: {}]
  %s2 = inlined_call_operand.vmem [shape: f32[9,128,128], index: 2, kind: input, shape index: {}]
  %s3 = inlined_call_operand.vmem [shape: f32[2,128], index: 3, kind: input, shape index: {}]
  %s4 = inlined_call_operand.vmem [shape: f32[2,16,16,8], index: 4, kind: output, shape index: {}]
  %s5 = sld [smem:[#allocation0]]
  $region53: #{tpu_custom_call.1} parent=0
    _
  %s7 = ssub.s32 1, %s5
  %s8 = scalar_select 0, %s7, %s5
  loop: start=0, step=1, limit=4
  $region2: #{tpu_custom_call.1} parent=0 // loop_pre_header
    _
  $region3: #{tpu_custom_call.1} parent=0 // loop_header
    %s10 = sphi 0, %s14
    %p11 = scmp.ge.s32.totalorder %s10, 4
    %s17 = sphi 0, %s29
    %s18 = sphi 0, %s25
    %s19 = sphi 0, %s17
    %s20 = sphi 0, %s18
    %s21 = sphi 0, %s19
    %s22 = sphi 0, %s20
    %s34 = sphi 0, %s36
    %s37 = sphi 0, %s34
    %s38 = sphi 0, %s37
    %s54 = sphi 0, %s38
    %s58 = sphi 0, %s58
    %s60 = sphi 0, %s58
    %s61 = sphi 0, %s60
    %s75 = sphi 0, %s61
    %s79 = sphi 0, %s79
    %s81 = sphi 0, %s79
    %s82 = sphi 0, %s81
    %s96 = sphi 0, %s82
    %s100 = sphi 0, %s100
    %s102 = sphi 0, %s100
    %s103 = sphi 0, %s102
    %s117 = sphi 0, %s103
    %s125 = sphi 0, %s127
    %s128 = sphi 0, %s125
    %s129 = sphi 0, %s128
    %s145 = sphi 0, %s129
  $region4: #{tpu_custom_call.1} parent=0 // loop_header_branch
    %13 = sbr.rel (%p11) target = $region8
  $region5: #{tpu_custom_call.1} parent=0 // loop_body
    %s15 = ssub.s32 %s10, 1
    %s16 = ssub.s32 %s10, 2
    %s23 = sadd.s32 1, %s18
    %p24 = scmp.ge.s32.totalorder %s23, 1
    %s25 = scalar_select %p24, 0, %s23
    %s26 = sadd.s32 1, %s17
    %s27 = scalar_select %p24, %s26, %s17
    %p28 = scmp.ge.s32.totalorder %s27, 2
    %s29 = scalar_select %p28, 0, %s27
    %s30 = sadd.s32 %s17, %s18
    %s31 = sadd.s32 %s29, %s25
    %s32 = ssub.s32 %s30, %s31
    %p33 = scmp.eq.s32.totalorder %s32, 0
    %s35 = sadd.s32 %s34, 1
    %s36 = scalar_select %p33, %s34, %s35
    %p39 = pneg %p33
    %p40 = scmp.eq.s32.totalorder %s10, 1
    %p41 = por %p39, %p40
    %p42 = scmp.ne.s32.totalorder %s34, %s37
    %p43 = scmp.eq.s32.totalorder %s10, 0
    %p44 = por %p42, %p43
    %p45 = scmp.ne.s32.totalorder %s34, %s37
    %p46 = scmp.eq.s32.totalorder %s15, 1
    %p47 = por %p45, %p46
    %p48 = scmp.ne.s32.totalorder %s37, %s38
    %p49 = scmp.eq.s32.totalorder %s15, 0
    %p50 = por %p48, %p49
    %p51 = scmp.ne.s32.totalorder %s37, %s38
    %p52 = scmp.eq.s32.totalorder %s16, 1
    %p53 = por %p51, %p52
    %p55 = scmp.ne.s32.totalorder %s38, %s54
    %p56 = scmp.eq.s32.totalorder %s16, 0
    %p57 = por %p55, %p56
    %s59 = sadd.s32 %s58, 1
    %p62 = scmp.eq.s32.totalorder %s10, 1
    %p63 = scmp.ne.s32.totalorder %s58, %s60
    %p64 = scmp.eq.s32.totalorder %s10, 0
    %p65 = por %p63, %p64
    %p66 = scmp.ne.s32.totalorder %s58, %s60
    %p67 = scmp.eq.s32.totalorder %s15, 1
    %p68 = por %p66, %p67
    %p69 = scmp.ne.s32.totalorder %s60, %s61
    %p70 = scmp.eq.s32.totalorder %s15, 0
    %p71 = por %p69, %p70
    %p72 = scmp.ne.s32.totalorder %s60, %s61
    %p73 = scmp.eq.s32.totalorder %s16, 1
    %p74 = por %p72, %p73
    %p76 = scmp.ne.s32.totalorder %s61, %s75
    %p77 = scmp.eq.s32.totalorder %s16, 0
    %p78 = por %p76, %p77
    %s80 = sadd.s32 %s79, 1
    %p83 = scmp.eq.s32.totalorder %s10, 1
    %p84 = scmp.ne.s32.totalorder %s79, %s81
    %p85 = scmp.eq.s32.totalorder %s10, 0
    %p86 = por %p84, %p85
    %p87 = scmp.ne.s32.totalorder %s79, %s81
    %p88 = scmp.eq.s32.totalorder %s15, 1
    %p89 = por %p87, %p88
    %p90 = scmp.ne.s32.totalorder %s81, %s82
    %p91 = scmp.eq.s32.totalorder %s15, 0
    %p92 = por %p90, %p91
    %p93 = scmp.ne.s32.totalorder %s81, %s82
    %p94 = scmp.eq.s32.totalorder %s16, 1
    %p95 = por %p93, %p94
    %p97 = scmp.ne.s32.totalorder %s82, %s96
    %p98 = scmp.eq.s32.totalorder %s16, 0
    %p99 = por %p97, %p98
    %s101 = sadd.s32 %s100, 1
    %p104 = scmp.eq.s32.totalorder %s10, 1
    %p105 = scmp.ne.s32.totalorder %s100, %s102
    %p106 = scmp.eq.s32.totalorder %s10, 0
    %p107 = por %p105, %p106
    %p108 = scmp.ne.s32.totalorder %s100, %s102
    %p109 = scmp.eq.s32.totalorder %s15, 1
    %p110 = por %p108, %p109
    %p111 = scmp.ne.s32.totalorder %s102, %s103
    %p112 = scmp.eq.s32.totalorder %s15, 0
    %p113 = por %p111, %p112
    %p114 = scmp.ne.s32.totalorder %s102, %s103
    %p115 = scmp.eq.s32.totalorder %s16, 1
    %p116 = por %p114, %p115
    %p118 = scmp.ne.s32.totalorder %s103, %s117
    %p119 = scmp.eq.s32.totalorder %s16, 0
    %p120 = por %p118, %p119
    %s121 = ssub.s32 %s17, %s29
    %s122 = ssub.s32 %s18, %s25
    %s123 = sor.u32 %s121, %s122
    %p124 = scmp.eq.s32.totalorder %s123, 0
    %s126 = sadd.s32 %s125, 1
    %s127 = scalar_select %p124, %s125, %s126
    %p130 = pneg %p124
    %p131 = scmp.eq.s32.totalorder %s10, 1
    %p132 = por %p130, %p131
    %p133 = scmp.ne.s32.totalorder %s125, %s128
    %p134 = scmp.eq.s32.totalorder %s10, 0
    %p135 = por %p133, %p134
    %p136 = scmp.ne.s32.totalorder %s125, %s128
    %p137 = scmp.eq.s32.totalorder %s15, 1
    %p138 = por %p136, %p137
    %p139 = scmp.ne.s32.totalorder %s128, %s129
    %p140 = scmp.eq.s32.totalorder %s15, 0
    %p141 = por %p139, %p140
    %p142 = scmp.ne.s32.totalorder %s128, %s129
    %p143 = scmp.eq.s32.totalorder %s16, 1
    %p144 = por %p142, %p143
    %p146 = scmp.ne.s32.totalorder %s129, %s145
    %p147 = scmp.eq.s32.totalorder %s16, 0
    %p148 = por %p146, %p147
    %p149 = scmp.le.s32.totalorder 1, %s10
    %p150 = scmp.lt.s32.totalorder %s10, 3
    %p151 = pnand %p149, %p150
    %p152 = pneg %p151
    // Predicated region
    $region9: #{tpu_custom_call.1} parent=5 // pred_check
      _
    $region10: #{tpu_custom_call.1} parent=5 // pred_check_branch
      %154 = sbr.rel (%p151) target = $region12
    $region11: #{tpu_custom_call.1} parent=5 // pred_region
      %s155 = ssub.s32 %s10, 1
      // Predicated region
      $region13: #{tpu_custom_call.1} parent=11 // pred_check
        %p156 = pneg %p71
      $region14: #{tpu_custom_call.1} parent=11 // pred_check_branch
        %158 = sbr.rel (%p156) target = $region16
      $region15: #{tpu_custom_call.1} parent=11 // pred_region
        _
      $region16: #{tpu_custom_call.1} parent=11 // pred_fallthru
        _
      // Predicated region
      $region17: #{tpu_custom_call.1} parent=11 // pred_check
        %p159 = pneg %p92
      $region18: #{tpu_custom_call.1} parent=11 // pred_check_branch
        %161 = sbr.rel (%p159) target = $region20
      $region19: #{tpu_custom_call.1} parent=11 // pred_region
        _
      $region20: #{tpu_custom_call.1} parent=11 // pred_fallthru
        _
      // Predicated region
      $region21: #{tpu_custom_call.1} parent=11 // pred_check
        %p162 = pneg %p113
      $region22: #{tpu_custom_call.1} parent=11 // pred_check_branch
        %164 = sbr.rel (%p162) target = $region24
      $region23: #{tpu_custom_call.1} parent=11 // pred_region
        _
      $region24: #{tpu_custom_call.1} parent=11 // pred_fallthru
        _
    $region12: #{tpu_custom_call.1} parent=5 // pred_fallthru
      _
    %p165 = scmp.lt.s32.totalorder %s10, 2
    // Predicated region
    $region25: #{tpu_custom_call.1} parent=5 // pred_check
      %p166 = pneg %p165
    $region26: #{tpu_custom_call.1} parent=5 // pred_check_branch
      %168 = sbr.rel (%p166) target = $region28
    $region27: #{tpu_custom_call.1} parent=5 // pred_region
      // Predicated region
      $region29: #{tpu_custom_call.1} parent=27 // pred_check
        %p169 = pneg %p44
      $region30: #{tpu_custom_call.1} parent=27 // pred_check_branch
        %171 = sbr.rel (%p169) target = $region32
      $region31: #{tpu_custom_call.1} parent=27 // pred_region
        %s172 = sadd.s32 %s17, %s18
        %p173 = scmp.lt.s32.totalorder %s172, 1
        %s174 = scalar_select %p173, %s172, 1
        %s175 = smul.addr %s174, 60
        %s176 = smul.addr %s175, 8
        %s177 = scalar_lea.vmem %s0, %s176
        %s178 = sadd.s32 %s17, %s18
      $region32: #{tpu_custom_call.1} parent=27 // pred_fallthru
        _
    $region28: #{tpu_custom_call.1} parent=5 // pred_fallthru
      _
    %p179 = scmp.le.s32.totalorder 1, %s10
    %p180 = scmp.lt.s32.totalorder %s10, 3
    %p181 = pnand %p179, %p180
    %p182 = pneg %p181
    // Predicated region
    $region33: #{tpu_custom_call.1} parent=5 // pred_check
      _
    $region34: #{tpu_custom_call.1} parent=5 // pred_check_branch
      %184 = sbr.rel (%p181) target = $region36
    $region35: #{tpu_custom_call.1} parent=5 // pred_region
      %s185 = ssub.s32 %s10, 1
      %s186 = sadd.s32 %s19, %s20
      %p187 = scmp.lt.s32.totalorder %s186, 1
      %s188 = scalar_select %p187, %s186, 1
      %s189 = smul.addr %s188, 60
      %s190 = smul.addr %s189, 8
      %s191 = scalar_lea.vmem %s0, %s190
      %p192 = pneg %p50
      %p193 = pneg %p47
      %p194 = pneg %p71
      %p195 = pneg %p68
      %p196 = pneg %p92
      %p197 = pneg %p89
      %p198 = pneg %p113
      %p199 = pneg %p110
      %p200 = pneg %p141
      %p201 = pneg %p138
      %s202 = smul.u32 16, %s20
      %p203 = scmp.lt.s32.totalorder %s19, 1
      %s204 = scalar_select %p203, %s19, 1
      %p205 = scmp.lt.s32.totalorder %s202, 15
      %s206 = scalar_select %p205, %s202, 15
      %s207 = smul.addr %s206, 2
      %s208 = smul.addr %s204, 32
      %s209 = sadd.s32 %s207, %s208
      %s210 = smul.addr %s209, 8
      %s211 = scalar_lea.vmem %s4, %s210
      %s212 = sadd.s32 %s19, %s20
      %p213 = scmp.lt.s32.totalorder %s212, 1
      %s214 = scalar_select %p213, %s212, 1
      %s215 = smul.addr %s214, 60
      %s216 = smul.addr %s215, 8
      %s217 = scalar_lea.vmem %s0, %s216
      %s218 = sadd.s32 %s19, %s20
      %s219 = smul.u32 16, %s20
      %p220 = scmp.lt.s32.totalorder %s19, 1
      %s221 = scalar_select %p220, %s19, 1
      %p222 = scmp.lt.s32.totalorder %s219, 15
      %s223 = scalar_select %p222, %s219, 15
      %s224 = smul.addr %s223, 2
      %s225 = smul.addr %s221, 32
      %s226 = sadd.s32 %s224, %s225
      %s227 = smul.addr %s226, 8
      %s228 = scalar_lea.vmem %s4, %s227
      %s229 = smul.u32 16, %s20
      %230 = vst [vmem:[#allocation2] sm:$0xff] 0.0
      %231 = vst [vmem:[#allocation2 + $0x20] sm:$0xff] 0.0
      %232 = vst [vmem:[#allocation2 + $0x40] sm:$0xff] 0.0
      %233 = vst [vmem:[#allocation2 + $0x60] sm:$0xff] 0.0
      %234 = vst [vmem:[#allocation2 + $0x80] sm:$0xff] 0.0
      %235 = vst [vmem:[#allocation2 + $0xa0] sm:$0xff] 0.0
      %236 = vst [vmem:[#allocation2 + $0xc0] sm:$0xff] 0.0
      %237 = vst [vmem:[#allocation2 + $0xe0] sm:$0xff] 0.0
      %238 = vst [vmem:[#allocation2 + $0x100] sm:$0xff] 0.0
      %239 = vst [vmem:[#allocation2 + $0x120] sm:$0xff] 0.0
      %240 = vst [vmem:[#allocation2 + $0x140] sm:$0xff] 0.0
      %241 = vst [vmem:[#allocation2 + $0x160] sm:$0xff] 0.0
      %242 = vst [vmem:[#allocation2 + $0x180] sm:$0xff] 0.0
      %243 = vst [vmem:[#allocation2 + $0x1a0] sm:$0xff] 0.0
      %244 = vst [vmem:[#allocation2 + $0x1c0] sm:$0xff] 0.0
      %245 = vst [vmem:[#allocation2 + $0x1e0] sm:$0xff] 0.0
      %246 = vst [vmem:[#allocation2 + $0x200] sm:$0xff] 0.0
      %247 = vst [vmem:[#allocation2 + $0x220] sm:$0xff] 0.0
      %248 = vst [vmem:[#allocation2 + $0x18] sm:$0xff] 0.0
      %249 = vst [vmem:[#allocation2 + $0x38] sm:$0xff] 0.0
      %250 = vst [vmem:[#allocation2 + $0x58] sm:$0xff] 0.0
      %251 = vst [vmem:[#allocation2 + $0x78] sm:$0xff] 0.0
      %252 = vst [vmem:[#allocation2 + $0x98] sm:$0xff] 0.0
      %253 = vst [vmem:[#allocation2 + $0xb8] sm:$0xff] 0.0
      %254 = vst [vmem:[#allocation2 + $0xd8] sm:$0xff] 0.0
      %255 = vst [vmem:[#allocation2 + $0xf8] sm:$0xff] 0.0
      %256 = vst [vmem:[#allocation2 + $0x118] sm:$0xff] 0.0
      %257 = vst [vmem:[#allocation2 + $0x138] sm:$0xff] 0.0
      %258 = vst [vmem:[#allocation2 + $0x158] sm:$0xff] 0.0
      %259 = vst [vmem:[#allocation2 + $0x178] sm:$0xff] 0.0
      %260 = vst [vmem:[#allocation2 + $0x198] sm:$0xff] 0.0
      %261 = vst [vmem:[#allocation2 + $0x1b8] sm:$0xff] 0.0
      %262 = vst [vmem:[#allocation2 + $0x1d8] sm:$0xff] 0.0
      %263 = vst [vmem:[#allocation2 + $0x1f8] sm:$0xff] 0.0
      %264 = vst [vmem:[#allocation2 + $0x218] sm:$0xff] 0.0
      %265 = vst [vmem:[#allocation2 + $0x238] sm:$0xff] 0.0
      %v266 = vld [vmem:[%s217] sm:$0xff]
      %v267 = vld [vmem:[%s217 + $0x8] sm:$0xff]
      %v268 = vld [vmem:[%s217 + $0x18] sm:$0xff]
      %v269 = vld [vmem:[%s217 + $0x20] sm:$0xff]
      %v270 = vld [vmem:[%s217 + $0x30] sm:$0xff]
      %v271 = vld [vmem:[%s217 + $0x38] sm:$0xff]
      %v272 = vld [vmem:[%s217 + $0x48] sm:$0xff]
      %v273 = vld [vmem:[%s217 + $0x50] sm:$0xff]
      %v274 = vld [vmem:[%s217 + $0x60] sm:$0xff]
      %v275 = vld [vmem:[%s217 + $0x68] sm:$0xff]
      %v276 = vld [vmem:[%s217 + $0x78] sm:$0xff]
      %v277 = vld [vmem:[%s217 + $0x80] sm:$0xff]
      %v278 = vld [vmem:[%s217 + $0x90] sm:$0xff]
      %v279 = vld [vmem:[%s217 + $0x98] sm:$0xff]
      %v280 = vld [vmem:[%s217 + $0xa8] sm:$0xff]
      %v281 = vld [vmem:[%s217 + $0xb0] sm:$0xff]
      %v282 = vld [vmem:[%s217 + $0xc0] sm:$0xff]
      %v283 = vld [vmem:[%s217 + $0xc8] sm:$0xff]
      %v284 = vld [vmem:[%s217 + $0xd8] sm:$0xff]
      %v285 = vld [vmem:[%s217 + $0xe0] sm:$0xff]
      %v286 = vld [vmem:[%s217 + $0xf0] sm:$0xff]
      %v287 = vld [vmem:[%s217 + $0xf8] sm:$0xff]
      %v288 = vld [vmem:[%s217 + $0x108] sm:$0xff]
      %v289 = vld [vmem:[%s217 + $0x110] sm:$0xff]
      %v290 = vld [vmem:[%s217 + $0x120] sm:$0xff]
      %v291 = vld [vmem:[%s217 + $0x128] sm:$0xff]
      %v292 = vld [vmem:[%s217 + $0x138] sm:$0xff]
      %v293 = vld [vmem:[%s217 + $0x140] sm:$0xff]
      %v294 = vld [vmem:[%s217 + $0x150] sm:$0xff]
      %v295 = vld [vmem:[%s217 + $0x158] sm:$0xff]
      %v296 = vld [vmem:[%s217 + $0x168] sm:$0xff]
      %v297 = vld [vmem:[%s217 + $0x170] sm:$0xff]
      %v298 = vld [vmem:[%s217 + $0x180] sm:$0xff]
      %v299 = vld [vmem:[%s217 + $0x188] sm:$0xff]
      %v300 = vld [vmem:[%s217 + $0x198] sm:$0xff]
      %v301 = vld [vmem:[%s217 + $0x1a0] sm:$0xff]
      %v302 = vld [vmem:[%s1] sm:$0xff]
      %v303 = vld [vmem:[%s217 + $0x1] sm:$0xff]
      %v304 = vld [vmem:[%s217 + $0x9] sm:$0xff]
      %v305 = vld [vmem:[%s217 + $0x19] sm:$0xff]
      %v306 = vld [vmem:[%s217 + $0x21] sm:$0xff]
      %v307 = vld [vmem:[%s217 + $0x31] sm:$0xff]
      %v308 = vld [vmem:[%s217 + $0x39] sm:$0xff]
      %v309 = vld [vmem:[%s217 + $0x49] sm:$0xff]
      %v310 = vld [vmem:[%s217 + $0x51] sm:$0xff]
      %v311 = vld [vmem:[%s217 + $0x61] sm:$0xff]
      %v312 = vld [vmem:[%s217 + $0x69] sm:$0xff]
      %v313 = vld [vmem:[%s217 + $0x79] sm:$0xff]
      %v314 = vld [vmem:[%s217 + $0x81] sm:$0xff]
      %v315 = vld [vmem:[%s217 + $0x91] sm:$0xff]
      %v316 = vld [vmem:[%s217 + $0x99] sm:$0xff]
      %v317 = vld [vmem:[%s217 + $0xa9] sm:$0xff]
      %v318 = vld [vmem:[%s217 + $0xb1] sm:$0xff]
      %v319 = vld [vmem:[%s217 + $0xc1] sm:$0xff]
      %v320 = vld [vmem:[%s217 + $0xc9] sm:$0xff]
      %v321 = vld [vmem:[%s217 + $0xd9] sm:$0xff]
      %v322 = vld [vmem:[%s217 + $0xe1] sm:$0xff]
      %v323 = vld [vmem:[%s217 + $0xf1] sm:$0xff]
      %v324 = vld [vmem:[%s217 + $0xf9] sm:$0xff]
      %v325 = vld [vmem:[%s217 + $0x109] sm:$0xff]
      %v326 = vld [vmem:[%s217 + $0x111] sm:$0xff]
      %v327 = vld [vmem:[%s217 + $0x121] sm:$0xff]
      %v328 = vld [vmem:[%s217 + $0x129] sm:$0xff]
      %v329 = vld [vmem:[%s217 + $0x139] sm:$0xff]
      %v330 = vld [vmem:[%s217 + $0x141] sm:$0xff]
      %v331 = vld [vmem:[%s217 + $0x151] sm:$0xff]
      %v332 = vld [vmem:[%s217 + $0x159] sm:$0xff]
      %v333 = vld [vmem:[%s217 + $0x169] sm:$0xff]
      %v334 = vld [vmem:[%s217 + $0x171] sm:$0xff]
      %v335 = vld [vmem:[%s217 + $0x181] sm:$0xff]
      %v336 = vld [vmem:[%s217 + $0x189] sm:$0xff]
      %v337 = vld [vmem:[%s217 + $0x199] sm:$0xff]
      %v338 = vld [vmem:[%s217 + $0x1a1] sm:$0xff]
      %s339 = scalar_lea.vmem %s1, 8
      %v340 = vld [vmem:[%s339] sm:$0xff]
      %vm341 = vcmask 64512
      %v343 = vsel %vm341, %v303, 0
      %v346 = vsel %vm341, %v304, 0
      %v349 = vsel %vm341, %v305, 0
      %v352 = vsel %vm341, %v306, 0
      %v355 = vsel %vm341, %v307, 0
      %v358 = vsel %vm341, %v308, 0
      %v361 = vsel %vm341, %v309, 0
      %v364 = vsel %vm341, %v310, 0
      %v367 = vsel %vm341, %v311, 0
      %v370 = vsel %vm341, %v312, 0
      %v373 = vsel %vm341, %v313, 0
      %v376 = vsel %vm341, %v314, 0
      %v379 = vsel %vm341, %v315, 0
      %v382 = vsel %vm341, %v316, 0
      %v385 = vsel %vm341, %v317, 0
      %v388 = vsel %vm341, %v318, 0
      %v391 = vsel %vm341, %v319, 0
      %v394 = vsel %vm341, %v320, 0
      %v397 = vsel %vm341, %v321, 0
      %v400 = vsel %vm341, %v322, 0
      %v403 = vsel %vm341, %v323, 0
      %v406 = vsel %vm341, %v324, 0
      %v409 = vsel %vm341, %v325, 0
      %v412 = vsel %vm341, %v326, 0
      %v415 = vsel %vm341, %v327, 0
      %v418 = vsel %vm341, %v328, 0
      %v421 = vsel %vm341, %v329, 0
      %v424 = vsel %vm341, %v330, 0
      %v427 = vsel %vm341, %v331, 0
      %v430 = vsel %vm341, %v332, 0
      %v433 = vsel %vm341, %v333, 0
      %v436 = vsel %vm341, %v334, 0
      %v439 = vsel %vm341, %v335, 0
      %v442 = vsel %vm341, %v336, 0
      %v445 = vsel %vm341, %v337, 0
      %v448 = vsel %vm341, %v338, 0
      %450 = vmatprep.subr.mxu0 0.0
      %451 = vmatpush1.msra.mxu0 %v340
      %452 = vmatprep.subr.mxu0 0.0
      %453 = vmatpush1.msra.mxu0 0.0
      %454 = vmatprep.subr.mxu0 0.0
      %455 = vmatpush1.msra.mxu0 0.0
      %456 = vmatprep.subr.mxu0 0.0
      %457 = vmatpush1.msra.mxu0 0.0
      %458 = vmatprep.subr.mxu0 0.0
      %459 = vmatpush1.msra.mxu0 0.0
      %460 = vmatprep.subr.mxu0 0.0
      %461 = vmatpush1.msra.mxu0 0.0
      %462 = vmatprep.subr.mxu0 0.0
      %463 = vmatpush1.msra.mxu0 0.0
      %464 = vmatprep.subr.mxu0 0.0
      %465 = vmatpush1.msra.mxu0 0.0
      %466 = vmatprep.subr.mxu0 0.0
      %467 = vmatpush1.msra.mxu0 0.0
      %468 = vmatprep.subr.mxu0 0.0
      %469 = vmatpush1.msra.mxu0 0.0
      %470 = vmatprep.subr.mxu0 0.0
      %471 = vmatpush1.msra.mxu0 0.0
      %472 = vmatprep.subr.mxu0 0.0
      %473 = vmatpush1.msra.mxu0 0.0
      %474 = vmatprep.subr.mxu0 0.0
      %475 = vmatpush1.msra.mxu0 0.0
      %476 = vmatprep.subr.mxu0 0.0
      %477 = vmatpush1.msra.mxu0 0.0
      %478 = vmatprep.subr.mxu0 0.0
      %479 = vmatpush1.msra.mxu0 0.0
      %480 = vmatprep.subr.mxu0 0.0
      %481 = vmatpush1.msra.mxu0 0.0
      %482 = vmatprep.subr.mxu0 0.0
      %483 = vmatpush1.msra.mxu0 0.0
      %484 = vmatprep.subr.mxu0 0.0
      %485 = vmatpush1.msra.mxu0 0.0
      %486 = vmatprep.subr.mxu0 0.0
      %487 = vmatpush1.msra.mxu0 0.0
      %488 = vmatprep.subr.mxu0 0.0
      %489 = vmatpush1.msra.mxu0 0.0
      %490 = vmatprep.subr.mxu0 0.0
      %491 = vmatpush1.msra.mxu0 0.0
      %492 = vmatprep.subr.mxu0 0.0
      %493 = vmatpush1.msra.mxu0 0.0
      %494 = vmatprep.subr.mxu0 0.0
      %495 = vmatpush1.msra.mxu0 0.0
      %496 = vmatprep.subr.mxu0 0.0
      %497 = vmatpush1.msra.mxu0 0.0
      %498 = vmatprep.subr.mxu0 0.0
      %499 = vmatpush1.msra.mxu0 0.0
      %500 = vmatprep.subr.mxu0 0.0
      %501 = vmatpush1.msra.mxu0 0.0
      %502 = vmatprep.subr.mxu0 0.0
      %503 = vmatpush1.msra.mxu0 0.0
      %504 = vmatprep.subr.mxu0 0.0
      %505 = vmatpush1.msra.mxu0 0.0
      %506 = vmatprep.subr.mxu0 0.0
      %507 = vmatpush1.msra.mxu0 0.0
      %508 = vmatprep.subr.mxu0 0.0
      %509 = vmatpush1.msra.mxu0 0.0
      %510 = vmatprep.subr.mxu0 0.0
      %511 = vmatpush1.msra.mxu0 0.0
      %512 = vmatprep.subr.mxu0 0.0
      %513 = vmatpush1.msra.mxu0 0.0
      %514 = vmatprep.mubr.f32.mxu0 0.0
      %515 = vmatmul.mubr.f32.gmra.mrb[0].mxu0 %v343
      %v516 = vpop.f32.mrb[0].mxu0
      %v517 = vadd.f32 0.0, %v516
      %v518 = vpop.f32.mrb[0].mxu0
      %519 = vmatprep.mubr.f32.mxu0 0.0
      %520 = vmatmul.mubr.f32.gmra.mrb[0].mxu0 %v346
      %v521 = vpop.f32.mrb[0].mxu0
      %v522 = vadd.f32 0.0, %v521
      %v523 = vpop.f32.mrb[0].mxu0
      %524 = vmatprep.mubr.f32.mxu0 0.0
      %525 = vmatmul.mubr.f32.gmra.mrb[0].mxu0 %v349
      %v526 = vpop.f32.mrb[0].mxu0
      %v527 = vadd.f32 0.0, %v526
      %v528 = vpop.f32.mrb[0].mxu0
      %529 = vmatprep.mubr.f32.mxu0 0.0
      %530 = vmatmul.mubr.f32.gmra.mrb[0].mxu0 %v352
      %v531 = vpop.f32.mrb[0].mxu0
      %v532 = vadd.f32 0.0, %v531
      %v533 = vpop.f32.mrb[0].mxu0
      %534 = vmatprep.mubr.f32.mxu0 0.0
      %535 = vmatmul.mubr.f32.gmra.mrb[0].mxu0 %v355
      %v536 = vpop.f32.mrb[0].mxu0
      %v537 = vadd.f32 0.0, %v536
      %v538 = vpop.f32.mrb[0].mxu0
      %539 = vmatprep.mubr.f32.mxu0 0.0
      %540 = vmatmul.mubr.f32.gmra.mrb[0].mxu0 %v358
      %v541 = vpop.f32.mrb[0].mxu0
      %v542 = vadd.f32 0.0, %v541
      %v543 = vpop.f32.mrb[0].mxu0
      %544 = vmatprep.mubr.f32.mxu0 0.0
      %545 = vmatmul.mubr.f32.gmra.mrb[0].mxu0 %v361
      %v546 = vpop.f32.mrb[0].mxu0
      %v547 = vadd.f32 0.0, %v546
      %v548 = vpop.f32.mrb[0].mxu0
      %549 = vmatprep.mubr.f32.mxu0 0.0
      %550 = vmatmul.mubr.f32.gmra.mrb[0].mxu0 %v364
      %v551 = vpop.f32.mrb[0].mxu0
      %v552 = vadd.f32 0.0, %v551
      %v553 = vpop.f32.mrb[0].mxu0
      %554 = vmatprep.mubr.f32.mxu0 0.0
      %555 = vmatmul.mubr.f32.gmra.mrb[0].mxu0 %v367
      %v556 = vpop.f32.mrb[0].mxu0
      %v557 = vadd.f32 0.0, %v556
      %v558 = vpop.f32.mrb[0].mxu0
      %559 = vmatprep.mubr.f32.mxu0 0.0
      %560 = vmatmul.mubr.f32.gmra.mrb[0].mxu0 %v370
      %v561 = vpop.f32.mrb[0].mxu0
      %v562 = vadd.f32 0.0, %v561
      %v563 = vpop.f32.mrb[0].mxu0
      %564 = vmatprep.mubr.f32.mxu0 0.0
      %565 = vmatmul.mubr.f32.gmra.mrb[0].mxu0 %v373
      %v566 = vpop.f32.mrb[0].mxu0
      %v567 = vadd.f32 0.0, %v566
      %v568 = vpop.f32.mrb[0].mxu0
      %569 = vmatprep.mubr.f32.mxu0 0.0
      %570 = vmatmul.mubr.f32.gmra.mrb[0].mxu0 %v376
      %v571 = vpop.f32.mrb[0].mxu0
      %v572 = vadd.f32 0.0, %v571
      %v573 = vpop.f32.mrb[0].mxu0
      %574 = vmatprep.mubr.f32.mxu0 0.0
      %575 = vmatmul.mubr.f32.gmra.mrb[0].mxu0 %v379
      %v576 = vpop.f32.mrb[0].mxu0
      %v577 = vadd.f32 0.0, %v576
      %v578 = vpop.f32.mrb[0].mxu0
      %579 = vmatprep.mubr.f32.mxu0 0.0
      %580 = vmatmul.mubr.f32.gmra.mrb[0].mxu0 %v382
      %v581 = vpop.f32.mrb[0].mxu0
      %v582 = vadd.f32 0.0, %v581
      %v583 = vpop.f32.mrb[0].mxu0
      %584 = vmatprep.mubr.f32.mxu0 0.0
      %585 = vmatmul.mubr.f32.gmra.mrb[0].mxu0 %v385
      %v586 = vpop.f32.mrb[0].mxu0
      %v587 = vadd.f32 0.0, %v586
      %v588 = vpop.f32.mrb[0].mxu0
      %589 = vmatprep.mubr.f32.mxu0 0.0
      %590 = vmatmul.mubr.f32.gmra.mrb[0].mxu0 %v388
      %v591 = vpop.f32.mrb[0].mxu0
      %v592 = vadd.f32 0.0, %v591
      %v593 = vpop.f32.mrb[0].mxu0
      %594 = vmatprep.mubr.f32.mxu0 0.0
      %595 = vmatmul.mubr.f32.gmra.mrb[0].mxu0 %v391
      %v596 = vpop.f32.mrb[0].mxu0
      %v597 = vadd.f32 0.0, %v596
      %v598 = vpop.f32.mrb[0].mxu0
      %599 = vmatprep.mubr.f32.mxu0 0.0
      %600 = vmatmul.mubr.f32.gmra.mrb[0].mxu0 %v394
      %v601 = vpop.f32.mrb[0].mxu0
      %v602 = vadd.f32 0.0, %v601
      %v603 = vpop.f32.mrb[0].mxu0
      %604 = vmatprep.mubr.f32.mxu0 0.0
      %605 = vmatmul.mubr.f32.gmra.mrb[0].mxu0 %v397
      %v606 = vpop.f32.mrb[0].mxu0
      %v607 = vadd.f32 0.0, %v606
      %v608 = vpop.f32.mrb[0].mxu0
      %609 = vmatprep.mubr.f32.mxu0 0.0
      %610 = vmatmul.mubr.f32.gmra.mrb[0].mxu0 %v400
      %v611 = vpop.f32.mrb[0].mxu0
      %v612 = vadd.f32 0.0, %v611
      %v613 = vpop.f32.mrb[0].mxu0
      %614 = vmatprep.mubr.f32.mxu0 0.0
      %615 = vmatmul.mubr.f32.gmra.mrb[0].mxu0 %v403
      %v616 = vpop.f32.mrb[0].mxu0
      %v617 = vadd.f32 0.0, %v616
      %v618 = vpop.f32.mrb[0].mxu0
      %619 = vmatprep.mubr.f32.mxu0 0.0
      %620 = vmatmul.mubr.f32.gmra.mrb[0].mxu0 %v406
      %v621 = vpop.f32.mrb[0].mxu0
      %v622 = vadd.f32 0.0, %v621
      %v623 = vpop.f32.mrb[0].mxu0
      %624 = vmatprep.mubr.f32.mxu0 0.0
      %625 = vmatmul.mubr.f32.gmra.mrb[0].mxu0 %v409
      %v626 = vpop.f32.mrb[0].mxu0
      %v627 = vadd.f32 0.0, %v626
      %v628 = vpop.f32.mrb[0].mxu0
      %629 = vmatprep.mubr.f32.mxu0 0.0
      %630 = vmatmul.mubr.f32.gmra.mrb[0].mxu0 %v412
      %v631 = vpop.f32.mrb[0].mxu0
      %v632 = vadd.f32 0.0, %v631
      %v633 = vpop.f32.mrb[0].mxu0
      %634 = vmatprep.mubr.f32.mxu0 0.0
      %635 = vmatmul.mubr.f32.gmra.mrb[0].mxu0 %v415
      %v636 = vpop.f32.mrb[0].mxu0
      %v637 = vadd.f32 0.0, %v636
      %v638 = vpop.f32.mrb[0].mxu0
      %639 = vmatprep.mubr.f32.mxu0 0.0
      %640 = vmatmul.mubr.f32.gmra.mrb[0].mxu0 %v418
      %v641 = vpop.f32.mrb[0].mxu0
      %v642 = vadd.f32 0.0, %v641
      %v643 = vpop.f32.mrb[0].mxu0
      %644 = vmatprep.mubr.f32.mxu0 0.0
      %645 = vmatmul.mubr.f32.gmra.mrb[0].mxu0 %v421
      %v646 = vpop.f32.mrb[0].mxu0
      %v647 = vadd.f32 0.0, %v646
      %v648 = vpop.f32.mrb[0].mxu0
      %649 = vmatprep.mubr.f32.mxu0 0.0
      %650 = vmatmul.mubr.f32.gmra.mrb[0].mxu0 %v424
      %v651 = vpop.f32.mrb[0].mxu0
      %v652 = vadd.f32 0.0, %v651
      %v653 = vpop.f32.mrb[0].mxu0
      %654 = vmatprep.mubr.f32.mxu0 0.0
      %655 = vmatmul.mubr.f32.gmra.mrb[0].mxu0 %v427
      %v656 = vpop.f32.mrb[0].mxu0
      %v657 = vadd.f32 0.0, %v656
      %v658 = vpop.f32.mrb[0].mxu0
      %659 = vmatprep.mubr.f32.mxu0 0.0
      %660 = vmatmul.mubr.f32.gmra.mrb[0].mxu0 %v430
      %v661 = vpop.f32.mrb[0].mxu0
      %v662 = vadd.f32 0.0, %v661
      %v663 = vpop.f32.mrb[0].mxu0
      %664 = vmatprep.mubr.f32.mxu0 0.0
      %665 = vmatmul.mubr.f32.gmra.mrb[0].mxu0 %v433
      %v666 = vpop.f32.mrb[0].mxu0
      %v667 = vadd.f32 0.0, %v666
      %v668 = vpop.f32.mrb[0].mxu0
      %669 = vmatprep.mubr.f32.mxu0 0.0
      %670 = vmatmul.mubr.f32.gmra.mrb[0].mxu0 %v436
      %v671 = vpop.f32.mrb[0].mxu0
      %v672 = vadd.f32 0.0, %v671
      %v673 = vpop.f32.mrb[0].mxu0
      %674 = vmatprep.mubr.f32.mxu0 0.0
      %675 = vmatmul.mubr.f32.gmra.mrb[0].mxu0 %v439
      %v676 = vpop.f32.mrb[0].mxu0
      %v677 = vadd.f32 0.0, %v676
      %v678 = vpop.f32.mrb[0].mxu0
      %679 = vmatprep.mubr.f32.mxu0 0.0
      %680 = vmatmul.mubr.f32.gmra.mrb[0].mxu0 %v442
      %v681 = vpop.f32.mrb[0].mxu0
      %v682 = vadd.f32 0.0, %v681
      %v683 = vpop.f32.mrb[0].mxu0
      %684 = vmatprep.mubr.f32.mxu0 0.0
      %685 = vmatmul.mubr.f32.gmra.mrb[0].mxu0 %v445
      %v686 = vpop.f32.mrb[0].mxu0
      %v687 = vadd.f32 0.0, %v686
      %v688 = vpop.f32.mrb[0].mxu0
      %689 = vmatprep.mubr.f32.mxu0 0.0
      %690 = vmatmul.mubr.f32.gmra.mrb[0].mxu0 %v448
      %v691 = vpop.f32.mrb[0].mxu0
      %v692 = vadd.f32 0.0, %v691
      %v693 = vpop.f32.mrb[0].mxu0
      %694 = vdwg.mxu0
      %v696 = vsel %vm341, %v266, 0
      %v699 = vsel %vm341, %v267, 0
      %v702 = vsel %vm341, %v268, 0
      %v705 = vsel %vm341, %v269, 0
      %v708 = vsel %vm341, %v270, 0
      %v711 = vsel %vm341, %v271, 0
      %v714 = vsel %vm341, %v272, 0
      %v717 = vsel %vm341, %v273, 0
      %v720 = vsel %vm341, %v274, 0
      %v723 = vsel %vm341, %v275, 0
      %v726 = vsel %vm341, %v276, 0
      %v729 = vsel %vm341, %v277, 0
      %v732 = vsel %vm341, %v278, 0
      %v735 = vsel %vm341, %v279, 0
      %v738 = vsel %vm341, %v280, 0
      %v741 = vsel %vm341, %v281, 0
      %v744 = vsel %vm341, %v282, 0
      %v747 = vsel %vm341, %v283, 0
      %v750 = vsel %vm341, %v284, 0
      %v753 = vsel %vm341, %v285, 0
      %v756 = vsel %vm341, %v286, 0
      %v759 = vsel %vm341, %v287, 0
      %v762 = vsel %vm341, %v288, 0
      %v765 = vsel %vm341, %v289, 0
      %v768 = vsel %vm341, %v290, 0
      %v771 = vsel %vm341, %v291, 0
      %v774 = vsel %vm341, %v292, 0
      %v777 = vsel %vm341, %v293, 0
      %v780 = vsel %vm341, %v294, 0
      %v783 = vsel %vm341, %v295, 0
      %v786 = vsel %vm341, %v296, 0
      %v789 = vsel %vm341, %v297, 0
      %v792 = vsel %vm341, %v298, 0
      %v795 = vsel %vm341, %v299, 0
      %v798 = vsel %vm341, %v300, 0
      %v801 = vsel %vm341, %v301, 0
      %803 = vmatprep.subr.mxu0 0.0
      %804 = vmatpush1.msra.mxu0 %v302
      %805 = vmatprep.subr.mxu0 0.0
      %806 = vmatpush1.msra.mxu0 0.0
      %807 = vmatprep.subr.mxu0 0.0
      %808 = vmatpush1.msra.mxu0 0.0
      %809 = vmatprep.subr.mxu0 0.0
      %810 = vmatpush1.msra.mxu0 0.0
      %811 = vmatprep.subr.mxu0 0.0
      %812 = vmatpush1.msra.mxu0 0.0
      %813 = vmatprep.subr.mxu0 0.0
      %814 = vmatpush1.msra.mxu0 0.0
      %815 = vmatprep.subr.mxu0 0.0
      %816 = vmatpush1.msra.mxu0 0.0
      %817 = vmatprep.subr.mxu0 0.0
      %818 = vmatpush1.msra.mxu0 0.0
      %819 = vmatprep.subr.mxu0 0.0
      %820 = vmatpush1.msra.mxu0 0.0
      %821 = vmatprep.subr.mxu0 0.0
      %822 = vmatpush1.msra.mxu0 0.0
      %823 = vmatprep.subr.mxu0 0.0
      %824 = vmatpush1.msra.mxu0 0.0
      %825 = vmatprep.subr.mxu0 0.0
      %826 = vmatpush1.msra.mxu0 0.0
      %827 = vmatprep.subr.mxu0 0.0
      %828 = vmatpush1.msra.mxu0 0.0
      %829 = vmatprep.subr.mxu0 0.0
      %830 = vmatpush1.msra.mxu0 0.0
      %831 = vmatprep.subr.mxu0 0.0
      %832 = vmatpush1.msra.mxu0 0.0
      %833 = vmatprep.subr.mxu0 0.0
      %834 = vmatpush1.msra.mxu0 0.0
      %835 = vmatprep.subr.mxu0 0.0
      %836 = vmatpush1.msra.mxu0 0.0
      %837 = vmatprep.subr.mxu0 0.0
      %838 = vmatpush1.msra.mxu0 0.0
      %839 = vmatprep.subr.mxu0 0.0
      %840 = vmatpush1.msra.mxu0 0.0
      %841 = vmatprep.subr.mxu0 0.0
      %842 = vmatpush1.msra.mxu0 0.0
      %843 = vmatprep.subr.mxu0 0.0
      %844 = vmatpush1.msra.mxu0 0.0
      %845 = vmatprep.subr.mxu0 0.0
      %846 = vmatpush1.msra.mxu0 0.0
      %847 = vmatprep.subr.mxu0 0.0
      %848 = vmatpush1.msra.mxu0 0.0
      %849 = vmatprep.subr.mxu0 0.0
      %850 = vmatpush1.msra.mxu0 0.0
      %851 = vmatprep.subr.mxu0 0.0
      %852 = vmatpush1.msra.mxu0 0.0
      %853 = vmatprep.subr.mxu0 0.0
      %854 = vmatpush1.msra.mxu0 0.0
      %855 = vmatprep.subr.mxu0 0.0
      %856 = vmatpush1.msra.mxu0 0.0
      %857 = vmatprep.subr.mxu0 0.0
      %858 = vmatpush1.msra.mxu0 0.0
      %859 = vmatprep.subr.mxu0 0.0
      %860 = vmatpush1.msra.mxu0 0.0
      %861 = vmatprep.subr.mxu0 0.0
      %862 = vmatpush1.msra.mxu0 0.0
      %863 = vmatprep.subr.mxu0 0.0
      %864 = vmatpush1.msra.mxu0 0.0
      %865 = vmatprep.subr.mxu0 0.0
      %866 = vmatpush1.msra.mxu0 0.0
      %867 = vmatprep.mubr.f32.mxu0 0.0
      %868 = vmatmul.mubr.f32.gmra.mrb[0].mxu0 %v696
      %v869 = vpop.f32.mrb[0].mxu0
      %v870 = vadd.f32 %v517, %v869
      %v871 = vpop.f32.mrb[0].mxu0
      %872 = vmatprep.mubr.f32.mxu0 0.0
      %873 = vmatmul.mubr.f32.gmra.mrb[0].mxu0 %v699
      %v874 = vpop.f32.mrb[0].mxu0
      %v875 = vadd.f32 %v522, %v874
      %v876 = vpop.f32.mrb[0].mxu0
      %877 = vmatprep.mubr.f32.mxu0 0.0
      %878 = vmatmul.mubr.f32.gmra.mrb[0].mxu0 %v702
      %v879 = vpop.f32.mrb[0].mxu0
      %v880 = vadd.f32 %v527, %v879
      %v881 = vpop.f32.mrb[0].mxu0
      %882 = vmatprep.mubr.f32.mxu0 0.0
      %883 = vmatmul.mubr.f32.gmra.mrb[0].mxu0 %v705
      %v884 = vpop.f32.mrb[0].mxu0
      %v885 = vadd.f32 %v532, %v884
      %v886 = vpop.f32.mrb[0].mxu0
      %887 = vmatprep.mubr.f32.mxu0 0.0
      %888 = vmatmul.mubr.f32.gmra.mrb[0].mxu0 %v708
      %v889 = vpop.f32.mrb[0].mxu0
      %v890 = vadd.f32 %v537, %v889
      %v891 = vpop.f32.mrb[0].mxu0
      %892 = vmatprep.mubr.f32.mxu0 0.0
      %893 = vmatmul.mubr.f32.gmra.mrb[0].mxu0 %v711
      %v894 = vpop.f32.mrb[0].mxu0
      %v895 = vadd.f32 %v542, %v894
      %v896 = vpop.f32.mrb[0].mxu0
      %897 = vmatprep.mubr.f32.mxu0 0.0
      %898 = vmatmul.mubr.f32.gmra.mrb[0].mxu0 %v714
      %v899 = vpop.f32.mrb[0].mxu0
      %v900 = vadd.f32 %v547, %v899
      %v901 = vpop.f32.mrb[0].mxu0
      %902 = vmatprep.mubr.f32.mxu0 0.0
      %903 = vmatmul.mubr.f32.gmra.mrb[0].mxu0 %v717
      %v904 = vpop.f32.mrb[0].mxu0
      %v905 = vadd.f32 %v552, %v904
      %v906 = vpop.f32.mrb[0].mxu0
      %907 = vmatprep.mubr.f32.mxu0 0.0
      %908 = vmatmul.mubr.f32.gmra.mrb[0].mxu0 %v720
      %v909 = vpop.f32.mrb[0].mxu0
      %v910 = vadd.f32 %v557, %v909
      %v911 = vpop.f32.mrb[0].mxu0
      %912 = vmatprep.mubr.f32.mxu0 0.0
      %913 = vmatmul.mubr.f32.gmra.mrb[0].mxu0 %v723
      %v914 = vpop.f32.mrb[0].mxu0
      %v915 = vadd.f32 %v562, %v914
      %v916 = vpop.f32.mrb[0].mxu0
      %917 = vmatprep.mubr.f32.mxu0 0.0
      %918 = vmatmul.mubr.f32.gmra.mrb[0].mxu0 %v726
      %v919 = vpop.f32.mrb[0].mxu0
      %v920 = vadd.f32 %v567, %v919
      %v921 = vpop.f32.mrb[0].mxu0
      %922 = vmatprep.mubr.f32.mxu0 0.0
      %923 = vmatmul.mubr.f32.gmra.mrb[0].mxu0 %v729
      %v924 = vpop.f32.mrb[0].mxu0
      %v925 = vadd.f32 %v572, %v924
      %v926 = vpop.f32.mrb[0].mxu0
      %927 = vmatprep.mubr.f32.mxu0 0.0
      %928 = vmatmul.mubr.f32.gmra.mrb[0].mxu0 %v732
      %v929 = vpop.f32.mrb[0].mxu0
      %v930 = vadd.f32 %v577, %v929
      %v931 = vpop.f32.mrb[0].mxu0
      %932 = vmatprep.mubr.f32.mxu0 0.0
      %933 = vmatmul.mubr.f32.gmra.mrb[0].mxu0 %v735
      %v934 = vpop.f32.mrb[0].mxu0
      %v935 = vadd.f32 %v582, %v934
      %v936 = vpop.f32.mrb[0].mxu0
      %937 = vmatprep.mubr.f32.mxu0 0.0
      %938 = vmatmul.mubr.f32.gmra.mrb[0].mxu0 %v738
      %v939 = vpop.f32.mrb[0].mxu0
      %v940 = vadd.f32 %v587, %v939
      %v941 = vpop.f32.mrb[0].mxu0
      %942 = vmatprep.mubr.f32.mxu0 0.0
      %943 = vmatmul.mubr.f32.gmra.mrb[0].mxu0 %v741
      %v944 = vpop.f32.mrb[0].mxu0
      %v945 = vadd.f32 %v592, %v944
      %v946 = vpop.f32.mrb[0].mxu0
      %947 = vmatprep.mubr.f32.mxu0 0.0
      %948 = vmatmul.mubr.f32.gmra.mrb[0].mxu0 %v744
      %v949 = vpop.f32.mrb[0].mxu0
      %v950 = vadd.f32 %v597, %v949
      %v951 = vpop.f32.mrb[0].mxu0
      %952 = vmatprep.mubr.f32.mxu0 0.0
      %953 = vmatmul.mubr.f32.gmra.mrb[0].mxu0 %v747
      %v954 = vpop.f32.mrb[0].mxu0
      %v955 = vadd.f32 %v602, %v954
      %v956 = vpop.f32.mrb[0].mxu0
      %957 = vmatprep.mubr.f32.mxu0 0.0
      %958 = vmatmul.mubr.f32.gmra.mrb[0].mxu0 %v750
      %v959 = vpop.f32.mrb[0].mxu0
      %v960 = vadd.f32 %v607, %v959
      %v961 = vpop.f32.mrb[0].mxu0
      %962 = vmatprep.mubr.f32.mxu0 0.0
      %963 = vmatmul.mubr.f32.gmra.mrb[0].mxu0 %v753
      %v964 = vpop.f32.mrb[0].mxu0
      %v965 = vadd.f32 %v612, %v964
      %v966 = vpop.f32.mrb[0].mxu0
      %967 = vmatprep.mubr.f32.mxu0 0.0
      %968 = vmatmul.mubr.f32.gmra.mrb[0].mxu0 %v756
      %v969 = vpop.f32.mrb[0].mxu0
      %v970 = vadd.f32 %v617, %v969
      %v971 = vpop.f32.mrb[0].mxu0
      %972 = vmatprep.mubr.f32.mxu0 0.0
      %973 = vmatmul.mubr.f32.gmra.mrb[0].mxu0 %v759
      %v974 = vpop.f32.mrb[0].mxu0
      %v975 = vadd.f32 %v622, %v974
      %v976 = vpop.f32.mrb[0].mxu0
      %977 = vmatprep.mubr.f32.mxu0 0.0
      %978 = vmatmul.mubr.f32.gmra.mrb[0].mxu0 %v762
      %v979 = vpop.f32.mrb[0].mxu0
      %v980 = vadd.f32 %v627, %v979
      %v981 = vpop.f32.mrb[0].mxu0
      %982 = vmatprep.mubr.f32.mxu0 0.0
      %983 = vmatmul.mubr.f32.gmra.mrb[0].mxu0 %v765
      %v984 = vpop.f32.mrb[0].mxu0
      %v985 = vadd.f32 %v632, %v984
      %v986 = vpop.f32.mrb[0].mxu0
      %987 = vmatprep.mubr.f32.mxu0 0.0
      %988 = vmatmul.mubr.f32.gmra.mrb[0].mxu0 %v768
      %v989 = vpop.f32.mrb[0].mxu0
      %v990 = vadd.f32 %v637, %v989
      %v991 = vpop.f32.mrb[0].mxu0
      %992 = vmatprep.mubr.f32.mxu0 0.0
      %993 = vmatmul.mubr.f32.gmra.mrb[0].mxu0 %v771
      %v994 = vpop.f32.mrb[0].mxu0
      %v995 = vadd.f32 %v642, %v994
      %v996 = vpop.f32.mrb[0].mxu0
      %997 = vmatprep.mubr.f32.mxu0 0.0
      %998 = vmatmul.mubr.f32.gmra.mrb[0].mxu0 %v774
      %v999 = vpop.f32.mrb[0].mxu0
      %v1000 = vadd.f32 %v647, %v999
      %v1001 = vpop.f32.mrb[0].mxu0
      %1002 = vmatprep.mubr.f32.mxu0 0.0
      %1003 = vmatmul.mubr.f32.gmra.mrb[0].mxu0 %v777
      %v1004 = vpop.f32.mrb[0].mxu0
      %v1005 = vadd.f32 %v652, %v1004
      %v1006 = vpop.f32.mrb[0].mxu0
      %1007 = vmatprep.mubr.f32.mxu0 0.0
      %1008 = vmatmul.mubr.f32.gmra.mrb[0].mxu0 %v780
      %v1009 = vpop.f32.mrb[0].mxu0
      %v1010 = vadd.f32 %v657, %v1009
      %v1011 = vpop.f32.mrb[0].mxu0
      %1012 = vmatprep.mubr.f32.mxu0 0.0
      %1013 = vmatmul.mubr.f32.gmra.mrb[0].mxu0 %v783
      %v1014 = vpop.f32.mrb[0].mxu0
      %v1015 = vadd.f32 %v662, %v1014
      %v1016 = vpop.f32.mrb[0].mxu0
      %1017 = vmatprep.mubr.f32.mxu0 0.0
      %1018 = vmatmul.mubr.f32.gmra.mrb[0].mxu0 %v786
      %v1019 = vpop.f32.mrb[0].mxu0
      %v1020 = vadd.f32 %v667, %v1019
      %v1021 = vpop.f32.mrb[0].mxu0
      %1022 = vmatprep.mubr.f32.mxu0 0.0
      %1023 = vmatmul.mubr.f32.gmra.mrb[0].mxu0 %v789
      %v1024 = vpop.f32.mrb[0].mxu0
      %v1025 = vadd.f32 %v672, %v1024
      %v1026 = vpop.f32.mrb[0].mxu0
      %1027 = vmatprep.mubr.f32.mxu0 0.0
      %1028 = vmatmul.mubr.f32.gmra.mrb[0].mxu0 %v792
      %v1029 = vpop.f32.mrb[0].mxu0
      %v1030 = vadd.f32 %v677, %v1029
      %v1031 = vpop.f32.mrb[0].mxu0
      %1032 = vmatprep.mubr.f32.mxu0 0.0
      %1033 = vmatmul.mubr.f32.gmra.mrb[0].mxu0 %v795
      %v1034 = vpop.f32.mrb[0].mxu0
      %v1035 = vadd.f32 %v682, %v1034
      %v1036 = vpop.f32.mrb[0].mxu0
      %1037 = vmatprep.mubr.f32.mxu0 0.0
      %1038 = vmatmul.mubr.f32.gmra.mrb[0].mxu0 %v798
      %v1039 = vpop.f32.mrb[0].mxu0
      %v1040 = vadd.f32 %v687, %v1039
      %v1041 = vpop.f32.mrb[0].mxu0
      %1042 = vmatprep.mubr.f32.mxu0 0.0
      %1043 = vmatmul.mubr.f32.gmra.mrb[0].mxu0 %v801
      %v1044 = vpop.f32.mrb[0].mxu0
      %v1045 = vadd.f32 %v692, %v1044
      %v1046 = vpop.f32.mrb[0].mxu0
      %1047 = vdwg.mxu0
      %v1048 = vld [vmem:[%s217 + $0x2] sm:$0xff]
      %v1049 = vld [vmem:[%s217 + $0xa] sm:$0xff]
      %v1050 = vld [vmem:[%s217 + $0x1a] sm:$0xff]
      %v1051 = vld [vmem:[%s217 + $0x22] sm:$0xff]
      %v1052 = vld [vmem:[%s217 + $0x32] sm:$0xff]
      %v1053 = vld [vmem:[%s217 + $0x3a] sm:$0xff]
      %v1054 = vld [vmem:[%s217 + $0x4a] sm:$0xff]
      %v1055 = vld [vmem:[%s217 + $0x52] sm:$0xff]
      %v1056 = vld [vmem:[%s217 + $0x62] sm:$0xff]
      %v1057 = vld [vmem:[%s217 + $0x6a] sm:$0xff]
      %v1058 = vld [vmem:[%s217 + $0x7a] sm:$0xff]
      %v1059 = vld [vmem:[%s217 + $0x82] sm:$0xff]
      %v1060 = vld [vmem:[%s217 + $0x92] sm:$0xff]
      %v1061 = vld [vmem:[%s217 + $0x9a] sm:$0xff]
      %v1062 = vld [vmem:[%s217 + $0xaa] sm:$0xff]
      %v1063 = vld [vmem:[%s217 + $0xb2] sm:$0xff]
      %v1064 = vld [vmem:[%s217 + $0xc2] sm:$0xff]
      %v1065 = vld [vmem:[%s217 + $0xca] sm:$0xff]
      %v1066 = vld [vmem:[%s217 + $0xda] sm:$0xff]
      %v1067 = vld [vmem:[%s217 + $0xe2] sm:$0xff]
      %v1068 = vld [vmem:[%s217 + $0xf2] sm:$0xff]
      %v1069 = vld [vmem:[%s217 + $0xfa] sm:$0xff]
      %v1070 = vld [vmem:[%s217 + $0x10a] sm:$0xff]
      %v1071 = vld [vmem:[%s217 + $0x112] sm:$0xff]
      %v1072 = vld [vmem:[%s217 + $0x122] sm:$0xff]
      %v1073 = vld [vmem:[%s217 + $0x12a] sm:$0xff]
      %v1074 = vld [vmem:[%s217 + $0x13a] sm:$0xff]
      %v1075 = vld [vmem:[%s217 + $0x142] sm:$0xff]
      %v1076 = vld [vmem:[%s217 + $0x152] sm:$0xff]
      %v1077 = vld [vmem:[%s217 + $0x15a] sm:$0xff]
      %v1078 = vld [vmem:[%s217 + $0x16a] sm:$0xff]
      %v1079 = vld [vmem:[%s217 + $0x172] sm:$0xff]
      %v1080 = vld [vmem:[%s217 + $0x182] sm:$0xff]
      %v1081 = vld [vmem:[%s217 + $0x18a] sm:$0xff]
      %v1082 = vld [vmem:[%s217 + $0x19a] sm:$0xff]
      %v1083 = vld [vmem:[%s217 + $0x1a2] sm:$0xff]
      %s1084 = scalar_lea.vmem %s1, 16
      %v1085 = vld [vmem:[%s1084] sm:$0xff]
      %v1087 = vsel %vm341, %v1048, 0
      %v1090 = vsel %vm341, %v1049, 0
      %v1093 = vsel %vm341, %v1050, 0
      %v1096 = vsel %vm341, %v1051, 0
      %v1099 = vsel %vm341, %v1052, 0
      %v1102 = vsel %vm341, %v1053, 0
      %v1105 = vsel %vm341, %v1054, 0
      %v1108 = vsel %vm341, %v1055, 0
      %v1111 = vsel %vm341, %v1056, 0
      %v1114 = vsel %vm341, %v1057, 0
      %v1117 = vsel %vm341, %v1058, 0
      %v1120 = vsel %vm341, %v1059, 0
      %v1123 = vsel %vm341, %v1060, 0
      %v1126 = vsel %vm341, %v1061, 0
      %v1129 = vsel %vm341, %v1062, 0
      %v1132 = vsel %vm341, %v1063, 0
      %v1135 = vsel %vm341, %v1064, 0
      %v1138 = vsel %vm341, %v1065, 0
      %v1141 = vsel %vm341, %v1066, 0
      %v1144 = vsel %vm341, %v1067, 0
      %v1147 = vsel %vm341, %v1068, 0
      %v1150 = vsel %vm341, %v1069, 0
      %v1153 = vsel %vm341, %v1070, 0
      %v1156 = vsel %vm341, %v1071, 0
      %v1159 = vsel %vm341, %v1072, 0
      %v1162 = vsel %vm341, %v1073, 0
      %v1165 = vsel %vm341, %v1074, 0
      %v1168 = vsel %vm341, %v1075, 0
      %v1171 = vsel %vm341, %v1076, 0
      %v1174 = vsel %vm341, %v1077, 0
      %v1177 = vsel %vm341, %v1078, 0
      %v1180 = vsel %vm341, %v1079, 0
      %v1183 = vsel %vm341, %v1080, 0
      %v1186 = vsel %vm341, %v1081, 0
      %v1189 = vsel %vm341, %v1082, 0
      %v1192 = vsel %vm341, %v1083, 0
      %1194 = vmatprep.subr.mxu0 0.0
      %1195 = vmatpush1.msra.mxu0 %v1085
      %1196 = vmatprep.subr.mxu0 0.0
      %1197 = vmatpush1.msra.mxu0 0.0
      %1198 = vmatprep.subr.mxu0 0.0
      %1199 = vmatpush1.msra.mxu0 0.0
      %1200 = vmatprep.subr.mxu0 0.0
      %1201 = vmatpush1.msra.mxu0 0.0
      %1202 = vmatprep.subr.mxu0 0.0
      %1203 = vmatpush1.msra.mxu0 0.0
      %1204 = vmatprep.subr.mxu0 0.0
      %1205 = vmatpush1.msra.mxu0 0.0
      %1206 = vmatprep.subr.mxu0 0.0
      %1207 = vmatpush1.msra.mxu0 0.0
      %1208 = vmatprep.subr.mxu0 0.0
      %1209 = vmatpush1.msra.mxu0 0.0
      %1210 = vmatprep.subr.mxu0 0.0
      %1211 = vmatpush1.msra.mxu0 0.0
      %1212 = vmatprep.subr.mxu0 0.0
      %1213 = vmatpush1.msra.mxu0 0.0
      %1214 = vmatprep.subr.mxu0 0.0
      %1215 = vmatpush1.msra.mxu0 0.0
      %1216 = vmatprep.subr.mxu0 0.0
      %1217 = vmatpush1.msra.mxu0 0.0
      %1218 = vmatprep.subr.mxu0 0.0
      %1219 = vmatpush1.msra.mxu0 0.0
      %1220 = vmatprep.subr.mxu0 0.0
      %1221 = vmatpush1.msra.mxu0 0.0
      %1222 = vmatprep.subr.mxu0 0.0
      %1223 = vmatpush1.msra.mxu0 0.0
      %1224 = vmatprep.subr.mxu0 0.0
      %1225 = vmatpush1.msra.mxu0 0.0
      %1226 = vmatprep.subr.mxu0 0.0
      %1227 = vmatpush1.msra.mxu0 0.0
      %1228 = vmatprep.subr.mxu0 0.0
      %1229 = vmatpush1.msra.mxu0 0.0
      %1230 = vmatprep.subr.mxu0 0.0
      %1231 = vmatpush1.msra.mxu0 0.0
      %1232 = vmatprep.subr.mxu0 0.0
      %1233 = vmatpush1.msra.mxu0 0.0
      %1234 = vmatprep.subr.mxu0 0.0
      %1235 = vmatpush1.msra.mxu0 0.0
      %1236 = vmatprep.subr.mxu0 0.0
      %1237 = vmatpush1.msra.mxu0 0.0
      %1238 = vmatprep.subr.mxu0 0.0
      %1239 = vmatpush1.msra.mxu0 0.0
      %1240 = vmatprep.subr.mxu0 0.0
      %1241 = vmatpush1.msra.mxu0 0.0
      %1242 = vmatprep.subr.mxu0 0.0
      %1243 = vmatpush1.msra.mxu0 0.0
      %1244 = vmatprep.subr.mxu0 0.0
      %1245 = vmatpush1.msra.mxu0 0.0
      %1246 = vmatprep.subr.mxu0 0.0
      %1247 = vmatpush1.msra.mxu0 0.0
      %1248 = vmatprep.subr.mxu0 0.0
      %1249 = vmatpush1.msra.mxu0 0.0
      %1250 = vmatprep.subr.mxu0 0.0
      %1251 = vmatpush1.msra.mxu0 0.0
      %1252 = vmatprep.subr.mxu0 0.0
      %1253 = vmatpush1.msra.mxu0 0.0
      %1254 = vmatprep.subr.mxu0 0.0
      %1255 = vmatpush1.msra.mxu0 0.0
      %1256 = vmatprep.subr.mxu0 0.0
      %1257 = vmatpush1.msra.mxu0 0.0
      %1258 = vmatprep.mubr.f32.mxu0 0.0
      %1259 = vmatmul.mubr.f32.gmra.mrb[0].mxu0 %v1087
      %v1260 = vpop.f32.mrb[0].mxu0
      %v1261 = vadd.f32 0.0, %v1260
      %v1262 = vpop.f32.mrb[0].mxu0
      %1263 = vmatprep.mubr.f32.mxu0 0.0
      %1264 = vmatmul.mubr.f32.gmra.mrb[0].mxu0 %v1090
      %v1265 = vpop.f32.mrb[0].mxu0
      %v1266 = vadd.f32 0.0, %v1265
      %v1267 = vpop.f32.mrb[0].mxu0
      %1268 = vmatprep.mubr.f32.mxu0 0.0
      %1269 = vmatmul.mubr.f32.gmra.mrb[0].mxu0 %v1093
      %v1270 = vpop.f32.mrb[0].mxu0
      %v1271 = vadd.f32 0.0, %v1270
      %v1272 = vpop.f32.mrb[0].mxu0
      %1273 = vmatprep.mubr.f32.mxu0 0.0
      %1274 = vmatmul.mubr.f32.gmra.mrb[0].mxu0 %v1096
      %v1275 = vpop.f32.mrb[0].mxu0
      %v1276 = vadd.f32 0.0, %v1275
      %v1277 = vpop.f32.mrb[0].mxu0
      %1278 = vmatprep.mubr.f32.mxu0 0.0
      %1279 = vmatmul.mubr.f32.gmra.mrb[0].mxu0 %v1099
      %v1280 = vpop.f32.mrb[0].mxu0
      %v1281 = vadd.f32 0.0, %v1280
      %v1282 = vpop.f32.mrb[0].mxu0
      %1283 = vmatprep.mubr.f32.mxu0 0.0
      %1284 = vmatmul.mubr.f32.gmra.mrb[0].mxu0 %v1102
      %v1285 = vpop.f32.mrb[0].mxu0
      %v1286 = vadd.f32 0.0, %v1285
      %v1287 = vpop.f32.mrb[0].mxu0
      %1288 = vmatprep.mubr.f32.mxu0 0.0
      %1289 = vmatmul.mubr.f32.gmra.mrb[0].mxu0 %v1105
      %v1290 = vpop.f32.mrb[0].mxu0
      %v1291 = vadd.f32 0.0, %v1290
      %v1292 = vpop.f32.mrb[0].mxu0
      %1293 = vmatprep.mubr.f32.mxu0 0.0
      %1294 = vmatmul.mubr.f32.gmra.mrb[0].mxu0 %v1108
      %v1295 = vpop.f32.mrb[0].mxu0
      %v1296 = vadd.f32 0.0, %v1295
      %v1297 = vpop.f32.mrb[0].mxu0
      %1298 = vmatprep.mubr.f32.mxu0 0.0
      %1299 = vmatmul.mubr.f32.gmra.mrb[0].mxu0 %v1111
      %v1300 = vpop.f32.mrb[0].mxu0
      %v1301 = vadd.f32 0.0, %v1300
      %v1302 = vpop.f32.mrb[0].mxu0
      %1303 = vmatprep.mubr.f32.mxu0 0.0
      %1304 = vmatmul.mubr.f32.gmra.mrb[0].mxu0 %v1114
      %v1305 = vpop.f32.mrb[0].mxu0
      %v1306 = vadd.f32 0.0, %v1305
      %v1307 = vpop.f32.mrb[0].mxu0
      %1308 = vmatprep.mubr.f32.mxu0 0.0
      %1309 = vmatmul.mubr.f32.gmra.mrb[0].mxu0 %v1117
      %v1310 = vpop.f32.mrb[0].mxu0
      %v1311 = vadd.f32 0.0, %v1310
      %v1312 = vpop.f32.mrb[0].mxu0
      %1313 = vmatprep.mubr.f32.mxu0 0.0
      %1314 = vmatmul.mubr.f32.gmra.mrb[0].mxu0 %v1120
      %v1315 = vpop.f32.mrb[0].mxu0
      %v1316 = vadd.f32 0.0, %v1315
      %v1317 = vpop.f32.mrb[0].mxu0
      %1318 = vmatprep.mubr.f32.mxu0 0.0
      %1319 = vmatmul.mubr.f32.gmra.mrb[0].mxu0 %v1123
      %v1320 = vpop.f32.mrb[0].mxu0
      %v1321 = vadd.f32 0.0, %v1320
      %v1322 = vpop.f32.mrb[0].mxu0
      %1323 = vmatprep.mubr.f32.mxu0 0.0
      %1324 = vmatmul.mubr.f32.gmra.mrb[0].mxu0 %v1126
      %v1325 = vpop.f32.mrb[0].mxu0
      %v1326 = vadd.f32 0.0, %v1325
      %v1327 = vpop.f32.mrb[0].mxu0
      %1328 = vmatprep.mubr.f32.mxu0 0.0
      %1329 = vmatmul.mubr.f32.gmra.mrb[0].mxu0 %v1129
      %v1330 = vpop.f32.mrb[0].mxu0
      %v1331 = vadd.f32 0.0, %v1330
      %v1332 = vpop.f32.mrb[0].mxu0
      %1333 = vmatprep.mubr.f32.mxu0 0.0
      %1334 = vmatmul.mubr.f32.gmra.mrb[0].mxu0 %v1132
      %v1335 = vpop.f32.mrb[0].mxu0
      %v1336 = vadd.f32 0.0, %v1335
      %v1337 = vpop.f32.mrb[0].mxu0
      %1338 = vmatprep.mubr.f32.mxu0 0.0
      %1339 = vmatmul.mubr.f32.gmra.mrb[0].mxu0 %v1135
      %v1340 = vpop.f32.mrb[0].mxu0
      %v1341 = vadd.f32 0.0, %v1340
      %v1342 = vpop.f32.mrb[0].mxu0
      %1343 = vmatprep.mubr.f32.mxu0 0.0
      %1344 = vmatmul.mubr.f32.gmra.mrb[0].mxu0 %v1138
      %v1345 = vpop.f32.mrb[0].mxu0
      %v1346 = vadd.f32 0.0, %v1345
      %v1347 = vpop.f32.mrb[0].mxu0
      %1348 = vmatprep.mubr.f32.mxu0 0.0
      %1349 = vmatmul.mubr.f32.gmra.mrb[0].mxu0 %v1141
      %v1350 = vpop.f32.mrb[0].mxu0
      %v1351 = vadd.f32 0.0, %v1350
      %v1352 = vpop.f32.mrb[0].mxu0
      %1353 = vmatprep.mubr.f32.mxu0 0.0
      %1354 = vmatmul.mubr.f32.gmra.mrb[0].mxu0 %v1144
      %v1355 = vpop.f32.mrb[0].mxu0
      %v1356 = vadd.f32 0.0, %v1355
      %v1357 = vpop.f32.mrb[0].mxu0
      %1358 = vmatprep.mubr.f32.mxu0 0.0
      %1359 = vmatmul.mubr.f32.gmra.mrb[0].mxu0 %v1147
      %v1360 = vpop.f32.mrb[0].mxu0
      %v1361 = vadd.f32 0.0, %v1360
      %v1362 = vpop.f32.mrb[0].mxu0
      %1363 = vmatprep.mubr.f32.mxu0 0.0
      %1364 = vmatmul.mubr.f32.gmra.mrb[0].mxu0 %v1150
      %v1365 = vpop.f32.mrb[0].mxu0
      %v1366 = vadd.f32 0.0, %v1365
      %v1367 = vpop.f32.mrb[0].mxu0
      %1368 = vmatprep.mubr.f32.mxu0 0.0
      %1369 = vmatmul.mubr.f32.gmra.mrb[0].mxu0 %v1153
      %v1370 = vpop.f32.mrb[0].mxu0
      %v1371 = vadd.f32 0.0, %v1370
      %v1372 = vpop.f32.mrb[0].mxu0
      %1373 = vmatprep.mubr.f32.mxu0 0.0
      %1374 = vmatmul.mubr.f32.gmra.mrb[0].mxu0 %v1156
      %v1375 = vpop.f32.mrb[0].mxu0
      %v1376 = vadd.f32 0.0, %v1375
      %v1377 = vpop.f32.mrb[0].mxu0
      %1378 = vmatprep.mubr.f32.mxu0 0.0
      %1379 = vmatmul.mubr.f32.gmra.mrb[0].mxu0 %v1159
      %v1380 = vpop.f32.mrb[0].mxu0
      %v1381 = vadd.f32 0.0, %v1380
      %v1382 = vpop.f32.mrb[0].mxu0
      %1383 = vmatprep.mubr.f32.mxu0 0.0
      %1384 = vmatmul.mubr.f32.gmra.mrb[0].mxu0 %v1162
      %v1385 = vpop.f32.mrb[0].mxu0
      %v1386 = vadd.f32 0.0, %v1385
      %v1387 = vpop.f32.mrb[0].mxu0
      %1388 = vmatprep.mubr.f32.mxu0 0.0
      %1389 = vmatmul.mubr.f32.gmra.mrb[0].mxu0 %v1165
      %v1390 = vpop.f32.mrb[0].mxu0
      %v1391 = vadd.f32 0.0, %v1390
      %v1392 = vpop.f32.mrb[0].mxu0
      %1393 = vmatprep.mubr.f32.mxu0 0.0
      %1394 = vmatmul.mubr.f32.gmra.mrb[0].mxu0 %v1168
      %v1395 = vpop.f32.mrb[0].mxu0
      %v1396 = vadd.f32 0.0, %v1395
      %v1397 = vpop.f32.mrb[0].mxu0
      %1398 = vmatprep.mubr.f32.mxu0 0.0
      %1399 = vmatmul.mubr.f32.gmra.mrb[0].mxu0 %v1171
      %v1400 = vpop.f32.mrb[0].mxu0
      %v1401 = vadd.f32 0.0, %v1400
      %v1402 = vpop.f32.mrb[0].mxu0
      %1403 = vmatprep.mubr.f32.mxu0 0.0
      %1404 = vmatmul.mubr.f32.gmra.mrb[0].mxu0 %v1174
      %v1405 = vpop.f32.mrb[0].mxu0
      %v1406 = vadd.f32 0.0, %v1405
      %v1407 = vpop.f32.mrb[0].mxu0
      %1408 = vmatprep.mubr.f32.mxu0 0.0
      %1409 = vmatmul.mubr.f32.gmra.mrb[0].mxu0 %v1177
      %v1410 = vpop.f32.mrb[0].mxu0
      %v1411 = vadd.f32 0.0, %v1410
      %v1412 = vpop.f32.mrb[0].mxu0
      %1413 = vmatprep.mubr.f32.mxu0 0.0
      %1414 = vmatmul.mubr.f32.gmra.mrb[0].mxu0 %v1180
      %v1415 = vpop.f32.mrb[0].mxu0
      %v1416 = vadd.f32 0.0, %v1415
      %v1417 = vpop.f32.mrb[0].mxu0
      %1418 = vmatprep.mubr.f32.mxu0 0.0
      %1419 = vmatmul.mubr.f32.gmra.mrb[0].mxu0 %v1183
      %v1420 = vpop.f32.mrb[0].mxu0
      %v1421 = vadd.f32 0.0, %v1420
      %v1422 = vpop.f32.mrb[0].mxu0
      %1423 = vmatprep.mubr.f32.mxu0 0.0
      %1424 = vmatmul.mubr.f32.gmra.mrb[0].mxu0 %v1186
      %v1425 = vpop.f32.mrb[0].mxu0
      %v1426 = vadd.f32 0.0, %v1425
      %v1427 = vpop.f32.mrb[0].mxu0
      %1428 = vmatprep.mubr.f32.mxu0 0.0
      %1429 = vmatmul.mubr.f32.gmra.mrb[0].mxu0 %v1189
      %v1430 = vpop.f32.mrb[0].mxu0
      %v1431 = vadd.f32 0.0, %v1430
      %v1432 = vpop.f32.mrb[0].mxu0
      %1433 = vmatprep.mubr.f32.mxu0 0.0
      %1434 = vmatmul.mubr.f32.gmra.mrb[0].mxu0 %v1192
      %v1435 = vpop.f32.mrb[0].mxu0
      %v1436 = vadd.f32 0.0, %v1435
      %v1437 = vpop.f32.mrb[0].mxu0
      %1438 = vdwg.mxu0
      %v1439 = vadd.f32 %v870, %v1261
      %v1440 = vadd.f32 %v875, %v1266
      %v1441 = vadd.f32 %v880, %v1271
      %v1442 = vadd.f32 %v885, %v1276
      %v1443 = vadd.f32 %v890, %v1281
      %v1444 = vadd.f32 %v895, %v1286
      %v1445 = vadd.f32 %v900, %v1291
      %v1446 = vadd.f32 %v905, %v1296
      %v1447 = vadd.f32 %v910, %v1301
      %v1448 = vadd.f32 %v915, %v1306
      %v1449 = vadd.f32 %v920, %v1311
      %v1450 = vadd.f32 %v925, %v1316
      %v1451 = vadd.f32 %v930, %v1321
      %v1452 = vadd.f32 %v935, %v1326
      %v1453 = vadd.f32 %v940, %v1331
      %v1454 = vadd.f32 %v945, %v1336
      %v1455 = vadd.f32 %v950, %v1341
      %v1456 = vadd.f32 %v955, %v1346
      %v1457 = vadd.f32 %v960, %v1351
      %v1458 = vadd.f32 %v965, %v1356
      %v1459 = vadd.f32 %v970, %v1361
      %v1460 = vadd.f32 %v975, %v1366
      %v1461 = vadd.f32 %v980, %v1371
      %v1462 = vadd.f32 %v985, %v1376
      %v1463 = vadd.f32 %v990, %v1381
      %v1464 = vadd.f32 %v995, %v1386
      %v1465 = vadd.f32 %v1000, %v1391
      %v1466 = vadd.f32 %v1005, %v1396
      %v1467 = vadd.f32 %v1010, %v1401
      %v1468 = vadd.f32 %v1015, %v1406
      %v1469 = vadd.f32 %v1020, %v1411
      %v1470 = vadd.f32 %v1025, %v1416
      %v1471 = vadd.f32 %v1030, %v1421
      %v1472 = vadd.f32 %v1035, %v1426
      %v1473 = vadd.f32 %v1040, %v1431
      %v1474 = vadd.f32 %v1045, %v1436
      %s1475 = scalar_lea.vmem %s217, 24
      %v1476 = vld [vmem:[%s1475] sm:$0xff]
      %v1477 = vld [vmem:[%s1475 + $0x8] sm:$0xff]
      %v1478 = vld [vmem:[%s1475 + $0x18] sm:$0xff]
      %v1479 = vld [vmem:[%s1475 + $0x20] sm:$0xff]
      %v1480 = vld [vmem:[%s1475 + $0x30] sm:$0xff]
      %v1481 = vld [vmem:[%s1475 + $0x38] sm:$0xff]
      %v1482 = vld [vmem:[%s1475 + $0x48] sm:$0xff]
      %v1483 = vld [vmem:[%s1475 + $0x50] sm:$0xff]
      %v1484 = vld [vmem:[%s1475 + $0x60] sm:$0xff]
      %v1485 = vld [vmem:[%s1475 + $0x68] sm:$0xff]
      %v1486 = vld [vmem:[%s1475 + $0x78] sm:$0xff]
      %v1487 = vld [vmem:[%s1475 + $0x80] sm:$0xff]
      %v1488 = vld [vmem:[%s1475 + $0x90] sm:$0xff]
      %v1489 = vld [vmem:[%s1475 + $0x98] sm:$0xff]
      %v1490 = vld [vmem:[%s1475 + $0xa8] sm:$0xff]
      %v1491 = vld [vmem:[%s1475 + $0xb0] sm:$0xff]
      %v1492 = vld [vmem:[%s1475 + $0xc0] sm:$0xff]
      %v1493 = vld [vmem:[%s1475 + $0xc8] sm:$0xff]
      %v1494 = vld [vmem:[%s1475 + $0xd8] sm:$0xff]
      %v1495 = vld [vmem:[%s1475 + $0xe0] sm:$0xff]
      %v1496 = vld [vmem:[%s1475 + $0xf0] sm:$0xff]
      %v1497 = vld [vmem:[%s1475 + $0xf8] sm:$0xff]
      %v1498 = vld [vmem:[%s1475 + $0x108] sm:$0xff]
      %v1499 = vld [vmem:[%s1475 + $0x110] sm:$0xff]
      %v1500 = vld [vmem:[%s1475 + $0x120] sm:$0xff]
      %v1501 = vld [vmem:[%s1475 + $0x128] sm:$0xff]
      %v1502 = vld [vmem:[%s1475 + $0x138] sm:$0xff]
      %v1503 = vld [vmem:[%s1475 + $0x140] sm:$0xff]
      %v1504 = vld [vmem:[%s1475 + $0x150] sm:$0xff]
      %v1505 = vld [vmem:[%s1475 + $0x158] sm:$0xff]
      %v1506 = vld [vmem:[%s1475 + $0x168] sm:$0xff]
      %v1507 = vld [vmem:[%s1475 + $0x170] sm:$0xff]
      %v1508 = vld [vmem:[%s1475 + $0x180] sm:$0xff]
      %v1509 = vld [vmem:[%s1475 + $0x188] sm:$0xff]
      %v1510 = vld [vmem:[%s1475 + $0x198] sm:$0xff]
      %v1511 = vld [vmem:[%s1475 + $0x1a0] sm:$0xff]
      %s1512 = scalar_lea.vmem %s1, 24
      %v1513 = vld [vmem:[%s1512] sm:$0xff]
      %v1515 = vsel %vm341, %v1476, 0
      %v1518 = vsel %vm341, %v1477, 0
      %v1521 = vsel %vm341, %v1478, 0
      %v1524 = vsel %vm341, %v1479, 0
      %v1527 = vsel %vm341, %v1480, 0
      %v1530 = vsel %vm341, %v1481, 0
      %v1533 = vsel %vm341, %v1482, 0
      %v1536 = vsel %vm341, %v1483, 0
      %v1539 = vsel %vm341, %v1484, 0
      %v1542 = vsel %vm341, %v1485, 0
      %v1545 = vsel %vm341, %v1486, 0
      %v1548 = vsel %vm341, %v1487, 0
      %v1551 = vsel %vm341, %v1488, 0
      %v1554 = vsel %vm341, %v1489, 0
      %v1557 = vsel %vm341, %v1490, 0
      %v1560 = vsel %vm341, %v1491, 0
      %v1563 = vsel %vm341, %v1492, 0
      %v1566 = vsel %vm341, %v1493, 0
      %v1569 = vsel %vm341, %v1494, 0
      %v1572 = vsel %vm341, %v1495, 0
      %v1575 = vsel %vm341, %v1496, 0
      %v1578 = vsel %vm341, %v1497, 0
      %v1581 = vsel %vm341, %v1498, 0
      %v1584 = vsel %vm341, %v1499, 0
      %v1587 = vsel %vm341, %v1500, 0
      %v1590 = vsel %vm341, %v1501, 0
      %v1593 = vsel %vm341, %v1502, 0
      %v1596 = vsel %vm341, %v1503, 0
      %v1599 = vsel %vm341, %v1504, 0
      %v1602 = vsel %vm341, %v1505, 0
      %v1605 = vsel %vm341, %v1506, 0
      %v1608 = vsel %vm341, %v1507, 0
      %v1611 = vsel %vm341, %v1508, 0
      %v1614 = vsel %vm341, %v1509, 0
      %v1617 = vsel %vm341, %v1510, 0
      %v1620 = vsel %vm341, %v1511, 0
      %1622 = vmatprep.subr.mxu0 0.0
      %1623 = vmatpush1.msra.mxu0 %v1513
      %1624 = vmatprep.subr.mxu0 0.0
      %1625 = vmatpush1.msra.mxu0 0.0
      %1626 = vmatprep.subr.mxu0 0.0
      %1627 = vmatpush1.msra.mxu0 0.0
      %1628 = vmatprep.subr.mxu0 0.0
      %1629 = vmatpush1.msra.mxu0 0.0
      %1630 = vmatprep.subr.mxu0 0.0
      %1631 = vmatpush1.msra.mxu0 0.0
      %1632 = vmatprep.subr.mxu0 0.0
      %1633 = vmatpush1.msra.mxu0 0.0
      %1634 = vmatprep.subr.mxu0 0.0
      %1635 = vmatpush1.msra.mxu0 0.0
      %1636 = vmatprep.subr.mxu0 0.0
      %1637 = vmatpush1.msra.mxu0 0.0
      %1638 = vmatprep.subr.mxu0 0.0
      %1639 = vmatpush1.msra.mxu0 0.0
      %1640 = vmatprep.subr.mxu0 0.0
      %1641 = vmatpush1.msra.mxu0 0.0
      %1642 = vmatprep.subr.mxu0 0.0
      %1643 = vmatpush1.msra.mxu0 0.0
      %1644 = vmatprep.subr.mxu0 0.0
      %1645 = vmatpush1.msra.mxu0 0.0
      %1646 = vmatprep.subr.mxu0 0.0
      %1647 = vmatpush1.msra.mxu0 0.0
      %1648 = vmatprep.subr.mxu0 0.0
      %1649 = vmatpush1.msra.mxu0 0.0
      %1650 = vmatprep.subr.mxu0 0.0
      %1651 = vmatpush1.msra.mxu0 0.0
      %1652 = vmatprep.subr.mxu0 0.0
      %1653 = vmatpush1.msra.mxu0 0.0
      %1654 = vmatprep.subr.mxu0 0.0
      %1655 = vmatpush1.msra.mxu0 0.0
      %1656 = vmatprep.subr.mxu0 0.0
      %1657 = vmatpush1.msra.mxu0 0.0
      %1658 = vmatprep.subr.mxu0 0.0
      %1659 = vmatpush1.msra.mxu0 0.0
      %1660 = vmatprep.subr.mxu0 0.0
      %1661 = vmatpush1.msra.mxu0 0.0
      %1662 = vmatprep.subr.mxu0 0.0
      %1663 = vmatpush1.msra.mxu0 0.0
      %1664 = vmatprep.subr.mxu0 0.0
      %1665 = vmatpush1.msra.mxu0 0.0
      %1666 = vmatprep.subr.mxu0 0.0
      %1667 = vmatpush1.msra.mxu0 0.0
      %1668 = vmatprep.subr.mxu0 0.0
      %1669 = vmatpush1.msra.mxu0 0.0
      %1670 = vmatprep.subr.mxu0 0.0
      %1671 = vmatpush1.msra.mxu0 0.0
      %1672 = vmatprep.subr.mxu0 0.0
      %1673 = vmatpush1.msra.mxu0 0.0
      %1674 = vmatprep.subr.mxu0 0.0
      %1675 = vmatpush1.msra.mxu0 0.0
      %1676 = vmatprep.subr.mxu0 0.0
      %1677 = vmatpush1.msra.mxu0 0.0
      %1678 = vmatprep.subr.mxu0 0.0
      %1679 = vmatpush1.msra.mxu0 0.0
      %1680 = vmatprep.subr.mxu0 0.0
      %1681 = vmatpush1.msra.mxu0 0.0
      %1682 = vmatprep.subr.mxu0 0.0
      %1683 = vmatpush1.msra.mxu0 0.0
      %1684 = vmatprep.subr.mxu0 0.0
      %1685 = vmatpush1.msra.mxu0 0.0
      %1686 = vmatprep.mubr.f32.mxu0 0.0
      %1687 = vmatmul.mubr.f32.gmra.mrb[0].mxu0 %v1515
      %v1688 = vpop.f32.mrb[0].mxu0
      %v1689 = vadd.f32 0.0, %v1688
      %v1690 = vpop.f32.mrb[0].mxu0
      %1691 = vmatprep.mubr.f32.mxu0 0.0
      %1692 = vmatmul.mubr.f32.gmra.mrb[0].mxu0 %v1518
      %v1693 = vpop.f32.mrb[0].mxu0
      %v1694 = vadd.f32 0.0, %v1693
      %v1695 = vpop.f32.mrb[0].mxu0
      %1696 = vmatprep.mubr.f32.mxu0 0.0
      %1697 = vmatmul.mubr.f32.gmra.mrb[0].mxu0 %v1521
      %v1698 = vpop.f32.mrb[0].mxu0
      %v1699 = vadd.f32 0.0, %v1698
      %v1700 = vpop.f32.mrb[0].mxu0
      %1701 = vmatprep.mubr.f32.mxu0 0.0
      %1702 = vmatmul.mubr.f32.gmra.mrb[0].mxu0 %v1524
      %v1703 = vpop.f32.mrb[0].mxu0
      %v1704 = vadd.f32 0.0, %v1703
      %v1705 = vpop.f32.mrb[0].mxu0
      %1706 = vmatprep.mubr.f32.mxu0 0.0
      %1707 = vmatmul.mubr.f32.gmra.mrb[0].mxu0 %v1527
      %v1708 = vpop.f32.mrb[0].mxu0
      %v1709 = vadd.f32 0.0, %v1708
      %v1710 = vpop.f32.mrb[0].mxu0
      %1711 = vmatprep.mubr.f32.mxu0 0.0
      %1712 = vmatmul.mubr.f32.gmra.mrb[0].mxu0 %v1530
      %v1713 = vpop.f32.mrb[0].mxu0
      %v1714 = vadd.f32 0.0, %v1713
      %v1715 = vpop.f32.mrb[0].mxu0
      %1716 = vmatprep.mubr.f32.mxu0 0.0
      %1717 = vmatmul.mubr.f32.gmra.mrb[0].mxu0 %v1533
      %v1718 = vpop.f32.mrb[0].mxu0
      %v1719 = vadd.f32 0.0, %v1718
      %v1720 = vpop.f32.mrb[0].mxu0
      %1721 = vmatprep.mubr.f32.mxu0 0.0
      %1722 = vmatmul.mubr.f32.gmra.mrb[0].mxu0 %v1536
      %v1723 = vpop.f32.mrb[0].mxu0
      %v1724 = vadd.f32 0.0, %v1723
      %v1725 = vpop.f32.mrb[0].mxu0
      %1726 = vmatprep.mubr.f32.mxu0 0.0
      %1727 = vmatmul.mubr.f32.gmra.mrb[0].mxu0 %v1539
      %v1728 = vpop.f32.mrb[0].mxu0
      %v1729 = vadd.f32 0.0, %v1728
      %v1730 = vpop.f32.mrb[0].mxu0
      %1731 = vmatprep.mubr.f32.mxu0 0.0
      %1732 = vmatmul.mubr.f32.gmra.mrb[0].mxu0 %v1542
      %v1733 = vpop.f32.mrb[0].mxu0
      %v1734 = vadd.f32 0.0, %v1733
      %v1735 = vpop.f32.mrb[0].mxu0
      %1736 = vmatprep.mubr.f32.mxu0 0.0
      %1737 = vmatmul.mubr.f32.gmra.mrb[0].mxu0 %v1545
      %v1738 = vpop.f32.mrb[0].mxu0
      %v1739 = vadd.f32 0.0, %v1738
      %v1740 = vpop.f32.mrb[0].mxu0
      %1741 = vmatprep.mubr.f32.mxu0 0.0
      %1742 = vmatmul.mubr.f32.gmra.mrb[0].mxu0 %v1548
      %v1743 = vpop.f32.mrb[0].mxu0
      %v1744 = vadd.f32 0.0, %v1743
      %v1745 = vpop.f32.mrb[0].mxu0
      %1746 = vmatprep.mubr.f32.mxu0 0.0
      %1747 = vmatmul.mubr.f32.gmra.mrb[0].mxu0 %v1551
      %v1748 = vpop.f32.mrb[0].mxu0
      %v1749 = vadd.f32 0.0, %v1748
      %v1750 = vpop.f32.mrb[0].mxu0
      %1751 = vmatprep.mubr.f32.mxu0 0.0
      %1752 = vmatmul.mubr.f32.gmra.mrb[0].mxu0 %v1554
      %v1753 = vpop.f32.mrb[0].mxu0
      %v1754 = vadd.f32 0.0, %v1753
      %v1755 = vpop.f32.mrb[0].mxu0
      %1756 = vmatprep.mubr.f32.mxu0 0.0
      %1757 = vmatmul.mubr.f32.gmra.mrb[0].mxu0 %v1557
      %v1758 = vpop.f32.mrb[0].mxu0
      %v1759 = vadd.f32 0.0, %v1758
      %v1760 = vpop.f32.mrb[0].mxu0
      %1761 = vmatprep.mubr.f32.mxu0 0.0
      %1762 = vmatmul.mubr.f32.gmra.mrb[0].mxu0 %v1560
      %v1763 = vpop.f32.mrb[0].mxu0
      %v1764 = vadd.f32 0.0, %v1763
      %v1765 = vpop.f32.mrb[0].mxu0
      %1766 = vmatprep.mubr.f32.mxu0 0.0
      %1767 = vmatmul.mubr.f32.gmra.mrb[0].mxu0 %v1563
      %v1768 = vpop.f32.mrb[0].mxu0
      %v1769 = vadd.f32 0.0, %v1768
      %v1770 = vpop.f32.mrb[0].mxu0
      %1771 = vmatprep.mubr.f32.mxu0 0.0
      %1772 = vmatmul.mubr.f32.gmra.mrb[0].mxu0 %v1566
      %v1773 = vpop.f32.mrb[0].mxu0
      %v1774 = vadd.f32 0.0, %v1773
      %v1775 = vpop.f32.mrb[0].mxu0
      %1776 = vmatprep.mubr.f32.mxu0 0.0
      %1777 = vmatmul.mubr.f32.gmra.mrb[0].mxu0 %v1569
      %v1778 = vpop.f32.mrb[0].mxu0
      %v1779 = vadd.f32 0.0, %v1778
      %v1780 = vpop.f32.mrb[0].mxu0
      %1781 = vmatprep.mubr.f32.mxu0 0.0
      %1782 = vmatmul.mubr.f32.gmra.mrb[0].mxu0 %v1572
      %v1783 = vpop.f32.mrb[0].mxu0
      %v1784 = vadd.f32 0.0, %v1783
      %v1785 = vpop.f32.mrb[0].mxu0
      %1786 = vmatprep.mubr.f32.mxu0 0.0
      %1787 = vmatmul.mubr.f32.gmra.mrb[0].mxu0 %v1575
      %v1788 = vpop.f32.mrb[0].mxu0
      %v1789 = vadd.f32 0.0, %v1788
      %v1790 = vpop.f32.mrb[0].mxu0
      %1791 = vmatprep.mubr.f32.mxu0 0.0
      %1792 = vmatmul.mubr.f32.gmra.mrb[0].mxu0 %v1578
      %v1793 = vpop.f32.mrb[0].mxu0
      %v1794 = vadd.f32 0.0, %v1793
      %v1795 = vpop.f32.mrb[0].mxu0
      %1796 = vmatprep.mubr.f32.mxu0 0.0
      %1797 = vmatmul.mubr.f32.gmra.mrb[0].mxu0 %v1581
      %v1798 = vpop.f32.mrb[0].mxu0
      %v1799 = vadd.f32 0.0, %v1798
      %v1800 = vpop.f32.mrb[0].mxu0
      %1801 = vmatprep.mubr.f32.mxu0 0.0
      %1802 = vmatmul.mubr.f32.gmra.mrb[0].mxu0 %v1584
      %v1803 = vpop.f32.mrb[0].mxu0
      %v1804 = vadd.f32 0.0, %v1803
      %v1805 = vpop.f32.mrb[0].mxu0
      %1806 = vmatprep.mubr.f32.mxu0 0.0
      %1807 = vmatmul.mubr.f32.gmra.mrb[0].mxu0 %v1587
      %v1808 = vpop.f32.mrb[0].mxu0
      %v1809 = vadd.f32 0.0, %v1808
      %v1810 = vpop.f32.mrb[0].mxu0
      %1811 = vmatprep.mubr.f32.mxu0 0.0
      %1812 = vmatmul.mubr.f32.gmra.mrb[0].mxu0 %v1590
      %v1813 = vpop.f32.mrb[0].mxu0
      %v1814 = vadd.f32 0.0, %v1813
      %v1815 = vpop.f32.mrb[0].mxu0
      %1816 = vmatprep.mubr.f32.mxu0 0.0
      %1817 = vmatmul.mubr.f32.gmra.mrb[0].mxu0 %v1593
      %v1818 = vpop.f32.mrb[0].mxu0
      %v1819 = vadd.f32 0.0, %v1818
      %v1820 = vpop.f32.mrb[0].mxu0
      %1821 = vmatprep.mubr.f32.mxu0 0.0
      %1822 = vmatmul.mubr.f32.gmra.mrb[0].mxu0 %v1596
      %v1823 = vpop.f32.mrb[0].mxu0
      %v1824 = vadd.f32 0.0, %v1823
      %v1825 = vpop.f32.mrb[0].mxu0
      %1826 = vmatprep.mubr.f32.mxu0 0.0
      %1827 = vmatmul.mubr.f32.gmra.mrb[0].mxu0 %v1599
      %v1828 = vpop.f32.mrb[0].mxu0
      %v1829 = vadd.f32 0.0, %v1828
      %v1830 = vpop.f32.mrb[0].mxu0
      %1831 = vmatprep.mubr.f32.mxu0 0.0
      %1832 = vmatmul.mubr.f32.gmra.mrb[0].mxu0 %v1602
      %v1833 = vpop.f32.mrb[0].mxu0
      %v1834 = vadd.f32 0.0, %v1833
      %v1835 = vpop.f32.mrb[0].mxu0
      %1836 = vmatprep.mubr.f32.mxu0 0.0
      %1837 = vmatmul.mubr.f32.gmra.mrb[0].mxu0 %v1605
      %v1838 = vpop.f32.mrb[0].mxu0
      %v1839 = vadd.f32 0.0, %v1838
      %v1840 = vpop.f32.mrb[0].mxu0
      %1841 = vmatprep.mubr.f32.mxu0 0.0
      %1842 = vmatmul.mubr.f32.gmra.mrb[0].mxu0 %v1608
      %v1843 = vpop.f32.mrb[0].mxu0
      %v1844 = vadd.f32 0.0, %v1843
      %v1845 = vpop.f32.mrb[0].mxu0
      %1846 = vmatprep.mubr.f32.mxu0 0.0
      %1847 = vmatmul.mubr.f32.gmra.mrb[0].mxu0 %v1611
      %v1848 = vpop.f32.mrb[0].mxu0
      %v1849 = vadd.f32 0.0, %v1848
      %v1850 = vpop.f32.mrb[0].mxu0
      %1851 = vmatprep.mubr.f32.mxu0 0.0
      %1852 = vmatmul.mubr.f32.gmra.mrb[0].mxu0 %v1614
      %v1853 = vpop.f32.mrb[0].mxu0
      %v1854 = vadd.f32 0.0, %v1853
      %v1855 = vpop.f32.mrb[0].mxu0
      %1856 = vmatprep.mubr.f32.mxu0 0.0
      %1857 = vmatmul.mubr.f32.gmra.mrb[0].mxu0 %v1617
      %v1858 = vpop.f32.mrb[0].mxu0
      %v1859 = vadd.f32 0.0, %v1858
      %v1860 = vpop.f32.mrb[0].mxu0
      %1861 = vmatprep.mubr.f32.mxu0 0.0
      %1862 = vmatmul.mubr.f32.gmra.mrb[0].mxu0 %v1620
      %v1863 = vpop.f32.mrb[0].mxu0
      %v1864 = vadd.f32 0.0, %v1863
      %v1865 = vpop.f32.mrb[0].mxu0
      %1866 = vdwg.mxu0
      %v1867 = vadd.f32 %v1439, %v1689
      %v1868 = vadd.f32 %v1440, %v1694
      %v1869 = vadd.f32 %v1441, %v1699
      %v1870 = vadd.f32 %v1442, %v1704
      %v1871 = vadd.f32 %v1443, %v1709
      %v1872 = vadd.f32 %v1444, %v1714
      %v1873 = vadd.f32 %v1445, %v1719
      %v1874 = vadd.f32 %v1446, %v1724
      %v1875 = vadd.f32 %v1447, %v1729
      %v1876 = vadd.f32 %v1448, %v1734
      %v1877 = vadd.f32 %v1449, %v1739
      %v1878 = vadd.f32 %v1450, %v1744
      %v1879 = vadd.f32 %v1451, %v1749
      %v1880 = vadd.f32 %v1452, %v1754
      %v1881 = vadd.f32 %v1453, %v1759
      %v1882 = vadd.f32 %v1454, %v1764
      %v1883 = vadd.f32 %v1455, %v1769
      %v1884 = vadd.f32 %v1456, %v1774
      %v1885 = vadd.f32 %v1457, %v1779
      %v1886 = vadd.f32 %v1458, %v1784
      %v1887 = vadd.f32 %v1459, %v1789
      %v1888 = vadd.f32 %v1460, %v1794
      %v1889 = vadd.f32 %v1461, %v1799
      %v1890 = vadd.f32 %v1462, %v1804
      %v1891 = vadd.f32 %v1463, %v1809
      %v1892 = vadd.f32 %v1464, %v1814
      %v1893 = vadd.f32 %v1465, %v1819
      %v1894 = vadd.f32 %v1466, %v1824
      %v1895 = vadd.f32 %v1467, %v1829
      %v1896 = vadd.f32 %v1468, %v1834
      %v1897 = vadd.f32 %v1469, %v1839
      %v1898 = vadd.f32 %v1470, %v1844
      %v1899 = vadd.f32 %v1471, %v1849
      %v1900 = vadd.f32 %v1472, %v1854
      %v1901 = vadd.f32 %v1473, %v1859
      %v1902 = vadd.f32 %v1474, %v1864
      %v1903 = vld [vmem:[%s1475 + $0x1] sm:$0xff]
      %v1904 = vld [vmem:[%s1475 + $0x9] sm:$0xff]
      %v1905 = vld [vmem:[%s1475 + $0x19] sm:$0xff]
      %v1906 = vld [vmem:[%s1475 + $0x21] sm:$0xff]
      %v1907 = vld [vmem:[%s1475 + $0x31] sm:$0xff]
      %v1908 = vld [vmem:[%s1475 + $0x39] sm:$0xff]
      %v1909 = vld [vmem:[%s1475 + $0x49] sm:$0xff]
      %v1910 = vld [vmem:[%s1475 + $0x51] sm:$0xff]
      %v1911 = vld [vmem:[%s1475 + $0x61] sm:$0xff]
      %v1912 = vld [vmem:[%s1475 + $0x69] sm:$0xff]
      %v1913 = vld [vmem:[%s1475 + $0x79] sm:$0xff]
      %v1914 = vld [vmem:[%s1475 + $0x81] sm:$0xff]
      %v1915 = vld [vmem:[%s1475 + $0x91] sm:$0xff]
      %v1916 = vld [vmem:[%s1475 + $0x99] sm:$0xff]
      %v1917 = vld [vmem:[%s1475 + $0xa9] sm:$0xff]
      %v1918 = vld [vmem:[%s1475 + $0xb1] sm:$0xff]
      %v1919 = vld [vmem:[%s1475 + $0xc1] sm:$0xff]
      %v1920 = vld [vmem:[%s1475 + $0xc9] sm:$0xff]
      %v1921 = vld [vmem:[%s1475 + $0xd9] sm:$0xff]
      %v1922 = vld [vmem:[%s1475 + $0xe1] sm:$0xff]
      %v1923 = vld [vmem:[%s1475 + $0xf1] sm:$0xff]
      %v1924 = vld [vmem:[%s1475 + $0xf9] sm:$0xff]
      %v1925 = vld [vmem:[%s1475 + $0x109] sm:$0xff]
      %v1926 = vld [vmem:[%s1475 + $0x111] sm:$0xff]
      %v1927 = vld [vmem:[%s1475 + $0x121] sm:$0xff]
      %v1928 = vld [vmem:[%s1475 + $0x129] sm:$0xff]
      %v1929 = vld [vmem:[%s1475 + $0x139] sm:$0xff]
      %v1930 = vld [vmem:[%s1475 + $0x141] sm:$0xff]
      %v1931 = vld [vmem:[%s1475 + $0x151] sm:$0xff]
      %v1932 = vld [vmem:[%s1475 + $0x159] sm:$0xff]
      %v1933 = vld [vmem:[%s1475 + $0x169] sm:$0xff]
      %v1934 = vld [vmem:[%s1475 + $0x171] sm:$0xff]
      %v1935 = vld [vmem:[%s1475 + $0x181] sm:$0xff]
      %v1936 = vld [vmem:[%s1475 + $0x189] sm:$0xff]
      %v1937 = vld [vmem:[%s1475 + $0x199] sm:$0xff]
      %v1938 = vld [vmem:[%s1475 + $0x1a1] sm:$0xff]
      %s1939 = scalar_lea.vmem %s1, 32
      %v1940 = vld [vmem:[%s1939] sm:$0xff]
      %v1942 = vsel %vm341, %v1903, 0
      %v1945 = vsel %vm341, %v1904, 0
      %v1948 = vsel %vm341, %v1905, 0
      %v1951 = vsel %vm341, %v1906, 0
      %v1954 = vsel %vm341, %v1907, 0
      %v1957 = vsel %vm341, %v1908, 0
      %v1960 = vsel %vm341, %v1909, 0
      %v1963 = vsel %vm341, %v1910, 0
      %v1966 = vsel %vm341, %v1911, 0
      %v1969 = vsel %vm341, %v1912, 0
      %v1972 = vsel %vm341, %v1913, 0
      %v1975 = vsel %vm341, %v1914, 0
      %v1978 = vsel %vm341, %v1915, 0
      %v1981 = vsel %vm341, %v1916, 0
      %v1984 = vsel %vm341, %v1917, 0
      %v1987 = vsel %vm341, %v1918, 0
      %v1990 = vsel %vm341, %v1919, 0
      %v1993 = vsel %vm341, %v1920, 0
      %v1996 = vsel %vm341, %v1921, 0
      %v1999 = vsel %vm341, %v1922, 0
      %v2002 = vsel %vm341, %v1923, 0
      %v2005 = vsel %vm341, %v1924, 0
      %v2008 = vsel %vm341, %v1925, 0
      %v2011 = vsel %vm341, %v1926, 0
      %v2014 = vsel %vm341, %v1927, 0
      %v2017 = vsel %vm341, %v1928, 0
      %v2020 = vsel %vm341, %v1929, 0
      %v2023 = vsel %vm341, %v1930, 0
      %v2026 = vsel %vm341, %v1931, 0
      %v2029 = vsel %vm341, %v1932, 0
      %v2032 = vsel %vm341, %v1933, 0
      %v2035 = vsel %vm341, %v1934, 0
      %v2038 = vsel %vm341, %v1935, 0
      %v2041 = vsel %vm341, %v1936, 0
      %v2044 = vsel %vm341, %v1937, 0
      %v2047 = vsel %vm341, %v1938, 0
      %2049 = vmatprep.subr.mxu0 0.0
      %2050 = vmatpush1.msra.mxu0 %v1940
      %2051 = vmatprep.subr.mxu0 0.0
      %2052 = vmatpush1.msra.mxu0 0.0
      %2053 = vmatprep.subr.mxu0 0.0
      %2054 = vmatpush1.msra.mxu0 0.0
      %2055 = vmatprep.subr.mxu0 0.0
      %2056 = vmatpush1.msra.mxu0 0.0
      %2057 = vmatprep.subr.mxu0 0.0
      %2058 = vmatpush1.msra.mxu0 0.0
      %2059 = vmatprep.subr.mxu0 0.0
      %2060 = vmatpush1.msra.mxu0 0.0
      %2061 = vmatprep.subr.mxu0 0.0
      %2062 = vmatpush1.msra.mxu0 0.0
      %2063 = vmatprep.subr.mxu0 0.0
      %2064 = vmatpush1.msra.mxu0 0.0
      %2065 = vmatprep.subr.mxu0 0.0
      %2066 = vmatpush1.msra.mxu0 0.0
      %2067 = vmatprep.subr.mxu0 0.0
      %2068 = vmatpush1.msra.mxu0 0.0
      %2069 = vmatprep.subr.mxu0 0.0
      %2070 = vmatpush1.msra.mxu0 0.0
      %2071 = vmatprep.subr.mxu0 0.0
      %2072 = vmatpush1.msra.mxu0 0.0
      %2073 = vmatprep.subr.mxu0 0.0
      %2074 = vmatpush1.msra.mxu0 0.0
      %2075 = vmatprep.subr.mxu0 0.0
      %2076 = vmatpush1.msra.mxu0 0.0
      %2077 = vmatprep.subr.mxu0 0.0
      %2078 = vmatpush1.msra.mxu0 0.0
      %2079 = vmatprep.subr.mxu0 0.0
      %2080 = vmatpush1.msra.mxu0 0.0
      %2081 = vmatprep.subr.mxu0 0.0
      %2082 = vmatpush1.msra.mxu0 0.0
      %2083 = vmatprep.subr.mxu0 0.0
      %2084 = vmatpush1.msra.mxu0 0.0
      %2085 = vmatprep.subr.mxu0 0.0
      %2086 = vmatpush1.msra.mxu0 0.0
      %2087 = vmatprep.subr.mxu0 0.0
      %2088 = vmatpush1.msra.mxu0 0.0
      %2089 = vmatprep.subr.mxu0 0.0
      %2090 = vmatpush1.msra.mxu0 0.0
      %2091 = vmatprep.subr.mxu0 0.0
      %2092 = vmatpush1.msra.mxu0 0.0
      %2093 = vmatprep.subr.mxu0 0.0
      %2094 = vmatpush1.msra.mxu0 0.0
      %2095 = vmatprep.subr.mxu0 0.0
      %2096 = vmatpush1.msra.mxu0 0.0
      %2097 = vmatprep.subr.mxu0 0.0
      %2098 = vmatpush1.msra.mxu0 0.0
      %2099 = vmatprep.subr.mxu0 0.0
      %2100 = vmatpush1.msra.mxu0 0.0
      %2101 = vmatprep.subr.mxu0 0.0
      %2102 = vmatpush1.msra.mxu0 0.0
      %2103 = vmatprep.subr.mxu0 0.0
      %2104 = vmatpush1.msra.mxu0 0.0
      %2105 = vmatprep.subr.mxu0 0.0
      %2106 = vmatpush1.msra.mxu0 0.0
      %2107 = vmatprep.subr.mxu0 0.0
      %2108 = vmatpush1.msra.mxu0 0.0
      %2109 = vmatprep.subr.mxu0 0.0
      %2110 = vmatpush1.msra.mxu0 0.0
      %2111 = vmatprep.subr.mxu0 0.0
      %2112 = vmatpush1.msra.mxu0 0.0
      %2113 = vmatprep.mubr.f32.mxu0 0.0
      %2114 = vmatmul.mubr.f32.gmra.mrb[0].mxu0 %v1942
      %v2115 = vpop.f32.mrb[0].mxu0
      %v2116 = vadd.f32 0.0, %v2115
      %v2117 = vpop.f32.mrb[0].mxu0
      %2118 = vmatprep.mubr.f32.mxu0 0.0
      %2119 = vmatmul.mubr.f32.gmra.mrb[0].mxu0 %v1945
      %v2120 = vpop.f32.mrb[0].mxu0
      %v2121 = vadd.f32 0.0, %v2120
      %v2122 = vpop.f32.mrb[0].mxu0
      %2123 = vmatprep.mubr.f32.mxu0 0.0
      %2124 = vmatmul.mubr.f32.gmra.mrb[0].mxu0 %v1948
      %v2125 = vpop.f32.mrb[0].mxu0
      %v2126 = vadd.f32 0.0, %v2125
      %v2127 = vpop.f32.mrb[0].mxu0
      %2128 = vmatprep.mubr.f32.mxu0 0.0
      %2129 = vmatmul.mubr.f32.gmra.mrb[0].mxu0 %v1951
      %v2130 = vpop.f32.mrb[0].mxu0
      %v2131 = vadd.f32 0.0, %v2130
      %v2132 = vpop.f32.mrb[0].mxu0
      %2133 = vmatprep.mubr.f32.mxu0 0.0
      %2134 = vmatmul.mubr.f32.gmra.mrb[0].mxu0 %v1954
      %v2135 = vpop.f32.mrb[0].mxu0
      %v2136 = vadd.f32 0.0, %v2135
      %v2137 = vpop.f32.mrb[0].mxu0
      %2138 = vmatprep.mubr.f32.mxu0 0.0
      %2139 = vmatmul.mubr.f32.gmra.mrb[0].mxu0 %v1957
      %v2140 = vpop.f32.mrb[0].mxu0
      %v2141 = vadd.f32 0.0, %v2140
      %v2142 = vpop.f32.mrb[0].mxu0
      %2143 = vmatprep.mubr.f32.mxu0 0.0
      %2144 = vmatmul.mubr.f32.gmra.mrb[0].mxu0 %v1960
      %v2145 = vpop.f32.mrb[0].mxu0
      %v2146 = vadd.f32 0.0, %v2145
      %v2147 = vpop.f32.mrb[0].mxu0
      %2148 = vmatprep.mubr.f32.mxu0 0.0
      %2149 = vmatmul.mubr.f32.gmra.mrb[0].mxu0 %v1963
      %v2150 = vpop.f32.mrb[0].mxu0
      %v2151 = vadd.f32 0.0, %v2150
      %v2152 = vpop.f32.mrb[0].mxu0
      %2153 = vmatprep.mubr.f32.mxu0 0.0
      %2154 = vmatmul.mubr.f32.gmra.mrb[0].mxu0 %v1966
      %v2155 = vpop.f32.mrb[0].mxu0
      %v2156 = vadd.f32 0.0, %v2155
      %v2157 = vpop.f32.mrb[0].mxu0
      %2158 = vmatprep.mubr.f32.mxu0 0.0
      %2159 = vmatmul.mubr.f32.gmra.mrb[0].mxu0 %v1969
      %v2160 = vpop.f32.mrb[0].mxu0
      %v2161 = vadd.f32 0.0, %v2160
      %v2162 = vpop.f32.mrb[0].mxu0
      %2163 = vmatprep.mubr.f32.mxu0 0.0
      %2164 = vmatmul.mubr.f32.gmra.mrb[0].mxu0 %v1972
      %v2165 = vpop.f32.mrb[0].mxu0
      %v2166 = vadd.f32 0.0, %v2165
      %v2167 = vpop.f32.mrb[0].mxu0
      %2168 = vmatprep.mubr.f32.mxu0 0.0
      %2169 = vmatmul.mubr.f32.gmra.mrb[0].mxu0 %v1975
      %v2170 = vpop.f32.mrb[0].mxu0
      %v2171 = vadd.f32 0.0, %v2170
      %v2172 = vpop.f32.mrb[0].mxu0
      %2173 = vmatprep.mubr.f32.mxu0 0.0
      %2174 = vmatmul.mubr.f32.gmra.mrb[0].mxu0 %v1978
      %v2175 = vpop.f32.mrb[0].mxu0
      %v2176 = vadd.f32 0.0, %v2175
      %v2177 = vpop.f32.mrb[0].mxu0
      %2178 = vmatprep.mubr.f32.mxu0 0.0
      %2179 = vmatmul.mubr.f32.gmra.mrb[0].mxu0 %v1981
      %v2180 = vpop.f32.mrb[0].mxu0
      %v2181 = vadd.f32 0.0, %v2180
      %v2182 = vpop.f32.mrb[0].mxu0
      %2183 = vmatprep.mubr.f32.mxu0 0.0
      %2184 = vmatmul.mubr.f32.gmra.mrb[0].mxu0 %v1984
      %v2185 = vpop.f32.mrb[0].mxu0
      %v2186 = vadd.f32 0.0, %v2185
      %v2187 = vpop.f32.mrb[0].mxu0
      %2188 = vmatprep.mubr.f32.mxu0 0.0
      %2189 = vmatmul.mubr.f32.gmra.mrb[0].mxu0 %v1987
      %v2190 = vpop.f32.mrb[0].mxu0
      %v2191 = vadd.f32 0.0, %v2190
      %v2192 = vpop.f32.mrb[0].mxu0
      %2193 = vmatprep.mubr.f32.mxu0 0.0
      %2194 = vmatmul.mubr.f32.gmra.mrb[0].mxu0 %v1990
      %v2195 = vpop.f32.mrb[0].mxu0
      %v2196 = vadd.f32 0.0, %v2195
      %v2197 = vpop.f32.mrb[0].mxu0
      %2198 = vmatprep.mubr.f32.mxu0 0.0
      %2199 = vmatmul.mubr.f32.gmra.mrb[0].mxu0 %v1993
      %v2200 = vpop.f32.mrb[0].mxu0
      %v2201 = vadd.f32 0.0, %v2200
      %v2202 = vpop.f32.mrb[0].mxu0
      %2203 = vmatprep.mubr.f32.mxu0 0.0
      %2204 = vmatmul.mubr.f32.gmra.mrb[0].mxu0 %v1996
      %v2205 = vpop.f32.mrb[0].mxu0
      %v2206 = vadd.f32 0.0, %v2205
      %v2207 = vpop.f32.mrb[0].mxu0
      %2208 = vmatprep.mubr.f32.mxu0 0.0
      %2209 = vmatmul.mubr.f32.gmra.mrb[0].mxu0 %v1999
      %v2210 = vpop.f32.mrb[0].mxu0
      %v2211 = vadd.f32 0.0, %v2210
      %v2212 = vpop.f32.mrb[0].mxu0
      %2213 = vmatprep.mubr.f32.mxu0 0.0
      %2214 = vmatmul.mubr.f32.gmra.mrb[0].mxu0 %v2002
      %v2215 = vpop.f32.mrb[0].mxu0
      %v2216 = vadd.f32 0.0, %v2215
      %v2217 = vpop.f32.mrb[0].mxu0
      %2218 = vmatprep.mubr.f32.mxu0 0.0
      %2219 = vmatmul.mubr.f32.gmra.mrb[0].mxu0 %v2005
      %v2220 = vpop.f32.mrb[0].mxu0
      %v2221 = vadd.f32 0.0, %v2220
      %v2222 = vpop.f32.mrb[0].mxu0
      %2223 = vmatprep.mubr.f32.mxu0 0.0
      %2224 = vmatmul.mubr.f32.gmra.mrb[0].mxu0 %v2008
      %v2225 = vpop.f32.mrb[0].mxu0
      %v2226 = vadd.f32 0.0, %v2225
      %v2227 = vpop.f32.mrb[0].mxu0
      %2228 = vmatprep.mubr.f32.mxu0 0.0
      %2229 = vmatmul.mubr.f32.gmra.mrb[0].mxu0 %v2011
      %v2230 = vpop.f32.mrb[0].mxu0
      %v2231 = vadd.f32 0.0, %v2230
      %v2232 = vpop.f32.mrb[0].mxu0
      %2233 = vmatprep.mubr.f32.mxu0 0.0
      %2234 = vmatmul.mubr.f32.gmra.mrb[0].mxu0 %v2014
      %v2235 = vpop.f32.mrb[0].mxu0
      %v2236 = vadd.f32 0.0, %v2235
      %v2237 = vpop.f32.mrb[0].mxu0
      %2238 = vmatprep.mubr.f32.mxu0 0.0
      %2239 = vmatmul.mubr.f32.gmra.mrb[0].mxu0 %v2017
      %v2240 = vpop.f32.mrb[0].mxu0
      %v2241 = vadd.f32 0.0, %v2240
      %v2242 = vpop.f32.mrb[0].mxu0
      %2243 = vmatprep.mubr.f32.mxu0 0.0
      %2244 = vmatmul.mubr.f32.gmra.mrb[0].mxu0 %v2020
      %v2245 = vpop.f32.mrb[0].mxu0
      %v2246 = vadd.f32 0.0, %v2245
      %v2247 = vpop.f32.mrb[0].mxu0
      %2248 = vmatprep.mubr.f32.mxu0 0.0
      %2249 = vmatmul.mubr.f32.gmra.mrb[0].mxu0 %v2023
      %v2250 = vpop.f32.mrb[0].mxu0
      %v2251 = vadd.f32 0.0, %v2250
      %v2252 = vpop.f32.mrb[0].mxu0
      %2253 = vmatprep.mubr.f32.mxu0 0.0
      %2254 = vmatmul.mubr.f32.gmra.mrb[0].mxu0 %v2026
      %v2255 = vpop.f32.mrb[0].mxu0
      %v2256 = vadd.f32 0.0, %v2255
      %v2257 = vpop.f32.mrb[0].mxu0
      %2258 = vmatprep.mubr.f32.mxu0 0.0
      %2259 = vmatmul.mubr.f32.gmra.mrb[0].mxu0 %v2029
      %v2260 = vpop.f32.mrb[0].mxu0
      %v2261 = vadd.f32 0.0, %v2260
      %v2262 = vpop.f32.mrb[0].mxu0
      %2263 = vmatprep.mubr.f32.mxu0 0.0
      %2264 = vmatmul.mubr.f32.gmra.mrb[0].mxu0 %v2032
      %v2265 = vpop.f32.mrb[0].mxu0
      %v2266 = vadd.f32 0.0, %v2265
      %v2267 = vpop.f32.mrb[0].mxu0
      %2268 = vmatprep.mubr.f32.mxu0 0.0
      %2269 = vmatmul.mubr.f32.gmra.mrb[0].mxu0 %v2035
      %v2270 = vpop.f32.mrb[0].mxu0
      %v2271 = vadd.f32 0.0, %v2270
      %v2272 = vpop.f32.mrb[0].mxu0
      %2273 = vmatprep.mubr.f32.mxu0 0.0
      %2274 = vmatmul.mubr.f32.gmra.mrb[0].mxu0 %v2038
      %v2275 = vpop.f32.mrb[0].mxu0
      %v2276 = vadd.f32 0.0, %v2275
      %v2277 = vpop.f32.mrb[0].mxu0
      %2278 = vmatprep.mubr.f32.mxu0 0.0
      %2279 = vmatmul.mubr.f32.gmra.mrb[0].mxu0 %v2041
      %v2280 = vpop.f32.mrb[0].mxu0
      %v2281 = vadd.f32 0.0, %v2280
      %v2282 = vpop.f32.mrb[0].mxu0
      %2283 = vmatprep.mubr.f32.mxu0 0.0
      %2284 = vmatmul.mubr.f32.gmra.mrb[0].mxu0 %v2044
      %v2285 = vpop.f32.mrb[0].mxu0
      %v2286 = vadd.f32 0.0, %v2285
      %v2287 = vpop.f32.mrb[0].mxu0
      %2288 = vmatprep.mubr.f32.mxu0 0.0
      %2289 = vmatmul.mubr.f32.gmra.mrb[0].mxu0 %v2047
      %v2290 = vpop.f32.mrb[0].mxu0
      %v2291 = vadd.f32 0.0, %v2290
      %v2292 = vpop.f32.mrb[0].mxu0
      %2293 = vdwg.mxu0
      %v2294 = vadd.f32 %v1867, %v2116
      %v2295 = vadd.f32 %v1868, %v2121
      %v2296 = vadd.f32 %v1869, %v2126
      %v2297 = vadd.f32 %v1870, %v2131
      %v2298 = vadd.f32 %v1871, %v2136
      %v2299 = vadd.f32 %v1872, %v2141
      %v2300 = vadd.f32 %v1873, %v2146
      %v2301 = vadd.f32 %v1874, %v2151
      %v2302 = vadd.f32 %v1875, %v2156
      %v2303 = vadd.f32 %v1876, %v2161
      %v2304 = vadd.f32 %v1877, %v2166
      %v2305 = vadd.f32 %v1878, %v2171
      %v2306 = vadd.f32 %v1879, %v2176
      %v2307 = vadd.f32 %v1880, %v2181
      %v2308 = vadd.f32 %v1881, %v2186
      %v2309 = vadd.f32 %v1882, %v2191
      %v2310 = vadd.f32 %v1883, %v2196
      %v2311 = vadd.f32 %v1884, %v2201
      %v2312 = vadd.f32 %v1885, %v2206
      %v2313 = vadd.f32 %v1886, %v2211
      %v2314 = vadd.f32 %v1887, %v2216
      %v2315 = vadd.f32 %v1888, %v2221
      %v2316 = vadd.f32 %v1889, %v2226
      %v2317 = vadd.f32 %v1890, %v2231
      %v2318 = vadd.f32 %v1891, %v2236
      %v2319 = vadd.f32 %v1892, %v2241
      %v2320 = vadd.f32 %v1893, %v2246
      %v2321 = vadd.f32 %v1894, %v2251
      %v2322 = vadd.f32 %v1895, %v2256
      %v2323 = vadd.f32 %v1896, %v2261
      %v2324 = vadd.f32 %v1897, %v2266
      %v2325 = vadd.f32 %v1898, %v2271
      %v2326 = vadd.f32 %v1899, %v2276
      %v2327 = vadd.f32 %v1900, %v2281
      %v2328 = vadd.f32 %v1901, %v2286
      %v2329 = vadd.f32 %v1902, %v2291
      %v2330 = vld [vmem:[%s1475 + $0x2] sm:$0xff]
      %v2331 = vld [vmem:[%s1475 + $0xa] sm:$0xff]
      %v2332 = vld [vmem:[%s1475 + $0x1a] sm:$0xff]
      %v2333 = vld [vmem:[%s1475 + $0x22] sm:$0xff]
      %v2334 = vld [vmem:[%s1475 + $0x32] sm:$0xff]
      %v2335 = vld [vmem:[%s1475 + $0x3a] sm:$0xff]
      %v2336 = vld [vmem:[%s1475 + $0x4a] sm:$0xff]
      %v2337 = vld [vmem:[%s1475 + $0x52] sm:$0xff]
      %v2338 = vld [vmem:[%s1475 + $0x62] sm:$0xff]
      %v2339 = vld [vmem:[%s1475 + $0x6a] sm:$0xff]
      %v2340 = vld [vmem:[%s1475 + $0x7a] sm:$0xff]
      %v2341 = vld [vmem:[%s1475 + $0x82] sm:$0xff]
      %v2342 = vld [vmem:[%s1475 + $0x92] sm:$0xff]
      %v2343 = vld [vmem:[%s1475 + $0x9a] sm:$0xff]
      %v2344 = vld [vmem:[%s1475 + $0xaa] sm:$0xff]
      %v2345 = vld [vmem:[%s1475 + $0xb2] sm:$0xff]
      %v2346 = vld [vmem:[%s1475 + $0xc2] sm:$0xff]
      %v2347 = vld [vmem:[%s1475 + $0xca] sm:$0xff]
      %v2348 = vld [vmem:[%s1475 + $0xda] sm:$0xff]
      %v2349 = vld [vmem:[%s1475 + $0xe2] sm:$0xff]
      %v2350 = vld [vmem:[%s1475 + $0xf2] sm:$0xff]
      %v2351 = vld [vmem:[%s1475 + $0xfa] sm:$0xff]
      %v2352 = vld [vmem:[%s1475 + $0x10a] sm:$0xff]
      %v2353 = vld [vmem:[%s1475 + $0x112] sm:$0xff]
      %v2354 = vld [vmem:[%s1475 + $0x122] sm:$0xff]
      %v2355 = vld [vmem:[%s1475 + $0x12a] sm:$0xff]
      %v2356 = vld [vmem:[%s1475 + $0x13a] sm:$0xff]
      %v2357 = vld [vmem:[%s1475 + $0x142] sm:$0xff]
      %v2358 = vld [vmem:[%s1475 + $0x152] sm:$0xff]
      %v2359 = vld [vmem:[%s1475 + $0x15a] sm:$0xff]
      %v2360 = vld [vmem:[%s1475 + $0x16a] sm:$0xff]
      %v2361 = vld [vmem:[%s1475 + $0x172] sm:$0xff]
      %v2362 = vld [vmem:[%s1475 + $0x182] sm:$0xff]
      %v2363 = vld [vmem:[%s1475 + $0x18a] sm:$0xff]
      %v2364 = vld [vmem:[%s1475 + $0x19a] sm:$0xff]
      %v2365 = vld [vmem:[%s1475 + $0x1a2] sm:$0xff]
      %s2366 = scalar_lea.vmem %s1, 40
      %v2367 = vld [vmem:[%s2366] sm:$0xff]
      %v2369 = vsel %vm341, %v2330, 0
      %v2372 = vsel %vm341, %v2331, 0
      %v2375 = vsel %vm341, %v2332, 0
      %v2378 = vsel %vm341, %v2333, 0
      %v2381 = vsel %vm341, %v2334, 0
      %v2384 = vsel %vm341, %v2335, 0
      %v2387 = vsel %vm341, %v2336, 0
      %v2390 = vsel %vm341, %v2337, 0
      %v2393 = vsel %vm341, %v2338, 0
      %v2396 = vsel %vm341, %v2339, 0
      %v2399 = vsel %vm341, %v2340, 0
      %v2402 = vsel %vm341, %v2341, 0
      %v2405 = vsel %vm341, %v2342, 0
      %v2408 = vsel %vm341, %v2343, 0
      %v2411 = vsel %vm341, %v2344, 0
      %v2414 = vsel %vm341, %v2345, 0
      %v2417 = vsel %vm341, %v2346, 0
      %v2420 = vsel %vm341, %v2347, 0
      %v2423 = vsel %vm341, %v2348, 0
      %v2426 = vsel %vm341, %v2349, 0
      %v2429 = vsel %vm341, %v2350, 0
      %v2432 = vsel %vm341, %v2351, 0
      %v2435 = vsel %vm341, %v2352, 0
      %v2438 = vsel %vm341, %v2353, 0
      %v2441 = vsel %vm341, %v2354, 0
      %v2444 = vsel %vm341, %v2355, 0
      %v2447 = vsel %vm341, %v2356, 0
      %v2450 = vsel %vm341, %v2357, 0
      %v2453 = vsel %vm341, %v2358, 0
      %v2456 = vsel %vm341, %v2359, 0
      %v2459 = vsel %vm341, %v2360, 0
      %v2462 = vsel %vm341, %v2361, 0
      %v2465 = vsel %vm341, %v2362, 0
      %v2468 = vsel %vm341, %v2363, 0
      %v2471 = vsel %vm341, %v2364, 0
      %v2474 = vsel %vm341, %v2365, 0
      %2476 = vmatprep.subr.mxu0 0.0
      %2477 = vmatpush1.msra.mxu0 %v2367
      %2478 = vmatprep.subr.mxu0 0.0
      %2479 = vmatpush1.msra.mxu0 0.0
      %2480 = vmatprep.subr.mxu0 0.0
      %2481 = vmatpush1.msra.mxu0 0.0
      %2482 = vmatprep.subr.mxu0 0.0
      %2483 = vmatpush1.msra.mxu0 0.0
      %2484 = vmatprep.subr.mxu0 0.0
      %2485 = vmatpush1.msra.mxu0 0.0
      %2486 = vmatprep.subr.mxu0 0.0
      %2487 = vmatpush1.msra.mxu0 0.0
      %2488 = vmatprep.subr.mxu0 0.0
      %2489 = vmatpush1.msra.mxu0 0.0
      %2490 = vmatprep.subr.mxu0 0.0
      %2491 = vmatpush1.msra.mxu0 0.0
      %2492 = vmatprep.subr.mxu0 0.0
      %2493 = vmatpush1.msra.mxu0 0.0
      %2494 = vmatprep.subr.mxu0 0.0
      %2495 = vmatpush1.msra.mxu0 0.0
      %2496 = vmatprep.subr.mxu0 0.0
      %2497 = vmatpush1.msra.mxu0 0.0
      %2498 = vmatprep.subr.mxu0 0.0
      %2499 = vmatpush1.msra.mxu0 0.0
      %2500 = vmatprep.subr.mxu0 0.0
      %2501 = vmatpush1.msra.mxu0 0.0
      %2502 = vmatprep.subr.mxu0 0.0
      %2503 = vmatpush1.msra.mxu0 0.0
      %2504 = vmatprep.subr.mxu0 0.0
      %2505 = vmatpush1.msra.mxu0 0.0
      %2506 = vmatprep.subr.mxu0 0.0
      %2507 = vmatpush1.msra.mxu0 0.0
      %2508 = vmatprep.subr.mxu0 0.0
      %2509 = vmatpush1.msra.mxu0 0.0
      %2510 = vmatprep.subr.mxu0 0.0
      %2511 = vmatpush1.msra.mxu0 0.0
      %2512 = vmatprep.subr.mxu0 0.0
      %2513 = vmatpush1.msra.mxu0 0.0
      %2514 = vmatprep.subr.mxu0 0.0
      %2515 = vmatpush1.msra.mxu0 0.0
      %2516 = vmatprep.subr.mxu0 0.0
      %2517 = vmatpush1.msra.mxu0 0.0
      %2518 = vmatprep.subr.mxu0 0.0
      %2519 = vmatpush1.msra.mxu0 0.0
      %2520 = vmatprep.subr.mxu0 0.0
      %2521 = vmatpush1.msra.mxu0 0.0
      %2522 = vmatprep.subr.mxu0 0.0
      %2523 = vmatpush1.msra.mxu0 0.0
      %2524 = vmatprep.subr.mxu0 0.0
      %2525 = vmatpush1.msra.mxu0 0.0
      %2526 = vmatprep.subr.mxu0 0.0
      %2527 = vmatpush1.msra.mxu0 0.0
      %2528 = vmatprep.subr.mxu0 0.0
      %2529 = vmatpush1.msra.mxu0 0.0
      %2530 = vmatprep.subr.mxu0 0.0
      %2531 = vmatpush1.msra.mxu0 0.0
      %2532 = vmatprep.subr.mxu0 0.0
      %2533 = vmatpush1.msra.mxu0 0.0
      %2534 = vmatprep.subr.mxu0 0.0
      %2535 = vmatpush1.msra.mxu0 0.0
      %2536 = vmatprep.subr.mxu0 0.0
      %2537 = vmatpush1.msra.mxu0 0.0
      %2538 = vmatprep.subr.mxu0 0.0
      %2539 = vmatpush1.msra.mxu0 0.0
      %2540 = vmatprep.mubr.f32.mxu0 0.0
      %2541 = vmatmul.mubr.f32.gmra.mrb[0].mxu0 %v2369
      %v2542 = vpop.f32.mrb[0].mxu0
      %v2543 = vadd.f32 0.0, %v2542
      %v2544 = vpop.f32.mrb[0].mxu0
      %2545 = vmatprep.mubr.f32.mxu0 0.0
      %2546 = vmatmul.mubr.f32.gmra.mrb[0].mxu0 %v2372
      %v2547 = vpop.f32.mrb[0].mxu0
      %v2548 = vadd.f32 0.0, %v2547
      %v2549 = vpop.f32.mrb[0].mxu0
      %2550 = vmatprep.mubr.f32.mxu0 0.0
      %2551 = vmatmul.mubr.f32.gmra.mrb[0].mxu0 %v2375
      %v2552 = vpop.f32.mrb[0].mxu0
      %v2553 = vadd.f32 0.0, %v2552
      %v2554 = vpop.f32.mrb[0].mxu0
      %2555 = vmatprep.mubr.f32.mxu0 0.0
      %2556 = vmatmul.mubr.f32.gmra.mrb[0].mxu0 %v2378
      %v2557 = vpop.f32.mrb[0].mxu0
      %v2558 = vadd.f32 0.0, %v2557
      %v2559 = vpop.f32.mrb[0].mxu0
      %2560 = vmatprep.mubr.f32.mxu0 0.0
      %2561 = vmatmul.mubr.f32.gmra.mrb[0].mxu0 %v2381
      %v2562 = vpop.f32.mrb[0].mxu0
      %v2563 = vadd.f32 0.0, %v2562
      %v2564 = vpop.f32.mrb[0].mxu0
      %2565 = vmatprep.mubr.f32.mxu0 0.0
      %2566 = vmatmul.mubr.f32.gmra.mrb[0].mxu0 %v2384
      %v2567 = vpop.f32.mrb[0].mxu0
      %v2568 = vadd.f32 0.0, %v2567
      %v2569 = vpop.f32.mrb[0].mxu0
      %2570 = vmatprep.mubr.f32.mxu0 0.0
      %2571 = vmatmul.mubr.f32.gmra.mrb[0].mxu0 %v2387
      %v2572 = vpop.f32.mrb[0].mxu0
      %v2573 = vadd.f32 0.0, %v2572
      %v2574 = vpop.f32.mrb[0].mxu0
      %2575 = vmatprep.mubr.f32.mxu0 0.0
      %2576 = vmatmul.mubr.f32.gmra.mrb[0].mxu0 %v2390
      %v2577 = vpop.f32.mrb[0].mxu0
      %v2578 = vadd.f32 0.0, %v2577
      %v2579 = vpop.f32.mrb[0].mxu0
      %2580 = vmatprep.mubr.f32.mxu0 0.0
      %2581 = vmatmul.mubr.f32.gmra.mrb[0].mxu0 %v2393
      %v2582 = vpop.f32.mrb[0].mxu0
      %v2583 = vadd.f32 0.0, %v2582
      %v2584 = vpop.f32.mrb[0].mxu0
      %2585 = vmatprep.mubr.f32.mxu0 0.0
      %2586 = vmatmul.mubr.f32.gmra.mrb[0].mxu0 %v2396
      %v2587 = vpop.f32.mrb[0].mxu0
      %v2588 = vadd.f32 0.0, %v2587
      %v2589 = vpop.f32.mrb[0].mxu0
      %2590 = vmatprep.mubr.f32.mxu0 0.0
      %2591 = vmatmul.mubr.f32.gmra.mrb[0].mxu0 %v2399
      %v2592 = vpop.f32.mrb[0].mxu0
      %v2593 = vadd.f32 0.0, %v2592
      %v2594 = vpop.f32.mrb[0].mxu0
      %2595 = vmatprep.mubr.f32.mxu0 0.0
      %2596 = vmatmul.mubr.f32.gmra.mrb[0].mxu0 %v2402
      %v2597 = vpop.f32.mrb[0].mxu0
      %v2598 = vadd.f32 0.0, %v2597
      %v2599 = vpop.f32.mrb[0].mxu0
      %2600 = vmatprep.mubr.f32.mxu0 0.0
      %2601 = vmatmul.mubr.f32.gmra.mrb[0].mxu0 %v2405
      %v2602 = vpop.f32.mrb[0].mxu0
      %v2603 = vadd.f32 0.0, %v2602
      %v2604 = vpop.f32.mrb[0].mxu0
      %2605 = vmatprep.mubr.f32.mxu0 0.0
      %2606 = vmatmul.mubr.f32.gmra.mrb[0].mxu0 %v2408
      %v2607 = vpop.f32.mrb[0].mxu0
      %v2608 = vadd.f32 0.0, %v2607
      %v2609 = vpop.f32.mrb[0].mxu0
      %2610 = vmatprep.mubr.f32.mxu0 0.0
      %2611 = vmatmul.mubr.f32.gmra.mrb[0].mxu0 %v2411
      %v2612 = vpop.f32.mrb[0].mxu0
      %v2613 = vadd.f32 0.0, %v2612
      %v2614 = vpop.f32.mrb[0].mxu0
      %2615 = vmatprep.mubr.f32.mxu0 0.0
      %2616 = vmatmul.mubr.f32.gmra.mrb[0].mxu0 %v2414
      %v2617 = vpop.f32.mrb[0].mxu0
      %v2618 = vadd.f32 0.0, %v2617
      %v2619 = vpop.f32.mrb[0].mxu0
      %2620 = vmatprep.mubr.f32.mxu0 0.0
      %2621 = vmatmul.mubr.f32.gmra.mrb[0].mxu0 %v2417
      %v2622 = vpop.f32.mrb[0].mxu0
      %v2623 = vadd.f32 0.0, %v2622
      %v2624 = vpop.f32.mrb[0].mxu0
      %2625 = vmatprep.mubr.f32.mxu0 0.0
      %2626 = vmatmul.mubr.f32.gmra.mrb[0].mxu0 %v2420
      %v2627 = vpop.f32.mrb[0].mxu0
      %v2628 = vadd.f32 0.0, %v2627
      %v2629 = vpop.f32.mrb[0].mxu0
      %2630 = vmatprep.mubr.f32.mxu0 0.0
      %2631 = vmatmul.mubr.f32.gmra.mrb[0].mxu0 %v2423
      %v2632 = vpop.f32.mrb[0].mxu0
      %v2633 = vadd.f32 0.0, %v2632
      %v2634 = vpop.f32.mrb[0].mxu0
      %2635 = vmatprep.mubr.f32.mxu0 0.0
      %2636 = vmatmul.mubr.f32.gmra.mrb[0].mxu0 %v2426
      %v2637 = vpop.f32.mrb[0].mxu0
      %v2638 = vadd.f32 0.0, %v2637
      %v2639 = vpop.f32.mrb[0].mxu0
      %2640 = vmatprep.mubr.f32.mxu0 0.0
      %2641 = vmatmul.mubr.f32.gmra.mrb[0].mxu0 %v2429
      %v2642 = vpop.f32.mrb[0].mxu0
      %v2643 = vadd.f32 0.0, %v2642
      %v2644 = vpop.f32.mrb[0].mxu0
      %2645 = vmatprep.mubr.f32.mxu0 0.0
      %2646 = vmatmul.mubr.f32.gmra.mrb[0].mxu0 %v2432
      %v2647 = vpop.f32.mrb[0].mxu0
      %v2648 = vadd.f32 0.0, %v2647
      %v2649 = vpop.f32.mrb[0].mxu0
      %2650 = vmatprep.mubr.f32.mxu0 0.0
      %2651 = vmatmul.mubr.f32.gmra.mrb[0].mxu0 %v2435
      %v2652 = vpop.f32.mrb[0].mxu0
      %v2653 = vadd.f32 0.0, %v2652
      %v2654 = vpop.f32.mrb[0].mxu0
      %2655 = vmatprep.mubr.f32.mxu0 0.0
      %2656 = vmatmul.mubr.f32.gmra.mrb[0].mxu0 %v2438
      %v2657 = vpop.f32.mrb[0].mxu0
      %v2658 = vadd.f32 0.0, %v2657
      %v2659 = vpop.f32.mrb[0].mxu0
      %2660 = vmatprep.mubr.f32.mxu0 0.0
      %2661 = vmatmul.mubr.f32.gmra.mrb[0].mxu0 %v2441
      %v2662 = vpop.f32.mrb[0].mxu0
      %v2663 = vadd.f32 0.0, %v2662
      %v2664 = vpop.f32.mrb[0].mxu0
      %2665 = vmatprep.mubr.f32.mxu0 0.0
      %2666 = vmatmul.mubr.f32.gmra.mrb[0].mxu0 %v2444
      %v2667 = vpop.f32.mrb[0].mxu0
      %v2668 = vadd.f32 0.0, %v2667
      %v2669 = vpop.f32.mrb[0].mxu0
      %2670 = vmatprep.mubr.f32.mxu0 0.0
      %2671 = vmatmul.mubr.f32.gmra.mrb[0].mxu0 %v2447
      %v2672 = vpop.f32.mrb[0].mxu0
      %v2673 = vadd.f32 0.0, %v2672
      %v2674 = vpop.f32.mrb[0].mxu0
      %2675 = vmatprep.mubr.f32.mxu0 0.0
      %2676 = vmatmul.mubr.f32.gmra.mrb[0].mxu0 %v2450
      %v2677 = vpop.f32.mrb[0].mxu0
      %v2678 = vadd.f32 0.0, %v2677
      %v2679 = vpop.f32.mrb[0].mxu0
      %2680 = vmatprep.mubr.f32.mxu0 0.0
      %2681 = vmatmul.mubr.f32.gmra.mrb[0].mxu0 %v2453
      %v2682 = vpop.f32.mrb[0].mxu0
      %v2683 = vadd.f32 0.0, %v2682
      %v2684 = vpop.f32.mrb[0].mxu0
      %2685 = vmatprep.mubr.f32.mxu0 0.0
      %2686 = vmatmul.mubr.f32.gmra.mrb[0].mxu0 %v2456
      %v2687 = vpop.f32.mrb[0].mxu0
      %v2688 = vadd.f32 0.0, %v2687
      %v2689 = vpop.f32.mrb[0].mxu0
      %2690 = vmatprep.mubr.f32.mxu0 0.0
      %2691 = vmatmul.mubr.f32.gmra.mrb[0].mxu0 %v2459
      %v2692 = vpop.f32.mrb[0].mxu0
      %v2693 = vadd.f32 0.0, %v2692
      %v2694 = vpop.f32.mrb[0].mxu0
      %2695 = vmatprep.mubr.f32.mxu0 0.0
      %2696 = vmatmul.mubr.f32.gmra.mrb[0].mxu0 %v2462
      %v2697 = vpop.f32.mrb[0].mxu0
      %v2698 = vadd.f32 0.0, %v2697
      %v2699 = vpop.f32.mrb[0].mxu0
      %2700 = vmatprep.mubr.f32.mxu0 0.0
      %2701 = vmatmul.mubr.f32.gmra.mrb[0].mxu0 %v2465
      %v2702 = vpop.f32.mrb[0].mxu0
      %v2703 = vadd.f32 0.0, %v2702
      %v2704 = vpop.f32.mrb[0].mxu0
      %2705 = vmatprep.mubr.f32.mxu0 0.0
      %2706 = vmatmul.mubr.f32.gmra.mrb[0].mxu0 %v2468
      %v2707 = vpop.f32.mrb[0].mxu0
      %v2708 = vadd.f32 0.0, %v2707
      %v2709 = vpop.f32.mrb[0].mxu0
      %2710 = vmatprep.mubr.f32.mxu0 0.0
      %2711 = vmatmul.mubr.f32.gmra.mrb[0].mxu0 %v2471
      %v2712 = vpop.f32.mrb[0].mxu0
      %v2713 = vadd.f32 0.0, %v2712
      %v2714 = vpop.f32.mrb[0].mxu0
      %2715 = vmatprep.mubr.f32.mxu0 0.0
      %2716 = vmatmul.mubr.f32.gmra.mrb[0].mxu0 %v2474
      %v2717 = vpop.f32.mrb[0].mxu0
      %v2718 = vadd.f32 0.0, %v2717
      %v2719 = vpop.f32.mrb[0].mxu0
      %2720 = vdwg.mxu0
      %v2721 = vadd.f32 %v2294, %v2543
      %v2722 = vadd.f32 %v2295, %v2548
      %v2723 = vadd.f32 %v2296, %v2553
      %v2724 = vadd.f32 %v2297, %v2558
      %v2725 = vadd.f32 %v2298, %v2563
      %v2726 = vadd.f32 %v2299, %v2568
      %v2727 = vadd.f32 %v2300, %v2573
      %v2728 = vadd.f32 %v2301, %v2578
      %v2729 = vadd.f32 %v2302, %v2583
      %v2730 = vadd.f32 %v2303, %v2588
      %v2731 = vadd.f32 %v2304, %v2593
      %v2732 = vadd.f32 %v2305, %v2598
      %v2733 = vadd.f32 %v2306, %v2603
      %v2734 = vadd.f32 %v2307, %v2608
      %v2735 = vadd.f32 %v2308, %v2613
      %v2736 = vadd.f32 %v2309, %v2618
      %v2737 = vadd.f32 %v2310, %v2623
      %v2738 = vadd.f32 %v2311, %v2628
      %v2739 = vadd.f32 %v2312, %v2633
      %v2740 = vadd.f32 %v2313, %v2638
      %v2741 = vadd.f32 %v2314, %v2643
      %v2742 = vadd.f32 %v2315, %v2648
      %v2743 = vadd.f32 %v2316, %v2653
      %v2744 = vadd.f32 %v2317, %v2658
      %v2745 = vadd.f32 %v2318, %v2663
      %v2746 = vadd.f32 %v2319, %v2668
      %v2747 = vadd.f32 %v2320, %v2673
      %v2748 = vadd.f32 %v2321, %v2678
      %v2749 = vadd.f32 %v2322, %v2683
      %v2750 = vadd.f32 %v2323, %v2688
      %v2751 = vadd.f32 %v2324, %v2693
      %v2752 = vadd.f32 %v2325, %v2698
      %v2753 = vadd.f32 %v2326, %v2703
      %v2754 = vadd.f32 %v2327, %v2708
      %v2755 = vadd.f32 %v2328, %v2713
      %v2756 = vadd.f32 %v2329, %v2718
      %s2757 = scalar_lea.vmem %s217, 48
      %v2758 = vld [vmem:[%s2757] sm:$0xff]
      %v2759 = vld [vmem:[%s2757 + $0x8] sm:$0xff]
      %v2760 = vld [vmem:[%s2757 + $0x18] sm:$0xff]
      %v2761 = vld [vmem:[%s2757 + $0x20] sm:$0xff]
      %v2762 = vld [vmem:[%s2757 + $0x30] sm:$0xff]
      %v2763 = vld [vmem:[%s2757 + $0x38] sm:$0xff]
      %v2764 = vld [vmem:[%s2757 + $0x48] sm:$0xff]
      %v2765 = vld [vmem:[%s2757 + $0x50] sm:$0xff]
      %v2766 = vld [vmem:[%s2757 + $0x60] sm:$0xff]
      %v2767 = vld [vmem:[%s2757 + $0x68] sm:$0xff]
      %v2768 = vld [vmem:[%s2757 + $0x78] sm:$0xff]
      %v2769 = vld [vmem:[%s2757 + $0x80] sm:$0xff]
      %v2770 = vld [vmem:[%s2757 + $0x90] sm:$0xff]
      %v2771 = vld [vmem:[%s2757 + $0x98] sm:$0xff]
      %v2772 = vld [vmem:[%s2757 + $0xa8] sm:$0xff]
      %v2773 = vld [vmem:[%s2757 + $0xb0] sm:$0xff]
      %v2774 = vld [vmem:[%s2757 + $0xc0] sm:$0xff]
      %v2775 = vld [vmem:[%s2757 + $0xc8] sm:$0xff]
      %v2776 = vld [vmem:[%s2757 + $0xd8] sm:$0xff]
      %v2777 = vld [vmem:[%s2757 + $0xe0] sm:$0xff]
      %v2778 = vld [vmem:[%s2757 + $0xf0] sm:$0xff]
      %v2779 = vld [vmem:[%s2757 + $0xf8] sm:$0xff]
      %v2780 = vld [vmem:[%s2757 + $0x108] sm:$0xff]
      %v2781 = vld [vmem:[%s2757 + $0x110] sm:$0xff]
      %v2782 = vld [vmem:[%s2757 + $0x120] sm:$0xff]
      %v2783 = vld [vmem:[%s2757 + $0x128] sm:$0xff]
      %v2784 = vld [vmem:[%s2757 + $0x138] sm:$0xff]
      %v2785 = vld [vmem:[%s2757 + $0x140] sm:$0xff]
      %v2786 = vld [vmem:[%s2757 + $0x150] sm:$0xff]
      %v2787 = vld [vmem:[%s2757 + $0x158] sm:$0xff]
      %v2788 = vld [vmem:[%s2757 + $0x168] sm:$0xff]
      %v2789 = vld [vmem:[%s2757 + $0x170] sm:$0xff]
      %v2790 = vld [vmem:[%s2757 + $0x180] sm:$0xff]
      %v2791 = vld [vmem:[%s2757 + $0x188] sm:$0xff]
      %v2792 = vld [vmem:[%s2757 + $0x198] sm:$0xff]
      %v2793 = vld [vmem:[%s2757 + $0x1a0] sm:$0xff]
      %s2794 = scalar_lea.vmem %s1, 48
      %v2795 = vld [vmem:[%s2794] sm:$0xff]
      %v2797 = vsel %vm341, %v2758, 0
      %v2800 = vsel %vm341, %v2759, 0
      %v2803 = vsel %vm341, %v2760, 0
      %v2806 = vsel %vm341, %v2761, 0
      %v2809 = vsel %vm341, %v2762, 0
      %v2812 = vsel %vm341, %v2763, 0
      %v2815 = vsel %vm341, %v2764, 0
      %v2818 = vsel %vm341, %v2765, 0
      %v2821 = vsel %vm341, %v2766, 0
      %v2824 = vsel %vm341, %v2767, 0
      %v2827 = vsel %vm341, %v2768, 0
      %v2830 = vsel %vm341, %v2769, 0
      %v2833 = vsel %vm341, %v2770, 0
      %v2836 = vsel %vm341, %v2771, 0
      %v2839 = vsel %vm341, %v2772, 0
      %v2842 = vsel %vm341, %v2773, 0
      %v2845 = vsel %vm341, %v2774, 0
      %v2848 = vsel %vm341, %v2775, 0
      %v2851 = vsel %vm341, %v2776, 0
      %v2854 = vsel %vm341, %v2777, 0
      %v2857 = vsel %vm341, %v2778, 0
      %v2860 = vsel %vm341, %v2779, 0
      %v2863 = vsel %vm341, %v2780, 0
      %v2866 = vsel %vm341, %v2781, 0
      %v2869 = vsel %vm341, %v2782, 0
      %v2872 = vsel %vm341, %v2783, 0
      %v2875 = vsel %vm341, %v2784, 0
      %v2878 = vsel %vm341, %v2785, 0
      %v2881 = vsel %vm341, %v2786, 0
      %v2884 = vsel %vm341, %v2787, 0
      %v2887 = vsel %vm341, %v2788, 0
      %v2890 = vsel %vm341, %v2789, 0
      %v2893 = vsel %vm341, %v2790, 0
      %v2896 = vsel %vm341, %v2791, 0
      %v2899 = vsel %vm341, %v2792, 0
      %v2902 = vsel %vm341, %v2793, 0
      %2904 = vmatprep.subr.mxu0 0.0
      %2905 = vmatpush1.msra.mxu0 %v2795
      %2906 = vmatprep.subr.mxu0 0.0
      %2907 = vmatpush1.msra.mxu0 0.0
      %2908 = vmatprep.subr.mxu0 0.0
      %2909 = vmatpush1.msra.mxu0 0.0
      %2910 = vmatprep.subr.mxu0 0.0
      %2911 = vmatpush1.msra.mxu0 0.0
      %2912 = vmatprep.subr.mxu0 0.0
      %2913 = vmatpush1.msra.mxu0 0.0
      %2914 = vmatprep.subr.mxu0 0.0
      %2915 = vmatpush1.msra.mxu0 0.0
      %2916 = vmatprep.subr.mxu0 0.0
      %2917 = vmatpush1.msra.mxu0 0.0
      %2918 = vmatprep.subr.mxu0 0.0
      %2919 = vmatpush1.msra.mxu0 0.0
      %2920 = vmatprep.subr.mxu0 0.0
      %2921 = vmatpush1.msra.mxu0 0.0
      %2922 = vmatprep.subr.mxu0 0.0
      %2923 = vmatpush1.msra.mxu0 0.0
      %2924 = vmatprep.subr.mxu0 0.0
      %2925 = vmatpush1.msra.mxu0 0.0
      %2926 = vmatprep.subr.mxu0 0.0
      %2927 = vmatpush1.msra.mxu0 0.0
      %2928 = vmatprep.subr.mxu0 0.0
      %2929 = vmatpush1.msra.mxu0 0.0
      %2930 = vmatprep.subr.mxu0 0.0
      %2931 = vmatpush1.msra.mxu0 0.0
      %2932 = vmatprep.subr.mxu0 0.0
      %2933 = vmatpush1.msra.mxu0 0.0
      %2934 = vmatprep.subr.mxu0 0.0
      %2935 = vmatpush1.msra.mxu0 0.0
      %2936 = vmatprep.subr.mxu0 0.0
      %2937 = vmatpush1.msra.mxu0 0.0
      %2938 = vmatprep.subr.mxu0 0.0
      %2939 = vmatpush1.msra.mxu0 0.0
      %2940 = vmatprep.subr.mxu0 0.0
      %2941 = vmatpush1.msra.mxu0 0.0
      %2942 = vmatprep.subr.mxu0 0.0
      %2943 = vmatpush1.msra.mxu0 0.0
      %2944 = vmatprep.subr.mxu0 0.0
      %2945 = vmatpush1.msra.mxu0 0.0
      %2946 = vmatprep.subr.mxu0 0.0
      %2947 = vmatpush1.msra.mxu0 0.0
      %2948 = vmatprep.subr.mxu0 0.0
      %2949 = vmatpush1.msra.mxu0 0.0
      %2950 = vmatprep.subr.mxu0 0.0
      %2951 = vmatpush1.msra.mxu0 0.0
      %2952 = vmatprep.subr.mxu0 0.0
      %2953 = vmatpush1.msra.mxu0 0.0
      %2954 = vmatprep.subr.mxu0 0.0
      %2955 = vmatpush1.msra.mxu0 0.0
      %2956 = vmatprep.subr.mxu0 0.0
      %2957 = vmatpush1.msra.mxu0 0.0
      %2958 = vmatprep.subr.mxu0 0.0
      %2959 = vmatpush1.msra.mxu0 0.0
      %2960 = vmatprep.subr.mxu0 0.0
      %2961 = vmatpush1.msra.mxu0 0.0
      %2962 = vmatprep.subr.mxu0 0.0
      %2963 = vmatpush1.msra.mxu0 0.0
      %2964 = vmatprep.subr.mxu0 0.0
      %2965 = vmatpush1.msra.mxu0 0.0
      %2966 = vmatprep.subr.mxu0 0.0
      %2967 = vmatpush1.msra.mxu0 0.0
      %2968 = vmatprep.mubr.f32.mxu0 0.0
      %2969 = vmatmul.mubr.f32.gmra.mrb[0].mxu0 %v2797
      %v2970 = vpop.f32.mrb[0].mxu0
      %v2971 = vadd.f32 0.0, %v2970
      %v2972 = vpop.f32.mrb[0].mxu0
      %2973 = vmatprep.mubr.f32.mxu0 0.0
      %2974 = vmatmul.mubr.f32.gmra.mrb[0].mxu0 %v2800
      %v2975 = vpop.f32.mrb[0].mxu0
      %v2976 = vadd.f32 0.0, %v2975
      %v2977 = vpop.f32.mrb[0].mxu0
      %2978 = vmatprep.mubr.f32.mxu0 0.0
      %2979 = vmatmul.mubr.f32.gmra.mrb[0].mxu0 %v2803
      %v2980 = vpop.f32.mrb[0].mxu0
      %v2981 = vadd.f32 0.0, %v2980
      %v2982 = vpop.f32.mrb[0].mxu0
      %2983 = vmatprep.mubr.f32.mxu0 0.0
      %2984 = vmatmul.mubr.f32.gmra.mrb[0].mxu0 %v2806
      %v2985 = vpop.f32.mrb[0].mxu0
      %v2986 = vadd.f32 0.0, %v2985
      %v2987 = vpop.f32.mrb[0].mxu0
      %2988 = vmatprep.mubr.f32.mxu0 0.0
      %2989 = vmatmul.mubr.f32.gmra.mrb[0].mxu0 %v2809
      %v2990 = vpop.f32.mrb[0].mxu0
      %v2991 = vadd.f32 0.0, %v2990
      %v2992 = vpop.f32.mrb[0].mxu0
      %2993 = vmatprep.mubr.f32.mxu0 0.0
      %2994 = vmatmul.mubr.f32.gmra.mrb[0].mxu0 %v2812
      %v2995 = vpop.f32.mrb[0].mxu0
      %v2996 = vadd.f32 0.0, %v2995
      %v2997 = vpop.f32.mrb[0].mxu0
      %2998 = vmatprep.mubr.f32.mxu0 0.0
      %2999 = vmatmul.mubr.f32.gmra.mrb[0].mxu0 %v2815
      %v3000 = vpop.f32.mrb[0].mxu0
      %v3001 = vadd.f32 0.0, %v3000
      %v3002 = vpop.f32.mrb[0].mxu0
      %3003 = vmatprep.mubr.f32.mxu0 0.0
      %3004 = vmatmul.mubr.f32.gmra.mrb[0].mxu0 %v2818
      %v3005 = vpop.f32.mrb[0].mxu0
      %v3006 = vadd.f32 0.0, %v3005
      %v3007 = vpop.f32.mrb[0].mxu0
      %3008 = vmatprep.mubr.f32.mxu0 0.0
      %3009 = vmatmul.mubr.f32.gmra.mrb[0].mxu0 %v2821
      %v3010 = vpop.f32.mrb[0].mxu0
      %v3011 = vadd.f32 0.0, %v3010
      %v3012 = vpop.f32.mrb[0].mxu0
      %3013 = vmatprep.mubr.f32.mxu0 0.0
      %3014 = vmatmul.mubr.f32.gmra.mrb[0].mxu0 %v2824
      %v3015 = vpop.f32.mrb[0].mxu0
      %v3016 = vadd.f32 0.0, %v3015
      %v3017 = vpop.f32.mrb[0].mxu0
      %3018 = vmatprep.mubr.f32.mxu0 0.0
      %3019 = vmatmul.mubr.f32.gmra.mrb[0].mxu0 %v2827
      %v3020 = vpop.f32.mrb[0].mxu0
      %v3021 = vadd.f32 0.0, %v3020
      %v3022 = vpop.f32.mrb[0].mxu0
      %3023 = vmatprep.mubr.f32.mxu0 0.0
      %3024 = vmatmul.mubr.f32.gmra.mrb[0].mxu0 %v2830
      %v3025 = vpop.f32.mrb[0].mxu0
      %v3026 = vadd.f32 0.0, %v3025
      %v3027 = vpop.f32.mrb[0].mxu0
      %3028 = vmatprep.mubr.f32.mxu0 0.0
      %3029 = vmatmul.mubr.f32.gmra.mrb[0].mxu0 %v2833
      %v3030 = vpop.f32.mrb[0].mxu0
      %v3031 = vadd.f32 0.0, %v3030
      %v3032 = vpop.f32.mrb[0].mxu0
      %3033 = vmatprep.mubr.f32.mxu0 0.0
      %3034 = vmatmul.mubr.f32.gmra.mrb[0].mxu0 %v2836
      %v3035 = vpop.f32.mrb[0].mxu0
      %v3036 = vadd.f32 0.0, %v3035
      %v3037 = vpop.f32.mrb[0].mxu0
      %3038 = vmatprep.mubr.f32.mxu0 0.0
      %3039 = vmatmul.mubr.f32.gmra.mrb[0].mxu0 %v2839
      %v3040 = vpop.f32.mrb[0].mxu0
      %v3041 = vadd.f32 0.0, %v3040
      %v3042 = vpop.f32.mrb[0].mxu0
      %3043 = vmatprep.mubr.f32.mxu0 0.0
      %3044 = vmatmul.mubr.f32.gmra.mrb[0].mxu0 %v2842
      %v3045 = vpop.f32.mrb[0].mxu0
      %v3046 = vadd.f32 0.0, %v3045
      %v3047 = vpop.f32.mrb[0].mxu0
      %3048 = vmatprep.mubr.f32.mxu0 0.0
      %3049 = vmatmul.mubr.f32.gmra.mrb[0].mxu0 %v2845
      %v3050 = vpop.f32.mrb[0].mxu0
      %v3051 = vadd.f32 0.0, %v3050
      %v3052 = vpop.f32.mrb[0].mxu0
      %3053 = vmatprep.mubr.f32.mxu0 0.0
      %3054 = vmatmul.mubr.f32.gmra.mrb[0].mxu0 %v2848
      %v3055 = vpop.f32.mrb[0].mxu0
      %v3056 = vadd.f32 0.0, %v3055
      %v3057 = vpop.f32.mrb[0].mxu0
      %3058 = vmatprep.mubr.f32.mxu0 0.0
      %3059 = vmatmul.mubr.f32.gmra.mrb[0].mxu0 %v2851
      %v3060 = vpop.f32.mrb[0].mxu0
      %v3061 = vadd.f32 0.0, %v3060
      %v3062 = vpop.f32.mrb[0].mxu0
      %3063 = vmatprep.mubr.f32.mxu0 0.0
      %3064 = vmatmul.mubr.f32.gmra.mrb[0].mxu0 %v2854
      %v3065 = vpop.f32.mrb[0].mxu0
      %v3066 = vadd.f32 0.0, %v3065
      %v3067 = vpop.f32.mrb[0].mxu0
      %3068 = vmatprep.mubr.f32.mxu0 0.0
      %3069 = vmatmul.mubr.f32.gmra.mrb[0].mxu0 %v2857
      %v3070 = vpop.f32.mrb[0].mxu0
      %v3071 = vadd.f32 0.0, %v3070
      %v3072 = vpop.f32.mrb[0].mxu0
      %3073 = vmatprep.mubr.f32.mxu0 0.0
      %3074 = vmatmul.mubr.f32.gmra.mrb[0].mxu0 %v2860
      %v3075 = vpop.f32.mrb[0].mxu0
      %v3076 = vadd.f32 0.0, %v3075
      %v3077 = vpop.f32.mrb[0].mxu0
      %3078 = vmatprep.mubr.f32.mxu0 0.0
      %3079 = vmatmul.mubr.f32.gmra.mrb[0].mxu0 %v2863
      %v3080 = vpop.f32.mrb[0].mxu0
      %v3081 = vadd.f32 0.0, %v3080
      %v3082 = vpop.f32.mrb[0].mxu0
      %3083 = vmatprep.mubr.f32.mxu0 0.0
      %3084 = vmatmul.mubr.f32.gmra.mrb[0].mxu0 %v2866
      %v3085 = vpop.f32.mrb[0].mxu0
      %v3086 = vadd.f32 0.0, %v3085
      %v3087 = vpop.f32.mrb[0].mxu0
      %3088 = vmatprep.mubr.f32.mxu0 0.0
      %3089 = vmatmul.mubr.f32.gmra.mrb[0].mxu0 %v2869
      %v3090 = vpop.f32.mrb[0].mxu0
      %v3091 = vadd.f32 0.0, %v3090
      %v3092 = vpop.f32.mrb[0].mxu0
      %3093 = vmatprep.mubr.f32.mxu0 0.0
      %3094 = vmatmul.mubr.f32.gmra.mrb[0].mxu0 %v2872
      %v3095 = vpop.f32.mrb[0].mxu0
      %v3096 = vadd.f32 0.0, %v3095
      %v3097 = vpop.f32.mrb[0].mxu0
      %3098 = vmatprep.mubr.f32.mxu0 0.0
      %3099 = vmatmul.mubr.f32.gmra.mrb[0].mxu0 %v2875
      %v3100 = vpop.f32.mrb[0].mxu0
      %v3101 = vadd.f32 0.0, %v3100
      %v3102 = vpop.f32.mrb[0].mxu0
      %3103 = vmatprep.mubr.f32.mxu0 0.0
      %3104 = vmatmul.mubr.f32.gmra.mrb[0].mxu0 %v2878
      %v3105 = vpop.f32.mrb[0].mxu0
      %v3106 = vadd.f32 0.0, %v3105
      %v3107 = vpop.f32.mrb[0].mxu0
      %3108 = vmatprep.mubr.f32.mxu0 0.0
      %3109 = vmatmul.mubr.f32.gmra.mrb[0].mxu0 %v2881
      %v3110 = vpop.f32.mrb[0].mxu0
      %v3111 = vadd.f32 0.0, %v3110
      %v3112 = vpop.f32.mrb[0].mxu0
      %3113 = vmatprep.mubr.f32.mxu0 0.0
      %3114 = vmatmul.mubr.f32.gmra.mrb[0].mxu0 %v2884
      %v3115 = vpop.f32.mrb[0].mxu0
      %v3116 = vadd.f32 0.0, %v3115
      %v3117 = vpop.f32.mrb[0].mxu0
      %3118 = vmatprep.mubr.f32.mxu0 0.0
      %3119 = vmatmul.mubr.f32.gmra.mrb[0].mxu0 %v2887
      %v3120 = vpop.f32.mrb[0].mxu0
      %v3121 = vadd.f32 0.0, %v3120
      %v3122 = vpop.f32.mrb[0].mxu0
      %3123 = vmatprep.mubr.f32.mxu0 0.0
      %3124 = vmatmul.mubr.f32.gmra.mrb[0].mxu0 %v2890
      %v3125 = vpop.f32.mrb[0].mxu0
      %v3126 = vadd.f32 0.0, %v3125
      %v3127 = vpop.f32.mrb[0].mxu0
      %3128 = vmatprep.mubr.f32.mxu0 0.0
      %3129 = vmatmul.mubr.f32.gmra.mrb[0].mxu0 %v2893
      %v3130 = vpop.f32.mrb[0].mxu0
      %v3131 = vadd.f32 0.0, %v3130
      %v3132 = vpop.f32.mrb[0].mxu0
      %3133 = vmatprep.mubr.f32.mxu0 0.0
      %3134 = vmatmul.mubr.f32.gmra.mrb[0].mxu0 %v2896
      %v3135 = vpop.f32.mrb[0].mxu0
      %v3136 = vadd.f32 0.0, %v3135
      %v3137 = vpop.f32.mrb[0].mxu0
      %3138 = vmatprep.mubr.f32.mxu0 0.0
      %3139 = vmatmul.mubr.f32.gmra.mrb[0].mxu0 %v2899
      %v3140 = vpop.f32.mrb[0].mxu0
      %v3141 = vadd.f32 0.0, %v3140
      %v3142 = vpop.f32.mrb[0].mxu0
      %3143 = vmatprep.mubr.f32.mxu0 0.0
      %3144 = vmatmul.mubr.f32.gmra.mrb[0].mxu0 %v2902
      %v3145 = vpop.f32.mrb[0].mxu0
      %v3146 = vadd.f32 0.0, %v3145
      %v3147 = vpop.f32.mrb[0].mxu0
      %3148 = vdwg.mxu0
      %v3149 = vadd.f32 %v2721, %v2971
      %v3150 = vadd.f32 %v2722, %v2976
      %v3151 = vadd.f32 %v2723, %v2981
      %v3152 = vadd.f32 %v2724, %v2986
      %v3153 = vadd.f32 %v2725, %v2991
      %v3154 = vadd.f32 %v2726, %v2996
      %v3155 = vadd.f32 %v2727, %v3001
      %v3156 = vadd.f32 %v2728, %v3006
      %v3157 = vadd.f32 %v2729, %v3011
      %v3158 = vadd.f32 %v2730, %v3016
      %v3159 = vadd.f32 %v2731, %v3021
      %v3160 = vadd.f32 %v2732, %v3026
      %v3161 = vadd.f32 %v2733, %v3031
      %v3162 = vadd.f32 %v2734, %v3036
      %v3163 = vadd.f32 %v2735, %v3041
      %v3164 = vadd.f32 %v2736, %v3046
      %v3165 = vadd.f32 %v2737, %v3051
      %v3166 = vadd.f32 %v2738, %v3056
      %v3167 = vadd.f32 %v2739, %v3061
      %v3168 = vadd.f32 %v2740, %v3066
      %v3169 = vadd.f32 %v2741, %v3071
      %v3170 = vadd.f32 %v2742, %v3076
      %v3171 = vadd.f32 %v2743, %v3081
      %v3172 = vadd.f32 %v2744, %v3086
      %v3173 = vadd.f32 %v2745, %v3091
      %v3174 = vadd.f32 %v2746, %v3096
      %v3175 = vadd.f32 %v2747, %v3101
      %v3176 = vadd.f32 %v2748, %v3106
      %v3177 = vadd.f32 %v2749, %v3111
      %v3178 = vadd.f32 %v2750, %v3116
      %v3179 = vadd.f32 %v2751, %v3121
      %v3180 = vadd.f32 %v2752, %v3126
      %v3181 = vadd.f32 %v2753, %v3131
      %v3182 = vadd.f32 %v2754, %v3136
      %v3183 = vadd.f32 %v2755, %v3141
      %v3184 = vadd.f32 %v2756, %v3146
      %v3185 = vld [vmem:[%s2757 + $0x1] sm:$0xff]
      %v3186 = vld [vmem:[%s2757 + $0x9] sm:$0xff]
      %v3187 = vld [vmem:[%s2757 + $0x19] sm:$0xff]
      %v3188 = vld [vmem:[%s2757 + $0x21] sm:$0xff]
      %v3189 = vld [vmem:[%s2757 + $0x31] sm:$0xff]
      %v3190 = vld [vmem:[%s2757 + $0x39] sm:$0xff]
      %v3191 = vld [vmem:[%s2757 + $0x49] sm:$0xff]
      %v3192 = vld [vmem:[%s2757 + $0x51] sm:$0xff]
      %v3193 = vld [vmem:[%s2757 + $0x61] sm:$0xff]
      %v3194 = vld [vmem:[%s2757 + $0x69] sm:$0xff]
      %v3195 = vld [vmem:[%s2757 + $0x79] sm:$0xff]
      %v3196 = vld [vmem:[%s2757 + $0x81] sm:$0xff]
      %v3197 = vld [vmem:[%s2757 + $0x91] sm:$0xff]
      %v3198 = vld [vmem:[%s2757 + $0x99] sm:$0xff]
      %v3199 = vld [vmem:[%s2757 + $0xa9] sm:$0xff]
      %v3200 = vld [vmem:[%s2757 + $0xb1] sm:$0xff]
      %v3201 = vld [vmem:[%s2757 + $0xc1] sm:$0xff]
      %v3202 = vld [vmem:[%s2757 + $0xc9] sm:$0xff]
      %v3203 = vld [vmem:[%s2757 + $0xd9] sm:$0xff]
      %v3204 = vld [vmem:[%s2757 + $0xe1] sm:$0xff]
      %v3205 = vld [vmem:[%s2757 + $0xf1] sm:$0xff]
      %v3206 = vld [vmem:[%s2757 + $0xf9] sm:$0xff]
      %v3207 = vld [vmem:[%s2757 + $0x109] sm:$0xff]
      %v3208 = vld [vmem:[%s2757 + $0x111] sm:$0xff]
      %v3209 = vld [vmem:[%s2757 + $0x121] sm:$0xff]
      %v3210 = vld [vmem:[%s2757 + $0x129] sm:$0xff]
      %v3211 = vld [vmem:[%s2757 + $0x139] sm:$0xff]
      %v3212 = vld [vmem:[%s2757 + $0x141] sm:$0xff]
      %v3213 = vld [vmem:[%s2757 + $0x151] sm:$0xff]
      %v3214 = vld [vmem:[%s2757 + $0x159] sm:$0xff]
      %v3215 = vld [vmem:[%s2757 + $0x169] sm:$0xff]
      %v3216 = vld [vmem:[%s2757 + $0x171] sm:$0xff]
      %v3217 = vld [vmem:[%s2757 + $0x181] sm:$0xff]
      %v3218 = vld [vmem:[%s2757 + $0x189] sm:$0xff]
      %v3219 = vld [vmem:[%s2757 + $0x199] sm:$0xff]
      %v3220 = vld [vmem:[%s2757 + $0x1a1] sm:$0xff]
      %s3221 = scalar_lea.vmem %s1, 56
      %v3222 = vld [vmem:[%s3221] sm:$0xff]
      %v3224 = vsel %vm341, %v3185, 0
      %v3227 = vsel %vm341, %v3186, 0
      %v3230 = vsel %vm341, %v3187, 0
      %v3233 = vsel %vm341, %v3188, 0
      %v3236 = vsel %vm341, %v3189, 0
      %v3239 = vsel %vm341, %v3190, 0
      %v3242 = vsel %vm341, %v3191, 0
      %v3245 = vsel %vm341, %v3192, 0
      %v3248 = vsel %vm341, %v3193, 0
      %v3251 = vsel %vm341, %v3194, 0
      %v3254 = vsel %vm341, %v3195, 0
      %v3257 = vsel %vm341, %v3196, 0
      %v3260 = vsel %vm341, %v3197, 0
      %v3263 = vsel %vm341, %v3198, 0
      %v3266 = vsel %vm341, %v3199, 0
      %v3269 = vsel %vm341, %v3200, 0
      %v3272 = vsel %vm341, %v3201, 0
      %v3275 = vsel %vm341, %v3202, 0
      %v3278 = vsel %vm341, %v3203, 0
      %v3281 = vsel %vm341, %v3204, 0
      %v3284 = vsel %vm341, %v3205, 0
      %v3287 = vsel %vm341, %v3206, 0
      %v3290 = vsel %vm341, %v3207, 0
      %v3293 = vsel %vm341, %v3208, 0
      %v3296 = vsel %vm341, %v3209, 0
      %v3299 = vsel %vm341, %v3210, 0
      %v3302 = vsel %vm341, %v3211, 0
      %v3305 = vsel %vm341, %v3212, 0
      %v3308 = vsel %vm341, %v3213, 0
      %v3311 = vsel %vm341, %v3214, 0
      %v3314 = vsel %vm341, %v3215, 0
      %v3317 = vsel %vm341, %v3216, 0
      %v3320 = vsel %vm341, %v3217, 0
      %v3323 = vsel %vm341, %v3218, 0
      %v3326 = vsel %vm341, %v3219, 0
      %v3329 = vsel %vm341, %v3220, 0
      %3331 = vmatprep.subr.mxu0 0.0
      %3332 = vmatpush1.msra.mxu0 %v3222
      %3333 = vmatprep.subr.mxu0 0.0
      %3334 = vmatpush1.msra.mxu0 0.0
      %3335 = vmatprep.subr.mxu0 0.0
      %3336 = vmatpush1.msra.mxu0 0.0
      %3337 = vmatprep.subr.mxu0 0.0
      %3338 = vmatpush1.msra.mxu0 0.0
      %3339 = vmatprep.subr.mxu0 0.0
      %3340 = vmatpush1.msra.mxu0 0.0
      %3341 = vmatprep.subr.mxu0 0.0
      %3342 = vmatpush1.msra.mxu0 0.0
      %3343 = vmatprep.subr.mxu0 0.0
      %3344 = vmatpush1.msra.mxu0 0.0
      %3345 = vmatprep.subr.mxu0 0.0
      %3346 = vmatpush1.msra.mxu0 0.0
      %3347 = vmatprep.subr.mxu0 0.0
      %3348 = vmatpush1.msra.mxu0 0.0
      %3349 = vmatprep.subr.mxu0 0.0
      %3350 = vmatpush1.msra.mxu0 0.0
      %3351 = vmatprep.subr.mxu0 0.0
      %3352 = vmatpush1.msra.mxu0 0.0
      %3353 = vmatprep.subr.mxu0 0.0
      %3354 = vmatpush1.msra.mxu0 0.0
      %3355 = vmatprep.subr.mxu0 0.0
      %3356 = vmatpush1.msra.mxu0 0.0
      %3357 = vmatprep.subr.mxu0 0.0
      %3358 = vmatpush1.msra.mxu0 0.0
      %3359 = vmatprep.subr.mxu0 0.0
      %3360 = vmatpush1.msra.mxu0 0.0
      %3361 = vmatprep.subr.mxu0 0.0
      %3362 = vmatpush1.msra.mxu0 0.0
      %3363 = vmatprep.subr.mxu0 0.0
      %3364 = vmatpush1.msra.mxu0 0.0
      %3365 = vmatprep.subr.mxu0 0.0
      %3366 = vmatpush1.msra.mxu0 0.0
      %3367 = vmatprep.subr.mxu0 0.0
      %3368 = vmatpush1.msra.mxu0 0.0
      %3369 = vmatprep.subr.mxu0 0.0
      %3370 = vmatpush1.msra.mxu0 0.0
      %3371 = vmatprep.subr.mxu0 0.0
      %3372 = vmatpush1.msra.mxu0 0.0
      %3373 = vmatprep.subr.mxu0 0.0
      %3374 = vmatpush1.msra.mxu0 0.0
      %3375 = vmatprep.subr.mxu0 0.0
      %3376 = vmatpush1.msra.mxu0 0.0
      %3377 = vmatprep.subr.mxu0 0.0
      %3378 = vmatpush1.msra.mxu0 0.0
      %3379 = vmatprep.subr.mxu0 0.0
      %3380 = vmatpush1.msra.mxu0 0.0
      %3381 = vmatprep.subr.mxu0 0.0
      %3382 = vmatpush1.msra.mxu0 0.0
      %3383 = vmatprep.subr.mxu0 0.0
      %3384 = vmatpush1.msra.mxu0 0.0
      %3385 = vmatprep.subr.mxu0 0.0
      %3386 = vmatpush1.msra.mxu0 0.0
      %3387 = vmatprep.subr.mxu0 0.0
      %3388 = vmatpush1.msra.mxu0 0.0
      %3389 = vmatprep.subr.mxu0 0.0
      %3390 = vmatpush1.msra.mxu0 0.0
      %3391 = vmatprep.subr.mxu0 0.0
      %3392 = vmatpush1.msra.mxu0 0.0
      %3393 = vmatprep.subr.mxu0 0.0
      %3394 = vmatpush1.msra.mxu0 0.0
      %3395 = vmatprep.mubr.f32.mxu0 0.0
      %3396 = vmatmul.mubr.f32.gmra.mrb[0].mxu0 %v3224
      %v3397 = vpop.f32.mrb[0].mxu0
      %v3398 = vadd.f32 0.0, %v3397
      %v3399 = vpop.f32.mrb[0].mxu0
      %3400 = vmatprep.mubr.f32.mxu0 0.0
      %3401 = vmatmul.mubr.f32.gmra.mrb[0].mxu0 %v3227
      %v3402 = vpop.f32.mrb[0].mxu0
      %v3403 = vadd.f32 0.0, %v3402
      %v3404 = vpop.f32.mrb[0].mxu0
      %3405 = vmatprep.mubr.f32.mxu0 0.0
      %3406 = vmatmul.mubr.f32.gmra.mrb[0].mxu0 %v3230
      %v3407 = vpop.f32.mrb[0].mxu0
      %v3408 = vadd.f32 0.0, %v3407
      %v3409 = vpop.f32.mrb[0].mxu0
      %3410 = vmatprep.mubr.f32.mxu0 0.0
      %3411 = vmatmul.mubr.f32.gmra.mrb[0].mxu0 %v3233
      %v3412 = vpop.f32.mrb[0].mxu0
      %v3413 = vadd.f32 0.0, %v3412
      %v3414 = vpop.f32.mrb[0].mxu0
      %3415 = vmatprep.mubr.f32.mxu0 0.0
      %3416 = vmatmul.mubr.f32.gmra.mrb[0].mxu0 %v3236
      %v3417 = vpop.f32.mrb[0].mxu0
      %v3418 = vadd.f32 0.0, %v3417
      %v3419 = vpop.f32.mrb[0].mxu0
      %3420 = vmatprep.mubr.f32.mxu0 0.0
      %3421 = vmatmul.mubr.f32.gmra.mrb[0].mxu0 %v3239
      %v3422 = vpop.f32.mrb[0].mxu0
      %v3423 = vadd.f32 0.0, %v3422
      %v3424 = vpop.f32.mrb[0].mxu0
      %3425 = vmatprep.mubr.f32.mxu0 0.0
      %3426 = vmatmul.mubr.f32.gmra.mrb[0].mxu0 %v3242
      %v3427 = vpop.f32.mrb[0].mxu0
      %v3428 = vadd.f32 0.0, %v3427
      %v3429 = vpop.f32.mrb[0].mxu0
      %3430 = vmatprep.mubr.f32.mxu0 0.0
      %3431 = vmatmul.mubr.f32.gmra.mrb[0].mxu0 %v3245
      %v3432 = vpop.f32.mrb[0].mxu0
      %v3433 = vadd.f32 0.0, %v3432
      %v3434 = vpop.f32.mrb[0].mxu0
      %3435 = vmatprep.mubr.f32.mxu0 0.0
      %3436 = vmatmul.mubr.f32.gmra.mrb[0].mxu0 %v3248
      %v3437 = vpop.f32.mrb[0].mxu0
      %v3438 = vadd.f32 0.0, %v3437
      %v3439 = vpop.f32.mrb[0].mxu0
      %3440 = vmatprep.mubr.f32.mxu0 0.0
      %3441 = vmatmul.mubr.f32.gmra.mrb[0].mxu0 %v3251
      %v3442 = vpop.f32.mrb[0].mxu0
      %v3443 = vadd.f32 0.0, %v3442
      %v3444 = vpop.f32.mrb[0].mxu0
      %3445 = vmatprep.mubr.f32.mxu0 0.0
      %3446 = vmatmul.mubr.f32.gmra.mrb[0].mxu0 %v3254
      %v3447 = vpop.f32.mrb[0].mxu0
      %v3448 = vadd.f32 0.0, %v3447
      %v3449 = vpop.f32.mrb[0].mxu0
      %3450 = vmatprep.mubr.f32.mxu0 0.0
      %3451 = vmatmul.mubr.f32.gmra.mrb[0].mxu0 %v3257
      %v3452 = vpop.f32.mrb[0].mxu0
      %v3453 = vadd.f32 0.0, %v3452
      %v3454 = vpop.f32.mrb[0].mxu0
      %3455 = vmatprep.mubr.f32.mxu0 0.0
      %3456 = vmatmul.mubr.f32.gmra.mrb[0].mxu0 %v3260
      %v3457 = vpop.f32.mrb[0].mxu0
      %v3458 = vadd.f32 0.0, %v3457
      %v3459 = vpop.f32.mrb[0].mxu0
      %3460 = vmatprep.mubr.f32.mxu0 0.0
      %3461 = vmatmul.mubr.f32.gmra.mrb[0].mxu0 %v3263
      %v3462 = vpop.f32.mrb[0].mxu0
      %v3463 = vadd.f32 0.0, %v3462
      %v3464 = vpop.f32.mrb[0].mxu0
      %3465 = vmatprep.mubr.f32.mxu0 0.0
      %3466 = vmatmul.mubr.f32.gmra.mrb[0].mxu0 %v3266
      %v3467 = vpop.f32.mrb[0].mxu0
      %v3468 = vadd.f32 0.0, %v3467
      %v3469 = vpop.f32.mrb[0].mxu0
      %3470 = vmatprep.mubr.f32.mxu0 0.0
      %3471 = vmatmul.mubr.f32.gmra.mrb[0].mxu0 %v3269
      %v3472 = vpop.f32.mrb[0].mxu0
      %v3473 = vadd.f32 0.0, %v3472
      %v3474 = vpop.f32.mrb[0].mxu0
      %3475 = vmatprep.mubr.f32.mxu0 0.0
      %3476 = vmatmul.mubr.f32.gmra.mrb[0].mxu0 %v3272
      %v3477 = vpop.f32.mrb[0].mxu0
      %v3478 = vadd.f32 0.0, %v3477
      %v3479 = vpop.f32.mrb[0].mxu0
      %3480 = vmatprep.mubr.f32.mxu0 0.0
      %3481 = vmatmul.mubr.f32.gmra.mrb[0].mxu0 %v3275
      %v3482 = vpop.f32.mrb[0].mxu0
      %v3483 = vadd.f32 0.0, %v3482
      %v3484 = vpop.f32.mrb[0].mxu0
      %3485 = vmatprep.mubr.f32.mxu0 0.0
      %3486 = vmatmul.mubr.f32.gmra.mrb[0].mxu0 %v3278
      %v3487 = vpop.f32.mrb[0].mxu0
      %v3488 = vadd.f32 0.0, %v3487
      %v3489 = vpop.f32.mrb[0].mxu0
      %3490 = vmatprep.mubr.f32.mxu0 0.0
      %3491 = vmatmul.mubr.f32.gmra.mrb[0].mxu0 %v3281
      %v3492 = vpop.f32.mrb[0].mxu0
      %v3493 = vadd.f32 0.0, %v3492
      %v3494 = vpop.f32.mrb[0].mxu0
      %3495 = vmatprep.mubr.f32.mxu0 0.0
      %3496 = vmatmul.mubr.f32.gmra.mrb[0].mxu0 %v3284
      %v3497 = vpop.f32.mrb[0].mxu0
      %v3498 = vadd.f32 0.0, %v3497
      %v3499 = vpop.f32.mrb[0].mxu0
      %3500 = vmatprep.mubr.f32.mxu0 0.0
      %3501 = vmatmul.mubr.f32.gmra.mrb[0].mxu0 %v3287
      %v3502 = vpop.f32.mrb[0].mxu0
      %v3503 = vadd.f32 0.0, %v3502
      %v3504 = vpop.f32.mrb[0].mxu0
      %3505 = vmatprep.mubr.f32.mxu0 0.0
      %3506 = vmatmul.mubr.f32.gmra.mrb[0].mxu0 %v3290
      %v3507 = vpop.f32.mrb[0].mxu0
      %v3508 = vadd.f32 0.0, %v3507
      %v3509 = vpop.f32.mrb[0].mxu0
      %3510 = vmatprep.mubr.f32.mxu0 0.0
      %3511 = vmatmul.mubr.f32.gmra.mrb[0].mxu0 %v3293
      %v3512 = vpop.f32.mrb[0].mxu0
      %v3513 = vadd.f32 0.0, %v3512
      %v3514 = vpop.f32.mrb[0].mxu0
      %3515 = vmatprep.mubr.f32.mxu0 0.0
      %3516 = vmatmul.mubr.f32.gmra.mrb[0].mxu0 %v3296
      %v3517 = vpop.f32.mrb[0].mxu0
      %v3518 = vadd.f32 0.0, %v3517
      %v3519 = vpop.f32.mrb[0].mxu0
      %3520 = vmatprep.mubr.f32.mxu0 0.0
      %3521 = vmatmul.mubr.f32.gmra.mrb[0].mxu0 %v3299
      %v3522 = vpop.f32.mrb[0].mxu0
      %v3523 = vadd.f32 0.0, %v3522
      %v3524 = vpop.f32.mrb[0].mxu0
      %3525 = vmatprep.mubr.f32.mxu0 0.0
      %3526 = vmatmul.mubr.f32.gmra.mrb[0].mxu0 %v3302
      %v3527 = vpop.f32.mrb[0].mxu0
      %v3528 = vadd.f32 0.0, %v3527
      %v3529 = vpop.f32.mrb[0].mxu0
      %3530 = vmatprep.mubr.f32.mxu0 0.0
      %3531 = vmatmul.mubr.f32.gmra.mrb[0].mxu0 %v3305
      %v3532 = vpop.f32.mrb[0].mxu0
      %v3533 = vadd.f32 0.0, %v3532
      %v3534 = vpop.f32.mrb[0].mxu0
      %3535 = vmatprep.mubr.f32.mxu0 0.0
      %3536 = vmatmul.mubr.f32.gmra.mrb[0].mxu0 %v3308
      %v3537 = vpop.f32.mrb[0].mxu0
      %v3538 = vadd.f32 0.0, %v3537
      %v3539 = vpop.f32.mrb[0].mxu0
      %3540 = vmatprep.mubr.f32.mxu0 0.0
      %3541 = vmatmul.mubr.f32.gmra.mrb[0].mxu0 %v3311
      %v3542 = vpop.f32.mrb[0].mxu0
      %v3543 = vadd.f32 0.0, %v3542
      %v3544 = vpop.f32.mrb[0].mxu0
      %3545 = vmatprep.mubr.f32.mxu0 0.0
      %3546 = vmatmul.mubr.f32.gmra.mrb[0].mxu0 %v3314
      %v3547 = vpop.f32.mrb[0].mxu0
      %v3548 = vadd.f32 0.0, %v3547
      %v3549 = vpop.f32.mrb[0].mxu0
      %3550 = vmatprep.mubr.f32.mxu0 0.0
      %3551 = vmatmul.mubr.f32.gmra.mrb[0].mxu0 %v3317
      %v3552 = vpop.f32.mrb[0].mxu0
      %v3553 = vadd.f32 0.0, %v3552
      %v3554 = vpop.f32.mrb[0].mxu0
      %3555 = vmatprep.mubr.f32.mxu0 0.0
      %3556 = vmatmul.mubr.f32.gmra.mrb[0].mxu0 %v3320
      %v3557 = vpop.f32.mrb[0].mxu0
      %v3558 = vadd.f32 0.0, %v3557
      %v3559 = vpop.f32.mrb[0].mxu0
      %3560 = vmatprep.mubr.f32.mxu0 0.0
      %3561 = vmatmul.mubr.f32.gmra.mrb[0].mxu0 %v3323
      %v3562 = vpop.f32.mrb[0].mxu0
      %v3563 = vadd.f32 0.0, %v3562
      %v3564 = vpop.f32.mrb[0].mxu0
      %3565 = vmatprep.mubr.f32.mxu0 0.0
      %3566 = vmatmul.mubr.f32.gmra.mrb[0].mxu0 %v3326
      %v3567 = vpop.f32.mrb[0].mxu0
      %v3568 = vadd.f32 0.0, %v3567
      %v3569 = vpop.f32.mrb[0].mxu0
      %3570 = vmatprep.mubr.f32.mxu0 0.0
      %3571 = vmatmul.mubr.f32.gmra.mrb[0].mxu0 %v3329
      %v3572 = vpop.f32.mrb[0].mxu0
      %v3573 = vadd.f32 0.0, %v3572
      %v3574 = vpop.f32.mrb[0].mxu0
      %3575 = vdwg.mxu0
      %v3576 = vadd.f32 %v3149, %v3398
      %v3577 = vadd.f32 %v3150, %v3403
      %v3578 = vadd.f32 %v3151, %v3408
      %v3579 = vadd.f32 %v3152, %v3413
      %v3580 = vadd.f32 %v3153, %v3418
      %v3581 = vadd.f32 %v3154, %v3423
      %v3582 = vadd.f32 %v3155, %v3428
      %v3583 = vadd.f32 %v3156, %v3433
      %v3584 = vadd.f32 %v3157, %v3438
      %v3585 = vadd.f32 %v3158, %v3443
      %v3586 = vadd.f32 %v3159, %v3448
      %v3587 = vadd.f32 %v3160, %v3453
      %v3588 = vadd.f32 %v3161, %v3458
      %v3589 = vadd.f32 %v3162, %v3463
      %v3590 = vadd.f32 %v3163, %v3468
      %v3591 = vadd.f32 %v3164, %v3473
      %v3592 = vadd.f32 %v3165, %v3478
      %v3593 = vadd.f32 %v3166, %v3483
      %v3594 = vadd.f32 %v3167, %v3488
      %v3595 = vadd.f32 %v3168, %v3493
      %v3596 = vadd.f32 %v3169, %v3498
      %v3597 = vadd.f32 %v3170, %v3503
      %v3598 = vadd.f32 %v3171, %v3508
      %v3599 = vadd.f32 %v3172, %v3513
      %v3600 = vadd.f32 %v3173, %v3518
      %v3601 = vadd.f32 %v3174, %v3523
      %v3602 = vadd.f32 %v3175, %v3528
      %v3603 = vadd.f32 %v3176, %v3533
      %v3604 = vadd.f32 %v3177, %v3538
      %v3605 = vadd.f32 %v3178, %v3543
      %v3606 = vadd.f32 %v3179, %v3548
      %v3607 = vadd.f32 %v3180, %v3553
      %v3608 = vadd.f32 %v3181, %v3558
      %v3609 = vadd.f32 %v3182, %v3563
      %v3610 = vadd.f32 %v3183, %v3568
      %v3611 = vadd.f32 %v3184, %v3573
      %v3612 = vld [vmem:[%s2757 + $0x2] sm:$0xff]
      %v3613 = vld [vmem:[%s2757 + $0xa] sm:$0xff]
      %v3614 = vld [vmem:[%s2757 + $0x1a] sm:$0xff]
      %v3615 = vld [vmem:[%s2757 + $0x22] sm:$0xff]
      %v3616 = vld [vmem:[%s2757 + $0x32] sm:$0xff]
      %v3617 = vld [vmem:[%s2757 + $0x3a] sm:$0xff]
      %v3618 = vld [vmem:[%s2757 + $0x4a] sm:$0xff]
      %v3619 = vld [vmem:[%s2757 + $0x52] sm:$0xff]
      %v3620 = vld [vmem:[%s2757 + $0x62] sm:$0xff]
      %v3621 = vld [vmem:[%s2757 + $0x6a] sm:$0xff]
      %v3622 = vld [vmem:[%s2757 + $0x7a] sm:$0xff]
      %v3623 = vld [vmem:[%s2757 + $0x82] sm:$0xff]
      %v3624 = vld [vmem:[%s2757 + $0x92] sm:$0xff]
      %v3625 = vld [vmem:[%s2757 + $0x9a] sm:$0xff]
      %v3626 = vld [vmem:[%s2757 + $0xaa] sm:$0xff]
      %v3627 = vld [vmem:[%s2757 + $0xb2] sm:$0xff]
      %v3628 = vld [vmem:[%s2757 + $0xc2] sm:$0xff]
      %v3629 = vld [vmem:[%s2757 + $0xca] sm:$0xff]
      %v3630 = vld [vmem:[%s2757 + $0xda] sm:$0xff]
      %v3631 = vld [vmem:[%s2757 + $0xe2] sm:$0xff]
      %v3632 = vld [vmem:[%s2757 + $0xf2] sm:$0xff]
      %v3633 = vld [vmem:[%s2757 + $0xfa] sm:$0xff]
      %v3634 = vld [vmem:[%s2757 + $0x10a] sm:$0xff]
      %v3635 = vld [vmem:[%s2757 + $0x112] sm:$0xff]
      %v3636 = vld [vmem:[%s2757 + $0x122] sm:$0xff]
      %v3637 = vld [vmem:[%s2757 + $0x12a] sm:$0xff]
      %v3638 = vld [vmem:[%s2757 + $0x13a] sm:$0xff]
      %v3639 = vld [vmem:[%s2757 + $0x142] sm:$0xff]
      %v3640 = vld [vmem:[%s2757 + $0x152] sm:$0xff]
      %v3641 = vld [vmem:[%s2757 + $0x15a] sm:$0xff]
      %v3642 = vld [vmem:[%s2757 + $0x16a] sm:$0xff]
      %v3643 = vld [vmem:[%s2757 + $0x172] sm:$0xff]
      %v3644 = vld [vmem:[%s2757 + $0x182] sm:$0xff]
      %v3645 = vld [vmem:[%s2757 + $0x18a] sm:$0xff]
      %v3646 = vld [vmem:[%s2757 + $0x19a] sm:$0xff]
      %v3647 = vld [vmem:[%s2757 + $0x1a2] sm:$0xff]
      %s3648 = scalar_lea.vmem %s1, 64
      %v3649 = vld [vmem:[%s3648] sm:$0xff]
      %v3651 = vsel %vm341, %v3612, 0
      %v3654 = vsel %vm341, %v3613, 0
      %v3657 = vsel %vm341, %v3614, 0
      %v3660 = vsel %vm341, %v3615, 0
      %v3663 = vsel %vm341, %v3616, 0
      %v3666 = vsel %vm341, %v3617, 0
      %v3669 = vsel %vm341, %v3618, 0
      %v3672 = vsel %vm341, %v3619, 0
      %v3675 = vsel %vm341, %v3620, 0
      %v3678 = vsel %vm341, %v3621, 0
      %v3681 = vsel %vm341, %v3622, 0
      %v3684 = vsel %vm341, %v3623, 0
      %v3687 = vsel %vm341, %v3624, 0
      %v3690 = vsel %vm341, %v3625, 0
      %v3693 = vsel %vm341, %v3626, 0
      %v3696 = vsel %vm341, %v3627, 0
      %v3699 = vsel %vm341, %v3628, 0
      %v3702 = vsel %vm341, %v3629, 0
      %v3705 = vsel %vm341, %v3630, 0
      %v3708 = vsel %vm341, %v3631, 0
      %v3711 = vsel %vm341, %v3632, 0
      %v3714 = vsel %vm341, %v3633, 0
      %v3717 = vsel %vm341, %v3634, 0
      %v3720 = vsel %vm341, %v3635, 0
      %v3723 = vsel %vm341, %v3636, 0
      %v3726 = vsel %vm341, %v3637, 0
      %v3729 = vsel %vm341, %v3638, 0
      %v3732 = vsel %vm341, %v3639, 0
      %v3735 = vsel %vm341, %v3640, 0
      %v3738 = vsel %vm341, %v3641, 0
      %v3741 = vsel %vm341, %v3642, 0
      %v3744 = vsel %vm341, %v3643, 0
      %v3747 = vsel %vm341, %v3644, 0
      %v3750 = vsel %vm341, %v3645, 0
      %v3753 = vsel %vm341, %v3646, 0
      %v3756 = vsel %vm341, %v3647, 0
      %3758 = vmatprep.subr.mxu0 0.0
      %3759 = vmatpush1.msra.mxu0 %v3649
      %3760 = vmatprep.subr.mxu0 0.0
      %3761 = vmatpush1.msra.mxu0 0.0
      %3762 = vmatprep.subr.mxu0 0.0
      %3763 = vmatpush1.msra.mxu0 0.0
      %3764 = vmatprep.subr.mxu0 0.0
      %3765 = vmatpush1.msra.mxu0 0.0
      %3766 = vmatprep.subr.mxu0 0.0
      %3767 = vmatpush1.msra.mxu0 0.0
      %3768 = vmatprep.subr.mxu0 0.0
      %3769 = vmatpush1.msra.mxu0 0.0
      %3770 = vmatprep.subr.mxu0 0.0
      %3771 = vmatpush1.msra.mxu0 0.0
      %3772 = vmatprep.subr.mxu0 0.0
      %3773 = vmatpush1.msra.mxu0 0.0
      %3774 = vmatprep.subr.mxu0 0.0
      %3775 = vmatpush1.msra.mxu0 0.0
      %3776 = vmatprep.subr.mxu0 0.0
      %3777 = vmatpush1.msra.mxu0 0.0
      %3778 = vmatprep.subr.mxu0 0.0
      %3779 = vmatpush1.msra.mxu0 0.0
      %3780 = vmatprep.subr.mxu0 0.0
      %3781 = vmatpush1.msra.mxu0 0.0
      %3782 = vmatprep.subr.mxu0 0.0
      %3783 = vmatpush1.msra.mxu0 0.0
      %3784 = vmatprep.subr.mxu0 0.0
      %3785 = vmatpush1.msra.mxu0 0.0
      %3786 = vmatprep.subr.mxu0 0.0
      %3787 = vmatpush1.msra.mxu0 0.0
      %3788 = vmatprep.subr.mxu0 0.0
      %3789 = vmatpush1.msra.mxu0 0.0
      %3790 = vmatprep.subr.mxu0 0.0
      %3791 = vmatpush1.msra.mxu0 0.0
      %3792 = vmatprep.subr.mxu0 0.0
      %3793 = vmatpush1.msra.mxu0 0.0
      %3794 = vmatprep.subr.mxu0 0.0
      %3795 = vmatpush1.msra.mxu0 0.0
      %3796 = vmatprep.subr.mxu0 0.0
      %3797 = vmatpush1.msra.mxu0 0.0
      %3798 = vmatprep.subr.mxu0 0.0
      %3799 = vmatpush1.msra.mxu0 0.0
      %3800 = vmatprep.subr.mxu0 0.0
      %3801 = vmatpush1.msra.mxu0 0.0
      %3802 = vmatprep.subr.mxu0 0.0
      %3803 = vmatpush1.msra.mxu0 0.0
      %3804 = vmatprep.subr.mxu0 0.0
      %3805 = vmatpush1.msra.mxu0 0.0
      %3806 = vmatprep.subr.mxu0 0.0
      %3807 = vmatpush1.msra.mxu0 0.0
      %3808 = vmatprep.subr.mxu0 0.0
      %3809 = vmatpush1.msra.mxu0 0.0
      %3810 = vmatprep.subr.mxu0 0.0
      %3811 = vmatpush1.msra.mxu0 0.0
      %3812 = vmatprep.subr.mxu0 0.0
      %3813 = vmatpush1.msra.mxu0 0.0
      %3814 = vmatprep.subr.mxu0 0.0
      %3815 = vmatpush1.msra.mxu0 0.0
      %3816 = vmatprep.subr.mxu0 0.0
      %3817 = vmatpush1.msra.mxu0 0.0
      %3818 = vmatprep.subr.mxu0 0.0
      %3819 = vmatpush1.msra.mxu0 0.0
      %3820 = vmatprep.subr.mxu0 0.0
      %3821 = vmatpush1.msra.mxu0 0.0
      %3822 = vmatprep.mubr.f32.mxu0 0.0
      %3823 = vmatmul.mubr.f32.gmra.mrb[0].mxu0 %v3651
      %v3824 = vpop.f32.mrb[0].mxu0
      %v3825 = vadd.f32 0.0, %v3824
      %v3826 = vpop.f32.mrb[0].mxu0
      %3827 = vmatprep.mubr.f32.mxu0 0.0
      %3828 = vmatmul.mubr.f32.gmra.mrb[0].mxu0 %v3654
      %v3829 = vpop.f32.mrb[0].mxu0
      %v3830 = vadd.f32 0.0, %v3829
      %v3831 = vpop.f32.mrb[0].mxu0
      %3832 = vmatprep.mubr.f32.mxu0 0.0
      %3833 = vmatmul.mubr.f32.gmra.mrb[0].mxu0 %v3657
      %v3834 = vpop.f32.mrb[0].mxu0
      %v3835 = vadd.f32 0.0, %v3834
      %v3836 = vpop.f32.mrb[0].mxu0
      %3837 = vmatprep.mubr.f32.mxu0 0.0
      %3838 = vmatmul.mubr.f32.gmra.mrb[0].mxu0 %v3660
      %v3839 = vpop.f32.mrb[0].mxu0
      %v3840 = vadd.f32 0.0, %v3839
      %v3841 = vpop.f32.mrb[0].mxu0
      %3842 = vmatprep.mubr.f32.mxu0 0.0
      %3843 = vmatmul.mubr.f32.gmra.mrb[0].mxu0 %v3663
      %v3844 = vpop.f32.mrb[0].mxu0
      %v3845 = vadd.f32 0.0, %v3844
      %v3846 = vpop.f32.mrb[0].mxu0
      %3847 = vmatprep.mubr.f32.mxu0 0.0
      %3848 = vmatmul.mubr.f32.gmra.mrb[0].mxu0 %v3666
      %v3849 = vpop.f32.mrb[0].mxu0
      %v3850 = vadd.f32 0.0, %v3849
      %v3851 = vpop.f32.mrb[0].mxu0
      %3852 = vmatprep.mubr.f32.mxu0 0.0
      %3853 = vmatmul.mubr.f32.gmra.mrb[0].mxu0 %v3669
      %v3854 = vpop.f32.mrb[0].mxu0
      %v3855 = vadd.f32 0.0, %v3854
      %v3856 = vpop.f32.mrb[0].mxu0
      %3857 = vmatprep.mubr.f32.mxu0 0.0
      %3858 = vmatmul.mubr.f32.gmra.mrb[0].mxu0 %v3672
      %v3859 = vpop.f32.mrb[0].mxu0
      %v3860 = vadd.f32 0.0, %v3859
      %v3861 = vpop.f32.mrb[0].mxu0
      %3862 = vmatprep.mubr.f32.mxu0 0.0
      %3863 = vmatmul.mubr.f32.gmra.mrb[0].mxu0 %v3675
      %v3864 = vpop.f32.mrb[0].mxu0
      %v3865 = vadd.f32 0.0, %v3864
      %v3866 = vpop.f32.mrb[0].mxu0
      %3867 = vmatprep.mubr.f32.mxu0 0.0
      %3868 = vmatmul.mubr.f32.gmra.mrb[0].mxu0 %v3678
      %v3869 = vpop.f32.mrb[0].mxu0
      %v3870 = vadd.f32 0.0, %v3869
      %v3871 = vpop.f32.mrb[0].mxu0
      %3872 = vmatprep.mubr.f32.mxu0 0.0
      %3873 = vmatmul.mubr.f32.gmra.mrb[0].mxu0 %v3681
      %v3874 = vpop.f32.mrb[0].mxu0
      %v3875 = vadd.f32 0.0, %v3874
      %v3876 = vpop.f32.mrb[0].mxu0
      %3877 = vmatprep.mubr.f32.mxu0 0.0
      %3878 = vmatmul.mubr.f32.gmra.mrb[0].mxu0 %v3684
      %v3879 = vpop.f32.mrb[0].mxu0
      %v3880 = vadd.f32 0.0, %v3879
      %v3881 = vpop.f32.mrb[0].mxu0
      %3882 = vmatprep.mubr.f32.mxu0 0.0
      %3883 = vmatmul.mubr.f32.gmra.mrb[0].mxu0 %v3687
      %v3884 = vpop.f32.mrb[0].mxu0
      %v3885 = vadd.f32 0.0, %v3884
      %v3886 = vpop.f32.mrb[0].mxu0
      %3887 = vmatprep.mubr.f32.mxu0 0.0
      %3888 = vmatmul.mubr.f32.gmra.mrb[0].mxu0 %v3690
      %v3889 = vpop.f32.mrb[0].mxu0
      %v3890 = vadd.f32 0.0, %v3889
      %v3891 = vpop.f32.mrb[0].mxu0
      %3892 = vmatprep.mubr.f32.mxu0 0.0
      %3893 = vmatmul.mubr.f32.gmra.mrb[0].mxu0 %v3693
      %v3894 = vpop.f32.mrb[0].mxu0
      %v3895 = vadd.f32 0.0, %v3894
      %v3896 = vpop.f32.mrb[0].mxu0
      %3897 = vmatprep.mubr.f32.mxu0 0.0
      %3898 = vmatmul.mubr.f32.gmra.mrb[0].mxu0 %v3696
      %v3899 = vpop.f32.mrb[0].mxu0
      %v3900 = vadd.f32 0.0, %v3899
      %v3901 = vpop.f32.mrb[0].mxu0
      %3902 = vmatprep.mubr.f32.mxu0 0.0
      %3903 = vmatmul.mubr.f32.gmra.mrb[0].mxu0 %v3699
      %v3904 = vpop.f32.mrb[0].mxu0
      %v3905 = vadd.f32 0.0, %v3904
      %v3906 = vpop.f32.mrb[0].mxu0
      %3907 = vmatprep.mubr.f32.mxu0 0.0
      %3908 = vmatmul.mubr.f32.gmra.mrb[0].mxu0 %v3702
      %v3909 = vpop.f32.mrb[0].mxu0
      %v3910 = vadd.f32 0.0, %v3909
      %v3911 = vpop.f32.mrb[0].mxu0
      %3912 = vmatprep.mubr.f32.mxu0 0.0
      %3913 = vmatmul.mubr.f32.gmra.mrb[0].mxu0 %v3705
      %v3914 = vpop.f32.mrb[0].mxu0
      %v3915 = vadd.f32 0.0, %v3914
      %v3916 = vpop.f32.mrb[0].mxu0
      %3917 = vmatprep.mubr.f32.mxu0 0.0
      %3918 = vmatmul.mubr.f32.gmra.mrb[0].mxu0 %v3708
      %v3919 = vpop.f32.mrb[0].mxu0
      %v3920 = vadd.f32 0.0, %v3919
      %v3921 = vpop.f32.mrb[0].mxu0
      %3922 = vmatprep.mubr.f32.mxu0 0.0
      %3923 = vmatmul.mubr.f32.gmra.mrb[0].mxu0 %v3711
      %v3924 = vpop.f32.mrb[0].mxu0
      %v3925 = vadd.f32 0.0, %v3924
      %v3926 = vpop.f32.mrb[0].mxu0
      %3927 = vmatprep.mubr.f32.mxu0 0.0
      %3928 = vmatmul.mubr.f32.gmra.mrb[0].mxu0 %v3714
      %v3929 = vpop.f32.mrb[0].mxu0
      %v3930 = vadd.f32 0.0, %v3929
      %v3931 = vpop.f32.mrb[0].mxu0
      %3932 = vmatprep.mubr.f32.mxu0 0.0
      %3933 = vmatmul.mubr.f32.gmra.mrb[0].mxu0 %v3717
      %v3934 = vpop.f32.mrb[0].mxu0
      %v3935 = vadd.f32 0.0, %v3934
      %v3936 = vpop.f32.mrb[0].mxu0
      %3937 = vmatprep.mubr.f32.mxu0 0.0
      %3938 = vmatmul.mubr.f32.gmra.mrb[0].mxu0 %v3720
      %v3939 = vpop.f32.mrb[0].mxu0
      %v3940 = vadd.f32 0.0, %v3939
      %v3941 = vpop.f32.mrb[0].mxu0
      %3942 = vmatprep.mubr.f32.mxu0 0.0
      %3943 = vmatmul.mubr.f32.gmra.mrb[0].mxu0 %v3723
      %v3944 = vpop.f32.mrb[0].mxu0
      %v3945 = vadd.f32 0.0, %v3944
      %v3946 = vpop.f32.mrb[0].mxu0
      %3947 = vmatprep.mubr.f32.mxu0 0.0
      %3948 = vmatmul.mubr.f32.gmra.mrb[0].mxu0 %v3726
      %v3949 = vpop.f32.mrb[0].mxu0
      %v3950 = vadd.f32 0.0, %v3949
      %v3951 = vpop.f32.mrb[0].mxu0
      %3952 = vmatprep.mubr.f32.mxu0 0.0
      %3953 = vmatmul.mubr.f32.gmra.mrb[0].mxu0 %v3729
      %v3954 = vpop.f32.mrb[0].mxu0
      %v3955 = vadd.f32 0.0, %v3954
      %v3956 = vpop.f32.mrb[0].mxu0
      %3957 = vmatprep.mubr.f32.mxu0 0.0
      %3958 = vmatmul.mubr.f32.gmra.mrb[0].mxu0 %v3732
      %v3959 = vpop.f32.mrb[0].mxu0
      %v3960 = vadd.f32 0.0, %v3959
      %v3961 = vpop.f32.mrb[0].mxu0
      %3962 = vmatprep.mubr.f32.mxu0 0.0
      %3963 = vmatmul.mubr.f32.gmra.mrb[0].mxu0 %v3735
      %v3964 = vpop.f32.mrb[0].mxu0
      %v3965 = vadd.f32 0.0, %v3964
      %v3966 = vpop.f32.mrb[0].mxu0
      %3967 = vmatprep.mubr.f32.mxu0 0.0
      %3968 = vmatmul.mubr.f32.gmra.mrb[0].mxu0 %v3738
      %v3969 = vpop.f32.mrb[0].mxu0
      %v3970 = vadd.f32 0.0, %v3969
      %v3971 = vpop.f32.mrb[0].mxu0
      %3972 = vmatprep.mubr.f32.mxu0 0.0
      %3973 = vmatmul.mubr.f32.gmra.mrb[0].mxu0 %v3741
      %v3974 = vpop.f32.mrb[0].mxu0
      %v3975 = vadd.f32 0.0, %v3974
      %v3976 = vpop.f32.mrb[0].mxu0
      %3977 = vmatprep.mubr.f32.mxu0 0.0
      %3978 = vmatmul.mubr.f32.gmra.mrb[0].mxu0 %v3744
      %v3979 = vpop.f32.mrb[0].mxu0
      %v3980 = vadd.f32 0.0, %v3979
      %v3981 = vpop.f32.mrb[0].mxu0
      %3982 = vmatprep.mubr.f32.mxu0 0.0
      %3983 = vmatmul.mubr.f32.gmra.mrb[0].mxu0 %v3747
      %v3984 = vpop.f32.mrb[0].mxu0
      %v3985 = vadd.f32 0.0, %v3984
      %v3986 = vpop.f32.mrb[0].mxu0
      %3987 = vmatprep.mubr.f32.mxu0 0.0
      %3988 = vmatmul.mubr.f32.gmra.mrb[0].mxu0 %v3750
      %v3989 = vpop.f32.mrb[0].mxu0
      %v3990 = vadd.f32 0.0, %v3989
      %v3991 = vpop.f32.mrb[0].mxu0
      %3992 = vmatprep.mubr.f32.mxu0 0.0
      %3993 = vmatmul.mubr.f32.gmra.mrb[0].mxu0 %v3753
      %v3994 = vpop.f32.mrb[0].mxu0
      %v3995 = vadd.f32 0.0, %v3994
      %v3996 = vpop.f32.mrb[0].mxu0
      %3997 = vmatprep.mubr.f32.mxu0 0.0
      %3998 = vmatmul.mubr.f32.gmra.mrb[0].mxu0 %v3756
      %v3999 = vpop.f32.mrb[0].mxu0
      %v4000 = vadd.f32 0.0, %v3999
      %v4001 = vpop.f32.mrb[0].mxu0
      %4002 = vdwg.mxu0
      %v4003 = vadd.f32 %v3576, %v3825
      %v4004 = vadd.f32 %v3577, %v3830
      %v4005 = vadd.f32 %v3578, %v3835
      %v4006 = vadd.f32 %v3579, %v3840
      %v4007 = vadd.f32 %v3580, %v3845
      %v4008 = vadd.f32 %v3581, %v3850
      %v4009 = vadd.f32 %v3582, %v3855
      %v4010 = vadd.f32 %v3583, %v3860
      %v4011 = vadd.f32 %v3584, %v3865
      %v4012 = vadd.f32 %v3585, %v3870
      %v4013 = vadd.f32 %v3586, %v3875
      %v4014 = vadd.f32 %v3587, %v3880
      %v4015 = vadd.f32 %v3588, %v3885
      %v4016 = vadd.f32 %v3589, %v3890
      %v4017 = vadd.f32 %v3590, %v3895
      %v4018 = vadd.f32 %v3591, %v3900
      %v4019 = vadd.f32 %v3592, %v3905
      %v4020 = vadd.f32 %v3593, %v3910
      %v4021 = vadd.f32 %v3594, %v3915
      %v4022 = vadd.f32 %v3595, %v3920
      %v4023 = vadd.f32 %v3596, %v3925
      %v4024 = vadd.f32 %v3597, %v3930
      %v4025 = vadd.f32 %v3598, %v3935
      %v4026 = vadd.f32 %v3599, %v3940
      %v4027 = vadd.f32 %v3600, %v3945
      %v4028 = vadd.f32 %v3601, %v3950
      %v4029 = vadd.f32 %v3602, %v3955
      %v4030 = vadd.f32 %v3603, %v3960
      %v4031 = vadd.f32 %v3604, %v3965
      %v4032 = vadd.f32 %v3605, %v3970
      %v4033 = vadd.f32 %v3606, %v3975
      %v4034 = vadd.f32 %v3607, %v3980
      %v4035 = vadd.f32 %v3608, %v3985
      %v4036 = vadd.f32 %v3609, %v3990
      %v4037 = vadd.f32 %v3610, %v3995
      %v4038 = vadd.f32 %v3611, %v4000
      %v4039 = vld [vmem:[%s3] sm:$0x1]
      %v4040 = vlaneseq
      %v4041 = vshrl.u32 %v4040, 7
      %v4042 = vsub.s32 0, %v4041
      %v4043 = vrot.slane %v4039, %v4042
      %v4044 = vadd.f32 %v4003, %v4043
      %v4045 = vadd.f32 %v4004, %v4043
      %v4046 = vadd.f32 %v4005, %v4043
      %v4047 = vadd.f32 %v4006, %v4043
      %v4048 = vadd.f32 %v4007, %v4043
      %v4049 = vadd.f32 %v4008, %v4043
      %v4050 = vadd.f32 %v4009, %v4043
      %v4051 = vadd.f32 %v4010, %v4043
      %v4052 = vadd.f32 %v4011, %v4043
      %v4053 = vadd.f32 %v4012, %v4043
      %v4054 = vadd.f32 %v4013, %v4043
      %v4055 = vadd.f32 %v4014, %v4043
      %v4056 = vadd.f32 %v4015, %v4043
      %v4057 = vadd.f32 %v4016, %v4043
      %v4058 = vadd.f32 %v4017, %v4043
      %v4059 = vadd.f32 %v4018, %v4043
      %v4060 = vadd.f32 %v4019, %v4043
      %v4061 = vadd.f32 %v4020, %v4043
      %v4062 = vadd.f32 %v4021, %v4043
      %v4063 = vadd.f32 %v4022, %v4043
      %v4064 = vadd.f32 %v4023, %v4043
      %v4065 = vadd.f32 %v4024, %v4043
      %v4066 = vadd.f32 %v4025, %v4043
      %v4067 = vadd.f32 %v4026, %v4043
      %v4068 = vadd.f32 %v4027, %v4043
      %v4069 = vadd.f32 %v4028, %v4043
      %v4070 = vadd.f32 %v4029, %v4043
      %v4071 = vadd.f32 %v4030, %v4043
      %v4072 = vadd.f32 %v4031, %v4043
      %v4073 = vadd.f32 %v4032, %v4043
      %v4074 = vadd.f32 %v4033, %v4043
      %v4075 = vadd.f32 %v4034, %v4043
      %v4076 = vadd.f32 %v4035, %v4043
      %v4077 = vadd.f32 %v4036, %v4043
      %v4078 = vadd.f32 %v4037, %v4043
      %v4079 = vadd.f32 %v4038, %v4043
      %v4080 = vmax.f32 %v4044, 0.0
      %v4081 = vmax.f32 %v4045, 0.0
      %v4082 = vmax.f32 %v4046, 0.0
      %v4083 = vmax.f32 %v4047, 0.0
      %v4084 = vmax.f32 %v4048, 0.0
      %v4085 = vmax.f32 %v4049, 0.0
      %v4086 = vmax.f32 %v4050, 0.0
      %v4087 = vmax.f32 %v4051, 0.0
      %v4088 = vmax.f32 %v4052, 0.0
      %v4089 = vmax.f32 %v4053, 0.0
      %v4090 = vmax.f32 %v4054, 0.0
      %v4091 = vmax.f32 %v4055, 0.0
      %v4092 = vmax.f32 %v4056, 0.0
      %v4093 = vmax.f32 %v4057, 0.0
      %v4094 = vmax.f32 %v4058, 0.0
      %v4095 = vmax.f32 %v4059, 0.0
      %v4096 = vmax.f32 %v4060, 0.0
      %v4097 = vmax.f32 %v4061, 0.0
      %v4098 = vmax.f32 %v4062, 0.0
      %v4099 = vmax.f32 %v4063, 0.0
      %v4100 = vmax.f32 %v4064, 0.0
      %v4101 = vmax.f32 %v4065, 0.0
      %v4102 = vmax.f32 %v4066, 0.0
      %v4103 = vmax.f32 %v4067, 0.0
      %v4104 = vmax.f32 %v4068, 0.0
      %v4105 = vmax.f32 %v4069, 0.0
      %v4106 = vmax.f32 %v4070, 0.0
      %v4107 = vmax.f32 %v4071, 0.0
      %v4108 = vmax.f32 %v4072, 0.0
      %v4109 = vmax.f32 %v4073, 0.0
      %v4110 = vmax.f32 %v4074, 0.0
      %v4111 = vmax.f32 %v4075, 0.0
      %v4112 = vmax.f32 %v4076, 0.0
      %v4113 = vmax.f32 %v4077, 0.0
      %v4114 = vmax.f32 %v4078, 0.0
      %v4115 = vmax.f32 %v4079, 0.0
      %4116 = vst [vmem:[#allocation2 + $0x8] sm:$0xff] %v4080
      %4117 = vst [vmem:[#allocation2 + $0x10] sm:$0xff] %v4081
      %4118 = vst [vmem:[#allocation2 + $0x28] sm:$0xff] %v4082
      %4119 = vst [vmem:[#allocation2 + $0x30] sm:$0xff] %v4083
      %4120 = vst [vmem:[#allocation2 + $0x48] sm:$0xff] %v4084
      %4121 = vst [vmem:[#allocation2 + $0x50] sm:$0xff] %v4085
      %4122 = vst [vmem:[#allocation2 + $0x68] sm:$0xff] %v4086
      %4123 = vst [vmem:[#allocation2 + $0x70] sm:$0xff] %v4087
      %4124 = vst [vmem:[#allocation2 + $0x88] sm:$0xff] %v4088
      %4125 = vst [vmem:[#allocation2 + $0x90] sm:$0xff] %v4089
      %4126 = vst [vmem:[#allocation2 + $0xa8] sm:$0xff] %v4090
      %4127 = vst [vmem:[#allocation2 + $0xb0] sm:$0xff] %v4091
      %4128 = vst [vmem:[#allocation2 + $0xc8] sm:$0xff] %v4092
      %4129 = vst [vmem:[#allocation2 + $0xd0] sm:$0xff] %v4093
      %4130 = vst [vmem:[#allocation2 + $0xe8] sm:$0xff] %v4094
      %4131 = vst [vmem:[#allocation2 + $0xf0] sm:$0xff] %v4095
      %4132 = vst [vmem:[#allocation2 + $0x108] sm:$0xff] %v4096
      %4133 = vst [vmem:[#allocation2 + $0x110] sm:$0xff] %v4097
      %4134 = vst [vmem:[#allocation2 + $0x128] sm:$0xff] %v4098
      %4135 = vst [vmem:[#allocation2 + $0x130] sm:$0xff] %v4099
      %4136 = vst [vmem:[#allocation2 + $0x148] sm:$0xff] %v4100
      %4137 = vst [vmem:[#allocation2 + $0x150] sm:$0xff] %v4101
      %4138 = vst [vmem:[#allocation2 + $0x168] sm:$0xff] %v4102
      %4139 = vst [vmem:[#allocation2 + $0x170] sm:$0xff] %v4103
      %4140 = vst [vmem:[#allocation2 + $0x188] sm:$0xff] %v4104
      %4141 = vst [vmem:[#allocation2 + $0x190] sm:$0xff] %v4105
      %4142 = vst [vmem:[#allocation2 + $0x1a8] sm:$0xff] %v4106
      %4143 = vst [vmem:[#allocation2 + $0x1b0] sm:$0xff] %v4107
      %4144 = vst [vmem:[#allocation2 + $0x1c8] sm:$0xff] %v4108
      %4145 = vst [vmem:[#allocation2 + $0x1d0] sm:$0xff] %v4109
      %4146 = vst [vmem:[#allocation2 + $0x1e8] sm:$0xff] %v4110
      %4147 = vst [vmem:[#allocation2 + $0x1f0] sm:$0xff] %v4111
      %4148 = vst [vmem:[#allocation2 + $0x208] sm:$0xff] %v4112
      %4149 = vst [vmem:[#allocation2 + $0x210] sm:$0xff] %v4113
      %4150 = vst [vmem:[#allocation2 + $0x228] sm:$0xff] %v4114
      %4151 = vst [vmem:[#allocation2 + $0x230] sm:$0xff] %v4115
      %p4152 = scmp.eq.s32.totalorder %s20, 0
      // Predicated region
      $region37: #{tpu_custom_call.1} parent=35 // pred_check
        %p4153 = pneg %p4152
      $region38: #{tpu_custom_call.1} parent=35 // pred_check_branch
        %4155 = sbr.rel (%p4153) target = $region40
      $region39: #{tpu_custom_call.1} parent=35 // pred_region
        %4156 = vst [vmem:[#allocation2 + $0x8] sm:$0xff] 0.0
        %4157 = vst [vmem:[#allocation2 + $0x10] sm:$0xff] 0.0
        %s4158 = scalar_lea.vmem [#allocation2], 544
        %4159 = vst [vmem:[%s4158 + $0x8] sm:$0xff] 0.0
        %4160 = vst [vmem:[%s4158 + $0x10] sm:$0xff] 0.0
      $region40: #{tpu_custom_call.1} parent=35 // pred_fallthru
        _
      %v4161 = vld [vmem:[#allocation2 + $0x7] sm:$0xff]
      %v4162 = vld [vmem:[#allocation2 + $0xf] sm:$0xff]
      %v4163 = vld [vmem:[#allocation2 + $0x27] sm:$0xff]
      %v4164 = vld [vmem:[#allocation2 + $0x2f] sm:$0xff]
      %v4165 = vld [vmem:[#allocation2 + $0x47] sm:$0xff]
      %v4166 = vld [vmem:[#allocation2 + $0x4f] sm:$0xff]
      %v4167 = vld [vmem:[#allocation2 + $0x67] sm:$0xff]
      %v4168 = vld [vmem:[#allocation2 + $0x6f] sm:$0xff]
      %v4169 = vld [vmem:[#allocation2 + $0x87] sm:$0xff]
      %v4170 = vld [vmem:[#allocation2 + $0x8f] sm:$0xff]
      %v4171 = vld [vmem:[#allocation2 + $0xa7] sm:$0xff]
      %v4172 = vld [vmem:[#allocation2 + $0xaf] sm:$0xff]
      %v4173 = vld [vmem:[#allocation2 + $0xc7] sm:$0xff]
      %v4174 = vld [vmem:[#allocation2 + $0xcf] sm:$0xff]
      %v4175 = vld [vmem:[#allocation2 + $0xe7] sm:$0xff]
      %v4176 = vld [vmem:[#allocation2 + $0xef] sm:$0xff]
      %v4177 = vld [vmem:[#allocation2 + $0x107] sm:$0xff]
      %v4178 = vld [vmem:[#allocation2 + $0x10f] sm:$0xff]
      %v4179 = vld [vmem:[#allocation2 + $0x127] sm:$0xff]
      %v4180 = vld [vmem:[#allocation2 + $0x12f] sm:$0xff]
      %v4181 = vld [vmem:[#allocation2 + $0x147] sm:$0xff]
      %v4182 = vld [vmem:[#allocation2 + $0x14f] sm:$0xff]
      %v4183 = vld [vmem:[#allocation2 + $0x167] sm:$0xff]
      %v4184 = vld [vmem:[#allocation2 + $0x16f] sm:$0xff]
      %v4185 = vld [vmem:[#allocation2 + $0x187] sm:$0xff]
      %v4186 = vld [vmem:[#allocation2 + $0x18f] sm:$0xff]
      %v4187 = vld [vmem:[#allocation2 + $0x1a7] sm:$0xff]
      %v4188 = vld [vmem:[#allocation2 + $0x1af] sm:$0xff]
      %v4189 = vld [vmem:[#allocation2 + $0x1c7] sm:$0xff]
      %v4190 = vld [vmem:[#allocation2 + $0x1cf] sm:$0xff]
      %v4191 = vld [vmem:[#allocation2 + $0x1e7] sm:$0xff]
      %v4192 = vld [vmem:[#allocation2 + $0x1ef] sm:$0xff]
      %v4193 = vld [vmem:[%s2] sm:$0xff]
      %v4194 = vld [vmem:[%s2 + $0x8] sm:$0xff]
      %v4195 = vld [vmem:[%s2 + $0x10] sm:$0xff]
      %v4196 = vld [vmem:[%s2 + $0x18] sm:$0xff]
      %v4197 = vld [vmem:[%s2 + $0x20] sm:$0xff]
      %v4198 = vld [vmem:[%s2 + $0x28] sm:$0xff]
      %v4199 = vld [vmem:[%s2 + $0x30] sm:$0xff]
      %v4200 = vld [vmem:[%s2 + $0x38] sm:$0xff]
      %v4201 = vld [vmem:[%s2 + $0x40] sm:$0xff]
      %v4202 = vld [vmem:[%s2 + $0x48] sm:$0xff]
      %v4203 = vld [vmem:[%s2 + $0x50] sm:$0xff]
      %v4204 = vld [vmem:[%s2 + $0x58] sm:$0xff]
      %v4205 = vld [vmem:[%s2 + $0x60] sm:$0xff]
      %v4206 = vld [vmem:[%s2 + $0x68] sm:$0xff]
      %v4207 = vld [vmem:[%s2 + $0x70] sm:$0xff]
      %v4208 = vld [vmem:[%s2 + $0x78] sm:$0xff]
      %v4209 = vld [vmem:[#allocation2 + $0x8] sm:$0xff]
      %v4210 = vld [vmem:[#allocation2 + $0x10] sm:$0xff]
      %v4211 = vld [vmem:[#allocation2 + $0x28] sm:$0xff]
      %v4212 = vld [vmem:[#allocation2 + $0x30] sm:$0xff]
      %v4213 = vld [vmem:[#allocation2 + $0x48] sm:$0xff]
      %v4214 = vld [vmem:[#allocation2 + $0x50] sm:$0xff]
      %v4215 = vld [vmem:[#allocation2 + $0x68] sm:$0xff]
      %v4216 = vld [vmem:[#allocation2 + $0x70] sm:$0xff]
      %v4217 = vld [vmem:[#allocation2 + $0x88] sm:$0xff]
      %v4218 = vld [vmem:[#allocation2 + $0x90] sm:$0xff]
      %v4219 = vld [vmem:[#allocation2 + $0xa8] sm:$0xff]
      %v4220 = vld [vmem:[#allocation2 + $0xb0] sm:$0xff]
      %v4221 = vld [vmem:[#allocation2 + $0xc8] sm:$0xff]
      %v4222 = vld [vmem:[#allocation2 + $0xd0] sm:$0xff]
      %v4223 = vld [vmem:[#allocation2 + $0xe8] sm:$0xff]
      %v4224 = vld [vmem:[#allocation2 + $0xf0] sm:$0xff]
      %v4225 = vld [vmem:[#allocation2 + $0x108] sm:$0xff]
      %v4226 = vld [vmem:[#allocation2 + $0x110] sm:$0xff]
      %v4227 = vld [vmem:[#allocation2 + $0x128] sm:$0xff]
      %v4228 = vld [vmem:[#allocation2 + $0x130] sm:$0xff]
      %v4229 = vld [vmem:[#allocation2 + $0x148] sm:$0xff]
      %v4230 = vld [vmem:[#allocation2 + $0x150] sm:$0xff]
      %v4231 = vld [vmem:[#allocation2 + $0x168] sm:$0xff]
      %v4232 = vld [vmem:[#allocation2 + $0x170] sm:$0xff]
      %v4233 = vld [vmem:[#allocation2 + $0x188] sm:$0xff]
      %v4234 = vld [vmem:[#allocation2 + $0x190] sm:$0xff]
      %v4235 = vld [vmem:[#allocation2 + $0x1a8] sm:$0xff]
      %v4236 = vld [vmem:[#allocation2 + $0x1b0] sm:$0xff]
      %v4237 = vld [vmem:[#allocation2 + $0x1c8] sm:$0xff]
      %v4238 = vld [vmem:[#allocation2 + $0x1d0] sm:$0xff]
      %v4239 = vld [vmem:[#allocation2 + $0x1e8] sm:$0xff]
      %v4240 = vld [vmem:[#allocation2 + $0x1f0] sm:$0xff]
      %s4241 = scalar_lea.vmem %s2, 128
      %v4242 = vld [vmem:[%s4241] sm:$0xff]
      %v4243 = vld [vmem:[%s4241 + $0x8] sm:$0xff]
      %v4244 = vld [vmem:[%s4241 + $0x10] sm:$0xff]
      %v4245 = vld [vmem:[%s4241 + $0x18] sm:$0xff]
      %v4246 = vld [vmem:[%s4241 + $0x20] sm:$0xff]
      %v4247 = vld [vmem:[%s4241 + $0x28] sm:$0xff]
      %v4248 = vld [vmem:[%s4241 + $0x30] sm:$0xff]
      %v4249 = vld [vmem:[%s4241 + $0x38] sm:$0xff]
      %v4250 = vld [vmem:[%s4241 + $0x40] sm:$0xff]
      %v4251 = vld [vmem:[%s4241 + $0x48] sm:$0xff]
      %v4252 = vld [vmem:[%s4241 + $0x50] sm:$0xff]
      %v4253 = vld [vmem:[%s4241 + $0x58] sm:$0xff]
      %v4254 = vld [vmem:[%s4241 + $0x60] sm:$0xff]
      %v4255 = vld [vmem:[%s4241 + $0x68] sm:$0xff]
      %v4256 = vld [vmem:[%s4241 + $0x70] sm:$0xff]
      %v4257 = vld [vmem:[%s4241 + $0x78] sm:$0xff]
      %4258 = vmatprep.subr.mxu0 0.0
      %4259 = vmatpush1.msra.mxu0 %v4242
      %4260 = vmatprep.subr.mxu0 0.0
      %4261 = vmatpush1.msra.mxu0 %v4243
      %4262 = vmatprep.subr.mxu0 0.0
      %4263 = vmatpush1.msra.mxu0 %v4244
      %4264 = vmatprep.subr.mxu0 0.0
      %4265 = vmatpush1.msra.mxu0 %v4245
      %4266 = vmatprep.subr.mxu0 0.0
      %4267 = vmatpush1.msra.mxu0 %v4246
      %4268 = vmatprep.subr.mxu0 0.0
      %4269 = vmatpush1.msra.mxu0 %v4247
      %4270 = vmatprep.subr.mxu0 0.0
      %4271 = vmatpush1.msra.mxu0 %v4248
      %4272 = vmatprep.subr.mxu0 0.0
      %4273 = vmatpush1.msra.mxu0 %v4249
      %4274 = vmatprep.subr.mxu0 0.0
      %4275 = vmatpush1.msra.mxu0 %v4250
      %4276 = vmatprep.subr.mxu0 0.0
      %4277 = vmatpush1.msra.mxu0 %v4251
      %4278 = vmatprep.subr.mxu0 0.0
      %4279 = vmatpush1.msra.mxu0 %v4252
      %4280 = vmatprep.subr.mxu0 0.0
      %4281 = vmatpush1.msra.mxu0 %v4253
      %4282 = vmatprep.subr.mxu0 0.0
      %4283 = vmatpush1.msra.mxu0 %v4254
      %4284 = vmatprep.subr.mxu0 0.0
      %4285 = vmatpush1.msra.mxu0 %v4255
      %4286 = vmatprep.subr.mxu0 0.0
      %4287 = vmatpush1.msra.mxu0 %v4256
      %4288 = vmatprep.subr.mxu0 0.0
      %4289 = vmatpush1.msra.mxu0 %v4257
      %4290 = vmatprep.subr.mxu0 0.0
      %4291 = vmatpush1.msra.mxu0 0.0
      %4292 = vmatprep.subr.mxu0 0.0
      %4293 = vmatpush1.msra.mxu0 0.0
      %4294 = vmatprep.subr.mxu0 0.0
      %4295 = vmatpush1.msra.mxu0 0.0
      %4296 = vmatprep.subr.mxu0 0.0
      %4297 = vmatpush1.msra.mxu0 0.0
      %4298 = vmatprep.subr.mxu0 0.0
      %4299 = vmatpush1.msra.mxu0 0.0
      %4300 = vmatprep.subr.mxu0 0.0
      %4301 = vmatpush1.msra.mxu0 0.0
      %4302 = vmatprep.subr.mxu0 0.0
      %4303 = vmatpush1.msra.mxu0 0.0
      %4304 = vmatprep.subr.mxu0 0.0
      %4305 = vmatpush1.msra.mxu0 0.0
      %4306 = vmatprep.subr.mxu0 0.0
      %4307 = vmatpush1.msra.mxu0 0.0
      %4308 = vmatprep.subr.mxu0 0.0
      %4309 = vmatpush1.msra.mxu0 0.0
      %4310 = vmatprep.subr.mxu0 0.0
      %4311 = vmatpush1.msra.mxu0 0.0
      %4312 = vmatprep.subr.mxu0 0.0
      %4313 = vmatpush1.msra.mxu0 0.0
      %4314 = vmatprep.subr.mxu0 0.0
      %4315 = vmatpush1.msra.mxu0 0.0
      %4316 = vmatprep.subr.mxu0 0.0
      %4317 = vmatpush1.msra.mxu0 0.0
      %4318 = vmatprep.subr.mxu0 0.0
      %4319 = vmatpush1.msra.mxu0 0.0
      %4320 = vmatprep.subr.mxu0 0.0
      %4321 = vmatpush1.msra.mxu0 0.0
      %4322 = vmatprep.mubr.f32.mxu0 0.0
      %4323 = vmatmul.mubr.f32.gmra.mrb[0].mxu0 %v4209
      %v4324 = vpop.f32.mrb[0].mxu0
      %v4325 = vadd.f32 0.0, %v4324
      %v4326 = vpop.f32.mrb[0].mxu0
      %4327 = vmatprep.mubr.f32.mxu0 0.0
      %4328 = vmatmul.mubr.f32.gmra.mrb[0].mxu0 %v4210
      %v4329 = vpop.f32.mrb[0].mxu0
      %v4330 = vadd.f32 0.0, %v4329
      %v4331 = vpop.f32.mrb[0].mxu0
      %4332 = vmatprep.mubr.f32.mxu0 0.0
      %4333 = vmatmul.mubr.f32.gmra.mrb[0].mxu0 %v4211
      %v4334 = vpop.f32.mrb[0].mxu0
      %v4335 = vadd.f32 0.0, %v4334
      %v4336 = vpop.f32.mrb[0].mxu0
      %4337 = vmatprep.mubr.f32.mxu0 0.0
      %4338 = vmatmul.mubr.f32.gmra.mrb[0].mxu0 %v4212
      %v4339 = vpop.f32.mrb[0].mxu0
      %v4340 = vadd.f32 0.0, %v4339
      %v4341 = vpop.f32.mrb[0].mxu0
      %4342 = vmatprep.mubr.f32.mxu0 0.0
      %4343 = vmatmul.mubr.f32.gmra.mrb[0].mxu0 %v4213
      %v4344 = vpop.f32.mrb[0].mxu0
      %v4345 = vadd.f32 0.0, %v4344
      %v4346 = vpop.f32.mrb[0].mxu0
      %4347 = vmatprep.mubr.f32.mxu0 0.0
      %4348 = vmatmul.mubr.f32.gmra.mrb[0].mxu0 %v4214
      %v4349 = vpop.f32.mrb[0].mxu0
      %v4350 = vadd.f32 0.0, %v4349
      %v4351 = vpop.f32.mrb[0].mxu0
      %4352 = vmatprep.mubr.f32.mxu0 0.0
      %4353 = vmatmul.mubr.f32.gmra.mrb[0].mxu0 %v4215
      %v4354 = vpop.f32.mrb[0].mxu0
      %v4355 = vadd.f32 0.0, %v4354
      %v4356 = vpop.f32.mrb[0].mxu0
      %4357 = vmatprep.mubr.f32.mxu0 0.0
      %4358 = vmatmul.mubr.f32.gmra.mrb[0].mxu0 %v4216
      %v4359 = vpop.f32.mrb[0].mxu0
      %v4360 = vadd.f32 0.0, %v4359
      %v4361 = vpop.f32.mrb[0].mxu0
      %4362 = vmatprep.mubr.f32.mxu0 0.0
      %4363 = vmatmul.mubr.f32.gmra.mrb[0].mxu0 %v4217
      %v4364 = vpop.f32.mrb[0].mxu0
      %v4365 = vadd.f32 0.0, %v4364
      %v4366 = vpop.f32.mrb[0].mxu0
      %4367 = vmatprep.mubr.f32.mxu0 0.0
      %4368 = vmatmul.mubr.f32.gmra.mrb[0].mxu0 %v4218
      %v4369 = vpop.f32.mrb[0].mxu0
      %v4370 = vadd.f32 0.0, %v4369
      %v4371 = vpop.f32.mrb[0].mxu0
      %4372 = vmatprep.mubr.f32.mxu0 0.0
      %4373 = vmatmul.mubr.f32.gmra.mrb[0].mxu0 %v4219
      %v4374 = vpop.f32.mrb[0].mxu0
      %v4375 = vadd.f32 0.0, %v4374
      %v4376 = vpop.f32.mrb[0].mxu0
      %4377 = vmatprep.mubr.f32.mxu0 0.0
      %4378 = vmatmul.mubr.f32.gmra.mrb[0].mxu0 %v4220
      %v4379 = vpop.f32.mrb[0].mxu0
      %v4380 = vadd.f32 0.0, %v4379
      %v4381 = vpop.f32.mrb[0].mxu0
      %4382 = vmatprep.mubr.f32.mxu0 0.0
      %4383 = vmatmul.mubr.f32.gmra.mrb[0].mxu0 %v4221
      %v4384 = vpop.f32.mrb[0].mxu0
      %v4385 = vadd.f32 0.0, %v4384
      %v4386 = vpop.f32.mrb[0].mxu0
      %4387 = vmatprep.mubr.f32.mxu0 0.0
      %4388 = vmatmul.mubr.f32.gmra.mrb[0].mxu0 %v4222
      %v4389 = vpop.f32.mrb[0].mxu0
      %v4390 = vadd.f32 0.0, %v4389
      %v4391 = vpop.f32.mrb[0].mxu0
      %4392 = vmatprep.mubr.f32.mxu0 0.0
      %4393 = vmatmul.mubr.f32.gmra.mrb[0].mxu0 %v4223
      %v4394 = vpop.f32.mrb[0].mxu0
      %v4395 = vadd.f32 0.0, %v4394
      %v4396 = vpop.f32.mrb[0].mxu0
      %4397 = vmatprep.mubr.f32.mxu0 0.0
      %4398 = vmatmul.mubr.f32.gmra.mrb[0].mxu0 %v4224
      %v4399 = vpop.f32.mrb[0].mxu0
      %v4400 = vadd.f32 0.0, %v4399
      %v4401 = vpop.f32.mrb[0].mxu0
      %4402 = vmatprep.mubr.f32.mxu0 0.0
      %4403 = vmatmul.mubr.f32.gmra.mrb[0].mxu0 %v4225
      %v4404 = vpop.f32.mrb[0].mxu0
      %v4405 = vadd.f32 0.0, %v4404
      %v4406 = vpop.f32.mrb[0].mxu0
      %4407 = vmatprep.mubr.f32.mxu0 0.0
      %4408 = vmatmul.mubr.f32.gmra.mrb[0].mxu0 %v4226
      %v4409 = vpop.f32.mrb[0].mxu0
      %v4410 = vadd.f32 0.0, %v4409
      %v4411 = vpop.f32.mrb[0].mxu0
      %4412 = vmatprep.mubr.f32.mxu0 0.0
      %4413 = vmatmul.mubr.f32.gmra.mrb[0].mxu0 %v4227
      %v4414 = vpop.f32.mrb[0].mxu0
      %v4415 = vadd.f32 0.0, %v4414
      %v4416 = vpop.f32.mrb[0].mxu0
      %4417 = vmatprep.mubr.f32.mxu0 0.0
      %4418 = vmatmul.mubr.f32.gmra.mrb[0].mxu0 %v4228
      %v4419 = vpop.f32.mrb[0].mxu0
      %v4420 = vadd.f32 0.0, %v4419
      %v4421 = vpop.f32.mrb[0].mxu0
      %4422 = vmatprep.mubr.f32.mxu0 0.0
      %4423 = vmatmul.mubr.f32.gmra.mrb[0].mxu0 %v4229
      %v4424 = vpop.f32.mrb[0].mxu0
      %v4425 = vadd.f32 0.0, %v4424
      %v4426 = vpop.f32.mrb[0].mxu0
      %4427 = vmatprep.mubr.f32.mxu0 0.0
      %4428 = vmatmul.mubr.f32.gmra.mrb[0].mxu0 %v4230
      %v4429 = vpop.f32.mrb[0].mxu0
      %v4430 = vadd.f32 0.0, %v4429
      %v4431 = vpop.f32.mrb[0].mxu0
      %4432 = vmatprep.mubr.f32.mxu0 0.0
      %4433 = vmatmul.mubr.f32.gmra.mrb[0].mxu0 %v4231
      %v4434 = vpop.f32.mrb[0].mxu0
      %v4435 = vadd.f32 0.0, %v4434
      %v4436 = vpop.f32.mrb[0].mxu0
      %4437 = vmatprep.mubr.f32.mxu0 0.0
      %4438 = vmatmul.mubr.f32.gmra.mrb[0].mxu0 %v4232
      %v4439 = vpop.f32.mrb[0].mxu0
      %v4440 = vadd.f32 0.0, %v4439
      %v4441 = vpop.f32.mrb[0].mxu0
      %4442 = vmatprep.mubr.f32.mxu0 0.0
      %4443 = vmatmul.mubr.f32.gmra.mrb[0].mxu0 %v4233
      %v4444 = vpop.f32.mrb[0].mxu0
      %v4445 = vadd.f32 0.0, %v4444
      %v4446 = vpop.f32.mrb[0].mxu0
      %4447 = vmatprep.mubr.f32.mxu0 0.0
      %4448 = vmatmul.mubr.f32.gmra.mrb[0].mxu0 %v4234
      %v4449 = vpop.f32.mrb[0].mxu0
      %v4450 = vadd.f32 0.0, %v4449
      %v4451 = vpop.f32.mrb[0].mxu0
      %4452 = vmatprep.mubr.f32.mxu0 0.0
      %4453 = vmatmul.mubr.f32.gmra.mrb[0].mxu0 %v4235
      %v4454 = vpop.f32.mrb[0].mxu0
      %v4455 = vadd.f32 0.0, %v4454
      %v4456 = vpop.f32.mrb[0].mxu0
      %4457 = vmatprep.mubr.f32.mxu0 0.0
      %4458 = vmatmul.mubr.f32.gmra.mrb[0].mxu0 %v4236
      %v4459 = vpop.f32.mrb[0].mxu0
      %v4460 = vadd.f32 0.0, %v4459
      %v4461 = vpop.f32.mrb[0].mxu0
      %4462 = vmatprep.mubr.f32.mxu0 0.0
      %4463 = vmatmul.mubr.f32.gmra.mrb[0].mxu0 %v4237
      %v4464 = vpop.f32.mrb[0].mxu0
      %v4465 = vadd.f32 0.0, %v4464
      %v4466 = vpop.f32.mrb[0].mxu0
      %4467 = vmatprep.mubr.f32.mxu0 0.0
      %4468 = vmatmul.mubr.f32.gmra.mrb[0].mxu0 %v4238
      %v4469 = vpop.f32.mrb[0].mxu0
      %v4470 = vadd.f32 0.0, %v4469
      %v4471 = vpop.f32.mrb[0].mxu0
      %4472 = vmatprep.mubr.f32.mxu0 0.0
      %4473 = vmatmul.mubr.f32.gmra.mrb[0].mxu0 %v4239
      %v4474 = vpop.f32.mrb[0].mxu0
      %v4475 = vadd.f32 0.0, %v4474
      %v4476 = vpop.f32.mrb[0].mxu0
      %4477 = vmatprep.mubr.f32.mxu0 0.0
      %4478 = vmatmul.mubr.f32.gmra.mrb[0].mxu0 %v4240
      %v4479 = vpop.f32.mrb[0].mxu0
      %v4480 = vadd.f32 0.0, %v4479
      %v4481 = vpop.f32.mrb[0].mxu0
      %4482 = vdwg.mxu0
      %4483 = vmatprep.subr.mxu0 0.0
      %4484 = vmatpush1.msra.mxu0 %v4193
      %4485 = vmatprep.subr.mxu0 0.0
      %4486 = vmatpush1.msra.mxu0 %v4194
      %4487 = vmatprep.subr.mxu0 0.0
      %4488 = vmatpush1.msra.mxu0 %v4195
      %4489 = vmatprep.subr.mxu0 0.0
      %4490 = vmatpush1.msra.mxu0 %v4196
      %4491 = vmatprep.subr.mxu0 0.0
      %4492 = vmatpush1.msra.mxu0 %v4197
      %4493 = vmatprep.subr.mxu0 0.0
      %4494 = vmatpush1.msra.mxu0 %v4198
      %4495 = vmatprep.subr.mxu0 0.0
      %4496 = vmatpush1.msra.mxu0 %v4199
      %4497 = vmatprep.subr.mxu0 0.0
      %4498 = vmatpush1.msra.mxu0 %v4200
      %4499 = vmatprep.subr.mxu0 0.0
      %4500 = vmatpush1.msra.mxu0 %v4201
      %4501 = vmatprep.subr.mxu0 0.0
      %4502 = vmatpush1.msra.mxu0 %v4202
      %4503 = vmatprep.subr.mxu0 0.0
      %4504 = vmatpush1.msra.mxu0 %v4203
      %4505 = vmatprep.subr.mxu0 0.0
      %4506 = vmatpush1.msra.mxu0 %v4204
      %4507 = vmatprep.subr.mxu0 0.0
      %4508 = vmatpush1.msra.mxu0 %v4205
      %4509 = vmatprep.subr.mxu0 0.0
      %4510 = vmatpush1.msra.mxu0 %v4206
      %4511 = vmatprep.subr.mxu0 0.0
      %4512 = vmatpush1.msra.mxu0 %v4207
      %4513 = vmatprep.subr.mxu0 0.0
      %4514 = vmatpush1.msra.mxu0 %v4208
      %4515 = vmatprep.subr.mxu0 0.0
      %4516 = vmatpush1.msra.mxu0 0.0
      %4517 = vmatprep.subr.mxu0 0.0
      %4518 = vmatpush1.msra.mxu0 0.0
      %4519 = vmatprep.subr.mxu0 0.0
      %4520 = vmatpush1.msra.mxu0 0.0
      %4521 = vmatprep.subr.mxu0 0.0
      %4522 = vmatpush1.msra.mxu0 0.0
      %4523 = vmatprep.subr.mxu0 0.0
      %4524 = vmatpush1.msra.mxu0 0.0
      %4525 = vmatprep.subr.mxu0 0.0
      %4526 = vmatpush1.msra.mxu0 0.0
      %4527 = vmatprep.subr.mxu0 0.0
      %4528 = vmatpush1.msra.mxu0 0.0
      %4529 = vmatprep.subr.mxu0 0.0
      %4530 = vmatpush1.msra.mxu0 0.0
      %4531 = vmatprep.subr.mxu0 0.0
      %4532 = vmatpush1.msra.mxu0 0.0
      %4533 = vmatprep.subr.mxu0 0.0
      %4534 = vmatpush1.msra.mxu0 0.0
      %4535 = vmatprep.subr.mxu0 0.0
      %4536 = vmatpush1.msra.mxu0 0.0
      %4537 = vmatprep.subr.mxu0 0.0
      %4538 = vmatpush1.msra.mxu0 0.0
      %4539 = vmatprep.subr.mxu0 0.0
      %4540 = vmatpush1.msra.mxu0 0.0
      %4541 = vmatprep.subr.mxu0 0.0
      %4542 = vmatpush1.msra.mxu0 0.0
      %4543 = vmatprep.subr.mxu0 0.0
      %4544 = vmatpush1.msra.mxu0 0.0
      %4545 = vmatprep.subr.mxu0 0.0
      %4546 = vmatpush1.msra.mxu0 0.0
      %4547 = vmatprep.mubr.f32.mxu0 0.0
      %4548 = vmatmul.mubr.f32.gmra.mrb[0].mxu0 %v4161
      %v4549 = vpop.f32.mrb[0].mxu0
      %v4550 = vadd.f32 %v4325, %v4549
      %v4551 = vpop.f32.mrb[0].mxu0
      %4552 = vmatprep.mubr.f32.mxu0 0.0
      %4553 = vmatmul.mubr.f32.gmra.mrb[0].mxu0 %v4162
      %v4554 = vpop.f32.mrb[0].mxu0
      %v4555 = vadd.f32 %v4330, %v4554
      %v4556 = vpop.f32.mrb[0].mxu0
      %4557 = vmatprep.mubr.f32.mxu0 0.0
      %4558 = vmatmul.mubr.f32.gmra.mrb[0].mxu0 %v4163
      %v4559 = vpop.f32.mrb[0].mxu0
      %v4560 = vadd.f32 %v4335, %v4559
      %v4561 = vpop.f32.mrb[0].mxu0
      %4562 = vmatprep.mubr.f32.mxu0 0.0
      %4563 = vmatmul.mubr.f32.gmra.mrb[0].mxu0 %v4164
      %v4564 = vpop.f32.mrb[0].mxu0
      %v4565 = vadd.f32 %v4340, %v4564
      %v4566 = vpop.f32.mrb[0].mxu0
      %4567 = vmatprep.mubr.f32.mxu0 0.0
      %4568 = vmatmul.mubr.f32.gmra.mrb[0].mxu0 %v4165
      %v4569 = vpop.f32.mrb[0].mxu0
      %v4570 = vadd.f32 %v4345, %v4569
      %v4571 = vpop.f32.mrb[0].mxu0
      %4572 = vmatprep.mubr.f32.mxu0 0.0
      %4573 = vmatmul.mubr.f32.gmra.mrb[0].mxu0 %v4166
      %v4574 = vpop.f32.mrb[0].mxu0
      %v4575 = vadd.f32 %v4350, %v4574
      %v4576 = vpop.f32.mrb[0].mxu0
      %4577 = vmatprep.mubr.f32.mxu0 0.0
      %4578 = vmatmul.mubr.f32.gmra.mrb[0].mxu0 %v4167
      %v4579 = vpop.f32.mrb[0].mxu0
      %v4580 = vadd.f32 %v4355, %v4579
      %v4581 = vpop.f32.mrb[0].mxu0
      %4582 = vmatprep.mubr.f32.mxu0 0.0
      %4583 = vmatmul.mubr.f32.gmra.mrb[0].mxu0 %v4168
      %v4584 = vpop.f32.mrb[0].mxu0
      %v4585 = vadd.f32 %v4360, %v4584
      %v4586 = vpop.f32.mrb[0].mxu0
      %4587 = vmatprep.mubr.f32.mxu0 0.0
      %4588 = vmatmul.mubr.f32.gmra.mrb[0].mxu0 %v4169
      %v4589 = vpop.f32.mrb[0].mxu0
      %v4590 = vadd.f32 %v4365, %v4589
      %v4591 = vpop.f32.mrb[0].mxu0
      %4592 = vmatprep.mubr.f32.mxu0 0.0
      %4593 = vmatmul.mubr.f32.gmra.mrb[0].mxu0 %v4170
      %v4594 = vpop.f32.mrb[0].mxu0
      %v4595 = vadd.f32 %v4370, %v4594
      %v4596 = vpop.f32.mrb[0].mxu0
      %4597 = vmatprep.mubr.f32.mxu0 0.0
      %4598 = vmatmul.mubr.f32.gmra.mrb[0].mxu0 %v4171
      %v4599 = vpop.f32.mrb[0].mxu0
      %v4600 = vadd.f32 %v4375, %v4599
      %v4601 = vpop.f32.mrb[0].mxu0
      %4602 = vmatprep.mubr.f32.mxu0 0.0
      %4603 = vmatmul.mubr.f32.gmra.mrb[0].mxu0 %v4172
      %v4604 = vpop.f32.mrb[0].mxu0
      %v4605 = vadd.f32 %v4380, %v4604
      %v4606 = vpop.f32.mrb[0].mxu0
      %4607 = vmatprep.mubr.f32.mxu0 0.0
      %4608 = vmatmul.mubr.f32.gmra.mrb[0].mxu0 %v4173
      %v4609 = vpop.f32.mrb[0].mxu0
      %v4610 = vadd.f32 %v4385, %v4609
      %v4611 = vpop.f32.mrb[0].mxu0
      %4612 = vmatprep.mubr.f32.mxu0 0.0
      %4613 = vmatmul.mubr.f32.gmra.mrb[0].mxu0 %v4174
      %v4614 = vpop.f32.mrb[0].mxu0
      %v4615 = vadd.f32 %v4390, %v4614
      %v4616 = vpop.f32.mrb[0].mxu0
      %4617 = vmatprep.mubr.f32.mxu0 0.0
      %4618 = vmatmul.mubr.f32.gmra.mrb[0].mxu0 %v4175
      %v4619 = vpop.f32.mrb[0].mxu0
      %v4620 = vadd.f32 %v4395, %v4619
      %v4621 = vpop.f32.mrb[0].mxu0
      %4622 = vmatprep.mubr.f32.mxu0 0.0
      %4623 = vmatmul.mubr.f32.gmra.mrb[0].mxu0 %v4176
      %v4624 = vpop.f32.mrb[0].mxu0
      %v4625 = vadd.f32 %v4400, %v4624
      %v4626 = vpop.f32.mrb[0].mxu0
      %4627 = vmatprep.mubr.f32.mxu0 0.0
      %4628 = vmatmul.mubr.f32.gmra.mrb[0].mxu0 %v4177
      %v4629 = vpop.f32.mrb[0].mxu0
      %v4630 = vadd.f32 %v4405, %v4629
      %v4631 = vpop.f32.mrb[0].mxu0
      %4632 = vmatprep.mubr.f32.mxu0 0.0
      %4633 = vmatmul.mubr.f32.gmra.mrb[0].mxu0 %v4178
      %v4634 = vpop.f32.mrb[0].mxu0
      %v4635 = vadd.f32 %v4410, %v4634
      %v4636 = vpop.f32.mrb[0].mxu0
      %4637 = vmatprep.mubr.f32.mxu0 0.0
      %4638 = vmatmul.mubr.f32.gmra.mrb[0].mxu0 %v4179
      %v4639 = vpop.f32.mrb[0].mxu0
      %v4640 = vadd.f32 %v4415, %v4639
      %v4641 = vpop.f32.mrb[0].mxu0
      %4642 = vmatprep.mubr.f32.mxu0 0.0
      %4643 = vmatmul.mubr.f32.gmra.mrb[0].mxu0 %v4180
      %v4644 = vpop.f32.mrb[0].mxu0
      %v4645 = vadd.f32 %v4420, %v4644
      %v4646 = vpop.f32.mrb[0].mxu0
      %4647 = vmatprep.mubr.f32.mxu0 0.0
      %4648 = vmatmul.mubr.f32.gmra.mrb[0].mxu0 %v4181
      %v4649 = vpop.f32.mrb[0].mxu0
      %v4650 = vadd.f32 %v4425, %v4649
      %v4651 = vpop.f32.mrb[0].mxu0
      %4652 = vmatprep.mubr.f32.mxu0 0.0
      %4653 = vmatmul.mubr.f32.gmra.mrb[0].mxu0 %v4182
      %v4654 = vpop.f32.mrb[0].mxu0
      %v4655 = vadd.f32 %v4430, %v4654
      %v4656 = vpop.f32.mrb[0].mxu0
      %4657 = vmatprep.mubr.f32.mxu0 0.0
      %4658 = vmatmul.mubr.f32.gmra.mrb[0].mxu0 %v4183
      %v4659 = vpop.f32.mrb[0].mxu0
      %v4660 = vadd.f32 %v4435, %v4659
      %v4661 = vpop.f32.mrb[0].mxu0
      %4662 = vmatprep.mubr.f32.mxu0 0.0
      %4663 = vmatmul.mubr.f32.gmra.mrb[0].mxu0 %v4184
      %v4664 = vpop.f32.mrb[0].mxu0
      %v4665 = vadd.f32 %v4440, %v4664
      %v4666 = vpop.f32.mrb[0].mxu0
      %4667 = vmatprep.mubr.f32.mxu0 0.0
      %4668 = vmatmul.mubr.f32.gmra.mrb[0].mxu0 %v4185
      %v4669 = vpop.f32.mrb[0].mxu0
      %v4670 = vadd.f32 %v4445, %v4669
      %v4671 = vpop.f32.mrb[0].mxu0
      %4672 = vmatprep.mubr.f32.mxu0 0.0
      %4673 = vmatmul.mubr.f32.gmra.mrb[0].mxu0 %v4186
      %v4674 = vpop.f32.mrb[0].mxu0
      %v4675 = vadd.f32 %v4450, %v4674
      %v4676 = vpop.f32.mrb[0].mxu0
      %4677 = vmatprep.mubr.f32.mxu0 0.0
      %4678 = vmatmul.mubr.f32.gmra.mrb[0].mxu0 %v4187
      %v4679 = vpop.f32.mrb[0].mxu0
      %v4680 = vadd.f32 %v4455, %v4679
      %v4681 = vpop.f32.mrb[0].mxu0
      %4682 = vmatprep.mubr.f32.mxu0 0.0
      %4683 = vmatmul.mubr.f32.gmra.mrb[0].mxu0 %v4188
      %v4684 = vpop.f32.mrb[0].mxu0
      %v4685 = vadd.f32 %v4460, %v4684
      %v4686 = vpop.f32.mrb[0].mxu0
      %4687 = vmatprep.mubr.f32.mxu0 0.0
      %4688 = vmatmul.mubr.f32.gmra.mrb[0].mxu0 %v4189
      %v4689 = vpop.f32.mrb[0].mxu0
      %v4690 = vadd.f32 %v4465, %v4689
      %v4691 = vpop.f32.mrb[0].mxu0
      %4692 = vmatprep.mubr.f32.mxu0 0.0
      %4693 = vmatmul.mubr.f32.gmra.mrb[0].mxu0 %v4190
      %v4694 = vpop.f32.mrb[0].mxu0
      %v4695 = vadd.f32 %v4470, %v4694
      %v4696 = vpop.f32.mrb[0].mxu0
      %4697 = vmatprep.mubr.f32.mxu0 0.0
      %4698 = vmatmul.mubr.f32.gmra.mrb[0].mxu0 %v4191
      %v4699 = vpop.f32.mrb[0].mxu0
      %v4700 = vadd.f32 %v4475, %v4699
      %v4701 = vpop.f32.mrb[0].mxu0
      %4702 = vmatprep.mubr.f32.mxu0 0.0
      %4703 = vmatmul.mubr.f32.gmra.mrb[0].mxu0 %v4192
      %v4704 = vpop.f32.mrb[0].mxu0
      %v4705 = vadd.f32 %v4480, %v4704
      %v4706 = vpop.f32.mrb[0].mxu0
      %4707 = vdwg.mxu0
      %v4708 = vld [vmem:[#allocation2 + $0x9] sm:$0xff]
      %v4709 = vld [vmem:[#allocation2 + $0x11] sm:$0xff]
      %v4710 = vld [vmem:[#allocation2 + $0x29] sm:$0xff]
      %v4711 = vld [vmem:[#allocation2 + $0x31] sm:$0xff]
      %v4712 = vld [vmem:[#allocation2 + $0x49] sm:$0xff]
      %v4713 = vld [vmem:[#allocation2 + $0x51] sm:$0xff]
      %v4714 = vld [vmem:[#allocation2 + $0x69] sm:$0xff]
      %v4715 = vld [vmem:[#allocation2 + $0x71] sm:$0xff]
      %v4716 = vld [vmem:[#allocation2 + $0x89] sm:$0xff]
      %v4717 = vld [vmem:[#allocation2 + $0x91] sm:$0xff]
      %v4718 = vld [vmem:[#allocation2 + $0xa9] sm:$0xff]
      %v4719 = vld [vmem:[#allocation2 + $0xb1] sm:$0xff]
      %v4720 = vld [vmem:[#allocation2 + $0xc9] sm:$0xff]
      %v4721 = vld [vmem:[#allocation2 + $0xd1] sm:$0xff]
      %v4722 = vld [vmem:[#allocation2 + $0xe9] sm:$0xff]
      %v4723 = vld [vmem:[#allocation2 + $0xf1] sm:$0xff]
      %v4724 = vld [vmem:[#allocation2 + $0x109] sm:$0xff]
      %v4725 = vld [vmem:[#allocation2 + $0x111] sm:$0xff]
      %v4726 = vld [vmem:[#allocation2 + $0x129] sm:$0xff]
      %v4727 = vld [vmem:[#allocation2 + $0x131] sm:$0xff]
      %v4728 = vld [vmem:[#allocation2 + $0x149] sm:$0xff]
      %v4729 = vld [vmem:[#allocation2 + $0x151] sm:$0xff]
      %v4730 = vld [vmem:[#allocation2 + $0x169] sm:$0xff]
      %v4731 = vld [vmem:[#allocation2 + $0x171] sm:$0xff]
      %v4732 = vld [vmem:[#allocation2 + $0x189] sm:$0xff]
      %v4733 = vld [vmem:[#allocation2 + $0x191] sm:$0xff]
      %v4734 = vld [vmem:[#allocation2 + $0x1a9] sm:$0xff]
      %v4735 = vld [vmem:[#allocation2 + $0x1b1] sm:$0xff]
      %v4736 = vld [vmem:[#allocation2 + $0x1c9] sm:$0xff]
      %v4737 = vld [vmem:[#allocation2 + $0x1d1] sm:$0xff]
      %v4738 = vld [vmem:[#allocation2 + $0x1e9] sm:$0xff]
      %v4739 = vld [vmem:[#allocation2 + $0x1f1] sm:$0xff]
      %s4740 = scalar_lea.vmem %s2, 256
      %v4741 = vld [vmem:[%s4740] sm:$0xff]
      %v4742 = vld [vmem:[%s4740 + $0x8] sm:$0xff]
      %v4743 = vld [vmem:[%s4740 + $0x10] sm:$0xff]
      %v4744 = vld [vmem:[%s4740 + $0x18] sm:$0xff]
      %v4745 = vld [vmem:[%s4740 + $0x20] sm:$0xff]
      %v4746 = vld [vmem:[%s4740 + $0x28] sm:$0xff]
      %v4747 = vld [vmem:[%s4740 + $0x30] sm:$0xff]
      %v4748 = vld [vmem:[%s4740 + $0x38] sm:$0xff]
      %v4749 = vld [vmem:[%s4740 + $0x40] sm:$0xff]
      %v4750 = vld [vmem:[%s4740 + $0x48] sm:$0xff]
      %v4751 = vld [vmem:[%s4740 + $0x50] sm:$0xff]
      %v4752 = vld [vmem:[%s4740 + $0x58] sm:$0xff]
      %v4753 = vld [vmem:[%s4740 + $0x60] sm:$0xff]
      %v4754 = vld [vmem:[%s4740 + $0x68] sm:$0xff]
      %v4755 = vld [vmem:[%s4740 + $0x70] sm:$0xff]
      %v4756 = vld [vmem:[%s4740 + $0x78] sm:$0xff]
      %4757 = vmatprep.subr.mxu0 0.0
      %4758 = vmatpush1.msra.mxu0 %v4741
      %4759 = vmatprep.subr.mxu0 0.0
      %4760 = vmatpush1.msra.mxu0 %v4742
      %4761 = vmatprep.subr.mxu0 0.0
      %4762 = vmatpush1.msra.mxu0 %v4743
      %4763 = vmatprep.subr.mxu0 0.0
      %4764 = vmatpush1.msra.mxu0 %v4744
      %4765 = vmatprep.subr.mxu0 0.0
      %4766 = vmatpush1.msra.mxu0 %v4745
      %4767 = vmatprep.subr.mxu0 0.0
      %4768 = vmatpush1.msra.mxu0 %v4746
      %4769 = vmatprep.subr.mxu0 0.0
      %4770 = vmatpush1.msra.mxu0 %v4747
      %4771 = vmatprep.subr.mxu0 0.0
      %4772 = vmatpush1.msra.mxu0 %v4748
      %4773 = vmatprep.subr.mxu0 0.0
      %4774 = vmatpush1.msra.mxu0 %v4749
      %4775 = vmatprep.subr.mxu0 0.0
      %4776 = vmatpush1.msra.mxu0 %v4750
      %4777 = vmatprep.subr.mxu0 0.0
      %4778 = vmatpush1.msra.mxu0 %v4751
      %4779 = vmatprep.subr.mxu0 0.0
      %4780 = vmatpush1.msra.mxu0 %v4752
      %4781 = vmatprep.subr.mxu0 0.0
      %4782 = vmatpush1.msra.mxu0 %v4753
      %4783 = vmatprep.subr.mxu0 0.0
      %4784 = vmatpush1.msra.mxu0 %v4754
      %4785 = vmatprep.subr.mxu0 0.0
      %4786 = vmatpush1.msra.mxu0 %v4755
      %4787 = vmatprep.subr.mxu0 0.0
      %4788 = vmatpush1.msra.mxu0 %v4756
      %4789 = vmatprep.subr.mxu0 0.0
      %4790 = vmatpush1.msra.mxu0 0.0
      %4791 = vmatprep.subr.mxu0 0.0
      %4792 = vmatpush1.msra.mxu0 0.0
      %4793 = vmatprep.subr.mxu0 0.0
      %4794 = vmatpush1.msra.mxu0 0.0
      %4795 = vmatprep.subr.mxu0 0.0
      %4796 = vmatpush1.msra.mxu0 0.0
      %4797 = vmatprep.subr.mxu0 0.0
      %4798 = vmatpush1.msra.mxu0 0.0
      %4799 = vmatprep.subr.mxu0 0.0
      %4800 = vmatpush1.msra.mxu0 0.0
      %4801 = vmatprep.subr.mxu0 0.0
      %4802 = vmatpush1.msra.mxu0 0.0
      %4803 = vmatprep.subr.mxu0 0.0
      %4804 = vmatpush1.msra.mxu0 0.0
      %4805 = vmatprep.subr.mxu0 0.0
      %4806 = vmatpush1.msra.mxu0 0.0
      %4807 = vmatprep.subr.mxu0 0.0
      %4808 = vmatpush1.msra.mxu0 0.0
      %4809 = vmatprep.subr.mxu0 0.0
      %4810 = vmatpush1.msra.mxu0 0.0
      %4811 = vmatprep.subr.mxu0 0.0
      %4812 = vmatpush1.msra.mxu0 0.0
      %4813 = vmatprep.subr.mxu0 0.0
      %4814 = vmatpush1.msra.mxu0 0.0
      %4815 = vmatprep.subr.mxu0 0.0
      %4816 = vmatpush1.msra.mxu0 0.0
      %4817 = vmatprep.subr.mxu0 0.0
      %4818 = vmatpush1.msra.mxu0 0.0
      %4819 = vmatprep.subr.mxu0 0.0
      %4820 = vmatpush1.msra.mxu0 0.0
      %4821 = vmatprep.mubr.f32.mxu0 0.0
      %4822 = vmatmul.mubr.f32.gmra.mrb[0].mxu0 %v4708
      %v4823 = vpop.f32.mrb[0].mxu0
      %v4824 = vadd.f32 0.0, %v4823
      %v4825 = vpop.f32.mrb[0].mxu0
      %4826 = vmatprep.mubr.f32.mxu0 0.0
      %4827 = vmatmul.mubr.f32.gmra.mrb[0].mxu0 %v4709
      %v4828 = vpop.f32.mrb[0].mxu0
      %v4829 = vadd.f32 0.0, %v4828
      %v4830 = vpop.f32.mrb[0].mxu0
      %4831 = vmatprep.mubr.f32.mxu0 0.0
      %4832 = vmatmul.mubr.f32.gmra.mrb[0].mxu0 %v4710
      %v4833 = vpop.f32.mrb[0].mxu0
      %v4834 = vadd.f32 0.0, %v4833
      %v4835 = vpop.f32.mrb[0].mxu0
      %4836 = vmatprep.mubr.f32.mxu0 0.0
      %4837 = vmatmul.mubr.f32.gmra.mrb[0].mxu0 %v4711
      %v4838 = vpop.f32.mrb[0].mxu0
      %v4839 = vadd.f32 0.0, %v4838
      %v4840 = vpop.f32.mrb[0].mxu0
      %4841 = vmatprep.mubr.f32.mxu0 0.0
      %4842 = vmatmul.mubr.f32.gmra.mrb[0].mxu0 %v4712
      %v4843 = vpop.f32.mrb[0].mxu0
      %v4844 = vadd.f32 0.0, %v4843
      %v4845 = vpop.f32.mrb[0].mxu0
      %4846 = vmatprep.mubr.f32.mxu0 0.0
      %4847 = vmatmul.mubr.f32.gmra.mrb[0].mxu0 %v4713
      %v4848 = vpop.f32.mrb[0].mxu0
      %v4849 = vadd.f32 0.0, %v4848
      %v4850 = vpop.f32.mrb[0].mxu0
      %4851 = vmatprep.mubr.f32.mxu0 0.0
      %4852 = vmatmul.mubr.f32.gmra.mrb[0].mxu0 %v4714
      %v4853 = vpop.f32.mrb[0].mxu0
      %v4854 = vadd.f32 0.0, %v4853
      %v4855 = vpop.f32.mrb[0].mxu0
      %4856 = vmatprep.mubr.f32.mxu0 0.0
      %4857 = vmatmul.mubr.f32.gmra.mrb[0].mxu0 %v4715
      %v4858 = vpop.f32.mrb[0].mxu0
      %v4859 = vadd.f32 0.0, %v4858
      %v4860 = vpop.f32.mrb[0].mxu0
      %4861 = vmatprep.mubr.f32.mxu0 0.0
      %4862 = vmatmul.mubr.f32.gmra.mrb[0].mxu0 %v4716
      %v4863 = vpop.f32.mrb[0].mxu0
      %v4864 = vadd.f32 0.0, %v4863
      %v4865 = vpop.f32.mrb[0].mxu0
      %4866 = vmatprep.mubr.f32.mxu0 0.0
      %4867 = vmatmul.mubr.f32.gmra.mrb[0].mxu0 %v4717
      %v4868 = vpop.f32.mrb[0].mxu0
      %v4869 = vadd.f32 0.0, %v4868
      %v4870 = vpop.f32.mrb[0].mxu0
      %4871 = vmatprep.mubr.f32.mxu0 0.0
      %4872 = vmatmul.mubr.f32.gmra.mrb[0].mxu0 %v4718
      %v4873 = vpop.f32.mrb[0].mxu0
      %v4874 = vadd.f32 0.0, %v4873
      %v4875 = vpop.f32.mrb[0].mxu0
      %4876 = vmatprep.mubr.f32.mxu0 0.0
      %4877 = vmatmul.mubr.f32.gmra.mrb[0].mxu0 %v4719
      %v4878 = vpop.f32.mrb[0].mxu0
      %v4879 = vadd.f32 0.0, %v4878
      %v4880 = vpop.f32.mrb[0].mxu0
      %4881 = vmatprep.mubr.f32.mxu0 0.0
      %4882 = vmatmul.mubr.f32.gmra.mrb[0].mxu0 %v4720
      %v4883 = vpop.f32.mrb[0].mxu0
      %v4884 = vadd.f32 0.0, %v4883
      %v4885 = vpop.f32.mrb[0].mxu0
      %4886 = vmatprep.mubr.f32.mxu0 0.0
      %4887 = vmatmul.mubr.f32.gmra.mrb[0].mxu0 %v4721
      %v4888 = vpop.f32.mrb[0].mxu0
      %v4889 = vadd.f32 0.0, %v4888
      %v4890 = vpop.f32.mrb[0].mxu0
      %4891 = vmatprep.mubr.f32.mxu0 0.0
      %4892 = vmatmul.mubr.f32.gmra.mrb[0].mxu0 %v4722
      %v4893 = vpop.f32.mrb[0].mxu0
      %v4894 = vadd.f32 0.0, %v4893
      %v4895 = vpop.f32.mrb[0].mxu0
      %4896 = vmatprep.mubr.f32.mxu0 0.0
      %4897 = vmatmul.mubr.f32.gmra.mrb[0].mxu0 %v4723
      %v4898 = vpop.f32.mrb[0].mxu0
      %v4899 = vadd.f32 0.0, %v4898
      %v4900 = vpop.f32.mrb[0].mxu0
      %4901 = vmatprep.mubr.f32.mxu0 0.0
      %4902 = vmatmul.mubr.f32.gmra.mrb[0].mxu0 %v4724
      %v4903 = vpop.f32.mrb[0].mxu0
      %v4904 = vadd.f32 0.0, %v4903
      %v4905 = vpop.f32.mrb[0].mxu0
      %4906 = vmatprep.mubr.f32.mxu0 0.0
      %4907 = vmatmul.mubr.f32.gmra.mrb[0].mxu0 %v4725
      %v4908 = vpop.f32.mrb[0].mxu0
      %v4909 = vadd.f32 0.0, %v4908
      %v4910 = vpop.f32.mrb[0].mxu0
      %4911 = vmatprep.mubr.f32.mxu0 0.0
      %4912 = vmatmul.mubr.f32.gmra.mrb[0].mxu0 %v4726
      %v4913 = vpop.f32.mrb[0].mxu0
      %v4914 = vadd.f32 0.0, %v4913
      %v4915 = vpop.f32.mrb[0].mxu0
      %4916 = vmatprep.mubr.f32.mxu0 0.0
      %4917 = vmatmul.mubr.f32.gmra.mrb[0].mxu0 %v4727
      %v4918 = vpop.f32.mrb[0].mxu0
      %v4919 = vadd.f32 0.0, %v4918
      %v4920 = vpop.f32.mrb[0].mxu0
      %4921 = vmatprep.mubr.f32.mxu0 0.0
      %4922 = vmatmul.mubr.f32.gmra.mrb[0].mxu0 %v4728
      %v4923 = vpop.f32.mrb[0].mxu0
      %v4924 = vadd.f32 0.0, %v4923
      %v4925 = vpop.f32.mrb[0].mxu0
      %4926 = vmatprep.mubr.f32.mxu0 0.0
      %4927 = vmatmul.mubr.f32.gmra.mrb[0].mxu0 %v4729
      %v4928 = vpop.f32.mrb[0].mxu0
      %v4929 = vadd.f32 0.0, %v4928
      %v4930 = vpop.f32.mrb[0].mxu0
      %4931 = vmatprep.mubr.f32.mxu0 0.0
      %4932 = vmatmul.mubr.f32.gmra.mrb[0].mxu0 %v4730
      %v4933 = vpop.f32.mrb[0].mxu0
      %v4934 = vadd.f32 0.0, %v4933
      %v4935 = vpop.f32.mrb[0].mxu0
      %4936 = vmatprep.mubr.f32.mxu0 0.0
      %4937 = vmatmul.mubr.f32.gmra.mrb[0].mxu0 %v4731
      %v4938 = vpop.f32.mrb[0].mxu0
      %v4939 = vadd.f32 0.0, %v4938
      %v4940 = vpop.f32.mrb[0].mxu0
      %4941 = vmatprep.mubr.f32.mxu0 0.0
      %4942 = vmatmul.mubr.f32.gmra.mrb[0].mxu0 %v4732
      %v4943 = vpop.f32.mrb[0].mxu0
      %v4944 = vadd.f32 0.0, %v4943
      %v4945 = vpop.f32.mrb[0].mxu0
      %4946 = vmatprep.mubr.f32.mxu0 0.0
      %4947 = vmatmul.mubr.f32.gmra.mrb[0].mxu0 %v4733
      %v4948 = vpop.f32.mrb[0].mxu0
      %v4949 = vadd.f32 0.0, %v4948
      %v4950 = vpop.f32.mrb[0].mxu0
      %4951 = vmatprep.mubr.f32.mxu0 0.0
      %4952 = vmatmul.mubr.f32.gmra.mrb[0].mxu0 %v4734
      %v4953 = vpop.f32.mrb[0].mxu0
      %v4954 = vadd.f32 0.0, %v4953
      %v4955 = vpop.f32.mrb[0].mxu0
      %4956 = vmatprep.mubr.f32.mxu0 0.0
      %4957 = vmatmul.mubr.f32.gmra.mrb[0].mxu0 %v4735
      %v4958 = vpop.f32.mrb[0].mxu0
      %v4959 = vadd.f32 0.0, %v4958
      %v4960 = vpop.f32.mrb[0].mxu0
      %4961 = vmatprep.mubr.f32.mxu0 0.0
      %4962 = vmatmul.mubr.f32.gmra.mrb[0].mxu0 %v4736
      %v4963 = vpop.f32.mrb[0].mxu0
      %v4964 = vadd.f32 0.0, %v4963
      %v4965 = vpop.f32.mrb[0].mxu0
      %4966 = vmatprep.mubr.f32.mxu0 0.0
      %4967 = vmatmul.mubr.f32.gmra.mrb[0].mxu0 %v4737
      %v4968 = vpop.f32.mrb[0].mxu0
      %v4969 = vadd.f32 0.0, %v4968
      %v4970 = vpop.f32.mrb[0].mxu0
      %4971 = vmatprep.mubr.f32.mxu0 0.0
      %4972 = vmatmul.mubr.f32.gmra.mrb[0].mxu0 %v4738
      %v4973 = vpop.f32.mrb[0].mxu0
      %v4974 = vadd.f32 0.0, %v4973
      %v4975 = vpop.f32.mrb[0].mxu0
      %4976 = vmatprep.mubr.f32.mxu0 0.0
      %4977 = vmatmul.mubr.f32.gmra.mrb[0].mxu0 %v4739
      %v4978 = vpop.f32.mrb[0].mxu0
      %v4979 = vadd.f32 0.0, %v4978
      %v4980 = vpop.f32.mrb[0].mxu0
      %4981 = vdwg.mxu0
      %v4982 = vadd.f32 %v4550, %v4824
      %v4983 = vadd.f32 %v4555, %v4829
      %v4984 = vadd.f32 %v4560, %v4834
      %v4985 = vadd.f32 %v4565, %v4839
      %v4986 = vadd.f32 %v4570, %v4844
      %v4987 = vadd.f32 %v4575, %v4849
      %v4988 = vadd.f32 %v4580, %v4854
      %v4989 = vadd.f32 %v4585, %v4859
      %v4990 = vadd.f32 %v4590, %v4864
      %v4991 = vadd.f32 %v4595, %v4869
      %v4992 = vadd.f32 %v4600, %v4874
      %v4993 = vadd.f32 %v4605, %v4879
      %v4994 = vadd.f32 %v4610, %v4884
      %v4995 = vadd.f32 %v4615, %v4889
      %v4996 = vadd.f32 %v4620, %v4894
      %v4997 = vadd.f32 %v4625, %v4899
      %v4998 = vadd.f32 %v4630, %v4904
      %v4999 = vadd.f32 %v4635, %v4909
      %v5000 = vadd.f32 %v4640, %v4914
      %v5001 = vadd.f32 %v4645, %v4919
      %v5002 = vadd.f32 %v4650, %v4924
      %v5003 = vadd.f32 %v4655, %v4929
      %v5004 = vadd.f32 %v4660, %v4934
      %v5005 = vadd.f32 %v4665, %v4939
      %v5006 = vadd.f32 %v4670, %v4944
      %v5007 = vadd.f32 %v4675, %v4949
      %v5008 = vadd.f32 %v4680, %v4954
      %v5009 = vadd.f32 %v4685, %v4959
      %v5010 = vadd.f32 %v4690, %v4964
      %v5011 = vadd.f32 %v4695, %v4969
      %v5012 = vadd.f32 %v4700, %v4974
      %v5013 = vadd.f32 %v4705, %v4979
      %s5014 = scalar_lea.vmem [#allocation2], 32
      %v5015 = vld [vmem:[%s5014 + $0x7] sm:$0xff]
      %v5016 = vld [vmem:[%s5014 + $0xf] sm:$0xff]
      %v5017 = vld [vmem:[%s5014 + $0x27] sm:$0xff]
      %v5018 = vld [vmem:[%s5014 + $0x2f] sm:$0xff]
      %v5019 = vld [vmem:[%s5014 + $0x47] sm:$0xff]
      %v5020 = vld [vmem:[%s5014 + $0x4f] sm:$0xff]
      %v5021 = vld [vmem:[%s5014 + $0x67] sm:$0xff]
      %v5022 = vld [vmem:[%s5014 + $0x6f] sm:$0xff]
      %v5023 = vld [vmem:[%s5014 + $0x87] sm:$0xff]
      %v5024 = vld [vmem:[%s5014 + $0x8f] sm:$0xff]
      %v5025 = vld [vmem:[%s5014 + $0xa7] sm:$0xff]
      %v5026 = vld [vmem:[%s5014 + $0xaf] sm:$0xff]
      %v5027 = vld [vmem:[%s5014 + $0xc7] sm:$0xff]
      %v5028 = vld [vmem:[%s5014 + $0xcf] sm:$0xff]
      %v5029 = vld [vmem:[%s5014 + $0xe7] sm:$0xff]
      %v5030 = vld [vmem:[%s5014 + $0xef] sm:$0xff]
      %v5031 = vld [vmem:[%s5014 + $0x107] sm:$0xff]
      %v5032 = vld [vmem:[%s5014 + $0x10f] sm:$0xff]
      %v5033 = vld [vmem:[%s5014 + $0x127] sm:$0xff]
      %v5034 = vld [vmem:[%s5014 + $0x12f] sm:$0xff]
      %v5035 = vld [vmem:[%s5014 + $0x147] sm:$0xff]
      %v5036 = vld [vmem:[%s5014 + $0x14f] sm:$0xff]
      %v5037 = vld [vmem:[%s5014 + $0x167] sm:$0xff]
      %v5038 = vld [vmem:[%s5014 + $0x16f] sm:$0xff]
      %v5039 = vld [vmem:[%s5014 + $0x187] sm:$0xff]
      %v5040 = vld [vmem:[%s5014 + $0x18f] sm:$0xff]
      %v5041 = vld [vmem:[%s5014 + $0x1a7] sm:$0xff]
      %v5042 = vld [vmem:[%s5014 + $0x1af] sm:$0xff]
      %v5043 = vld [vmem:[%s5014 + $0x1c7] sm:$0xff]
      %v5044 = vld [vmem:[%s5014 + $0x1cf] sm:$0xff]
      %v5045 = vld [vmem:[%s5014 + $0x1e7] sm:$0xff]
      %v5046 = vld [vmem:[%s5014 + $0x1ef] sm:$0xff]
      %s5047 = scalar_lea.vmem %s2, 384
      %v5048 = vld [vmem:[%s5047] sm:$0xff]
      %v5049 = vld [vmem:[%s5047 + $0x8] sm:$0xff]
      %v5050 = vld [vmem:[%s5047 + $0x10] sm:$0xff]
      %v5051 = vld [vmem:[%s5047 + $0x18] sm:$0xff]
      %v5052 = vld [vmem:[%s5047 + $0x20] sm:$0xff]
      %v5053 = vld [vmem:[%s5047 + $0x28] sm:$0xff]
      %v5054 = vld [vmem:[%s5047 + $0x30] sm:$0xff]
      %v5055 = vld [vmem:[%s5047 + $0x38] sm:$0xff]
      %v5056 = vld [vmem:[%s5047 + $0x40] sm:$0xff]
      %v5057 = vld [vmem:[%s5047 + $0x48] sm:$0xff]
      %v5058 = vld [vmem:[%s5047 + $0x50] sm:$0xff]
      %v5059 = vld [vmem:[%s5047 + $0x58] sm:$0xff]
      %v5060 = vld [vmem:[%s5047 + $0x60] sm:$0xff]
      %v5061 = vld [vmem:[%s5047 + $0x68] sm:$0xff]
      %v5062 = vld [vmem:[%s5047 + $0x70] sm:$0xff]
      %v5063 = vld [vmem:[%s5047 + $0x78] sm:$0xff]
      %5064 = vmatprep.subr.mxu0 0.0
      %5065 = vmatpush1.msra.mxu0 %v5048
      %5066 = vmatprep.subr.mxu0 0.0
      %5067 = vmatpush1.msra.mxu0 %v5049
      %5068 = vmatprep.subr.mxu0 0.0
      %5069 = vmatpush1.msra.mxu0 %v5050
      %5070 = vmatprep.subr.mxu0 0.0
      %5071 = vmatpush1.msra.mxu0 %v5051
      %5072 = vmatprep.subr.mxu0 0.0
      %5073 = vmatpush1.msra.mxu0 %v5052
      %5074 = vmatprep.subr.mxu0 0.0
      %5075 = vmatpush1.msra.mxu0 %v5053
      %5076 = vmatprep.subr.mxu0 0.0
      %5077 = vmatpush1.msra.mxu0 %v5054
      %5078 = vmatprep.subr.mxu0 0.0
      %5079 = vmatpush1.msra.mxu0 %v5055
      %5080 = vmatprep.subr.mxu0 0.0
      %5081 = vmatpush1.msra.mxu0 %v5056
      %5082 = vmatprep.subr.mxu0 0.0
      %5083 = vmatpush1.msra.mxu0 %v5057
      %5084 = vmatprep.subr.mxu0 0.0
      %5085 = vmatpush1.msra.mxu0 %v5058
      %5086 = vmatprep.subr.mxu0 0.0
      %5087 = vmatpush1.msra.mxu0 %v5059
      %5088 = vmatprep.subr.mxu0 0.0
      %5089 = vmatpush1.msra.mxu0 %v5060
      %5090 = vmatprep.subr.mxu0 0.0
      %5091 = vmatpush1.msra.mxu0 %v5061
      %5092 = vmatprep.subr.mxu0 0.0
      %5093 = vmatpush1.msra.mxu0 %v5062
      %5094 = vmatprep.subr.mxu0 0.0
      %5095 = vmatpush1.msra.mxu0 %v5063
      %5096 = vmatprep.subr.mxu0 0.0
      %5097 = vmatpush1.msra.mxu0 0.0
      %5098 = vmatprep.subr.mxu0 0.0
      %5099 = vmatpush1.msra.mxu0 0.0
      %5100 = vmatprep.subr.mxu0 0.0
      %5101 = vmatpush1.msra.mxu0 0.0
      %5102 = vmatprep.subr.mxu0 0.0
      %5103 = vmatpush1.msra.mxu0 0.0
      %5104 = vmatprep.subr.mxu0 0.0
      %5105 = vmatpush1.msra.mxu0 0.0
      %5106 = vmatprep.subr.mxu0 0.0
      %5107 = vmatpush1.msra.mxu0 0.0
      %5108 = vmatprep.subr.mxu0 0.0
      %5109 = vmatpush1.msra.mxu0 0.0
      %5110 = vmatprep.subr.mxu0 0.0
      %5111 = vmatpush1.msra.mxu0 0.0
      %5112 = vmatprep.subr.mxu0 0.0
      %5113 = vmatpush1.msra.mxu0 0.0
      %5114 = vmatprep.subr.mxu0 0.0
      %5115 = vmatpush1.msra.mxu0 0.0
      %5116 = vmatprep.subr.mxu0 0.0
      %5117 = vmatpush1.msra.mxu0 0.0
      %5118 = vmatprep.subr.mxu0 0.0
      %5119 = vmatpush1.msra.mxu0 0.0
      %5120 = vmatprep.subr.mxu0 0.0
      %5121 = vmatpush1.msra.mxu0 0.0
      %5122 = vmatprep.subr.mxu0 0.0
      %5123 = vmatpush1.msra.mxu0 0.0
      %5124 = vmatprep.subr.mxu0 0.0
      %5125 = vmatpush1.msra.mxu0 0.0
      %5126 = vmatprep.subr.mxu0 0.0
      %5127 = vmatpush1.msra.mxu0 0.0
      %5128 = vmatprep.mubr.f32.mxu0 0.0
      %5129 = vmatmul.mubr.f32.gmra.mrb[0].mxu0 %v5015
      %v5130 = vpop.f32.mrb[0].mxu0
      %v5131 = vadd.f32 0.0, %v5130
      %v5132 = vpop.f32.mrb[0].mxu0
      %5133 = vmatprep.mubr.f32.mxu0 0.0
      %5134 = vmatmul.mubr.f32.gmra.mrb[0].mxu0 %v5016
      %v5135 = vpop.f32.mrb[0].mxu0
      %v5136 = vadd.f32 0.0, %v5135
      %v5137 = vpop.f32.mrb[0].mxu0
      %5138 = vmatprep.mubr.f32.mxu0 0.0
      %5139 = vmatmul.mubr.f32.gmra.mrb[0].mxu0 %v5017
      %v5140 = vpop.f32.mrb[0].mxu0
      %v5141 = vadd.f32 0.0, %v5140
      %v5142 = vpop.f32.mrb[0].mxu0
      %5143 = vmatprep.mubr.f32.mxu0 0.0
      %5144 = vmatmul.mubr.f32.gmra.mrb[0].mxu0 %v5018
      %v5145 = vpop.f32.mrb[0].mxu0
      %v5146 = vadd.f32 0.0, %v5145
      %v5147 = vpop.f32.mrb[0].mxu0
      %5148 = vmatprep.mubr.f32.mxu0 0.0
      %5149 = vmatmul.mubr.f32.gmra.mrb[0].mxu0 %v5019
      %v5150 = vpop.f32.mrb[0].mxu0
      %v5151 = vadd.f32 0.0, %v5150
      %v5152 = vpop.f32.mrb[0].mxu0
      %5153 = vmatprep.mubr.f32.mxu0 0.0
      %5154 = vmatmul.mubr.f32.gmra.mrb[0].mxu0 %v5020
      %v5155 = vpop.f32.mrb[0].mxu0
      %v5156 = vadd.f32 0.0, %v5155
      %v5157 = vpop.f32.mrb[0].mxu0
      %5158 = vmatprep.mubr.f32.mxu0 0.0
      %5159 = vmatmul.mubr.f32.gmra.mrb[0].mxu0 %v5021
      %v5160 = vpop.f32.mrb[0].mxu0
      %v5161 = vadd.f32 0.0, %v5160
      %v5162 = vpop.f32.mrb[0].mxu0
      %5163 = vmatprep.mubr.f32.mxu0 0.0
      %5164 = vmatmul.mubr.f32.gmra.mrb[0].mxu0 %v5022
      %v5165 = vpop.f32.mrb[0].mxu0
      %v5166 = vadd.f32 0.0, %v5165
      %v5167 = vpop.f32.mrb[0].mxu0
      %5168 = vmatprep.mubr.f32.mxu0 0.0
      %5169 = vmatmul.mubr.f32.gmra.mrb[0].mxu0 %v5023
      %v5170 = vpop.f32.mrb[0].mxu0
      %v5171 = vadd.f32 0.0, %v5170
      %v5172 = vpop.f32.mrb[0].mxu0
      %5173 = vmatprep.mubr.f32.mxu0 0.0
      %5174 = vmatmul.mubr.f32.gmra.mrb[0].mxu0 %v5024
      %v5175 = vpop.f32.mrb[0].mxu0
      %v5176 = vadd.f32 0.0, %v5175
      %v5177 = vpop.f32.mrb[0].mxu0
      %5178 = vmatprep.mubr.f32.mxu0 0.0
      %5179 = vmatmul.mubr.f32.gmra.mrb[0].mxu0 %v5025
      %v5180 = vpop.f32.mrb[0].mxu0
      %v5181 = vadd.f32 0.0, %v5180
      %v5182 = vpop.f32.mrb[0].mxu0
      %5183 = vmatprep.mubr.f32.mxu0 0.0
      %5184 = vmatmul.mubr.f32.gmra.mrb[0].mxu0 %v5026
      %v5185 = vpop.f32.mrb[0].mxu0
      %v5186 = vadd.f32 0.0, %v5185
      %v5187 = vpop.f32.mrb[0].mxu0
      %5188 = vmatprep.mubr.f32.mxu0 0.0
      %5189 = vmatmul.mubr.f32.gmra.mrb[0].mxu0 %v5027
      %v5190 = vpop.f32.mrb[0].mxu0
      %v5191 = vadd.f32 0.0, %v5190
      %v5192 = vpop.f32.mrb[0].mxu0
      %5193 = vmatprep.mubr.f32.mxu0 0.0
      %5194 = vmatmul.mubr.f32.gmra.mrb[0].mxu0 %v5028
      %v5195 = vpop.f32.mrb[0].mxu0
      %v5196 = vadd.f32 0.0, %v5195
      %v5197 = vpop.f32.mrb[0].mxu0
      %5198 = vmatprep.mubr.f32.mxu0 0.0
      %5199 = vmatmul.mubr.f32.gmra.mrb[0].mxu0 %v5029
      %v5200 = vpop.f32.mrb[0].mxu0
      %v5201 = vadd.f32 0.0, %v5200
      %v5202 = vpop.f32.mrb[0].mxu0
      %5203 = vmatprep.mubr.f32.mxu0 0.0
      %5204 = vmatmul.mubr.f32.gmra.mrb[0].mxu0 %v5030
      %v5205 = vpop.f32.mrb[0].mxu0
      %v5206 = vadd.f32 0.0, %v5205
      %v5207 = vpop.f32.mrb[0].mxu0
      %5208 = vmatprep.mubr.f32.mxu0 0.0
      %5209 = vmatmul.mubr.f32.gmra.mrb[0].mxu0 %v5031
      %v5210 = vpop.f32.mrb[0].mxu0
      %v5211 = vadd.f32 0.0, %v5210
      %v5212 = vpop.f32.mrb[0].mxu0
      %5213 = vmatprep.mubr.f32.mxu0 0.0
      %5214 = vmatmul.mubr.f32.gmra.mrb[0].mxu0 %v5032
      %v5215 = vpop.f32.mrb[0].mxu0
      %v5216 = vadd.f32 0.0, %v5215
      %v5217 = vpop.f32.mrb[0].mxu0
      %5218 = vmatprep.mubr.f32.mxu0 0.0
      %5219 = vmatmul.mubr.f32.gmra.mrb[0].mxu0 %v5033
      %v5220 = vpop.f32.mrb[0].mxu0
      %v5221 = vadd.f32 0.0, %v5220
      %v5222 = vpop.f32.mrb[0].mxu0
      %5223 = vmatprep.mubr.f32.mxu0 0.0
      %5224 = vmatmul.mubr.f32.gmra.mrb[0].mxu0 %v5034
      %v5225 = vpop.f32.mrb[0].mxu0
      %v5226 = vadd.f32 0.0, %v5225
      %v5227 = vpop.f32.mrb[0].mxu0
      %5228 = vmatprep.mubr.f32.mxu0 0.0
      %5229 = vmatmul.mubr.f32.gmra.mrb[0].mxu0 %v5035
      %v5230 = vpop.f32.mrb[0].mxu0
      %v5231 = vadd.f32 0.0, %v5230
      %v5232 = vpop.f32.mrb[0].mxu0
      %5233 = vmatprep.mubr.f32.mxu0 0.0
      %5234 = vmatmul.mubr.f32.gmra.mrb[0].mxu0 %v5036
      %v5235 = vpop.f32.mrb[0].mxu0
      %v5236 = vadd.f32 0.0, %v5235
      %v5237 = vpop.f32.mrb[0].mxu0
      %5238 = vmatprep.mubr.f32.mxu0 0.0
      %5239 = vmatmul.mubr.f32.gmra.mrb[0].mxu0 %v5037
      %v5240 = vpop.f32.mrb[0].mxu0
      %v5241 = vadd.f32 0.0, %v5240
      %v5242 = vpop.f32.mrb[0].mxu0
      %5243 = vmatprep.mubr.f32.mxu0 0.0
      %5244 = vmatmul.mubr.f32.gmra.mrb[0].mxu0 %v5038
      %v5245 = vpop.f32.mrb[0].mxu0
      %v5246 = vadd.f32 0.0, %v5245
      %v5247 = vpop.f32.mrb[0].mxu0
      %5248 = vmatprep.mubr.f32.mxu0 0.0
      %5249 = vmatmul.mubr.f32.gmra.mrb[0].mxu0 %v5039
      %v5250 = vpop.f32.mrb[0].mxu0
      %v5251 = vadd.f32 0.0, %v5250
      %v5252 = vpop.f32.mrb[0].mxu0
      %5253 = vmatprep.mubr.f32.mxu0 0.0
      %5254 = vmatmul.mubr.f32.gmra.mrb[0].mxu0 %v5040
      %v5255 = vpop.f32.mrb[0].mxu0
      %v5256 = vadd.f32 0.0, %v5255
      %v5257 = vpop.f32.mrb[0].mxu0
      %5258 = vmatprep.mubr.f32.mxu0 0.0
      %5259 = vmatmul.mubr.f32.gmra.mrb[0].mxu0 %v5041
      %v5260 = vpop.f32.mrb[0].mxu0
      %v5261 = vadd.f32 0.0, %v5260
      %v5262 = vpop.f32.mrb[0].mxu0
      %5263 = vmatprep.mubr.f32.mxu0 0.0
      %5264 = vmatmul.mubr.f32.gmra.mrb[0].mxu0 %v5042
      %v5265 = vpop.f32.mrb[0].mxu0
      %v5266 = vadd.f32 0.0, %v5265
      %v5267 = vpop.f32.mrb[0].mxu0
      %5268 = vmatprep.mubr.f32.mxu0 0.0
      %5269 = vmatmul.mubr.f32.gmra.mrb[0].mxu0 %v5043
      %v5270 = vpop.f32.mrb[0].mxu0
      %v5271 = vadd.f32 0.0, %v5270
      %v5272 = vpop.f32.mrb[0].mxu0
      %5273 = vmatprep.mubr.f32.mxu0 0.0
      %5274 = vmatmul.mubr.f32.gmra.mrb[0].mxu0 %v5044
      %v5275 = vpop.f32.mrb[0].mxu0
      %v5276 = vadd.f32 0.0, %v5275
      %v5277 = vpop.f32.mrb[0].mxu0
      %5278 = vmatprep.mubr.f32.mxu0 0.0
      %5279 = vmatmul.mubr.f32.gmra.mrb[0].mxu0 %v5045
      %v5280 = vpop.f32.mrb[0].mxu0
      %v5281 = vadd.f32 0.0, %v5280
      %v5282 = vpop.f32.mrb[0].mxu0
      %5283 = vmatprep.mubr.f32.mxu0 0.0
      %5284 = vmatmul.mubr.f32.gmra.mrb[0].mxu0 %v5046
      %v5285 = vpop.f32.mrb[0].mxu0
      %v5286 = vadd.f32 0.0, %v5285
      %v5287 = vpop.f32.mrb[0].mxu0
      %5288 = vdwg.mxu0
      %v5289 = vadd.f32 %v4982, %v5131
      %v5290 = vadd.f32 %v4983, %v5136
      %v5291 = vadd.f32 %v4984, %v5141
      %v5292 = vadd.f32 %v4985, %v5146
      %v5293 = vadd.f32 %v4986, %v5151
      %v5294 = vadd.f32 %v4987, %v5156
      %v5295 = vadd.f32 %v4988, %v5161
      %v5296 = vadd.f32 %v4989, %v5166
      %v5297 = vadd.f32 %v4990, %v5171
      %v5298 = vadd.f32 %v4991, %v5176
      %v5299 = vadd.f32 %v4992, %v5181
      %v5300 = vadd.f32 %v4993, %v5186
      %v5301 = vadd.f32 %v4994, %v5191
      %v5302 = vadd.f32 %v4995, %v5196
      %v5303 = vadd.f32 %v4996, %v5201
      %v5304 = vadd.f32 %v4997, %v5206
      %v5305 = vadd.f32 %v4998, %v5211
      %v5306 = vadd.f32 %v4999, %v5216
      %v5307 = vadd.f32 %v5000, %v5221
      %v5308 = vadd.f32 %v5001, %v5226
      %v5309 = vadd.f32 %v5002, %v5231
      %v5310 = vadd.f32 %v5003, %v5236
      %v5311 = vadd.f32 %v5004, %v5241
      %v5312 = vadd.f32 %v5005, %v5246
      %v5313 = vadd.f32 %v5006, %v5251
      %v5314 = vadd.f32 %v5007, %v5256
      %v5315 = vadd.f32 %v5008, %v5261
      %v5316 = vadd.f32 %v5009, %v5266
      %v5317 = vadd.f32 %v5010, %v5271
      %v5318 = vadd.f32 %v5011, %v5276
      %v5319 = vadd.f32 %v5012, %v5281
      %v5320 = vadd.f32 %v5013, %v5286
      %v5321 = vld [vmem:[%s5014 + $0x8] sm:$0xff]
      %v5322 = vld [vmem:[%s5014 + $0x10] sm:$0xff]
      %v5323 = vld [vmem:[%s5014 + $0x28] sm:$0xff]
      %v5324 = vld [vmem:[%s5014 + $0x30] sm:$0xff]
      %v5325 = vld [vmem:[%s5014 + $0x48] sm:$0xff]
      %v5326 = vld [vmem:[%s5014 + $0x50] sm:$0xff]
      %v5327 = vld [vmem:[%s5014 + $0x68] sm:$0xff]
      %v5328 = vld [vmem:[%s5014 + $0x70] sm:$0xff]
      %v5329 = vld [vmem:[%s5014 + $0x88] sm:$0xff]
      %v5330 = vld [vmem:[%s5014 + $0x90] sm:$0xff]
      %v5331 = vld [vmem:[%s5014 + $0xa8] sm:$0xff]
      %v5332 = vld [vmem:[%s5014 + $0xb0] sm:$0xff]
      %v5333 = vld [vmem:[%s5014 + $0xc8] sm:$0xff]
      %v5334 = vld [vmem:[%s5014 + $0xd0] sm:$0xff]
      %v5335 = vld [vmem:[%s5014 + $0xe8] sm:$0xff]
      %v5336 = vld [vmem:[%s5014 + $0xf0] sm:$0xff]
      %v5337 = vld [vmem:[%s5014 + $0x108] sm:$0xff]
      %v5338 = vld [vmem:[%s5014 + $0x110] sm:$0xff]
      %v5339 = vld [vmem:[%s5014 + $0x128] sm:$0xff]
      %v5340 = vld [vmem:[%s5014 + $0x130] sm:$0xff]
      %v5341 = vld [vmem:[%s5014 + $0x148] sm:$0xff]
      %v5342 = vld [vmem:[%s5014 + $0x150] sm:$0xff]
      %v5343 = vld [vmem:[%s5014 + $0x168] sm:$0xff]
      %v5344 = vld [vmem:[%s5014 + $0x170] sm:$0xff]
      %v5345 = vld [vmem:[%s5014 + $0x188] sm:$0xff]
      %v5346 = vld [vmem:[%s5014 + $0x190] sm:$0xff]
      %v5347 = vld [vmem:[%s5014 + $0x1a8] sm:$0xff]
      %v5348 = vld [vmem:[%s5014 + $0x1b0] sm:$0xff]
      %v5349 = vld [vmem:[%s5014 + $0x1c8] sm:$0xff]
      %v5350 = vld [vmem:[%s5014 + $0x1d0] sm:$0xff]
      %v5351 = vld [vmem:[%s5014 + $0x1e8] sm:$0xff]
      %v5352 = vld [vmem:[%s5014 + $0x1f0] sm:$0xff]
      %s5353 = scalar_lea.vmem %s2, 512
      %v5354 = vld [vmem:[%s5353] sm:$0xff]
      %v5355 = vld [vmem:[%s5353 + $0x8] sm:$0xff]
      %v5356 = vld [vmem:[%s5353 + $0x10] sm:$0xff]
      %v5357 = vld [vmem:[%s5353 + $0x18] sm:$0xff]
      %v5358 = vld [vmem:[%s5353 + $0x20] sm:$0xff]
      %v5359 = vld [vmem:[%s5353 + $0x28] sm:$0xff]
      %v5360 = vld [vmem:[%s5353 + $0x30] sm:$0xff]
      %v5361 = vld [vmem:[%s5353 + $0x38] sm:$0xff]
      %v5362 = vld [vmem:[%s5353 + $0x40] sm:$0xff]
      %v5363 = vld [vmem:[%s5353 + $0x48] sm:$0xff]
      %v5364 = vld [vmem:[%s5353 + $0x50] sm:$0xff]
      %v5365 = vld [vmem:[%s5353 + $0x58] sm:$0xff]
      %v5366 = vld [vmem:[%s5353 + $0x60] sm:$0xff]
      %v5367 = vld [vmem:[%s5353 + $0x68] sm:$0xff]
      %v5368 = vld [vmem:[%s5353 + $0x70] sm:$0xff]
      %v5369 = vld [vmem:[%s5353 + $0x78] sm:$0xff]
      %5370 = vmatprep.subr.mxu0 0.0
      %5371 = vmatpush1.msra.mxu0 %v5354
      %5372 = vmatprep.subr.mxu0 0.0
      %5373 = vmatpush1.msra.mxu0 %v5355
      %5374 = vmatprep.subr.mxu0 0.0
      %5375 = vmatpush1.msra.mxu0 %v5356
      %5376 = vmatprep.subr.mxu0 0.0
      %5377 = vmatpush1.msra.mxu0 %v5357
      %5378 = vmatprep.subr.mxu0 0.0
      %5379 = vmatpush1.msra.mxu0 %v5358
      %5380 = vmatprep.subr.mxu0 0.0
      %5381 = vmatpush1.msra.mxu0 %v5359
      %5382 = vmatprep.subr.mxu0 0.0
      %5383 = vmatpush1.msra.mxu0 %v5360
      %5384 = vmatprep.subr.mxu0 0.0
      %5385 = vmatpush1.msra.mxu0 %v5361
      %5386 = vmatprep.subr.mxu0 0.0
      %5387 = vmatpush1.msra.mxu0 %v5362
      %5388 = vmatprep.subr.mxu0 0.0
      %5389 = vmatpush1.msra.mxu0 %v5363
      %5390 = vmatprep.subr.mxu0 0.0
      %5391 = vmatpush1.msra.mxu0 %v5364
      %5392 = vmatprep.subr.mxu0 0.0
      %5393 = vmatpush1.msra.mxu0 %v5365
      %5394 = vmatprep.subr.mxu0 0.0
      %5395 = vmatpush1.msra.mxu0 %v5366
      %5396 = vmatprep.subr.mxu0 0.0
      %5397 = vmatpush1.msra.mxu0 %v5367
      %5398 = vmatprep.subr.mxu0 0.0
      %5399 = vmatpush1.msra.mxu0 %v5368
      %5400 = vmatprep.subr.mxu0 0.0
      %5401 = vmatpush1.msra.mxu0 %v5369
      %5402 = vmatprep.subr.mxu0 0.0
      %5403 = vmatpush1.msra.mxu0 0.0
      %5404 = vmatprep.subr.mxu0 0.0
      %5405 = vmatpush1.msra.mxu0 0.0
      %5406 = vmatprep.subr.mxu0 0.0
      %5407 = vmatpush1.msra.mxu0 0.0
      %5408 = vmatprep.subr.mxu0 0.0
      %5409 = vmatpush1.msra.mxu0 0.0
      %5410 = vmatprep.subr.mxu0 0.0
      %5411 = vmatpush1.msra.mxu0 0.0
      %5412 = vmatprep.subr.mxu0 0.0
      %5413 = vmatpush1.msra.mxu0 0.0
      %5414 = vmatprep.subr.mxu0 0.0
      %5415 = vmatpush1.msra.mxu0 0.0
      %5416 = vmatprep.subr.mxu0 0.0
      %5417 = vmatpush1.msra.mxu0 0.0
      %5418 = vmatprep.subr.mxu0 0.0
      %5419 = vmatpush1.msra.mxu0 0.0
      %5420 = vmatprep.subr.mxu0 0.0
      %5421 = vmatpush1.msra.mxu0 0.0
      %5422 = vmatprep.subr.mxu0 0.0
      %5423 = vmatpush1.msra.mxu0 0.0
      %5424 = vmatprep.subr.mxu0 0.0
      %5425 = vmatpush1.msra.mxu0 0.0
      %5426 = vmatprep.subr.mxu0 0.0
      %5427 = vmatpush1.msra.mxu0 0.0
      %5428 = vmatprep.subr.mxu0 0.0
      %5429 = vmatpush1.msra.mxu0 0.0
      %5430 = vmatprep.subr.mxu0 0.0
      %5431 = vmatpush1.msra.mxu0 0.0
      %5432 = vmatprep.subr.mxu0 0.0
      %5433 = vmatpush1.msra.mxu0 0.0
      %5434 = vmatprep.mubr.f32.mxu0 0.0
      %5435 = vmatmul.mubr.f32.gmra.mrb[0].mxu0 %v5321
      %v5436 = vpop.f32.mrb[0].mxu0
      %v5437 = vadd.f32 0.0, %v5436
      %v5438 = vpop.f32.mrb[0].mxu0
      %5439 = vmatprep.mubr.f32.mxu0 0.0
      %5440 = vmatmul.mubr.f32.gmra.mrb[0].mxu0 %v5322
      %v5441 = vpop.f32.mrb[0].mxu0
      %v5442 = vadd.f32 0.0, %v5441
      %v5443 = vpop.f32.mrb[0].mxu0
      %5444 = vmatprep.mubr.f32.mxu0 0.0
      %5445 = vmatmul.mubr.f32.gmra.mrb[0].mxu0 %v5323
      %v5446 = vpop.f32.mrb[0].mxu0
      %v5447 = vadd.f32 0.0, %v5446
      %v5448 = vpop.f32.mrb[0].mxu0
      %5449 = vmatprep.mubr.f32.mxu0 0.0
      %5450 = vmatmul.mubr.f32.gmra.mrb[0].mxu0 %v5324
      %v5451 = vpop.f32.mrb[0].mxu0
      %v5452 = vadd.f32 0.0, %v5451
      %v5453 = vpop.f32.mrb[0].mxu0
      %5454 = vmatprep.mubr.f32.mxu0 0.0
      %5455 = vmatmul.mubr.f32.gmra.mrb[0].mxu0 %v5325
      %v5456 = vpop.f32.mrb[0].mxu0
      %v5457 = vadd.f32 0.0, %v5456
      %v5458 = vpop.f32.mrb[0].mxu0
      %5459 = vmatprep.mubr.f32.mxu0 0.0
      %5460 = vmatmul.mubr.f32.gmra.mrb[0].mxu0 %v5326
      %v5461 = vpop.f32.mrb[0].mxu0
      %v5462 = vadd.f32 0.0, %v5461
      %v5463 = vpop.f32.mrb[0].mxu0
      %5464 = vmatprep.mubr.f32.mxu0 0.0
      %5465 = vmatmul.mubr.f32.gmra.mrb[0].mxu0 %v5327
      %v5466 = vpop.f32.mrb[0].mxu0
      %v5467 = vadd.f32 0.0, %v5466
      %v5468 = vpop.f32.mrb[0].mxu0
      %5469 = vmatprep.mubr.f32.mxu0 0.0
      %5470 = vmatmul.mubr.f32.gmra.mrb[0].mxu0 %v5328
      %v5471 = vpop.f32.mrb[0].mxu0
      %v5472 = vadd.f32 0.0, %v5471
      %v5473 = vpop.f32.mrb[0].mxu0
      %5474 = vmatprep.mubr.f32.mxu0 0.0
      %5475 = vmatmul.mubr.f32.gmra.mrb[0].mxu0 %v5329
      %v5476 = vpop.f32.mrb[0].mxu0
      %v5477 = vadd.f32 0.0, %v5476
      %v5478 = vpop.f32.mrb[0].mxu0
      %5479 = vmatprep.mubr.f32.mxu0 0.0
      %5480 = vmatmul.mubr.f32.gmra.mrb[0].mxu0 %v5330
      %v5481 = vpop.f32.mrb[0].mxu0
      %v5482 = vadd.f32 0.0, %v5481
      %v5483 = vpop.f32.mrb[0].mxu0
      %5484 = vmatprep.mubr.f32.mxu0 0.0
      %5485 = vmatmul.mubr.f32.gmra.mrb[0].mxu0 %v5331
      %v5486 = vpop.f32.mrb[0].mxu0
      %v5487 = vadd.f32 0.0, %v5486
      %v5488 = vpop.f32.mrb[0].mxu0
      %5489 = vmatprep.mubr.f32.mxu0 0.0
      %5490 = vmatmul.mubr.f32.gmra.mrb[0].mxu0 %v5332
      %v5491 = vpop.f32.mrb[0].mxu0
      %v5492 = vadd.f32 0.0, %v5491
      %v5493 = vpop.f32.mrb[0].mxu0
      %5494 = vmatprep.mubr.f32.mxu0 0.0
      %5495 = vmatmul.mubr.f32.gmra.mrb[0].mxu0 %v5333
      %v5496 = vpop.f32.mrb[0].mxu0
      %v5497 = vadd.f32 0.0, %v5496
      %v5498 = vpop.f32.mrb[0].mxu0
      %5499 = vmatprep.mubr.f32.mxu0 0.0
      %5500 = vmatmul.mubr.f32.gmra.mrb[0].mxu0 %v5334
      %v5501 = vpop.f32.mrb[0].mxu0
      %v5502 = vadd.f32 0.0, %v5501
      %v5503 = vpop.f32.mrb[0].mxu0
      %5504 = vmatprep.mubr.f32.mxu0 0.0
      %5505 = vmatmul.mubr.f32.gmra.mrb[0].mxu0 %v5335
      %v5506 = vpop.f32.mrb[0].mxu0
      %v5507 = vadd.f32 0.0, %v5506
      %v5508 = vpop.f32.mrb[0].mxu0
      %5509 = vmatprep.mubr.f32.mxu0 0.0
      %5510 = vmatmul.mubr.f32.gmra.mrb[0].mxu0 %v5336
      %v5511 = vpop.f32.mrb[0].mxu0
      %v5512 = vadd.f32 0.0, %v5511
      %v5513 = vpop.f32.mrb[0].mxu0
      %5514 = vmatprep.mubr.f32.mxu0 0.0
      %5515 = vmatmul.mubr.f32.gmra.mrb[0].mxu0 %v5337
      %v5516 = vpop.f32.mrb[0].mxu0
      %v5517 = vadd.f32 0.0, %v5516
      %v5518 = vpop.f32.mrb[0].mxu0
      %5519 = vmatprep.mubr.f32.mxu0 0.0
      %5520 = vmatmul.mubr.f32.gmra.mrb[0].mxu0 %v5338
      %v5521 = vpop.f32.mrb[0].mxu0
      %v5522 = vadd.f32 0.0, %v5521
      %v5523 = vpop.f32.mrb[0].mxu0
      %5524 = vmatprep.mubr.f32.mxu0 0.0
      %5525 = vmatmul.mubr.f32.gmra.mrb[0].mxu0 %v5339
      %v5526 = vpop.f32.mrb[0].mxu0
      %v5527 = vadd.f32 0.0, %v5526
      %v5528 = vpop.f32.mrb[0].mxu0
      %5529 = vmatprep.mubr.f32.mxu0 0.0
      %5530 = vmatmul.mubr.f32.gmra.mrb[0].mxu0 %v5340
      %v5531 = vpop.f32.mrb[0].mxu0
      %v5532 = vadd.f32 0.0, %v5531
      %v5533 = vpop.f32.mrb[0].mxu0
      %5534 = vmatprep.mubr.f32.mxu0 0.0
      %5535 = vmatmul.mubr.f32.gmra.mrb[0].mxu0 %v5341
      %v5536 = vpop.f32.mrb[0].mxu0
      %v5537 = vadd.f32 0.0, %v5536
      %v5538 = vpop.f32.mrb[0].mxu0
      %5539 = vmatprep.mubr.f32.mxu0 0.0
      %5540 = vmatmul.mubr.f32.gmra.mrb[0].mxu0 %v5342
      %v5541 = vpop.f32.mrb[0].mxu0
      %v5542 = vadd.f32 0.0, %v5541
      %v5543 = vpop.f32.mrb[0].mxu0
      %5544 = vmatprep.mubr.f32.mxu0 0.0
      %5545 = vmatmul.mubr.f32.gmra.mrb[0].mxu0 %v5343
      %v5546 = vpop.f32.mrb[0].mxu0
      %v5547 = vadd.f32 0.0, %v5546
      %v5548 = vpop.f32.mrb[0].mxu0
      %5549 = vmatprep.mubr.f32.mxu0 0.0
      %5550 = vmatmul.mubr.f32.gmra.mrb[0].mxu0 %v5344
      %v5551 = vpop.f32.mrb[0].mxu0
      %v5552 = vadd.f32 0.0, %v5551
      %v5553 = vpop.f32.mrb[0].mxu0
      %5554 = vmatprep.mubr.f32.mxu0 0.0
      %5555 = vmatmul.mubr.f32.gmra.mrb[0].mxu0 %v5345
      %v5556 = vpop.f32.mrb[0].mxu0
      %v5557 = vadd.f32 0.0, %v5556
      %v5558 = vpop.f32.mrb[0].mxu0
      %5559 = vmatprep.mubr.f32.mxu0 0.0
      %5560 = vmatmul.mubr.f32.gmra.mrb[0].mxu0 %v5346
      %v5561 = vpop.f32.mrb[0].mxu0
      %v5562 = vadd.f32 0.0, %v5561
      %v5563 = vpop.f32.mrb[0].mxu0
      %5564 = vmatprep.mubr.f32.mxu0 0.0
      %5565 = vmatmul.mubr.f32.gmra.mrb[0].mxu0 %v5347
      %v5566 = vpop.f32.mrb[0].mxu0
      %v5567 = vadd.f32 0.0, %v5566
      %v5568 = vpop.f32.mrb[0].mxu0
      %5569 = vmatprep.mubr.f32.mxu0 0.0
      %5570 = vmatmul.mubr.f32.gmra.mrb[0].mxu0 %v5348
      %v5571 = vpop.f32.mrb[0].mxu0
      %v5572 = vadd.f32 0.0, %v5571
      %v5573 = vpop.f32.mrb[0].mxu0
      %5574 = vmatprep.mubr.f32.mxu0 0.0
      %5575 = vmatmul.mubr.f32.gmra.mrb[0].mxu0 %v5349
      %v5576 = vpop.f32.mrb[0].mxu0
      %v5577 = vadd.f32 0.0, %v5576
      %v5578 = vpop.f32.mrb[0].mxu0
      %5579 = vmatprep.mubr.f32.mxu0 0.0
      %5580 = vmatmul.mubr.f32.gmra.mrb[0].mxu0 %v5350
      %v5581 = vpop.f32.mrb[0].mxu0
      %v5582 = vadd.f32 0.0, %v5581
      %v5583 = vpop.f32.mrb[0].mxu0
      %5584 = vmatprep.mubr.f32.mxu0 0.0
      %5585 = vmatmul.mubr.f32.gmra.mrb[0].mxu0 %v5351
      %v5586 = vpop.f32.mrb[0].mxu0
      %v5587 = vadd.f32 0.0, %v5586
      %v5588 = vpop.f32.mrb[0].mxu0
      %5589 = vmatprep.mubr.f32.mxu0 0.0
      %5590 = vmatmul.mubr.f32.gmra.mrb[0].mxu0 %v5352
      %v5591 = vpop.f32.mrb[0].mxu0
      %v5592 = vadd.f32 0.0, %v5591
      %v5593 = vpop.f32.mrb[0].mxu0
      %5594 = vdwg.mxu0
      %v5595 = vadd.f32 %v5289, %v5437
      %v5596 = vadd.f32 %v5290, %v5442
      %v5597 = vadd.f32 %v5291, %v5447
      %v5598 = vadd.f32 %v5292, %v5452
      %v5599 = vadd.f32 %v5293, %v5457
      %v5600 = vadd.f32 %v5294, %v5462
      %v5601 = vadd.f32 %v5295, %v5467
      %v5602 = vadd.f32 %v5296, %v5472
      %v5603 = vadd.f32 %v5297, %v5477
      %v5604 = vadd.f32 %v5298, %v5482
      %v5605 = vadd.f32 %v5299, %v5487
      %v5606 = vadd.f32 %v5300, %v5492
      %v5607 = vadd.f32 %v5301, %v5497
      %v5608 = vadd.f32 %v5302, %v5502
      %v5609 = vadd.f32 %v5303, %v5507
      %v5610 = vadd.f32 %v5304, %v5512
      %v5611 = vadd.f32 %v5305, %v5517
      %v5612 = vadd.f32 %v5306, %v5522
      %v5613 = vadd.f32 %v5307, %v5527
      %v5614 = vadd.f32 %v5308, %v5532
      %v5615 = vadd.f32 %v5309, %v5537
      %v5616 = vadd.f32 %v5310, %v5542
      %v5617 = vadd.f32 %v5311, %v5547
      %v5618 = vadd.f32 %v5312, %v5552
      %v5619 = vadd.f32 %v5313, %v5557
      %v5620 = vadd.f32 %v5314, %v5562
      %v5621 = vadd.f32 %v5315, %v5567
      %v5622 = vadd.f32 %v5316, %v5572
      %v5623 = vadd.f32 %v5317, %v5577
      %v5624 = vadd.f32 %v5318, %v5582
      %v5625 = vadd.f32 %v5319, %v5587
      %v5626 = vadd.f32 %v5320, %v5592
      %v5627 = vld [vmem:[%s5014 + $0x9] sm:$0xff]
      %v5628 = vld [vmem:[%s5014 + $0x11] sm:$0xff]
      %v5629 = vld [vmem:[%s5014 + $0x29] sm:$0xff]
      %v5630 = vld [vmem:[%s5014 + $0x31] sm:$0xff]
      %v5631 = vld [vmem:[%s5014 + $0x49] sm:$0xff]
      %v5632 = vld [vmem:[%s5014 + $0x51] sm:$0xff]
      %v5633 = vld [vmem:[%s5014 + $0x69] sm:$0xff]
      %v5634 = vld [vmem:[%s5014 + $0x71] sm:$0xff]
      %v5635 = vld [vmem:[%s5014 + $0x89] sm:$0xff]
      %v5636 = vld [vmem:[%s5014 + $0x91] sm:$0xff]
      %v5637 = vld [vmem:[%s5014 + $0xa9] sm:$0xff]
      %v5638 = vld [vmem:[%s5014 + $0xb1] sm:$0xff]
      %v5639 = vld [vmem:[%s5014 + $0xc9] sm:$0xff]
      %v5640 = vld [vmem:[%s5014 + $0xd1] sm:$0xff]
      %v5641 = vld [vmem:[%s5014 + $0xe9] sm:$0xff]
      %v5642 = vld [vmem:[%s5014 + $0xf1] sm:$0xff]
      %v5643 = vld [vmem:[%s5014 + $0x109] sm:$0xff]
      %v5644 = vld [vmem:[%s5014 + $0x111] sm:$0xff]
      %v5645 = vld [vmem:[%s5014 + $0x129] sm:$0xff]
      %v5646 = vld [vmem:[%s5014 + $0x131] sm:$0xff]
      %v5647 = vld [vmem:[%s5014 + $0x149] sm:$0xff]
      %v5648 = vld [vmem:[%s5014 + $0x151] sm:$0xff]
      %v5649 = vld [vmem:[%s5014 + $0x169] sm:$0xff]
      %v5650 = vld [vmem:[%s5014 + $0x171] sm:$0xff]
      %v5651 = vld [vmem:[%s5014 + $0x189] sm:$0xff]
      %v5652 = vld [vmem:[%s5014 + $0x191] sm:$0xff]
      %v5653 = vld [vmem:[%s5014 + $0x1a9] sm:$0xff]
      %v5654 = vld [vmem:[%s5014 + $0x1b1] sm:$0xff]
      %v5655 = vld [vmem:[%s5014 + $0x1c9] sm:$0xff]
      %v5656 = vld [vmem:[%s5014 + $0x1d1] sm:$0xff]
      %v5657 = vld [vmem:[%s5014 + $0x1e9] sm:$0xff]
      %v5658 = vld [vmem:[%s5014 + $0x1f1] sm:$0xff]
      %s5659 = scalar_lea.vmem %s2, 640
      %v5660 = vld [vmem:[%s5659] sm:$0xff]
      %v5661 = vld [vmem:[%s5659 + $0x8] sm:$0xff]
      %v5662 = vld [vmem:[%s5659 + $0x10] sm:$0xff]
      %v5663 = vld [vmem:[%s5659 + $0x18] sm:$0xff]
      %v5664 = vld [vmem:[%s5659 + $0x20] sm:$0xff]
      %v5665 = vld [vmem:[%s5659 + $0x28] sm:$0xff]
      %v5666 = vld [vmem:[%s5659 + $0x30] sm:$0xff]
      %v5667 = vld [vmem:[%s5659 + $0x38] sm:$0xff]
      %v5668 = vld [vmem:[%s5659 + $0x40] sm:$0xff]
      %v5669 = vld [vmem:[%s5659 + $0x48] sm:$0xff]
      %v5670 = vld [vmem:[%s5659 + $0x50] sm:$0xff]
      %v5671 = vld [vmem:[%s5659 + $0x58] sm:$0xff]
      %v5672 = vld [vmem:[%s5659 + $0x60] sm:$0xff]
      %v5673 = vld [vmem:[%s5659 + $0x68] sm:$0xff]
      %v5674 = vld [vmem:[%s5659 + $0x70] sm:$0xff]
      %v5675 = vld [vmem:[%s5659 + $0x78] sm:$0xff]
      %5676 = vmatprep.subr.mxu0 0.0
      %5677 = vmatpush1.msra.mxu0 %v5660
      %5678 = vmatprep.subr.mxu0 0.0
      %5679 = vmatpush1.msra.mxu0 %v5661
      %5680 = vmatprep.subr.mxu0 0.0
      %5681 = vmatpush1.msra.mxu0 %v5662
      %5682 = vmatprep.subr.mxu0 0.0
      %5683 = vmatpush1.msra.mxu0 %v5663
      %5684 = vmatprep.subr.mxu0 0.0
      %5685 = vmatpush1.msra.mxu0 %v5664
      %5686 = vmatprep.subr.mxu0 0.0
      %5687 = vmatpush1.msra.mxu0 %v5665
      %5688 = vmatprep.subr.mxu0 0.0
      %5689 = vmatpush1.msra.mxu0 %v5666
      %5690 = vmatprep.subr.mxu0 0.0
      %5691 = vmatpush1.msra.mxu0 %v5667
      %5692 = vmatprep.subr.mxu0 0.0
      %5693 = vmatpush1.msra.mxu0 %v5668
      %5694 = vmatprep.subr.mxu0 0.0
      %5695 = vmatpush1.msra.mxu0 %v5669
      %5696 = vmatprep.subr.mxu0 0.0
      %5697 = vmatpush1.msra.mxu0 %v5670
      %5698 = vmatprep.subr.mxu0 0.0
      %5699 = vmatpush1.msra.mxu0 %v5671
      %5700 = vmatprep.subr.mxu0 0.0
      %5701 = vmatpush1.msra.mxu0 %v5672
      %5702 = vmatprep.subr.mxu0 0.0
      %5703 = vmatpush1.msra.mxu0 %v5673
      %5704 = vmatprep.subr.mxu0 0.0
      %5705 = vmatpush1.msra.mxu0 %v5674
      %5706 = vmatprep.subr.mxu0 0.0
      %5707 = vmatpush1.msra.mxu0 %v5675
      %5708 = vmatprep.subr.mxu0 0.0
      %5709 = vmatpush1.msra.mxu0 0.0
      %5710 = vmatprep.subr.mxu0 0.0
      %5711 = vmatpush1.msra.mxu0 0.0
      %5712 = vmatprep.subr.mxu0 0.0
      %5713 = vmatpush1.msra.mxu0 0.0
      %5714 = vmatprep.subr.mxu0 0.0
      %5715 = vmatpush1.msra.mxu0 0.0
      %5716 = vmatprep.subr.mxu0 0.0
      %5717 = vmatpush1.msra.mxu0 0.0
      %5718 = vmatprep.subr.mxu0 0.0
      %5719 = vmatpush1.msra.mxu0 0.0
      %5720 = vmatprep.subr.mxu0 0.0
      %5721 = vmatpush1.msra.mxu0 0.0
      %5722 = vmatprep.subr.mxu0 0.0
      %5723 = vmatpush1.msra.mxu0 0.0
      %5724 = vmatprep.subr.mxu0 0.0
      %5725 = vmatpush1.msra.mxu0 0.0
      %5726 = vmatprep.subr.mxu0 0.0
      %5727 = vmatpush1.msra.mxu0 0.0
      %5728 = vmatprep.subr.mxu0 0.0
      %5729 = vmatpush1.msra.mxu0 0.0
      %5730 = vmatprep.subr.mxu0 0.0
      %5731 = vmatpush1.msra.mxu0 0.0
      %5732 = vmatprep.subr.mxu0 0.0
      %5733 = vmatpush1.msra.mxu0 0.0
      %5734 = vmatprep.subr.mxu0 0.0
      %5735 = vmatpush1.msra.mxu0 0.0
      %5736 = vmatprep.subr.mxu0 0.0
      %5737 = vmatpush1.msra.mxu0 0.0
      %5738 = vmatprep.subr.mxu0 0.0
      %5739 = vmatpush1.msra.mxu0 0.0
      %5740 = vmatprep.mubr.f32.mxu0 0.0
      %5741 = vmatmul.mubr.f32.gmra.mrb[0].mxu0 %v5627
      %v5742 = vpop.f32.mrb[0].mxu0
      %v5743 = vadd.f32 0.0, %v5742
      %v5744 = vpop.f32.mrb[0].mxu0
      %5745 = vmatprep.mubr.f32.mxu0 0.0
      %5746 = vmatmul.mubr.f32.gmra.mrb[0].mxu0 %v5628
      %v5747 = vpop.f32.mrb[0].mxu0
      %v5748 = vadd.f32 0.0, %v5747
      %v5749 = vpop.f32.mrb[0].mxu0
      %5750 = vmatprep.mubr.f32.mxu0 0.0
      %5751 = vmatmul.mubr.f32.gmra.mrb[0].mxu0 %v5629
      %v5752 = vpop.f32.mrb[0].mxu0
      %v5753 = vadd.f32 0.0, %v5752
      %v5754 = vpop.f32.mrb[0].mxu0
      %5755 = vmatprep.mubr.f32.mxu0 0.0
      %5756 = vmatmul.mubr.f32.gmra.mrb[0].mxu0 %v5630
      %v5757 = vpop.f32.mrb[0].mxu0
      %v5758 = vadd.f32 0.0, %v5757
      %v5759 = vpop.f32.mrb[0].mxu0
      %5760 = vmatprep.mubr.f32.mxu0 0.0
      %5761 = vmatmul.mubr.f32.gmra.mrb[0].mxu0 %v5631
      %v5762 = vpop.f32.mrb[0].mxu0
      %v5763 = vadd.f32 0.0, %v5762
      %v5764 = vpop.f32.mrb[0].mxu0
      %5765 = vmatprep.mubr.f32.mxu0 0.0
      %5766 = vmatmul.mubr.f32.gmra.mrb[0].mxu0 %v5632
      %v5767 = vpop.f32.mrb[0].mxu0
      %v5768 = vadd.f32 0.0, %v5767
      %v5769 = vpop.f32.mrb[0].mxu0
      %5770 = vmatprep.mubr.f32.mxu0 0.0
      %5771 = vmatmul.mubr.f32.gmra.mrb[0].mxu0 %v5633
      %v5772 = vpop.f32.mrb[0].mxu0
      %v5773 = vadd.f32 0.0, %v5772
      %v5774 = vpop.f32.mrb[0].mxu0
      %5775 = vmatprep.mubr.f32.mxu0 0.0
      %5776 = vmatmul.mubr.f32.gmra.mrb[0].mxu0 %v5634
      %v5777 = vpop.f32.mrb[0].mxu0
      %v5778 = vadd.f32 0.0, %v5777
      %v5779 = vpop.f32.mrb[0].mxu0
      %5780 = vmatprep.mubr.f32.mxu0 0.0
      %5781 = vmatmul.mubr.f32.gmra.mrb[0].mxu0 %v5635
      %v5782 = vpop.f32.mrb[0].mxu0
      %v5783 = vadd.f32 0.0, %v5782
      %v5784 = vpop.f32.mrb[0].mxu0
      %5785 = vmatprep.mubr.f32.mxu0 0.0
      %5786 = vmatmul.mubr.f32.gmra.mrb[0].mxu0 %v5636
      %v5787 = vpop.f32.mrb[0].mxu0
      %v5788 = vadd.f32 0.0, %v5787
      %v5789 = vpop.f32.mrb[0].mxu0
      %5790 = vmatprep.mubr.f32.mxu0 0.0
      %5791 = vmatmul.mubr.f32.gmra.mrb[0].mxu0 %v5637
      %v5792 = vpop.f32.mrb[0].mxu0
      %v5793 = vadd.f32 0.0, %v5792
      %v5794 = vpop.f32.mrb[0].mxu0
      %5795 = vmatprep.mubr.f32.mxu0 0.0
      %5796 = vmatmul.mubr.f32.gmra.mrb[0].mxu0 %v5638
      %v5797 = vpop.f32.mrb[0].mxu0
      %v5798 = vadd.f32 0.0, %v5797
      %v5799 = vpop.f32.mrb[0].mxu0
      %5800 = vmatprep.mubr.f32.mxu0 0.0
      %5801 = vmatmul.mubr.f32.gmra.mrb[0].mxu0 %v5639
      %v5802 = vpop.f32.mrb[0].mxu0
      %v5803 = vadd.f32 0.0, %v5802
      %v5804 = vpop.f32.mrb[0].mxu0
      %5805 = vmatprep.mubr.f32.mxu0 0.0
      %5806 = vmatmul.mubr.f32.gmra.mrb[0].mxu0 %v5640
      %v5807 = vpop.f32.mrb[0].mxu0
      %v5808 = vadd.f32 0.0, %v5807
      %v5809 = vpop.f32.mrb[0].mxu0
      %5810 = vmatprep.mubr.f32.mxu0 0.0
      %5811 = vmatmul.mubr.f32.gmra.mrb[0].mxu0 %v5641
      %v5812 = vpop.f32.mrb[0].mxu0
      %v5813 = vadd.f32 0.0, %v5812
      %v5814 = vpop.f32.mrb[0].mxu0
      %5815 = vmatprep.mubr.f32.mxu0 0.0
      %5816 = vmatmul.mubr.f32.gmra.mrb[0].mxu0 %v5642
      %v5817 = vpop.f32.mrb[0].mxu0
      %v5818 = vadd.f32 0.0, %v5817
      %v5819 = vpop.f32.mrb[0].mxu0
      %5820 = vmatprep.mubr.f32.mxu0 0.0
      %5821 = vmatmul.mubr.f32.gmra.mrb[0].mxu0 %v5643
      %v5822 = vpop.f32.mrb[0].mxu0
      %v5823 = vadd.f32 0.0, %v5822
      %v5824 = vpop.f32.mrb[0].mxu0
      %5825 = vmatprep.mubr.f32.mxu0 0.0
      %5826 = vmatmul.mubr.f32.gmra.mrb[0].mxu0 %v5644
      %v5827 = vpop.f32.mrb[0].mxu0
      %v5828 = vadd.f32 0.0, %v5827
      %v5829 = vpop.f32.mrb[0].mxu0
      %5830 = vmatprep.mubr.f32.mxu0 0.0
      %5831 = vmatmul.mubr.f32.gmra.mrb[0].mxu0 %v5645
      %v5832 = vpop.f32.mrb[0].mxu0
      %v5833 = vadd.f32 0.0, %v5832
      %v5834 = vpop.f32.mrb[0].mxu0
      %5835 = vmatprep.mubr.f32.mxu0 0.0
      %5836 = vmatmul.mubr.f32.gmra.mrb[0].mxu0 %v5646
      %v5837 = vpop.f32.mrb[0].mxu0
      %v5838 = vadd.f32 0.0, %v5837
      %v5839 = vpop.f32.mrb[0].mxu0
      %5840 = vmatprep.mubr.f32.mxu0 0.0
      %5841 = vmatmul.mubr.f32.gmra.mrb[0].mxu0 %v5647
      %v5842 = vpop.f32.mrb[0].mxu0
      %v5843 = vadd.f32 0.0, %v5842
      %v5844 = vpop.f32.mrb[0].mxu0
      %5845 = vmatprep.mubr.f32.mxu0 0.0
      %5846 = vmatmul.mubr.f32.gmra.mrb[0].mxu0 %v5648
      %v5847 = vpop.f32.mrb[0].mxu0
      %v5848 = vadd.f32 0.0, %v5847
      %v5849 = vpop.f32.mrb[0].mxu0
      %5850 = vmatprep.mubr.f32.mxu0 0.0
      %5851 = vmatmul.mubr.f32.gmra.mrb[0].mxu0 %v5649
      %v5852 = vpop.f32.mrb[0].mxu0
      %v5853 = vadd.f32 0.0, %v5852
      %v5854 = vpop.f32.mrb[0].mxu0
      %5855 = vmatprep.mubr.f32.mxu0 0.0
      %5856 = vmatmul.mubr.f32.gmra.mrb[0].mxu0 %v5650
      %v5857 = vpop.f32.mrb[0].mxu0
      %v5858 = vadd.f32 0.0, %v5857
      %v5859 = vpop.f32.mrb[0].mxu0
      %5860 = vmatprep.mubr.f32.mxu0 0.0
      %5861 = vmatmul.mubr.f32.gmra.mrb[0].mxu0 %v5651
      %v5862 = vpop.f32.mrb[0].mxu0
      %v5863 = vadd.f32 0.0, %v5862
      %v5864 = vpop.f32.mrb[0].mxu0
      %5865 = vmatprep.mubr.f32.mxu0 0.0
      %5866 = vmatmul.mubr.f32.gmra.mrb[0].mxu0 %v5652
      %v5867 = vpop.f32.mrb[0].mxu0
      %v5868 = vadd.f32 0.0, %v5867
      %v5869 = vpop.f32.mrb[0].mxu0
      %5870 = vmatprep.mubr.f32.mxu0 0.0
      %5871 = vmatmul.mubr.f32.gmra.mrb[0].mxu0 %v5653
      %v5872 = vpop.f32.mrb[0].mxu0
      %v5873 = vadd.f32 0.0, %v5872
      %v5874 = vpop.f32.mrb[0].mxu0
      %5875 = vmatprep.mubr.f32.mxu0 0.0
      %5876 = vmatmul.mubr.f32.gmra.mrb[0].mxu0 %v5654
      %v5877 = vpop.f32.mrb[0].mxu0
      %v5878 = vadd.f32 0.0, %v5877
      %v5879 = vpop.f32.mrb[0].mxu0
      %5880 = vmatprep.mubr.f32.mxu0 0.0
      %5881 = vmatmul.mubr.f32.gmra.mrb[0].mxu0 %v5655
      %v5882 = vpop.f32.mrb[0].mxu0
      %v5883 = vadd.f32 0.0, %v5882
      %v5884 = vpop.f32.mrb[0].mxu0
      %5885 = vmatprep.mubr.f32.mxu0 0.0
      %5886 = vmatmul.mubr.f32.gmra.mrb[0].mxu0 %v5656
      %v5887 = vpop.f32.mrb[0].mxu0
      %v5888 = vadd.f32 0.0, %v5887
      %v5889 = vpop.f32.mrb[0].mxu0
      %5890 = vmatprep.mubr.f32.mxu0 0.0
      %5891 = vmatmul.mubr.f32.gmra.mrb[0].mxu0 %v5657
      %v5892 = vpop.f32.mrb[0].mxu0
      %v5893 = vadd.f32 0.0, %v5892
      %v5894 = vpop.f32.mrb[0].mxu0
      %5895 = vmatprep.mubr.f32.mxu0 0.0
      %5896 = vmatmul.mubr.f32.gmra.mrb[0].mxu0 %v5658
      %v5897 = vpop.f32.mrb[0].mxu0
      %v5898 = vadd.f32 0.0, %v5897
      %v5899 = vpop.f32.mrb[0].mxu0
      %5900 = vdwg.mxu0
      %v5901 = vadd.f32 %v5595, %v5743
      %v5902 = vadd.f32 %v5596, %v5748
      %v5903 = vadd.f32 %v5597, %v5753
      %v5904 = vadd.f32 %v5598, %v5758
      %v5905 = vadd.f32 %v5599, %v5763
      %v5906 = vadd.f32 %v5600, %v5768
      %v5907 = vadd.f32 %v5601, %v5773
      %v5908 = vadd.f32 %v5602, %v5778
      %v5909 = vadd.f32 %v5603, %v5783
      %v5910 = vadd.f32 %v5604, %v5788
      %v5911 = vadd.f32 %v5605, %v5793
      %v5912 = vadd.f32 %v5606, %v5798
      %v5913 = vadd.f32 %v5607, %v5803
      %v5914 = vadd.f32 %v5608, %v5808
      %v5915 = vadd.f32 %v5609, %v5813
      %v5916 = vadd.f32 %v5610, %v5818
      %v5917 = vadd.f32 %v5611, %v5823
      %v5918 = vadd.f32 %v5612, %v5828
      %v5919 = vadd.f32 %v5613, %v5833
      %v5920 = vadd.f32 %v5614, %v5838
      %v5921 = vadd.f32 %v5615, %v5843
      %v5922 = vadd.f32 %v5616, %v5848
      %v5923 = vadd.f32 %v5617, %v5853
      %v5924 = vadd.f32 %v5618, %v5858
      %v5925 = vadd.f32 %v5619, %v5863
      %v5926 = vadd.f32 %v5620, %v5868
      %v5927 = vadd.f32 %v5621, %v5873
      %v5928 = vadd.f32 %v5622, %v5878
      %v5929 = vadd.f32 %v5623, %v5883
      %v5930 = vadd.f32 %v5624, %v5888
      %v5931 = vadd.f32 %v5625, %v5893
      %v5932 = vadd.f32 %v5626, %v5898
      %s5933 = scalar_lea.vmem [#allocation2], 64
      %v5934 = vld [vmem:[%s5933 + $0x7] sm:$0xff]
      %v5935 = vld [vmem:[%s5933 + $0xf] sm:$0xff]
      %v5936 = vld [vmem:[%s5933 + $0x27] sm:$0xff]
      %v5937 = vld [vmem:[%s5933 + $0x2f] sm:$0xff]
      %v5938 = vld [vmem:[%s5933 + $0x47] sm:$0xff]
      %v5939 = vld [vmem:[%s5933 + $0x4f] sm:$0xff]
      %v5940 = vld [vmem:[%s5933 + $0x67] sm:$0xff]
      %v5941 = vld [vmem:[%s5933 + $0x6f] sm:$0xff]
      %v5942 = vld [vmem:[%s5933 + $0x87] sm:$0xff]
      %v5943 = vld [vmem:[%s5933 + $0x8f] sm:$0xff]
      %v5944 = vld [vmem:[%s5933 + $0xa7] sm:$0xff]
      %v5945 = vld [vmem:[%s5933 + $0xaf] sm:$0xff]
      %v5946 = vld [vmem:[%s5933 + $0xc7] sm:$0xff]
      %v5947 = vld [vmem:[%s5933 + $0xcf] sm:$0xff]
      %v5948 = vld [vmem:[%s5933 + $0xe7] sm:$0xff]
      %v5949 = vld [vmem:[%s5933 + $0xef] sm:$0xff]
      %v5950 = vld [vmem:[%s5933 + $0x107] sm:$0xff]
      %v5951 = vld [vmem:[%s5933 + $0x10f] sm:$0xff]
      %v5952 = vld [vmem:[%s5933 + $0x127] sm:$0xff]
      %v5953 = vld [vmem:[%s5933 + $0x12f] sm:$0xff]
      %v5954 = vld [vmem:[%s5933 + $0x147] sm:$0xff]
      %v5955 = vld [vmem:[%s5933 + $0x14f] sm:$0xff]
      %v5956 = vld [vmem:[%s5933 + $0x167] sm:$0xff]
      %v5957 = vld [vmem:[%s5933 + $0x16f] sm:$0xff]
      %v5958 = vld [vmem:[%s5933 + $0x187] sm:$0xff]
      %v5959 = vld [vmem:[%s5933 + $0x18f] sm:$0xff]
      %v5960 = vld [vmem:[%s5933 + $0x1a7] sm:$0xff]
      %v5961 = vld [vmem:[%s5933 + $0x1af] sm:$0xff]
      %v5962 = vld [vmem:[%s5933 + $0x1c7] sm:$0xff]
      %v5963 = vld [vmem:[%s5933 + $0x1cf] sm:$0xff]
      %v5964 = vld [vmem:[%s5933 + $0x1e7] sm:$0xff]
      %v5965 = vld [vmem:[%s5933 + $0x1ef] sm:$0xff]
      %s5966 = scalar_lea.vmem %s2, 768
      %v5967 = vld [vmem:[%s5966] sm:$0xff]
      %v5968 = vld [vmem:[%s5966 + $0x8] sm:$0xff]
      %v5969 = vld [vmem:[%s5966 + $0x10] sm:$0xff]
      %v5970 = vld [vmem:[%s5966 + $0x18] sm:$0xff]
      %v5971 = vld [vmem:[%s5966 + $0x20] sm:$0xff]
      %v5972 = vld [vmem:[%s5966 + $0x28] sm:$0xff]
      %v5973 = vld [vmem:[%s5966 + $0x30] sm:$0xff]
      %v5974 = vld [vmem:[%s5966 + $0x38] sm:$0xff]
      %v5975 = vld [vmem:[%s5966 + $0x40] sm:$0xff]
      %v5976 = vld [vmem:[%s5966 + $0x48] sm:$0xff]
      %v5977 = vld [vmem:[%s5966 + $0x50] sm:$0xff]
      %v5978 = vld [vmem:[%s5966 + $0x58] sm:$0xff]
      %v5979 = vld [vmem:[%s5966 + $0x60] sm:$0xff]
      %v5980 = vld [vmem:[%s5966 + $0x68] sm:$0xff]
      %v5981 = vld [vmem:[%s5966 + $0x70] sm:$0xff]
      %v5982 = vld [vmem:[%s5966 + $0x78] sm:$0xff]
      %5983 = vmatprep.subr.mxu0 0.0
      %5984 = vmatpush1.msra.mxu0 %v5967
      %5985 = vmatprep.subr.mxu0 0.0
      %5986 = vmatpush1.msra.mxu0 %v5968
      %5987 = vmatprep.subr.mxu0 0.0
      %5988 = vmatpush1.msra.mxu0 %v5969
      %5989 = vmatprep.subr.mxu0 0.0
      %5990 = vmatpush1.msra.mxu0 %v5970
      %5991 = vmatprep.subr.mxu0 0.0
      %5992 = vmatpush1.msra.mxu0 %v5971
      %5993 = vmatprep.subr.mxu0 0.0
      %5994 = vmatpush1.msra.mxu0 %v5972
      %5995 = vmatprep.subr.mxu0 0.0
      %5996 = vmatpush1.msra.mxu0 %v5973
      %5997 = vmatprep.subr.mxu0 0.0
      %5998 = vmatpush1.msra.mxu0 %v5974
      %5999 = vmatprep.subr.mxu0 0.0
      %6000 = vmatpush1.msra.mxu0 %v5975
      %6001 = vmatprep.subr.mxu0 0.0
      %6002 = vmatpush1.msra.mxu0 %v5976
      %6003 = vmatprep.subr.mxu0 0.0
      %6004 = vmatpush1.msra.mxu0 %v5977
      %6005 = vmatprep.subr.mxu0 0.0
      %6006 = vmatpush1.msra.mxu0 %v5978
      %6007 = vmatprep.subr.mxu0 0.0
      %6008 = vmatpush1.msra.mxu0 %v5979
      %6009 = vmatprep.subr.mxu0 0.0
      %6010 = vmatpush1.msra.mxu0 %v5980
      %6011 = vmatprep.subr.mxu0 0.0
      %6012 = vmatpush1.msra.mxu0 %v5981
      %6013 = vmatprep.subr.mxu0 0.0
      %6014 = vmatpush1.msra.mxu0 %v5982
      %6015 = vmatprep.subr.mxu0 0.0
      %6016 = vmatpush1.msra.mxu0 0.0
      %6017 = vmatprep.subr.mxu0 0.0
      %6018 = vmatpush1.msra.mxu0 0.0
      %6019 = vmatprep.subr.mxu0 0.0
      %6020 = vmatpush1.msra.mxu0 0.0
      %6021 = vmatprep.subr.mxu0 0.0
      %6022 = vmatpush1.msra.mxu0 0.0
      %6023 = vmatprep.subr.mxu0 0.0
      %6024 = vmatpush1.msra.mxu0 0.0
      %6025 = vmatprep.subr.mxu0 0.0
      %6026 = vmatpush1.msra.mxu0 0.0
      %6027 = vmatprep.subr.mxu0 0.0
      %6028 = vmatpush1.msra.mxu0 0.0
      %6029 = vmatprep.subr.mxu0 0.0
      %6030 = vmatpush1.msra.mxu0 0.0
      %6031 = vmatprep.subr.mxu0 0.0
      %6032 = vmatpush1.msra.mxu0 0.0
      %6033 = vmatprep.subr.mxu0 0.0
      %6034 = vmatpush1.msra.mxu0 0.0
      %6035 = vmatprep.subr.mxu0 0.0
      %6036 = vmatpush1.msra.mxu0 0.0
      %6037 = vmatprep.subr.mxu0 0.0
      %6038 = vmatpush1.msra.mxu0 0.0
      %6039 = vmatprep.subr.mxu0 0.0
      %6040 = vmatpush1.msra.mxu0 0.0
      %6041 = vmatprep.subr.mxu0 0.0
      %6042 = vmatpush1.msra.mxu0 0.0
      %6043 = vmatprep.subr.mxu0 0.0
      %6044 = vmatpush1.msra.mxu0 0.0
      %6045 = vmatprep.subr.mxu0 0.0
      %6046 = vmatpush1.msra.mxu0 0.0
      %6047 = vmatprep.mubr.f32.mxu0 0.0
      %6048 = vmatmul.mubr.f32.gmra.mrb[0].mxu0 %v5934
      %v6049 = vpop.f32.mrb[0].mxu0
      %v6050 = vadd.f32 0.0, %v6049
      %v6051 = vpop.f32.mrb[0].mxu0
      %6052 = vmatprep.mubr.f32.mxu0 0.0
      %6053 = vmatmul.mubr.f32.gmra.mrb[0].mxu0 %v5935
      %v6054 = vpop.f32.mrb[0].mxu0
      %v6055 = vadd.f32 0.0, %v6054
      %v6056 = vpop.f32.mrb[0].mxu0
      %6057 = vmatprep.mubr.f32.mxu0 0.0
      %6058 = vmatmul.mubr.f32.gmra.mrb[0].mxu0 %v5936
      %v6059 = vpop.f32.mrb[0].mxu0
      %v6060 = vadd.f32 0.0, %v6059
      %v6061 = vpop.f32.mrb[0].mxu0
      %6062 = vmatprep.mubr.f32.mxu0 0.0
      %6063 = vmatmul.mubr.f32.gmra.mrb[0].mxu0 %v5937
      %v6064 = vpop.f32.mrb[0].mxu0
      %v6065 = vadd.f32 0.0, %v6064
      %v6066 = vpop.f32.mrb[0].mxu0
      %6067 = vmatprep.mubr.f32.mxu0 0.0
      %6068 = vmatmul.mubr.f32.gmra.mrb[0].mxu0 %v5938
      %v6069 = vpop.f32.mrb[0].mxu0
      %v6070 = vadd.f32 0.0, %v6069
      %v6071 = vpop.f32.mrb[0].mxu0
      %6072 = vmatprep.mubr.f32.mxu0 0.0
      %6073 = vmatmul.mubr.f32.gmra.mrb[0].mxu0 %v5939
      %v6074 = vpop.f32.mrb[0].mxu0
      %v6075 = vadd.f32 0.0, %v6074
      %v6076 = vpop.f32.mrb[0].mxu0
      %6077 = vmatprep.mubr.f32.mxu0 0.0
      %6078 = vmatmul.mubr.f32.gmra.mrb[0].mxu0 %v5940
      %v6079 = vpop.f32.mrb[0].mxu0
      %v6080 = vadd.f32 0.0, %v6079
      %v6081 = vpop.f32.mrb[0].mxu0
      %6082 = vmatprep.mubr.f32.mxu0 0.0
      %6083 = vmatmul.mubr.f32.gmra.mrb[0].mxu0 %v5941
      %v6084 = vpop.f32.mrb[0].mxu0
      %v6085 = vadd.f32 0.0, %v6084
      %v6086 = vpop.f32.mrb[0].mxu0
      %6087 = vmatprep.mubr.f32.mxu0 0.0
      %6088 = vmatmul.mubr.f32.gmra.mrb[0].mxu0 %v5942
      %v6089 = vpop.f32.mrb[0].mxu0
      %v6090 = vadd.f32 0.0, %v6089
      %v6091 = vpop.f32.mrb[0].mxu0
      %6092 = vmatprep.mubr.f32.mxu0 0.0
      %6093 = vmatmul.mubr.f32.gmra.mrb[0].mxu0 %v5943
      %v6094 = vpop.f32.mrb[0].mxu0
      %v6095 = vadd.f32 0.0, %v6094
      %v6096 = vpop.f32.mrb[0].mxu0
      %6097 = vmatprep.mubr.f32.mxu0 0.0
      %6098 = vmatmul.mubr.f32.gmra.mrb[0].mxu0 %v5944
      %v6099 = vpop.f32.mrb[0].mxu0
      %v6100 = vadd.f32 0.0, %v6099
      %v6101 = vpop.f32.mrb[0].mxu0
      %6102 = vmatprep.mubr.f32.mxu0 0.0
      %6103 = vmatmul.mubr.f32.gmra.mrb[0].mxu0 %v5945
      %v6104 = vpop.f32.mrb[0].mxu0
      %v6105 = vadd.f32 0.0, %v6104
      %v6106 = vpop.f32.mrb[0].mxu0
      %6107 = vmatprep.mubr.f32.mxu0 0.0
      %6108 = vmatmul.mubr.f32.gmra.mrb[0].mxu0 %v5946
      %v6109 = vpop.f32.mrb[0].mxu0
      %v6110 = vadd.f32 0.0, %v6109
      %v6111 = vpop.f32.mrb[0].mxu0
      %6112 = vmatprep.mubr.f32.mxu0 0.0
      %6113 = vmatmul.mubr.f32.gmra.mrb[0].mxu0 %v5947
      %v6114 = vpop.f32.mrb[0].mxu0
      %v6115 = vadd.f32 0.0, %v6114
      %v6116 = vpop.f32.mrb[0].mxu0
      %6117 = vmatprep.mubr.f32.mxu0 0.0
      %6118 = vmatmul.mubr.f32.gmra.mrb[0].mxu0 %v5948
      %v6119 = vpop.f32.mrb[0].mxu0
      %v6120 = vadd.f32 0.0, %v6119
      %v6121 = vpop.f32.mrb[0].mxu0
      %6122 = vmatprep.mubr.f32.mxu0 0.0
      %6123 = vmatmul.mubr.f32.gmra.mrb[0].mxu0 %v5949
      %v6124 = vpop.f32.mrb[0].mxu0
      %v6125 = vadd.f32 0.0, %v6124
      %v6126 = vpop.f32.mrb[0].mxu0
      %6127 = vmatprep.mubr.f32.mxu0 0.0
      %6128 = vmatmul.mubr.f32.gmra.mrb[0].mxu0 %v5950
      %v6129 = vpop.f32.mrb[0].mxu0
      %v6130 = vadd.f32 0.0, %v6129
      %v6131 = vpop.f32.mrb[0].mxu0
      %6132 = vmatprep.mubr.f32.mxu0 0.0
      %6133 = vmatmul.mubr.f32.gmra.mrb[0].mxu0 %v5951
      %v6134 = vpop.f32.mrb[0].mxu0
      %v6135 = vadd.f32 0.0, %v6134
      %v6136 = vpop.f32.mrb[0].mxu0
      %6137 = vmatprep.mubr.f32.mxu0 0.0
      %6138 = vmatmul.mubr.f32.gmra.mrb[0].mxu0 %v5952
      %v6139 = vpop.f32.mrb[0].mxu0
      %v6140 = vadd.f32 0.0, %v6139
      %v6141 = vpop.f32.mrb[0].mxu0
      %6142 = vmatprep.mubr.f32.mxu0 0.0
      %6143 = vmatmul.mubr.f32.gmra.mrb[0].mxu0 %v5953
      %v6144 = vpop.f32.mrb[0].mxu0
      %v6145 = vadd.f32 0.0, %v6144
      %v6146 = vpop.f32.mrb[0].mxu0
      %6147 = vmatprep.mubr.f32.mxu0 0.0
      %6148 = vmatmul.mubr.f32.gmra.mrb[0].mxu0 %v5954
      %v6149 = vpop.f32.mrb[0].mxu0
      %v6150 = vadd.f32 0.0, %v6149
      %v6151 = vpop.f32.mrb[0].mxu0
      %6152 = vmatprep.mubr.f32.mxu0 0.0
      %6153 = vmatmul.mubr.f32.gmra.mrb[0].mxu0 %v5955
      %v6154 = vpop.f32.mrb[0].mxu0
      %v6155 = vadd.f32 0.0, %v6154
      %v6156 = vpop.f32.mrb[0].mxu0
      %6157 = vmatprep.mubr.f32.mxu0 0.0
      %6158 = vmatmul.mubr.f32.gmra.mrb[0].mxu0 %v5956
      %v6159 = vpop.f32.mrb[0].mxu0
      %v6160 = vadd.f32 0.0, %v6159
      %v6161 = vpop.f32.mrb[0].mxu0
      %6162 = vmatprep.mubr.f32.mxu0 0.0
      %6163 = vmatmul.mubr.f32.gmra.mrb[0].mxu0 %v5957
      %v6164 = vpop.f32.mrb[0].mxu0
      %v6165 = vadd.f32 0.0, %v6164
      %v6166 = vpop.f32.mrb[0].mxu0
      %6167 = vmatprep.mubr.f32.mxu0 0.0
      %6168 = vmatmul.mubr.f32.gmra.mrb[0].mxu0 %v5958
      %v6169 = vpop.f32.mrb[0].mxu0
      %v6170 = vadd.f32 0.0, %v6169
      %v6171 = vpop.f32.mrb[0].mxu0
      %6172 = vmatprep.mubr.f32.mxu0 0.0
      %6173 = vmatmul.mubr.f32.gmra.mrb[0].mxu0 %v5959
      %v6174 = vpop.f32.mrb[0].mxu0
      %v6175 = vadd.f32 0.0, %v6174
      %v6176 = vpop.f32.mrb[0].mxu0
      %6177 = vmatprep.mubr.f32.mxu0 0.0
      %6178 = vmatmul.mubr.f32.gmra.mrb[0].mxu0 %v5960
      %v6179 = vpop.f32.mrb[0].mxu0
      %v6180 = vadd.f32 0.0, %v6179
      %v6181 = vpop.f32.mrb[0].mxu0
      %6182 = vmatprep.mubr.f32.mxu0 0.0
      %6183 = vmatmul.mubr.f32.gmra.mrb[0].mxu0 %v5961
      %v6184 = vpop.f32.mrb[0].mxu0
      %v6185 = vadd.f32 0.0, %v6184
      %v6186 = vpop.f32.mrb[0].mxu0
      %6187 = vmatprep.mubr.f32.mxu0 0.0
      %6188 = vmatmul.mubr.f32.gmra.mrb[0].mxu0 %v5962
      %v6189 = vpop.f32.mrb[0].mxu0
      %v6190 = vadd.f32 0.0, %v6189
      %v6191 = vpop.f32.mrb[0].mxu0
      %6192 = vmatprep.mubr.f32.mxu0 0.0
      %6193 = vmatmul.mubr.f32.gmra.mrb[0].mxu0 %v5963
      %v6194 = vpop.f32.mrb[0].mxu0
      %v6195 = vadd.f32 0.0, %v6194
      %v6196 = vpop.f32.mrb[0].mxu0
      %6197 = vmatprep.mubr.f32.mxu0 0.0
      %6198 = vmatmul.mubr.f32.gmra.mrb[0].mxu0 %v5964
      %v6199 = vpop.f32.mrb[0].mxu0
      %v6200 = vadd.f32 0.0, %v6199
      %v6201 = vpop.f32.mrb[0].mxu0
      %6202 = vmatprep.mubr.f32.mxu0 0.0
      %6203 = vmatmul.mubr.f32.gmra.mrb[0].mxu0 %v5965
      %v6204 = vpop.f32.mrb[0].mxu0
      %v6205 = vadd.f32 0.0, %v6204
      %v6206 = vpop.f32.mrb[0].mxu0
      %6207 = vdwg.mxu0
      %v6208 = vadd.f32 %v5901, %v6050
      %v6209 = vadd.f32 %v5902, %v6055
      %v6210 = vadd.f32 %v5903, %v6060
      %v6211 = vadd.f32 %v5904, %v6065
      %v6212 = vadd.f32 %v5905, %v6070
      %v6213 = vadd.f32 %v5906, %v6075
      %v6214 = vadd.f32 %v5907, %v6080
      %v6215 = vadd.f32 %v5908, %v6085
      %v6216 = vadd.f32 %v5909, %v6090
      %v6217 = vadd.f32 %v5910, %v6095
      %v6218 = vadd.f32 %v5911, %v6100
      %v6219 = vadd.f32 %v5912, %v6105
      %v6220 = vadd.f32 %v5913, %v6110
      %v6221 = vadd.f32 %v5914, %v6115
      %v6222 = vadd.f32 %v5915, %v6120
      %v6223 = vadd.f32 %v5916, %v6125
      %v6224 = vadd.f32 %v5917, %v6130
      %v6225 = vadd.f32 %v5918, %v6135
      %v6226 = vadd.f32 %v5919, %v6140
      %v6227 = vadd.f32 %v5920, %v6145
      %v6228 = vadd.f32 %v5921, %v6150
      %v6229 = vadd.f32 %v5922, %v6155
      %v6230 = vadd.f32 %v5923, %v6160
      %v6231 = vadd.f32 %v5924, %v6165
      %v6232 = vadd.f32 %v5925, %v6170
      %v6233 = vadd.f32 %v5926, %v6175
      %v6234 = vadd.f32 %v5927, %v6180
      %v6235 = vadd.f32 %v5928, %v6185
      %v6236 = vadd.f32 %v5929, %v6190
      %v6237 = vadd.f32 %v5930, %v6195
      %v6238 = vadd.f32 %v5931, %v6200
      %v6239 = vadd.f32 %v5932, %v6205
      %v6240 = vld [vmem:[%s5933 + $0x8] sm:$0xff]
      %v6241 = vld [vmem:[%s5933 + $0x10] sm:$0xff]
      %v6242 = vld [vmem:[%s5933 + $0x28] sm:$0xff]
      %v6243 = vld [vmem:[%s5933 + $0x30] sm:$0xff]
      %v6244 = vld [vmem:[%s5933 + $0x48] sm:$0xff]
      %v6245 = vld [vmem:[%s5933 + $0x50] sm:$0xff]
      %v6246 = vld [vmem:[%s5933 + $0x68] sm:$0xff]
      %v6247 = vld [vmem:[%s5933 + $0x70] sm:$0xff]
      %v6248 = vld [vmem:[%s5933 + $0x88] sm:$0xff]
      %v6249 = vld [vmem:[%s5933 + $0x90] sm:$0xff]
      %v6250 = vld [vmem:[%s5933 + $0xa8] sm:$0xff]
      %v6251 = vld [vmem:[%s5933 + $0xb0] sm:$0xff]
      %v6252 = vld [vmem:[%s5933 + $0xc8] sm:$0xff]
      %v6253 = vld [vmem:[%s5933 + $0xd0] sm:$0xff]
      %v6254 = vld [vmem:[%s5933 + $0xe8] sm:$0xff]
      %v6255 = vld [vmem:[%s5933 + $0xf0] sm:$0xff]
      %v6256 = vld [vmem:[%s5933 + $0x108] sm:$0xff]
      %v6257 = vld [vmem:[%s5933 + $0x110] sm:$0xff]
      %v6258 = vld [vmem:[%s5933 + $0x128] sm:$0xff]
      %v6259 = vld [vmem:[%s5933 + $0x130] sm:$0xff]
      %v6260 = vld [vmem:[%s5933 + $0x148] sm:$0xff]
      %v6261 = vld [vmem:[%s5933 + $0x150] sm:$0xff]
      %v6262 = vld [vmem:[%s5933 + $0x168] sm:$0xff]
      %v6263 = vld [vmem:[%s5933 + $0x170] sm:$0xff]
      %v6264 = vld [vmem:[%s5933 + $0x188] sm:$0xff]
      %v6265 = vld [vmem:[%s5933 + $0x190] sm:$0xff]
      %v6266 = vld [vmem:[%s5933 + $0x1a8] sm:$0xff]
      %v6267 = vld [vmem:[%s5933 + $0x1b0] sm:$0xff]
      %v6268 = vld [vmem:[%s5933 + $0x1c8] sm:$0xff]
      %v6269 = vld [vmem:[%s5933 + $0x1d0] sm:$0xff]
      %v6270 = vld [vmem:[%s5933 + $0x1e8] sm:$0xff]
      %v6271 = vld [vmem:[%s5933 + $0x1f0] sm:$0xff]
      %s6272 = scalar_lea.vmem %s2, 896
      %v6273 = vld [vmem:[%s6272] sm:$0xff]
      %v6274 = vld [vmem:[%s6272 + $0x8] sm:$0xff]
      %v6275 = vld [vmem:[%s6272 + $0x10] sm:$0xff]
      %v6276 = vld [vmem:[%s6272 + $0x18] sm:$0xff]
      %v6277 = vld [vmem:[%s6272 + $0x20] sm:$0xff]
      %v6278 = vld [vmem:[%s6272 + $0x28] sm:$0xff]
      %v6279 = vld [vmem:[%s6272 + $0x30] sm:$0xff]
      %v6280 = vld [vmem:[%s6272 + $0x38] sm:$0xff]
      %v6281 = vld [vmem:[%s6272 + $0x40] sm:$0xff]
      %v6282 = vld [vmem:[%s6272 + $0x48] sm:$0xff]
      %v6283 = vld [vmem:[%s6272 + $0x50] sm:$0xff]
      %v6284 = vld [vmem:[%s6272 + $0x58] sm:$0xff]
      %v6285 = vld [vmem:[%s6272 + $0x60] sm:$0xff]
      %v6286 = vld [vmem:[%s6272 + $0x68] sm:$0xff]
      %v6287 = vld [vmem:[%s6272 + $0x70] sm:$0xff]
      %v6288 = vld [vmem:[%s6272 + $0x78] sm:$0xff]
      %6289 = vmatprep.subr.mxu0 0.0
      %6290 = vmatpush1.msra.mxu0 %v6273
      %6291 = vmatprep.subr.mxu0 0.0
      %6292 = vmatpush1.msra.mxu0 %v6274
      %6293 = vmatprep.subr.mxu0 0.0
      %6294 = vmatpush1.msra.mxu0 %v6275
      %6295 = vmatprep.subr.mxu0 0.0
      %6296 = vmatpush1.msra.mxu0 %v6276
      %6297 = vmatprep.subr.mxu0 0.0
      %6298 = vmatpush1.msra.mxu0 %v6277
      %6299 = vmatprep.subr.mxu0 0.0
      %6300 = vmatpush1.msra.mxu0 %v6278
      %6301 = vmatprep.subr.mxu0 0.0
      %6302 = vmatpush1.msra.mxu0 %v6279
      %6303 = vmatprep.subr.mxu0 0.0
      %6304 = vmatpush1.msra.mxu0 %v6280
      %6305 = vmatprep.subr.mxu0 0.0
      %6306 = vmatpush1.msra.mxu0 %v6281
      %6307 = vmatprep.subr.mxu0 0.0
      %6308 = vmatpush1.msra.mxu0 %v6282
      %6309 = vmatprep.subr.mxu0 0.0
      %6310 = vmatpush1.msra.mxu0 %v6283
      %6311 = vmatprep.subr.mxu0 0.0
      %6312 = vmatpush1.msra.mxu0 %v6284
      %6313 = vmatprep.subr.mxu0 0.0
      %6314 = vmatpush1.msra.mxu0 %v6285
      %6315 = vmatprep.subr.mxu0 0.0
      %6316 = vmatpush1.msra.mxu0 %v6286
      %6317 = vmatprep.subr.mxu0 0.0
      %6318 = vmatpush1.msra.mxu0 %v6287
      %6319 = vmatprep.subr.mxu0 0.0
      %6320 = vmatpush1.msra.mxu0 %v6288
      %6321 = vmatprep.subr.mxu0 0.0
      %6322 = vmatpush1.msra.mxu0 0.0
      %6323 = vmatprep.subr.mxu0 0.0
      %6324 = vmatpush1.msra.mxu0 0.0
      %6325 = vmatprep.subr.mxu0 0.0
      %6326 = vmatpush1.msra.mxu0 0.0
      %6327 = vmatprep.subr.mxu0 0.0
      %6328 = vmatpush1.msra.mxu0 0.0
      %6329 = vmatprep.subr.mxu0 0.0
      %6330 = vmatpush1.msra.mxu0 0.0
      %6331 = vmatprep.subr.mxu0 0.0
      %6332 = vmatpush1.msra.mxu0 0.0
      %6333 = vmatprep.subr.mxu0 0.0
      %6334 = vmatpush1.msra.mxu0 0.0
      %6335 = vmatprep.subr.mxu0 0.0
      %6336 = vmatpush1.msra.mxu0 0.0
      %6337 = vmatprep.subr.mxu0 0.0
      %6338 = vmatpush1.msra.mxu0 0.0
      %6339 = vmatprep.subr.mxu0 0.0
      %6340 = vmatpush1.msra.mxu0 0.0
      %6341 = vmatprep.subr.mxu0 0.0
      %6342 = vmatpush1.msra.mxu0 0.0
      %6343 = vmatprep.subr.mxu0 0.0
      %6344 = vmatpush1.msra.mxu0 0.0
      %6345 = vmatprep.subr.mxu0 0.0
      %6346 = vmatpush1.msra.mxu0 0.0
      %6347 = vmatprep.subr.mxu0 0.0
      %6348 = vmatpush1.msra.mxu0 0.0
      %6349 = vmatprep.subr.mxu0 0.0
      %6350 = vmatpush1.msra.mxu0 0.0
      %6351 = vmatprep.subr.mxu0 0.0
      %6352 = vmatpush1.msra.mxu0 0.0
      %6353 = vmatprep.mubr.f32.mxu0 0.0
      %6354 = vmatmul.mubr.f32.gmra.mrb[0].mxu0 %v6240
      %v6355 = vpop.f32.mrb[0].mxu0
      %v6356 = vadd.f32 0.0, %v6355
      %v6357 = vpop.f32.mrb[0].mxu0
      %6358 = vmatprep.mubr.f32.mxu0 0.0
      %6359 = vmatmul.mubr.f32.gmra.mrb[0].mxu0 %v6241
      %v6360 = vpop.f32.mrb[0].mxu0
      %v6361 = vadd.f32 0.0, %v6360
      %v6362 = vpop.f32.mrb[0].mxu0
      %6363 = vmatprep.mubr.f32.mxu0 0.0
      %6364 = vmatmul.mubr.f32.gmra.mrb[0].mxu0 %v6242
      %v6365 = vpop.f32.mrb[0].mxu0
      %v6366 = vadd.f32 0.0, %v6365
      %v6367 = vpop.f32.mrb[0].mxu0
      %6368 = vmatprep.mubr.f32.mxu0 0.0
      %6369 = vmatmul.mubr.f32.gmra.mrb[0].mxu0 %v6243
      %v6370 = vpop.f32.mrb[0].mxu0
      %v6371 = vadd.f32 0.0, %v6370
      %v6372 = vpop.f32.mrb[0].mxu0
      %6373 = vmatprep.mubr.f32.mxu0 0.0
      %6374 = vmatmul.mubr.f32.gmra.mrb[0].mxu0 %v6244
      %v6375 = vpop.f32.mrb[0].mxu0
      %v6376 = vadd.f32 0.0, %v6375
      %v6377 = vpop.f32.mrb[0].mxu0
      %6378 = vmatprep.mubr.f32.mxu0 0.0
      %6379 = vmatmul.mubr.f32.gmra.mrb[0].mxu0 %v6245
      %v6380 = vpop.f32.mrb[0].mxu0
      %v6381 = vadd.f32 0.0, %v6380
      %v6382 = vpop.f32.mrb[0].mxu0
      %6383 = vmatprep.mubr.f32.mxu0 0.0
      %6384 = vmatmul.mubr.f32.gmra.mrb[0].mxu0 %v6246
      %v6385 = vpop.f32.mrb[0].mxu0
      %v6386 = vadd.f32 0.0, %v6385
      %v6387 = vpop.f32.mrb[0].mxu0
      %6388 = vmatprep.mubr.f32.mxu0 0.0
      %6389 = vmatmul.mubr.f32.gmra.mrb[0].mxu0 %v6247
      %v6390 = vpop.f32.mrb[0].mxu0
      %v6391 = vadd.f32 0.0, %v6390
      %v6392 = vpop.f32.mrb[0].mxu0
      %6393 = vmatprep.mubr.f32.mxu0 0.0
      %6394 = vmatmul.mubr.f32.gmra.mrb[0].mxu0 %v6248
      %v6395 = vpop.f32.mrb[0].mxu0
      %v6396 = vadd.f32 0.0, %v6395
      %v6397 = vpop.f32.mrb[0].mxu0
      %6398 = vmatprep.mubr.f32.mxu0 0.0
      %6399 = vmatmul.mubr.f32.gmra.mrb[0].mxu0 %v6249
      %v6400 = vpop.f32.mrb[0].mxu0
      %v6401 = vadd.f32 0.0, %v6400
      %v6402 = vpop.f32.mrb[0].mxu0
      %6403 = vmatprep.mubr.f32.mxu0 0.0
      %6404 = vmatmul.mubr.f32.gmra.mrb[0].mxu0 %v6250
      %v6405 = vpop.f32.mrb[0].mxu0
      %v6406 = vadd.f32 0.0, %v6405
      %v6407 = vpop.f32.mrb[0].mxu0
      %6408 = vmatprep.mubr.f32.mxu0 0.0
      %6409 = vmatmul.mubr.f32.gmra.mrb[0].mxu0 %v6251
      %v6410 = vpop.f32.mrb[0].mxu0
      %v6411 = vadd.f32 0.0, %v6410
      %v6412 = vpop.f32.mrb[0].mxu0
      %6413 = vmatprep.mubr.f32.mxu0 0.0
      %6414 = vmatmul.mubr.f32.gmra.mrb[0].mxu0 %v6252
      %v6415 = vpop.f32.mrb[0].mxu0
      %v6416 = vadd.f32 0.0, %v6415
      %v6417 = vpop.f32.mrb[0].mxu0
      %6418 = vmatprep.mubr.f32.mxu0 0.0
      %6419 = vmatmul.mubr.f32.gmra.mrb[0].mxu0 %v6253
      %v6420 = vpop.f32.mrb[0].mxu0
      %v6421 = vadd.f32 0.0, %v6420
      %v6422 = vpop.f32.mrb[0].mxu0
      %6423 = vmatprep.mubr.f32.mxu0 0.0
      %6424 = vmatmul.mubr.f32.gmra.mrb[0].mxu0 %v6254
      %v6425 = vpop.f32.mrb[0].mxu0
      %v6426 = vadd.f32 0.0, %v6425
      %v6427 = vpop.f32.mrb[0].mxu0
      %6428 = vmatprep.mubr.f32.mxu0 0.0
      %6429 = vmatmul.mubr.f32.gmra.mrb[0].mxu0 %v6255
      %v6430 = vpop.f32.mrb[0].mxu0
      %v6431 = vadd.f32 0.0, %v6430
      %v6432 = vpop.f32.mrb[0].mxu0
      %6433 = vmatprep.mubr.f32.mxu0 0.0
      %6434 = vmatmul.mubr.f32.gmra.mrb[0].mxu0 %v6256
      %v6435 = vpop.f32.mrb[0].mxu0
      %v6436 = vadd.f32 0.0, %v6435
      %v6437 = vpop.f32.mrb[0].mxu0
      %6438 = vmatprep.mubr.f32.mxu0 0.0
      %6439 = vmatmul.mubr.f32.gmra.mrb[0].mxu0 %v6257
      %v6440 = vpop.f32.mrb[0].mxu0
      %v6441 = vadd.f32 0.0, %v6440
      %v6442 = vpop.f32.mrb[0].mxu0
      %6443 = vmatprep.mubr.f32.mxu0 0.0
      %6444 = vmatmul.mubr.f32.gmra.mrb[0].mxu0 %v6258
      %v6445 = vpop.f32.mrb[0].mxu0
      %v6446 = vadd.f32 0.0, %v6445
      %v6447 = vpop.f32.mrb[0].mxu0
      %6448 = vmatprep.mubr.f32.mxu0 0.0
      %6449 = vmatmul.mubr.f32.gmra.mrb[0].mxu0 %v6259
      %v6450 = vpop.f32.mrb[0].mxu0
      %v6451 = vadd.f32 0.0, %v6450
      %v6452 = vpop.f32.mrb[0].mxu0
      %6453 = vmatprep.mubr.f32.mxu0 0.0
      %6454 = vmatmul.mubr.f32.gmra.mrb[0].mxu0 %v6260
      %v6455 = vpop.f32.mrb[0].mxu0
      %v6456 = vadd.f32 0.0, %v6455
      %v6457 = vpop.f32.mrb[0].mxu0
      %6458 = vmatprep.mubr.f32.mxu0 0.0
      %6459 = vmatmul.mubr.f32.gmra.mrb[0].mxu0 %v6261
      %v6460 = vpop.f32.mrb[0].mxu0
      %v6461 = vadd.f32 0.0, %v6460
      %v6462 = vpop.f32.mrb[0].mxu0
      %6463 = vmatprep.mubr.f32.mxu0 0.0
      %6464 = vmatmul.mubr.f32.gmra.mrb[0].mxu0 %v6262
      %v6465 = vpop.f32.mrb[0].mxu0
      %v6466 = vadd.f32 0.0, %v6465
      %v6467 = vpop.f32.mrb[0].mxu0
      %6468 = vmatprep.mubr.f32.mxu0 0.0
      %6469 = vmatmul.mubr.f32.gmra.mrb[0].mxu0 %v6263
      %v6470 = vpop.f32.mrb[0].mxu0
      %v6471 = vadd.f32 0.0, %v6470
      %v6472 = vpop.f32.mrb[0].mxu0
      %6473 = vmatprep.mubr.f32.mxu0 0.0
      %6474 = vmatmul.mubr.f32.gmra.mrb[0].mxu0 %v6264
      %v6475 = vpop.f32.mrb[0].mxu0
      %v6476 = vadd.f32 0.0, %v6475
      %v6477 = vpop.f32.mrb[0].mxu0
      %6478 = vmatprep.mubr.f32.mxu0 0.0
      %6479 = vmatmul.mubr.f32.gmra.mrb[0].mxu0 %v6265
      %v6480 = vpop.f32.mrb[0].mxu0
      %v6481 = vadd.f32 0.0, %v6480
      %v6482 = vpop.f32.mrb[0].mxu0
      %6483 = vmatprep.mubr.f32.mxu0 0.0
      %6484 = vmatmul.mubr.f32.gmra.mrb[0].mxu0 %v6266
      %v6485 = vpop.f32.mrb[0].mxu0
      %v6486 = vadd.f32 0.0, %v6485
      %v6487 = vpop.f32.mrb[0].mxu0
      %6488 = vmatprep.mubr.f32.mxu0 0.0
      %6489 = vmatmul.mubr.f32.gmra.mrb[0].mxu0 %v6267
      %v6490 = vpop.f32.mrb[0].mxu0
      %v6491 = vadd.f32 0.0, %v6490
      %v6492 = vpop.f32.mrb[0].mxu0
      %6493 = vmatprep.mubr.f32.mxu0 0.0
      %6494 = vmatmul.mubr.f32.gmra.mrb[0].mxu0 %v6268
      %v6495 = vpop.f32.mrb[0].mxu0
      %v6496 = vadd.f32 0.0, %v6495
      %v6497 = vpop.f32.mrb[0].mxu0
      %6498 = vmatprep.mubr.f32.mxu0 0.0
      %6499 = vmatmul.mubr.f32.gmra.mrb[0].mxu0 %v6269
      %v6500 = vpop.f32.mrb[0].mxu0
      %v6501 = vadd.f32 0.0, %v6500
      %v6502 = vpop.f32.mrb[0].mxu0
      %6503 = vmatprep.mubr.f32.mxu0 0.0
      %6504 = vmatmul.mubr.f32.gmra.mrb[0].mxu0 %v6270
      %v6505 = vpop.f32.mrb[0].mxu0
      %v6506 = vadd.f32 0.0, %v6505
      %v6507 = vpop.f32.mrb[0].mxu0
      %6508 = vmatprep.mubr.f32.mxu0 0.0
      %6509 = vmatmul.mubr.f32.gmra.mrb[0].mxu0 %v6271
      %v6510 = vpop.f32.mrb[0].mxu0
      %v6511 = vadd.f32 0.0, %v6510
      %v6512 = vpop.f32.mrb[0].mxu0
      %6513 = vdwg.mxu0
      %v6514 = vadd.f32 %v6208, %v6356
      %v6515 = vadd.f32 %v6209, %v6361
      %v6516 = vadd.f32 %v6210, %v6366
      %v6517 = vadd.f32 %v6211, %v6371
      %v6518 = vadd.f32 %v6212, %v6376
      %v6519 = vadd.f32 %v6213, %v6381
      %v6520 = vadd.f32 %v6214, %v6386
      %v6521 = vadd.f32 %v6215, %v6391
      %v6522 = vadd.f32 %v6216, %v6396
      %v6523 = vadd.f32 %v6217, %v6401
      %v6524 = vadd.f32 %v6218, %v6406
      %v6525 = vadd.f32 %v6219, %v6411
      %v6526 = vadd.f32 %v6220, %v6416
      %v6527 = vadd.f32 %v6221, %v6421
      %v6528 = vadd.f32 %v6222, %v6426
      %v6529 = vadd.f32 %v6223, %v6431
      %v6530 = vadd.f32 %v6224, %v6436
      %v6531 = vadd.f32 %v6225, %v6441
      %v6532 = vadd.f32 %v6226, %v6446
      %v6533 = vadd.f32 %v6227, %v6451
      %v6534 = vadd.f32 %v6228, %v6456
      %v6535 = vadd.f32 %v6229, %v6461
      %v6536 = vadd.f32 %v6230, %v6466
      %v6537 = vadd.f32 %v6231, %v6471
      %v6538 = vadd.f32 %v6232, %v6476
      %v6539 = vadd.f32 %v6233, %v6481
      %v6540 = vadd.f32 %v6234, %v6486
      %v6541 = vadd.f32 %v6235, %v6491
      %v6542 = vadd.f32 %v6236, %v6496
      %v6543 = vadd.f32 %v6237, %v6501
      %v6544 = vadd.f32 %v6238, %v6506
      %v6545 = vadd.f32 %v6239, %v6511
      %v6546 = vld [vmem:[%s5933 + $0x9] sm:$0xff]
      %v6547 = vld [vmem:[%s5933 + $0x11] sm:$0xff]
      %v6548 = vld [vmem:[%s5933 + $0x29] sm:$0xff]
      %v6549 = vld [vmem:[%s5933 + $0x31] sm:$0xff]
      %v6550 = vld [vmem:[%s5933 + $0x49] sm:$0xff]
      %v6551 = vld [vmem:[%s5933 + $0x51] sm:$0xff]
      %v6552 = vld [vmem:[%s5933 + $0x69] sm:$0xff]
      %v6553 = vld [vmem:[%s5933 + $0x71] sm:$0xff]
      %v6554 = vld [vmem:[%s5933 + $0x89] sm:$0xff]
      %v6555 = vld [vmem:[%s5933 + $0x91] sm:$0xff]
      %v6556 = vld [vmem:[%s5933 + $0xa9] sm:$0xff]
      %v6557 = vld [vmem:[%s5933 + $0xb1] sm:$0xff]
      %v6558 = vld [vmem:[%s5933 + $0xc9] sm:$0xff]
      %v6559 = vld [vmem:[%s5933 + $0xd1] sm:$0xff]
      %v6560 = vld [vmem:[%s5933 + $0xe9] sm:$0xff]
      %v6561 = vld [vmem:[%s5933 + $0xf1] sm:$0xff]
      %v6562 = vld [vmem:[%s5933 + $0x109] sm:$0xff]
      %v6563 = vld [vmem:[%s5933 + $0x111] sm:$0xff]
      %v6564 = vld [vmem:[%s5933 + $0x129] sm:$0xff]
      %v6565 = vld [vmem:[%s5933 + $0x131] sm:$0xff]
      %v6566 = vld [vmem:[%s5933 + $0x149] sm:$0xff]
      %v6567 = vld [vmem:[%s5933 + $0x151] sm:$0xff]
      %v6568 = vld [vmem:[%s5933 + $0x169] sm:$0xff]
      %v6569 = vld [vmem:[%s5933 + $0x171] sm:$0xff]
      %v6570 = vld [vmem:[%s5933 + $0x189] sm:$0xff]
      %v6571 = vld [vmem:[%s5933 + $0x191] sm:$0xff]
      %v6572 = vld [vmem:[%s5933 + $0x1a9] sm:$0xff]
      %v6573 = vld [vmem:[%s5933 + $0x1b1] sm:$0xff]
      %v6574 = vld [vmem:[%s5933 + $0x1c9] sm:$0xff]
      %v6575 = vld [vmem:[%s5933 + $0x1d1] sm:$0xff]
      %v6576 = vld [vmem:[%s5933 + $0x1e9] sm:$0xff]
      %v6577 = vld [vmem:[%s5933 + $0x1f1] sm:$0xff]
      %s6578 = scalar_lea.vmem %s2, 1024
      %v6579 = vld [vmem:[%s6578] sm:$0xff]
      %v6580 = vld [vmem:[%s6578 + $0x8] sm:$0xff]
      %v6581 = vld [vmem:[%s6578 + $0x10] sm:$0xff]
      %v6582 = vld [vmem:[%s6578 + $0x18] sm:$0xff]
      %v6583 = vld [vmem:[%s6578 + $0x20] sm:$0xff]
      %v6584 = vld [vmem:[%s6578 + $0x28] sm:$0xff]
      %v6585 = vld [vmem:[%s6578 + $0x30] sm:$0xff]
      %v6586 = vld [vmem:[%s6578 + $0x38] sm:$0xff]
      %v6587 = vld [vmem:[%s6578 + $0x40] sm:$0xff]
      %v6588 = vld [vmem:[%s6578 + $0x48] sm:$0xff]
      %v6589 = vld [vmem:[%s6578 + $0x50] sm:$0xff]
      %v6590 = vld [vmem:[%s6578 + $0x58] sm:$0xff]
      %v6591 = vld [vmem:[%s6578 + $0x60] sm:$0xff]
      %v6592 = vld [vmem:[%s6578 + $0x68] sm:$0xff]
      %v6593 = vld [vmem:[%s6578 + $0x70] sm:$0xff]
      %v6594 = vld [vmem:[%s6578 + $0x78] sm:$0xff]
      %6595 = vmatprep.subr.mxu0 0.0
      %6596 = vmatpush1.msra.mxu0 %v6579
      %6597 = vmatprep.subr.mxu0 0.0
      %6598 = vmatpush1.msra.mxu0 %v6580
      %6599 = vmatprep.subr.mxu0 0.0
      %6600 = vmatpush1.msra.mxu0 %v6581
      %6601 = vmatprep.subr.mxu0 0.0
      %6602 = vmatpush1.msra.mxu0 %v6582
      %6603 = vmatprep.subr.mxu0 0.0
      %6604 = vmatpush1.msra.mxu0 %v6583
      %6605 = vmatprep.subr.mxu0 0.0
      %6606 = vmatpush1.msra.mxu0 %v6584
      %6607 = vmatprep.subr.mxu0 0.0
      %6608 = vmatpush1.msra.mxu0 %v6585
      %6609 = vmatprep.subr.mxu0 0.0
      %6610 = vmatpush1.msra.mxu0 %v6586
      %6611 = vmatprep.subr.mxu0 0.0
      %6612 = vmatpush1.msra.mxu0 %v6587
      %6613 = vmatprep.subr.mxu0 0.0
      %6614 = vmatpush1.msra.mxu0 %v6588
      %6615 = vmatprep.subr.mxu0 0.0
      %6616 = vmatpush1.msra.mxu0 %v6589
      %6617 = vmatprep.subr.mxu0 0.0
      %6618 = vmatpush1.msra.mxu0 %v6590
      %6619 = vmatprep.subr.mxu0 0.0
      %6620 = vmatpush1.msra.mxu0 %v6591
      %6621 = vmatprep.subr.mxu0 0.0
      %6622 = vmatpush1.msra.mxu0 %v6592
      %6623 = vmatprep.subr.mxu0 0.0
      %6624 = vmatpush1.msra.mxu0 %v6593
      %6625 = vmatprep.subr.mxu0 0.0
      %6626 = vmatpush1.msra.mxu0 %v6594
      %6627 = vmatprep.subr.mxu0 0.0
      %6628 = vmatpush1.msra.mxu0 0.0
      %6629 = vmatprep.subr.mxu0 0.0
      %6630 = vmatpush1.msra.mxu0 0.0
      %6631 = vmatprep.subr.mxu0 0.0
      %6632 = vmatpush1.msra.mxu0 0.0
      %6633 = vmatprep.subr.mxu0 0.0
      %6634 = vmatpush1.msra.mxu0 0.0
      %6635 = vmatprep.subr.mxu0 0.0
      %6636 = vmatpush1.msra.mxu0 0.0
      %6637 = vmatprep.subr.mxu0 0.0
      %6638 = vmatpush1.msra.mxu0 0.0
      %6639 = vmatprep.subr.mxu0 0.0
      %6640 = vmatpush1.msra.mxu0 0.0
      %6641 = vmatprep.subr.mxu0 0.0
      %6642 = vmatpush1.msra.mxu0 0.0
      %6643 = vmatprep.subr.mxu0 0.0
      %6644 = vmatpush1.msra.mxu0 0.0
      %6645 = vmatprep.subr.mxu0 0.0
      %6646 = vmatpush1.msra.mxu0 0.0
      %6647 = vmatprep.subr.mxu0 0.0
      %6648 = vmatpush1.msra.mxu0 0.0
      %6649 = vmatprep.subr.mxu0 0.0
      %6650 = vmatpush1.msra.mxu0 0.0
      %6651 = vmatprep.subr.mxu0 0.0
      %6652 = vmatpush1.msra.mxu0 0.0
      %6653 = vmatprep.subr.mxu0 0.0
      %6654 = vmatpush1.msra.mxu0 0.0
      %6655 = vmatprep.subr.mxu0 0.0
      %6656 = vmatpush1.msra.mxu0 0.0
      %6657 = vmatprep.subr.mxu0 0.0
      %6658 = vmatpush1.msra.mxu0 0.0
      %6659 = vmatprep.mubr.f32.mxu0 0.0
      %6660 = vmatmul.mubr.f32.gmra.mrb[0].mxu0 %v6546
      %v6661 = vpop.f32.mrb[0].mxu0
      %v6662 = vadd.f32 0.0, %v6661
      %v6663 = vpop.f32.mrb[0].mxu0
      %6664 = vmatprep.mubr.f32.mxu0 0.0
      %6665 = vmatmul.mubr.f32.gmra.mrb[0].mxu0 %v6547
      %v6666 = vpop.f32.mrb[0].mxu0
      %v6667 = vadd.f32 0.0, %v6666
      %v6668 = vpop.f32.mrb[0].mxu0
      %6669 = vmatprep.mubr.f32.mxu0 0.0
      %6670 = vmatmul.mubr.f32.gmra.mrb[0].mxu0 %v6548
      %v6671 = vpop.f32.mrb[0].mxu0
      %v6672 = vadd.f32 0.0, %v6671
      %v6673 = vpop.f32.mrb[0].mxu0
      %6674 = vmatprep.mubr.f32.mxu0 0.0
      %6675 = vmatmul.mubr.f32.gmra.mrb[0].mxu0 %v6549
      %v6676 = vpop.f32.mrb[0].mxu0
      %v6677 = vadd.f32 0.0, %v6676
      %v6678 = vpop.f32.mrb[0].mxu0
      %6679 = vmatprep.mubr.f32.mxu0 0.0
      %6680 = vmatmul.mubr.f32.gmra.mrb[0].mxu0 %v6550
      %v6681 = vpop.f32.mrb[0].mxu0
      %v6682 = vadd.f32 0.0, %v6681
      %v6683 = vpop.f32.mrb[0].mxu0
      %6684 = vmatprep.mubr.f32.mxu0 0.0
      %6685 = vmatmul.mubr.f32.gmra.mrb[0].mxu0 %v6551
      %v6686 = vpop.f32.mrb[0].mxu0
      %v6687 = vadd.f32 0.0, %v6686
      %v6688 = vpop.f32.mrb[0].mxu0
      %6689 = vmatprep.mubr.f32.mxu0 0.0
      %6690 = vmatmul.mubr.f32.gmra.mrb[0].mxu0 %v6552
      %v6691 = vpop.f32.mrb[0].mxu0
      %v6692 = vadd.f32 0.0, %v6691
      %v6693 = vpop.f32.mrb[0].mxu0
      %6694 = vmatprep.mubr.f32.mxu0 0.0
      %6695 = vmatmul.mubr.f32.gmra.mrb[0].mxu0 %v6553
      %v6696 = vpop.f32.mrb[0].mxu0
      %v6697 = vadd.f32 0.0, %v6696
      %v6698 = vpop.f32.mrb[0].mxu0
      %6699 = vmatprep.mubr.f32.mxu0 0.0
      %6700 = vmatmul.mubr.f32.gmra.mrb[0].mxu0 %v6554
      %v6701 = vpop.f32.mrb[0].mxu0
      %v6702 = vadd.f32 0.0, %v6701
      %v6703 = vpop.f32.mrb[0].mxu0
      %6704 = vmatprep.mubr.f32.mxu0 0.0
      %6705 = vmatmul.mubr.f32.gmra.mrb[0].mxu0 %v6555
      %v6706 = vpop.f32.mrb[0].mxu0
      %v6707 = vadd.f32 0.0, %v6706
      %v6708 = vpop.f32.mrb[0].mxu0
      %6709 = vmatprep.mubr.f32.mxu0 0.0
      %6710 = vmatmul.mubr.f32.gmra.mrb[0].mxu0 %v6556
      %v6711 = vpop.f32.mrb[0].mxu0
      %v6712 = vadd.f32 0.0, %v6711
      %v6713 = vpop.f32.mrb[0].mxu0
      %6714 = vmatprep.mubr.f32.mxu0 0.0
      %6715 = vmatmul.mubr.f32.gmra.mrb[0].mxu0 %v6557
      %v6716 = vpop.f32.mrb[0].mxu0
      %v6717 = vadd.f32 0.0, %v6716
      %v6718 = vpop.f32.mrb[0].mxu0
      %6719 = vmatprep.mubr.f32.mxu0 0.0
      %6720 = vmatmul.mubr.f32.gmra.mrb[0].mxu0 %v6558
      %v6721 = vpop.f32.mrb[0].mxu0
      %v6722 = vadd.f32 0.0, %v6721
      %v6723 = vpop.f32.mrb[0].mxu0
      %6724 = vmatprep.mubr.f32.mxu0 0.0
      %6725 = vmatmul.mubr.f32.gmra.mrb[0].mxu0 %v6559
      %v6726 = vpop.f32.mrb[0].mxu0
      %v6727 = vadd.f32 0.0, %v6726
      %v6728 = vpop.f32.mrb[0].mxu0
      %6729 = vmatprep.mubr.f32.mxu0 0.0
      %6730 = vmatmul.mubr.f32.gmra.mrb[0].mxu0 %v6560
      %v6731 = vpop.f32.mrb[0].mxu0
      %v6732 = vadd.f32 0.0, %v6731
      %v6733 = vpop.f32.mrb[0].mxu0
      %6734 = vmatprep.mubr.f32.mxu0 0.0
      %6735 = vmatmul.mubr.f32.gmra.mrb[0].mxu0 %v6561
      %v6736 = vpop.f32.mrb[0].mxu0
      %v6737 = vadd.f32 0.0, %v6736
      %v6738 = vpop.f32.mrb[0].mxu0
      %6739 = vmatprep.mubr.f32.mxu0 0.0
      %6740 = vmatmul.mubr.f32.gmra.mrb[0].mxu0 %v6562
      %v6741 = vpop.f32.mrb[0].mxu0
      %v6742 = vadd.f32 0.0, %v6741
      %v6743 = vpop.f32.mrb[0].mxu0
      %6744 = vmatprep.mubr.f32.mxu0 0.0
      %6745 = vmatmul.mubr.f32.gmra.mrb[0].mxu0 %v6563
      %v6746 = vpop.f32.mrb[0].mxu0
      %v6747 = vadd.f32 0.0, %v6746
      %v6748 = vpop.f32.mrb[0].mxu0
      %6749 = vmatprep.mubr.f32.mxu0 0.0
      %6750 = vmatmul.mubr.f32.gmra.mrb[0].mxu0 %v6564
      %v6751 = vpop.f32.mrb[0].mxu0
      %v6752 = vadd.f32 0.0, %v6751
      %v6753 = vpop.f32.mrb[0].mxu0
      %6754 = vmatprep.mubr.f32.mxu0 0.0
      %6755 = vmatmul.mubr.f32.gmra.mrb[0].mxu0 %v6565
      %v6756 = vpop.f32.mrb[0].mxu0
      %v6757 = vadd.f32 0.0, %v6756
      %v6758 = vpop.f32.mrb[0].mxu0
      %6759 = vmatprep.mubr.f32.mxu0 0.0
      %6760 = vmatmul.mubr.f32.gmra.mrb[0].mxu0 %v6566
      %v6761 = vpop.f32.mrb[0].mxu0
      %v6762 = vadd.f32 0.0, %v6761
      %v6763 = vpop.f32.mrb[0].mxu0
      %6764 = vmatprep.mubr.f32.mxu0 0.0
      %6765 = vmatmul.mubr.f32.gmra.mrb[0].mxu0 %v6567
      %v6766 = vpop.f32.mrb[0].mxu0
      %v6767 = vadd.f32 0.0, %v6766
      %v6768 = vpop.f32.mrb[0].mxu0
      %6769 = vmatprep.mubr.f32.mxu0 0.0
      %6770 = vmatmul.mubr.f32.gmra.mrb[0].mxu0 %v6568
      %v6771 = vpop.f32.mrb[0].mxu0
      %v6772 = vadd.f32 0.0, %v6771
      %v6773 = vpop.f32.mrb[0].mxu0
      %6774 = vmatprep.mubr.f32.mxu0 0.0
      %6775 = vmatmul.mubr.f32.gmra.mrb[0].mxu0 %v6569
      %v6776 = vpop.f32.mrb[0].mxu0
      %v6777 = vadd.f32 0.0, %v6776
      %v6778 = vpop.f32.mrb[0].mxu0
      %6779 = vmatprep.mubr.f32.mxu0 0.0
      %6780 = vmatmul.mubr.f32.gmra.mrb[0].mxu0 %v6570
      %v6781 = vpop.f32.mrb[0].mxu0
      %v6782 = vadd.f32 0.0, %v6781
      %v6783 = vpop.f32.mrb[0].mxu0
      %6784 = vmatprep.mubr.f32.mxu0 0.0
      %6785 = vmatmul.mubr.f32.gmra.mrb[0].mxu0 %v6571
      %v6786 = vpop.f32.mrb[0].mxu0
      %v6787 = vadd.f32 0.0, %v6786
      %v6788 = vpop.f32.mrb[0].mxu0
      %6789 = vmatprep.mubr.f32.mxu0 0.0
      %6790 = vmatmul.mubr.f32.gmra.mrb[0].mxu0 %v6572
      %v6791 = vpop.f32.mrb[0].mxu0
      %v6792 = vadd.f32 0.0, %v6791
      %v6793 = vpop.f32.mrb[0].mxu0
      %6794 = vmatprep.mubr.f32.mxu0 0.0
      %6795 = vmatmul.mubr.f32.gmra.mrb[0].mxu0 %v6573
      %v6796 = vpop.f32.mrb[0].mxu0
      %v6797 = vadd.f32 0.0, %v6796
      %v6798 = vpop.f32.mrb[0].mxu0
      %6799 = vmatprep.mubr.f32.mxu0 0.0
      %6800 = vmatmul.mubr.f32.gmra.mrb[0].mxu0 %v6574
      %v6801 = vpop.f32.mrb[0].mxu0
      %v6802 = vadd.f32 0.0, %v6801
      %v6803 = vpop.f32.mrb[0].mxu0
      %6804 = vmatprep.mubr.f32.mxu0 0.0
      %6805 = vmatmul.mubr.f32.gmra.mrb[0].mxu0 %v6575
      %v6806 = vpop.f32.mrb[0].mxu0
      %v6807 = vadd.f32 0.0, %v6806
      %v6808 = vpop.f32.mrb[0].mxu0
      %6809 = vmatprep.mubr.f32.mxu0 0.0
      %6810 = vmatmul.mubr.f32.gmra.mrb[0].mxu0 %v6576
      %v6811 = vpop.f32.mrb[0].mxu0
      %v6812 = vadd.f32 0.0, %v6811
      %v6813 = vpop.f32.mrb[0].mxu0
      %6814 = vmatprep.mubr.f32.mxu0 0.0
      %6815 = vmatmul.mubr.f32.gmra.mrb[0].mxu0 %v6577
      %v6816 = vpop.f32.mrb[0].mxu0
      %v6817 = vadd.f32 0.0, %v6816
      %v6818 = vpop.f32.mrb[0].mxu0
      %6819 = vdwg.mxu0
      %v6820 = vadd.f32 %v6514, %v6662
      %v6821 = vadd.f32 %v6515, %v6667
      %v6822 = vadd.f32 %v6516, %v6672
      %v6823 = vadd.f32 %v6517, %v6677
      %v6824 = vadd.f32 %v6518, %v6682
      %v6825 = vadd.f32 %v6519, %v6687
      %v6826 = vadd.f32 %v6520, %v6692
      %v6827 = vadd.f32 %v6521, %v6697
      %v6828 = vadd.f32 %v6522, %v6702
      %v6829 = vadd.f32 %v6523, %v6707
      %v6830 = vadd.f32 %v6524, %v6712
      %v6831 = vadd.f32 %v6525, %v6717
      %v6832 = vadd.f32 %v6526, %v6722
      %v6833 = vadd.f32 %v6527, %v6727
      %v6834 = vadd.f32 %v6528, %v6732
      %v6835 = vadd.f32 %v6529, %v6737
      %v6836 = vadd.f32 %v6530, %v6742
      %v6837 = vadd.f32 %v6531, %v6747
      %v6838 = vadd.f32 %v6532, %v6752
      %v6839 = vadd.f32 %v6533, %v6757
      %v6840 = vadd.f32 %v6534, %v6762
      %v6841 = vadd.f32 %v6535, %v6767
      %v6842 = vadd.f32 %v6536, %v6772
      %v6843 = vadd.f32 %v6537, %v6777
      %v6844 = vadd.f32 %v6538, %v6782
      %v6845 = vadd.f32 %v6539, %v6787
      %v6846 = vadd.f32 %v6540, %v6792
      %v6847 = vadd.f32 %v6541, %v6797
      %v6848 = vadd.f32 %v6542, %v6802
      %v6849 = vadd.f32 %v6543, %v6807
      %v6850 = vadd.f32 %v6544, %v6812
      %v6851 = vadd.f32 %v6545, %v6817
      %v6852 = vld [vmem:[%s3 + $0x1] sm:$0x1]
      %v6853 = vlaneseq
      %v6854 = vshrl.u32 %v6853, 7
      %v6855 = vsub.s32 0, %v6854
      %v6856 = vrot.slane %v6852, %v6855
      %v6857 = vadd.f32 %v6820, %v6856
      %v6858 = vadd.f32 %v6821, %v6856
      %v6859 = vadd.f32 %v6822, %v6856
      %v6860 = vadd.f32 %v6823, %v6856
      %v6861 = vadd.f32 %v6824, %v6856
      %v6862 = vadd.f32 %v6825, %v6856
      %v6863 = vadd.f32 %v6826, %v6856
      %v6864 = vadd.f32 %v6827, %v6856
      %v6865 = vadd.f32 %v6828, %v6856
      %v6866 = vadd.f32 %v6829, %v6856
      %v6867 = vadd.f32 %v6830, %v6856
      %v6868 = vadd.f32 %v6831, %v6856
      %v6869 = vadd.f32 %v6832, %v6856
      %v6870 = vadd.f32 %v6833, %v6856
      %v6871 = vadd.f32 %v6834, %v6856
      %v6872 = vadd.f32 %v6835, %v6856
      %v6873 = vadd.f32 %v6836, %v6856
      %v6874 = vadd.f32 %v6837, %v6856
      %v6875 = vadd.f32 %v6838, %v6856
      %v6876 = vadd.f32 %v6839, %v6856
      %v6877 = vadd.f32 %v6840, %v6856
      %v6878 = vadd.f32 %v6841, %v6856
      %v6879 = vadd.f32 %v6842, %v6856
      %v6880 = vadd.f32 %v6843, %v6856
      %v6881 = vadd.f32 %v6844, %v6856
      %v6882 = vadd.f32 %v6845, %v6856
      %v6883 = vadd.f32 %v6846, %v6856
      %v6884 = vadd.f32 %v6847, %v6856
      %v6885 = vadd.f32 %v6848, %v6856
      %v6886 = vadd.f32 %v6849, %v6856
      %v6887 = vadd.f32 %v6850, %v6856
      %v6888 = vadd.f32 %v6851, %v6856
      %v6889 = vmax.f32 %v6857, 0.0
      %v6890 = vmax.f32 %v6858, 0.0
      %v6891 = vmax.f32 %v6859, 0.0
      %v6892 = vmax.f32 %v6860, 0.0
      %v6893 = vmax.f32 %v6861, 0.0
      %v6894 = vmax.f32 %v6862, 0.0
      %v6895 = vmax.f32 %v6863, 0.0
      %v6896 = vmax.f32 %v6864, 0.0
      %v6897 = vmax.f32 %v6865, 0.0
      %v6898 = vmax.f32 %v6866, 0.0
      %v6899 = vmax.f32 %v6867, 0.0
      %v6900 = vmax.f32 %v6868, 0.0
      %v6901 = vmax.f32 %v6869, 0.0
      %v6902 = vmax.f32 %v6870, 0.0
      %v6903 = vmax.f32 %v6871, 0.0
      %v6904 = vmax.f32 %v6872, 0.0
      %v6905 = vmax.f32 %v6873, 0.0
      %v6906 = vmax.f32 %v6874, 0.0
      %v6907 = vmax.f32 %v6875, 0.0
      %v6908 = vmax.f32 %v6876, 0.0
      %v6909 = vmax.f32 %v6877, 0.0
      %v6910 = vmax.f32 %v6878, 0.0
      %v6911 = vmax.f32 %v6879, 0.0
      %v6912 = vmax.f32 %v6880, 0.0
      %v6913 = vmax.f32 %v6881, 0.0
      %v6914 = vmax.f32 %v6882, 0.0
      %v6915 = vmax.f32 %v6883, 0.0
      %v6916 = vmax.f32 %v6884, 0.0
      %v6917 = vmax.f32 %v6885, 0.0
      %v6918 = vmax.f32 %v6886, 0.0
      %v6919 = vmax.f32 %v6887, 0.0
      %v6920 = vmax.f32 %v6888, 0.0
      %6921 = vst.msk [vmem:[%s228] sm:$0xff] %vm341, %v6889
      %6922 = vst.msk [vmem:[%s228 + $0x8] sm:$0xff] %vm341, %v6890
      %6923 = vst.msk [vmem:[%s228 + $0x10] sm:$0xff] %vm341, %v6891
      %6924 = vst.msk [vmem:[%s228 + $0x18] sm:$0xff] %vm341, %v6892
      %6925 = vst.msk [vmem:[%s228 + $0x20] sm:$0xff] %vm341, %v6893
      %6926 = vst.msk [vmem:[%s228 + $0x28] sm:$0xff] %vm341, %v6894
      %6927 = vst.msk [vmem:[%s228 + $0x30] sm:$0xff] %vm341, %v6895
      %6928 = vst.msk [vmem:[%s228 + $0x38] sm:$0xff] %vm341, %v6896
      %6929 = vst.msk [vmem:[%s228 + $0x40] sm:$0xff] %vm341, %v6897
      %6930 = vst.msk [vmem:[%s228 + $0x48] sm:$0xff] %vm341, %v6898
      %6931 = vst.msk [vmem:[%s228 + $0x50] sm:$0xff] %vm341, %v6899
      %6932 = vst.msk [vmem:[%s228 + $0x58] sm:$0xff] %vm341, %v6900
      %6933 = vst.msk [vmem:[%s228 + $0x60] sm:$0xff] %vm341, %v6901
      %6934 = vst.msk [vmem:[%s228 + $0x68] sm:$0xff] %vm341, %v6902
      %6935 = vst.msk [vmem:[%s228 + $0x70] sm:$0xff] %vm341, %v6903
      %6936 = vst.msk [vmem:[%s228 + $0x78] sm:$0xff] %vm341, %v6904
      %6937 = vst.msk [vmem:[%s228 + $0x80] sm:$0xff] %vm341, %v6905
      %6938 = vst.msk [vmem:[%s228 + $0x88] sm:$0xff] %vm341, %v6906
      %6939 = vst.msk [vmem:[%s228 + $0x90] sm:$0xff] %vm341, %v6907
      %6940 = vst.msk [vmem:[%s228 + $0x98] sm:$0xff] %vm341, %v6908
      %6941 = vst.msk [vmem:[%s228 + $0xa0] sm:$0xff] %vm341, %v6909
      %6942 = vst.msk [vmem:[%s228 + $0xa8] sm:$0xff] %vm341, %v6910
      %6943 = vst.msk [vmem:[%s228 + $0xb0] sm:$0xff] %vm341, %v6911
      %6944 = vst.msk [vmem:[%s228 + $0xb8] sm:$0xff] %vm341, %v6912
      %6945 = vst.msk [vmem:[%s228 + $0xc0] sm:$0xff] %vm341, %v6913
      %6946 = vst.msk [vmem:[%s228 + $0xc8] sm:$0xff] %vm341, %v6914
      %6947 = vst.msk [vmem:[%s228 + $0xd0] sm:$0xff] %vm341, %v6915
      %6948 = vst.msk [vmem:[%s228 + $0xd8] sm:$0xff] %vm341, %v6916
      %6949 = vst.msk [vmem:[%s228 + $0xe0] sm:$0xff] %vm341, %v6917
      %6950 = vst.msk [vmem:[%s228 + $0xe8] sm:$0xff] %vm341, %v6918
      %6951 = vst.msk [vmem:[%s228 + $0xf0] sm:$0xff] %vm341, %v6919
      %6952 = vst.msk [vmem:[%s228 + $0xf8] sm:$0xff] %vm341, %v6920
      %s6953 = smul.u32 16, %s20
      %p6954 = scmp.lt.s32.totalorder %s19, 1
      %s6955 = scalar_select %p6954, %s19, 1
      %p6956 = scmp.lt.s32.totalorder %s6953, 15
      %s6957 = scalar_select %p6956, %s6953, 15
      %s6958 = smul.addr %s6957, 2
      %s6959 = smul.addr %s6955, 32
      %s6960 = sadd.s32 %s6958, %s6959
      %s6961 = smul.addr %s6960, 8
      %s6962 = scalar_lea.vmem %s4, %s6961
      // Predicated region
      $region41: #{tpu_custom_call.1} parent=35 // pred_check
        %p6963 = pneg %p138
      $region42: #{tpu_custom_call.1} parent=35 // pred_check_branch
        %6965 = sbr.rel (%p6963) target = $region44
      $region43: #{tpu_custom_call.1} parent=35 // pred_region
        %s6966 = smul.u32 16, %s20
      $region44: #{tpu_custom_call.1} parent=35 // pred_fallthru
        _
    $region36: #{tpu_custom_call.1} parent=5 // pred_fallthru
      _
    %p6967 = scmp.le.s32.totalorder 2, %s10
    // Predicated region
    $region45: #{tpu_custom_call.1} parent=5 // pred_check
      %p6968 = pneg %p6967
    $region46: #{tpu_custom_call.1} parent=5 // pred_check_branch
      %6970 = sbr.rel (%p6968) target = $region48
    $region47: #{tpu_custom_call.1} parent=5 // pred_region
      %s6971 = ssub.s32 %s10, 2
      // Predicated region
      $region49: #{tpu_custom_call.1} parent=47 // pred_check
        %p6972 = pneg %p144
      $region50: #{tpu_custom_call.1} parent=47 // pred_check_branch
        %6974 = sbr.rel (%p6972) target = $region52
      $region51: #{tpu_custom_call.1} parent=47 // pred_region
        %s6975 = smul.u32 16, %s22
        %p6976 = scmp.lt.s32.totalorder %s21, 1
        %s6977 = scalar_select %p6976, %s21, 1
        %p6978 = scmp.lt.s32.totalorder %s6975, 15
        %s6979 = scalar_select %p6978, %s6975, 15
        %s6980 = smul.addr %s6979, 2
        %s6981 = smul.addr %s6977, 32
        %s6982 = sadd.s32 %s6980, %s6981
        %s6983 = smul.addr %s6982, 8
        %s6984 = scalar_lea.vmem %s4, %s6983
      $region52: #{tpu_custom_call.1} parent=47 // pred_fallthru
        _
    $region48: #{tpu_custom_call.1} parent=5 // pred_fallthru
      _
  $region6: #{tpu_custom_call.1} parent=0 // loop_footer
    %s14 = sadd.s32 1, %s10
  $region7: #{tpu_custom_call.1} parent=0 // loop_footer_branch
    %9 = sbr.rel target = $region3
  $region8: #{tpu_custom_call.1} parent=0 // loop_exit
    _

</llo_original>
